<compile_context>
chip_gen: v5e
topology: v5e:2x2
jax: 0.10.0
libtpu: 0.0.40
codegen_flags: <defaults>
</compile_context>

<pallas_src>
import jax
import jax.numpy as jnp
from jax.experimental import pallas as pl
from jax.experimental.pallas import tpu as pltpu

_BIG = 1e30  # "no edge" penalty; >> any real activation, exact in f32 and bf16


def _round_up(a, b):
    return (a + b - 1) // b * b


def _pick_t_dst(n):
    """Largest of {128, 192, 256} dividing round_up(n, 128); prefer an even
    number of dst blocks (v7x has 2 TensorCores sharing the parallel axis)."""
    base = _round_up(n, 128)
    cands = [t for t in (128, 192, 256) if base % t == 0]
    return max(cands, key=lambda t: ((base // t) % 2 == 0, t))


def _mrconv_kernel(x_dst_ref, xt_ref, adj_ref, w1_ref, w2_ref, b_ref, o_ref,
                   pen_ref, min_ref):
    """One dst block: masked min over all src, then the split Linear + ReLU.

    x_dst_ref : (t_dst, C)     f32      destination-node features
    xt_ref    : (C, Ns)        f32/bf16 transposed source features (resident)
    adj_ref   : (t_dst, Ns)    int8     adjacency rows, adj[dst, src] != 0 => edge
    w1_ref    : (C, Coutp)     bf16     Linear weight rows acting on x
    w2_ref    : (C, Coutp)     bf16     Linear weight rows acting on max_diff
    b_ref     : (1, Coutp)     f32      bias (zero-padded)
    o_ref     : (t_dst, Coutp)          output block
    pen_ref   : (t_dst, Ns)    agg      scratch: 0 where edge, BIG where not
    min_ref   : (t_dst, C)     f32      scratch: per-channel min over in-neighbours
    """
    agg_dt = pen_ref.dtype
    big = jnp.asarray(_BIG, agg_dt)

    # ---- edge-penalty tile, built once per dst block (covers src padding) ----
    adj_f = adj_ref[...].astype(jnp.float32)
    pen_ref[...] = jnp.where(adj_f > 0.0, jnp.asarray(0.0, agg_dt), big)

    # ---- per-channel masked min:  min_s (x[s, c] + pen[d, s]) ----------------
    # One VPU add + one lane-min per channel; each (t_dst, 1) result goes
    # straight to its scratch column, so only one narrow temp is live at a time.
    # TODO(synk): for very wide blocks (C >= 256) switch to a bounded-unroll
    # fori_loop writing through a dynamic pl.ds column to keep code size flat.
    n_ch = xt_ref.shape[0]
    for ch in range(n_ch):
        masked = xt_ref[ch:ch + 1, :] + pen_ref[...]           # (t_dst, Ns)
        min_ref[:, ch:ch + 1] = jnp.min(
            masked, axis=1, keepdims=True).astype(jnp.float32)

    # ---- finalize: max-relative diff + split Linear + bias + ReLU ------------
    deg_pen = jnp.min(pen_ref[...], axis=1, keepdims=True)     # 0 iff any neighbour
    has_nbr = deg_pen < big                                    # exact degree test
    x_d = x_dst_ref[...].astype(jnp.float32)
    max_diff = jnp.where(has_nbr, x_d - min_ref[...], 0.0)     # zero in-degree -> 0
    h = jnp.dot(x_d.astype(w1_ref.dtype), w1_ref[...],
                preferred_element_type=jnp.float32)
    h = h + jnp.dot(max_diff.astype(w2_ref.dtype), w2_ref[...],
                    preferred_element_type=jnp.float32)
    h = h + b_ref[...]
    o_ref[...] = jnp.maximum(h, 0.0).astype(o_ref.dtype)


def mrconv(x, adj, weight, bias, *, t_dst=None,
           agg_dtype=jnp.float32, mxu_dtype=jnp.bfloat16):
    """relu(Linear(concat([x, max_relative_diff], -1))) with a dense adjacency.

    x        : (N, C)       node features
    adj      : (N, N)       adjacency, adj[dst, src] != 0  <=>  edge src -> dst
    weight   : (2*C, Cout)  Linear weight (in x out layout)
    bias     : (Cout,)
    agg_dtype: dtype of the masked-min aggregation (f32 default; bf16 is a
               v6e/v7x option — v5e has no bf16 VALU, keep f32 there)
    """
    n, c = x.shape
    k2, cout = weight.shape
    assert k2 == 2 * c, "Linear expects in_channels * 2 input features"
    assert c % 8 == 0, "in_channels must be a multiple of 8"

    if t_dst is None:
        t_dst = _pick_t_dst(n)
    assert t_dst % 8 == 0
    nd_pad = _round_up(n, t_dst)          # dst padding, independent of src
    ns_pad = _round_up(n, 128)            # src padding (lane axis of adj / x.T)
    coutp = _round_up(cout, 128)          # lane-dense output stores

    xf = x.astype(jnp.float32)
    x_dst = jnp.pad(xf, ((0, nd_pad - n), (0, 0))) if nd_pad > n else xf
    x_src = jnp.pad(xf, ((0, ns_pad - n), (0, 0))) if ns_pad > n else xf
    x_srcT = x_src.T.astype(agg_dtype)                         # (C, ns_pad)

    # adjacency stays int8 end-to-end; only normalize if the caller gave floats
    adj_i8 = adj if adj.dtype == jnp.int8 else (adj != 0).astype(jnp.int8)
    adj_i8 = jnp.pad(adj_i8, ((0, nd_pad - n), (0, ns_pad - n)))

    w1 = jnp.zeros((c, coutp), jnp.float32).at[:, :cout].set(
        weight[:c].astype(jnp.float32)).astype(mxu_dtype)
    w2 = jnp.zeros((c, coutp), jnp.float32).at[:, :cout].set(
        weight[c:].astype(jnp.float32)).astype(mxu_dtype)
    b_pad = jnp.zeros((1, coutp), jnp.float32).at[0, :cout].set(
        bias.astype(jnp.float32))

    grid = (nd_pad // t_dst,)
    out = pl.pallas_call(
        _mrconv_kernel,
        out_shape=jax.ShapeDtypeStruct((nd_pad, coutp), x.dtype),
        grid_spec=pltpu.PrefetchScalarGridSpec(
            num_scalar_prefetch=0,
            grid=grid,
            in_specs=[
                pl.BlockSpec((t_dst, c), lambda i: (i, 0)),        # dst rows
                pl.BlockSpec((c, ns_pad), lambda i: (0, 0)),       # x.T (resident)
                pl.BlockSpec((t_dst, ns_pad), lambda i: (i, 0)),   # adjacency rows
                pl.BlockSpec((c, coutp), lambda i: (0, 0)),        # W[:C]  (resident)
                pl.BlockSpec((c, coutp), lambda i: (0, 0)),        # W[C:]  (resident)
                pl.BlockSpec((1, coutp), lambda i: (0, 0)),        # bias   (resident)
            ],
            out_specs=pl.BlockSpec((t_dst, coutp), lambda i: (i, 0)),
            scratch_shapes=[
                pltpu.VMEM((t_dst, ns_pad), agg_dtype),            # edge penalty
                pltpu.VMEM((t_dst, c), jnp.float32),               # per-channel mins
            ],
        ),
        compiler_params=pltpu.CompilerParams(
            dimension_semantics=("parallel",),
        ),
    )(x_dst, x_srcT, adj_i8, w1, w2, b_pad)
    return out[:n, :cout]


def mrconv_ref(x, adj, weight, bias, mxu_dtype=jnp.float32):
    """Pure-JAX reference mirroring the DGL/PyTorch MRConv semantics."""
    big = jnp.float32(_BIG)
    masked = jnp.where(adj[:, :, None] != 0, x[None, :, :].astype(jnp.float32), big)
    min_nbr = jnp.min(masked, axis=1)
    deg = jnp.sum((adj != 0).astype(jnp.int32), axis=1, keepdims=True)
    max_diff = jnp.where(deg > 0, x - min_nbr, 0.0)
    cat = jnp.concatenate([x, max_diff], axis=1)
    h = jnp.dot(cat.astype(mxu_dtype).astype(jnp.float32),
                weight.astype(mxu_dtype).astype(jnp.float32)) + bias[None, :]
    return jax.nn.relu(h)


if __name__ == "__main__":
    key = jax.random.PRNGKey(0)
    k_x, k_adj, k_w, k_b = jax.random.split(key, 4)

    # GrapherDGL(conv='mr', in_channels=32) -> MRConv(32, 64) on the flattened
    # (batch * num_nodes, C) node set; small demo: 2 graphs x 128 nodes.
    N, C_IN = 256, 32
    C_OUT = 2 * C_IN

    x = jax.random.normal(k_x, (N, C_IN), dtype=jnp.float32)
    # random directed graph, ~8% density (adj[dst, src] = 1 means edge src->dst),
    # built as int8 at the source (no N^2 float conversion pass)
    adj = (jax.random.uniform(k_adj, (N, N)) < 0.08).astype(jnp.int8)
    adj = adj.at[5, :].set(0)            # a zero in-degree node (zero-fill path)

    # deterministic Linear(2*C_IN, C_OUT, bias=True) parameters (synthetic init)
    weight = jax.random.normal(k_w, (2 * C_IN, C_OUT), dtype=jnp.float32) * 0.05
    bias = jax.random.normal(k_b, (C_OUT,), dtype=jnp.float32) * 0.05

    out = jax.block_until_ready(mrconv(x, adj, weight, bias))
    assert out.shape == (N, C_OUT)

    # Reference with the same bf16 rounding on the matmul inputs (the only
    # intended deviation from the f32 PyTorch module) -> tight tolerance.
    ref_bf16 = mrconv_ref(x, adj, weight, bias, mxu_dtype=jnp.bfloat16)
    assert jnp.allclose(out, ref_bf16, atol=2e-3, rtol=2e-3), \
        "Pallas output mismatch vs bf16-matched reference"

    # Full-f32 PyTorch-semantics reference -> loose tolerance (bf16 MXU inputs).
    ref_f32 = mrconv_ref(x, adj, weight, bias, mxu_dtype=jnp.float32)
    assert jnp.allclose(out, ref_f32, atol=1e-1, rtol=1e-1), \
        "Pallas output mismatch vs f32 reference"

    print("KERNEL_OK")
</pallas_src>

<mosaic_0001>
module attributes {stable_mosaic.version = 11 : i64} {
  func.func @_mrconv_kernel(%arg0: i32, %arg1: memref<128x32xf32, #tpu.memory_space<vmem>>, %arg2: memref<32x256xf32, #tpu.memory_space<vmem>>, %arg3: memref<128x256xi8, #tpu.memory_space<vmem>>, %arg4: memref<32x128xbf16, #tpu.memory_space<vmem>>, %arg5: memref<32x128xbf16, #tpu.memory_space<vmem>>, %arg6: memref<1x128xf32, #tpu.memory_space<vmem>>, %arg7: memref<128x128xf32, #tpu.memory_space<vmem>>, %arg8: memref<128x256xf32, #tpu.memory_space<vmem>>, %arg9: memref<128x32xf32, #tpu.memory_space<vmem>>) attributes {dimension_semantics = [#tpu.dimension_semantics<parallel>], iteration_bounds = array<i64: 2>, scalar_prefetch = 0 : i64, scratch_operands = 2 : i64, tpu.core_type = #tpu.core_type<tc>, window_params = [{transform_indices = @transform_0, window_bounds = array<i64: 128, 32>}, {pipeline_mode = #tpu.pipeline_mode<synchronous>, transform_indices = @transform_1, window_bounds = array<i64: 32, 256>}, {transform_indices = @transform_2, window_bounds = array<i64: 128, 256>}, {pipeline_mode = #tpu.pipeline_mode<synchronous>, transform_indices = @transform_3, window_bounds = array<i64: 32, 128>}, {pipeline_mode = #tpu.pipeline_mode<synchronous>, transform_indices = @transform_4, window_bounds = array<i64: 32, 128>}, {pipeline_mode = #tpu.pipeline_mode<synchronous>, transform_indices = @transform_5, window_bounds = array<i64: 1, 128>}, {transform_indices = @transform_6, window_bounds = array<i64: 128, 128>}]} {
    %c0 = arith.constant 0 : index
    %c0_0 = arith.constant 0 : index
    %0 = vector.load %arg3[%c0, %c0_0] : memref<128x256xi8, #tpu.memory_space<vmem>>, vector<128x256xi8>
    %1 = arith.sitofp %0 : vector<128x256xi8> to vector<128x256xf32>
    %cst = arith.constant 0.000000e+00 : f32
    %2 = vector.broadcast %cst : f32 to vector<128x256xf32>
    %3 = arith.cmpf ogt, %1, %2 : vector<128x256xf32>
    %cst_1 = arith.constant 0.000000e+00 : f32
    %cst_2 = arith.constant 1.000000e+30 : f32
    %4 = vector.broadcast %cst_1 : f32 to vector<128x256xf32>
    %5 = vector.broadcast %cst_2 : f32 to vector<128x256xf32>
    %6 = arith.select %3, %4, %5 : vector<128x256xi1>, vector<128x256xf32>
    %c0_3 = arith.constant 0 : index
    %c0_4 = arith.constant 0 : index
    %7 = vector.load %arg8[%c0_3, %c0_4] : memref<128x256xf32, #tpu.memory_space<vmem>>, vector<128x256xf32>
    tpu.vector_store %arg8[%c0_3, %c0_4], %6 {strides = array<i32>} : memref<128x256xf32, #tpu.memory_space<vmem>>, vector<128x256xf32>,
    %c0_5 = arith.constant 0 : index
    %c0_6 = arith.constant 0 : index
    %8 = vector.load %arg2[%c0_5, %c0_6] : memref<32x256xf32, #tpu.memory_space<vmem>>, vector<1x256xf32>
    %c0_7 = arith.constant 0 : index
    %c0_8 = arith.constant 0 : index
    %9 = vector.load %arg8[%c0_7, %c0_8] : memref<128x256xf32, #tpu.memory_space<vmem>>, vector<128x256xf32>
    %10 = vector.broadcast %8 : vector<1x256xf32> to vector<128x256xf32>
    %11 = arith.addf %10, %9 : vector<128x256xf32>
    %cst_9 = arith.constant dense<0x7F800000> : vector<128xf32>
    %12 = vector.multi_reduction <minimumf>, %11, %cst_9 [1] : vector<128x256xf32> to vector<128xf32>
    %13 = vector.shape_cast %12 : vector<128xf32> to vector<128x1xf32>
    %c0_10 = arith.constant 0 : index
    %c0_11 = arith.constant 0 : index
    %14 = vector.load %arg9[%c0_10, %c0_11] : memref<128x32xf32, #tpu.memory_space<vmem>>, vector<128x1xf32>
    tpu.vector_store %arg9[%c0_10, %c0_11], %13 {strides = array<i32>} : memref<128x32xf32, #tpu.memory_space<vmem>>, vector<128x1xf32>,
    %c1 = arith.constant 1 : index
    %c0_12 = arith.constant 0 : index
    %15 = vector.load %arg2[%c1, %c0_12] : memref<32x256xf32, #tpu.memory_space<vmem>>, vector<1x256xf32>
    %c0_13 = arith.constant 0 : index
    %c0_14 = arith.constant 0 : index
    %16 = vector.load %arg8[%c0_13, %c0_14] : memref<128x256xf32, #tpu.memory_space<vmem>>, vector<128x256xf32>
    %17 = vector.broadcast %15 : vector<1x256xf32> to vector<128x256xf32>
    %18 = arith.addf %17, %16 : vector<128x256xf32>
    %cst_15 = arith.constant dense<0x7F800000> : vector<128xf32>
    %19 = vector.multi_reduction <minimumf>, %18, %cst_15 [1] : vector<128x256xf32> to vector<128xf32>
    %20 = vector.shape_cast %19 : vector<128xf32> to vector<128x1xf32>
    %c0_16 = arith.constant 0 : index
    %c1_17 = arith.constant 1 : index
    %21 = vector.load %arg9[%c0_16, %c1_17] : memref<128x32xf32, #tpu.memory_space<vmem>>, vector<128x1xf32>
    tpu.vector_store %arg9[%c0_16, %c1_17], %20 {strides = array<i32>} : memref<128x32xf32, #tpu.memory_space<vmem>>, vector<128x1xf32>,
    %c2 = arith.constant 2 : index
    %c0_18 = arith.constant 0 : index
    %22 = vector.load %arg2[%c2, %c0_18] : memref<32x256xf32, #tpu.memory_space<vmem>>, vector<1x256xf32>
    %c0_19 = arith.constant 0 : index
    %c0_20 = arith.constant 0 : index
    %23 = vector.load %arg8[%c0_19, %c0_20] : memref<128x256xf32, #tpu.memory_space<vmem>>, vector<128x256xf32>
    %24 = vector.broadcast %22 : vector<1x256xf32> to vector<128x256xf32>
    %25 = arith.addf %24, %23 : vector<128x256xf32>
    %cst_21 = arith.constant dense<0x7F800000> : vector<128xf32>
    %26 = vector.multi_reduction <minimumf>, %25, %cst_21 [1] : vector<128x256xf32> to vector<128xf32>
    %27 = vector.shape_cast %26 : vector<128xf32> to vector<128x1xf32>
    %c0_22 = arith.constant 0 : index
    %c2_23 = arith.constant 2 : index
    %28 = vector.load %arg9[%c0_22, %c2_23] : memref<128x32xf32, #tpu.memory_space<vmem>>, vector<128x1xf32>
    tpu.vector_store %arg9[%c0_22, %c2_23], %27 {strides = array<i32>} : memref<128x32xf32, #tpu.memory_space<vmem>>, vector<128x1xf32>,
    %c3 = arith.constant 3 : index
    %c0_24 = arith.constant 0 : index
    %29 = vector.load %arg2[%c3, %c0_24] : memref<32x256xf32, #tpu.memory_space<vmem>>, vector<1x256xf32>
    %c0_25 = arith.constant 0 : index
    %c0_26 = arith.constant 0 : index
    %30 = vector.load %arg8[%c0_25, %c0_26] : memref<128x256xf32, #tpu.memory_space<vmem>>, vector<128x256xf32>
    %31 = vector.broadcast %29 : vector<1x256xf32> to vector<128x256xf32>
    %32 = arith.addf %31, %30 : vector<128x256xf32>
    %cst_27 = arith.constant dense<0x7F800000> : vector<128xf32>
    %33 = vector.multi_reduction <minimumf>, %32, %cst_27 [1] : vector<128x256xf32> to vector<128xf32>
    %34 = vector.shape_cast %33 : vector<128xf32> to vector<128x1xf32>
    %c0_28 = arith.constant 0 : index
    %c3_29 = arith.constant 3 : index
    %35 = vector.load %arg9[%c0_28, %c3_29] : memref<128x32xf32, #tpu.memory_space<vmem>>, vector<128x1xf32>
    tpu.vector_store %arg9[%c0_28, %c3_29], %34 {strides = array<i32>} : memref<128x32xf32, #tpu.memory_space<vmem>>, vector<128x1xf32>,
    %c4 = arith.constant 4 : index
    %c0_30 = arith.constant 0 : index
    %36 = vector.load %arg2[%c4, %c0_30] : memref<32x256xf32, #tpu.memory_space<vmem>>, vector<1x256xf32>
    %c0_31 = arith.constant 0 : index
    %c0_32 = arith.constant 0 : index
    %37 = vector.load %arg8[%c0_31, %c0_32] : memref<128x256xf32, #tpu.memory_space<vmem>>, vector<128x256xf32>
    %38 = vector.broadcast %36 : vector<1x256xf32> to vector<128x256xf32>
    %39 = arith.addf %38, %37 : vector<128x256xf32>
    %cst_33 = arith.constant dense<0x7F800000> : vector<128xf32>
    %40 = vector.multi_reduction <minimumf>, %39, %cst_33 [1] : vector<128x256xf32> to vector<128xf32>
    %41 = vector.shape_cast %40 : vector<128xf32> to vector<128x1xf32>
    %c0_34 = arith.constant 0 : index
    %c4_35 = arith.constant 4 : index
    %42 = vector.load %arg9[%c0_34, %c4_35] : memref<128x32xf32, #tpu.memory_space<vmem>>, vector<128x1xf32>
    tpu.vector_store %arg9[%c0_34, %c4_35], %41 {strides = array<i32>} : memref<128x32xf32, #tpu.memory_space<vmem>>, vector<128x1xf32>,
    %c5 = arith.constant 5 : index
    %c0_36 = arith.constant 0 : index
    %43 = vector.load %arg2[%c5, %c0_36] : memref<32x256xf32, #tpu.memory_space<vmem>>, vector<1x256xf32>
    %c0_37 = arith.constant 0 : index
    %c0_38 = arith.constant 0 : index
    %44 = vector.load %arg8[%c0_37, %c0_38] : memref<128x256xf32, #tpu.memory_space<vmem>>, vector<128x256xf32>
    %45 = vector.broadcast %43 : vector<1x256xf32> to vector<128x256xf32>
    %46 = arith.addf %45, %44 : vector<128x256xf32>
    %cst_39 = arith.constant dense<0x7F800000> : vector<128xf32>
    %47 = vector.multi_reduction <minimumf>, %46, %cst_39 [1] : vector<128x256xf32> to vector<128xf32>
    %48 = vector.shape_cast %47 : vector<128xf32> to vector<128x1xf32>
    %c0_40 = arith.constant 0 : index
    %c5_41 = arith.constant 5 : index
    %49 = vector.load %arg9[%c0_40, %c5_41] : memref<128x32xf32, #tpu.memory_space<vmem>>, vector<128x1xf32>
    tpu.vector_store %arg9[%c0_40, %c5_41], %48 {strides = array<i32>} : memref<128x32xf32, #tpu.memory_space<vmem>>, vector<128x1xf32>,
    %c6 = arith.constant 6 : index
    %c0_42 = arith.constant 0 : index
    %50 = vector.load %arg2[%c6, %c0_42] : memref<32x256xf32, #tpu.memory_space<vmem>>, vector<1x256xf32>
    %c0_43 = arith.constant 0 : index
    %c0_44 = arith.constant 0 : index
    %51 = vector.load %arg8[%c0_43, %c0_44] : memref<128x256xf32, #tpu.memory_space<vmem>>, vector<128x256xf32>
    %52 = vector.broadcast %50 : vector<1x256xf32> to vector<128x256xf32>
    %53 = arith.addf %52, %51 : vector<128x256xf32>
    %cst_45 = arith.constant dense<0x7F800000> : vector<128xf32>
    %54 = vector.multi_reduction <minimumf>, %53, %cst_45 [1] : vector<128x256xf32> to vector<128xf32>
    %55 = vector.shape_cast %54 : vector<128xf32> to vector<128x1xf32>
    %c0_46 = arith.constant 0 : index
    %c6_47 = arith.constant 6 : index
    %56 = vector.load %arg9[%c0_46, %c6_47] : memref<128x32xf32, #tpu.memory_space<vmem>>, vector<128x1xf32>
    tpu.vector_store %arg9[%c0_46, %c6_47], %55 {strides = array<i32>} : memref<128x32xf32, #tpu.memory_space<vmem>>, vector<128x1xf32>,
    %c7 = arith.constant 7 : index
    %c0_48 = arith.constant 0 : index
    %57 = vector.load %arg2[%c7, %c0_48] : memref<32x256xf32, #tpu.memory_space<vmem>>, vector<1x256xf32>
    %c0_49 = arith.constant 0 : index
    %c0_50 = arith.constant 0 : index
    %58 = vector.load %arg8[%c0_49, %c0_50] : memref<128x256xf32, #tpu.memory_space<vmem>>, vector<128x256xf32>
    %59 = vector.broadcast %57 : vector<1x256xf32> to vector<128x256xf32>
    %60 = arith.addf %59, %58 : vector<128x256xf32>
    %cst_51 = arith.constant dense<0x7F800000> : vector<128xf32>
    %61 = vector.multi_reduction <minimumf>, %60, %cst_51 [1] : vector<128x256xf32> to vector<128xf32>
    %62 = vector.shape_cast %61 : vector<128xf32> to vector<128x1xf32>
    %c0_52 = arith.constant 0 : index
    %c7_53 = arith.constant 7 : index
    %63 = vector.load %arg9[%c0_52, %c7_53] : memref<128x32xf32, #tpu.memory_space<vmem>>, vector<128x1xf32>
    tpu.vector_store %arg9[%c0_52, %c7_53], %62 {strides = array<i32>} : memref<128x32xf32, #tpu.memory_space<vmem>>, vector<128x1xf32>,
    %c8 = arith.constant 8 : index
    %c0_54 = arith.constant 0 : index
    %64 = vector.load %arg2[%c8, %c0_54] : memref<32x256xf32, #tpu.memory_space<vmem>>, vector<1x256xf32>
    %c0_55 = arith.constant 0 : index
    %c0_56 = arith.constant 0 : index
    %65 = vector.load %arg8[%c0_55, %c0_56] : memref<128x256xf32, #tpu.memory_space<vmem>>, vector<128x256xf32>
    %66 = vector.broadcast %64 : vector<1x256xf32> to vector<128x256xf32>
    %67 = arith.addf %66, %65 : vector<128x256xf32>
    %cst_57 = arith.constant dense<0x7F800000> : vector<128xf32>
    %68 = vector.multi_reduction <minimumf>, %67, %cst_57 [1] : vector<128x256xf32> to vector<128xf32>
    %69 = vector.shape_cast %68 : vector<128xf32> to vector<128x1xf32>
    %c0_58 = arith.constant 0 : index
    %c8_59 = arith.constant 8 : index
    %70 = vector.load %arg9[%c0_58, %c8_59] : memref<128x32xf32, #tpu.memory_space<vmem>>, vector<128x1xf32>
    tpu.vector_store %arg9[%c0_58, %c8_59], %69 {strides = array<i32>} : memref<128x32xf32, #tpu.memory_space<vmem>>, vector<128x1xf32>,
    %c9 = arith.constant 9 : index
    %c0_60 = arith.constant 0 : index
    %71 = vector.load %arg2[%c9, %c0_60] : memref<32x256xf32, #tpu.memory_space<vmem>>, vector<1x256xf32>
    %c0_61 = arith.constant 0 : index
    %c0_62 = arith.constant 0 : index
    %72 = vector.load %arg8[%c0_61, %c0_62] : memref<128x256xf32, #tpu.memory_space<vmem>>, vector<128x256xf32>
    %73 = vector.broadcast %71 : vector<1x256xf32> to vector<128x256xf32>
    %74 = arith.addf %73, %72 : vector<128x256xf32>
    %cst_63 = arith.constant dense<0x7F800000> : vector<128xf32>
    %75 = vector.multi_reduction <minimumf>, %74, %cst_63 [1] : vector<128x256xf32> to vector<128xf32>
    %76 = vector.shape_cast %75 : vector<128xf32> to vector<128x1xf32>
    %c0_64 = arith.constant 0 : index
    %c9_65 = arith.constant 9 : index
    %77 = vector.load %arg9[%c0_64, %c9_65] : memref<128x32xf32, #tpu.memory_space<vmem>>, vector<128x1xf32>
    tpu.vector_store %arg9[%c0_64, %c9_65], %76 {strides = array<i32>} : memref<128x32xf32, #tpu.memory_space<vmem>>, vector<128x1xf32>,
    %c10 = arith.constant 10 : index
    %c0_66 = arith.constant 0 : index
    %78 = vector.load %arg2[%c10, %c0_66] : memref<32x256xf32, #tpu.memory_space<vmem>>, vector<1x256xf32>
    %c0_67 = arith.constant 0 : index
    %c0_68 = arith.constant 0 : index
    %79 = vector.load %arg8[%c0_67, %c0_68] : memref<128x256xf32, #tpu.memory_space<vmem>>, vector<128x256xf32>
    %80 = vector.broadcast %78 : vector<1x256xf32> to vector<128x256xf32>
    %81 = arith.addf %80, %79 : vector<128x256xf32>
    %cst_69 = arith.constant dense<0x7F800000> : vector<128xf32>
    %82 = vector.multi_reduction <minimumf>, %81, %cst_69 [1] : vector<128x256xf32> to vector<128xf32>
    %83 = vector.shape_cast %82 : vector<128xf32> to vector<128x1xf32>
    %c0_70 = arith.constant 0 : index
    %c10_71 = arith.constant 10 : index
    %84 = vector.load %arg9[%c0_70, %c10_71] : memref<128x32xf32, #tpu.memory_space<vmem>>, vector<128x1xf32>
    tpu.vector_store %arg9[%c0_70, %c10_71], %83 {strides = array<i32>} : memref<128x32xf32, #tpu.memory_space<vmem>>, vector<128x1xf32>,
    %c11 = arith.constant 11 : index
    %c0_72 = arith.constant 0 : index
    %85 = vector.load %arg2[%c11, %c0_72] : memref<32x256xf32, #tpu.memory_space<vmem>>, vector<1x256xf32>
    %c0_73 = arith.constant 0 : index
    %c0_74 = arith.constant 0 : index
    %86 = vector.load %arg8[%c0_73, %c0_74] : memref<128x256xf32, #tpu.memory_space<vmem>>, vector<128x256xf32>
    %87 = vector.broadcast %85 : vector<1x256xf32> to vector<128x256xf32>
    %88 = arith.addf %87, %86 : vector<128x256xf32>
    %cst_75 = arith.constant dense<0x7F800000> : vector<128xf32>
    %89 = vector.multi_reduction <minimumf>, %88, %cst_75 [1] : vector<128x256xf32> to vector<128xf32>
    %90 = vector.shape_cast %89 : vector<128xf32> to vector<128x1xf32>
    %c0_76 = arith.constant 0 : index
    %c11_77 = arith.constant 11 : index
    %91 = vector.load %arg9[%c0_76, %c11_77] : memref<128x32xf32, #tpu.memory_space<vmem>>, vector<128x1xf32>
    tpu.vector_store %arg9[%c0_76, %c11_77], %90 {strides = array<i32>} : memref<128x32xf32, #tpu.memory_space<vmem>>, vector<128x1xf32>,
    %c12 = arith.constant 12 : index
    %c0_78 = arith.constant 0 : index
    %92 = vector.load %arg2[%c12, %c0_78] : memref<32x256xf32, #tpu.memory_space<vmem>>, vector<1x256xf32>
    %c0_79 = arith.constant 0 : index
    %c0_80 = arith.constant 0 : index
    %93 = vector.load %arg8[%c0_79, %c0_80] : memref<128x256xf32, #tpu.memory_space<vmem>>, vector<128x256xf32>
    %94 = vector.broadcast %92 : vector<1x256xf32> to vector<128x256xf32>
    %95 = arith.addf %94, %93 : vector<128x256xf32>
    %cst_81 = arith.constant dense<0x7F800000> : vector<128xf32>
    %96 = vector.multi_reduction <minimumf>, %95, %cst_81 [1] : vector<128x256xf32> to vector<128xf32>
    %97 = vector.shape_cast %96 : vector<128xf32> to vector<128x1xf32>
    %c0_82 = arith.constant 0 : index
    %c12_83 = arith.constant 12 : index
    %98 = vector.load %arg9[%c0_82, %c12_83] : memref<128x32xf32, #tpu.memory_space<vmem>>, vector<128x1xf32>
    tpu.vector_store %arg9[%c0_82, %c12_83], %97 {strides = array<i32>} : memref<128x32xf32, #tpu.memory_space<vmem>>, vector<128x1xf32>,
    %c13 = arith.constant 13 : index
    %c0_84 = arith.constant 0 : index
    %99 = vector.load %arg2[%c13, %c0_84] : memref<32x256xf32, #tpu.memory_space<vmem>>, vector<1x256xf32>
    %c0_85 = arith.constant 0 : index
    %c0_86 = arith.constant 0 : index
    %100 = vector.load %arg8[%c0_85, %c0_86] : memref<128x256xf32, #tpu.memory_space<vmem>>, vector<128x256xf32>
    %101 = vector.broadcast %99 : vector<1x256xf32> to vector<128x256xf32>
    %102 = arith.addf %101, %100 : vector<128x256xf32>
    %cst_87 = arith.constant dense<0x7F800000> : vector<128xf32>
    %103 = vector.multi_reduction <minimumf>, %102, %cst_87 [1] : vector<128x256xf32> to vector<128xf32>
    %104 = vector.shape_cast %103 : vector<128xf32> to vector<128x1xf32>
    %c0_88 = arith.constant 0 : index
    %c13_89 = arith.constant 13 : index
    %105 = vector.load %arg9[%c0_88, %c13_89] : memref<128x32xf32, #tpu.memory_space<vmem>>, vector<128x1xf32>
    tpu.vector_store %arg9[%c0_88, %c13_89], %104 {strides = array<i32>} : memref<128x32xf32, #tpu.memory_space<vmem>>, vector<128x1xf32>,
    %c14 = arith.constant 14 : index
    %c0_90 = arith.constant 0 : index
    %106 = vector.load %arg2[%c14, %c0_90] : memref<32x256xf32, #tpu.memory_space<vmem>>, vector<1x256xf32>
    %c0_91 = arith.constant 0 : index
    %c0_92 = arith.constant 0 : index
    %107 = vector.load %arg8[%c0_91, %c0_92] : memref<128x256xf32, #tpu.memory_space<vmem>>, vector<128x256xf32>
    %108 = vector.broadcast %106 : vector<1x256xf32> to vector<128x256xf32>
    %109 = arith.addf %108, %107 : vector<128x256xf32>
    %cst_93 = arith.constant dense<0x7F800000> : vector<128xf32>
    %110 = vector.multi_reduction <minimumf>, %109, %cst_93 [1] : vector<128x256xf32> to vector<128xf32>
    %111 = vector.shape_cast %110 : vector<128xf32> to vector<128x1xf32>
    %c0_94 = arith.constant 0 : index
    %c14_95 = arith.constant 14 : index
    %112 = vector.load %arg9[%c0_94, %c14_95] : memref<128x32xf32, #tpu.memory_space<vmem>>, vector<128x1xf32>
    tpu.vector_store %arg9[%c0_94, %c14_95], %111 {strides = array<i32>} : memref<128x32xf32, #tpu.memory_space<vmem>>, vector<128x1xf32>,
    %c15 = arith.constant 15 : index
    %c0_96 = arith.constant 0 : index
    %113 = vector.load %arg2[%c15, %c0_96] : memref<32x256xf32, #tpu.memory_space<vmem>>, vector<1x256xf32>
    %c0_97 = arith.constant 0 : index
    %c0_98 = arith.constant 0 : index
    %114 = vector.load %arg8[%c0_97, %c0_98] : memref<128x256xf32, #tpu.memory_space<vmem>>, vector<128x256xf32>
    %115 = vector.broadcast %113 : vector<1x256xf32> to vector<128x256xf32>
    %116 = arith.addf %115, %114 : vector<128x256xf32>
    %cst_99 = arith.constant dense<0x7F800000> : vector<128xf32>
    %117 = vector.multi_reduction <minimumf>, %116, %cst_99 [1] : vector<128x256xf32> to vector<128xf32>
    %118 = vector.shape_cast %117 : vector<128xf32> to vector<128x1xf32>
    %c0_100 = arith.constant 0 : index
    %c15_101 = arith.constant 15 : index
    %119 = vector.load %arg9[%c0_100, %c15_101] : memref<128x32xf32, #tpu.memory_space<vmem>>, vector<128x1xf32>
    tpu.vector_store %arg9[%c0_100, %c15_101], %118 {strides = array<i32>} : memref<128x32xf32, #tpu.memory_space<vmem>>, vector<128x1xf32>,
    %c16 = arith.constant 16 : index
    %c0_102 = arith.constant 0 : index
    %120 = vector.load %arg2[%c16, %c0_102] : memref<32x256xf32, #tpu.memory_space<vmem>>, vector<1x256xf32>
    %c0_103 = arith.constant 0 : index
    %c0_104 = arith.constant 0 : index
    %121 = vector.load %arg8[%c0_103, %c0_104] : memref<128x256xf32, #tpu.memory_space<vmem>>, vector<128x256xf32>
    %122 = vector.broadcast %120 : vector<1x256xf32> to vector<128x256xf32>
    %123 = arith.addf %122, %121 : vector<128x256xf32>
    %cst_105 = arith.constant dense<0x7F800000> : vector<128xf32>
    %124 = vector.multi_reduction <minimumf>, %123, %cst_105 [1] : vector<128x256xf32> to vector<128xf32>
    %125 = vector.shape_cast %124 : vector<128xf32> to vector<128x1xf32>
    %c0_106 = arith.constant 0 : index
    %c16_107 = arith.constant 16 : index
    %126 = vector.load %arg9[%c0_106, %c16_107] : memref<128x32xf32, #tpu.memory_space<vmem>>, vector<128x1xf32>
    tpu.vector_store %arg9[%c0_106, %c16_107], %125 {strides = array<i32>} : memref<128x32xf32, #tpu.memory_space<vmem>>, vector<128x1xf32>,
    %c17 = arith.constant 17 : index
    %c0_108 = arith.constant 0 : index
    %127 = vector.load %arg2[%c17, %c0_108] : memref<32x256xf32, #tpu.memory_space<vmem>>, vector<1x256xf32>
    %c0_109 = arith.constant 0 : index
    %c0_110 = arith.constant 0 : index
    %128 = vector.load %arg8[%c0_109, %c0_110] : memref<128x256xf32, #tpu.memory_space<vmem>>, vector<128x256xf32>
    %129 = vector.broadcast %127 : vector<1x256xf32> to vector<128x256xf32>
    %130 = arith.addf %129, %128 : vector<128x256xf32>
    %cst_111 = arith.constant dense<0x7F800000> : vector<128xf32>
    %131 = vector.multi_reduction <minimumf>, %130, %cst_111 [1] : vector<128x256xf32> to vector<128xf32>
    %132 = vector.shape_cast %131 : vector<128xf32> to vector<128x1xf32>
    %c0_112 = arith.constant 0 : index
    %c17_113 = arith.constant 17 : index
    %133 = vector.load %arg9[%c0_112, %c17_113] : memref<128x32xf32, #tpu.memory_space<vmem>>, vector<128x1xf32>
    tpu.vector_store %arg9[%c0_112, %c17_113], %132 {strides = array<i32>} : memref<128x32xf32, #tpu.memory_space<vmem>>, vector<128x1xf32>,
    %c18 = arith.constant 18 : index
    %c0_114 = arith.constant 0 : index
    %134 = vector.load %arg2[%c18, %c0_114] : memref<32x256xf32, #tpu.memory_space<vmem>>, vector<1x256xf32>
    %c0_115 = arith.constant 0 : index
    %c0_116 = arith.constant 0 : index
    %135 = vector.load %arg8[%c0_115, %c0_116] : memref<128x256xf32, #tpu.memory_space<vmem>>, vector<128x256xf32>
    %136 = vector.broadcast %134 : vector<1x256xf32> to vector<128x256xf32>
    %137 = arith.addf %136, %135 : vector<128x256xf32>
    %cst_117 = arith.constant dense<0x7F800000> : vector<128xf32>
    %138 = vector.multi_reduction <minimumf>, %137, %cst_117 [1] : vector<128x256xf32> to vector<128xf32>
    %139 = vector.shape_cast %138 : vector<128xf32> to vector<128x1xf32>
    %c0_118 = arith.constant 0 : index
    %c18_119 = arith.constant 18 : index
    %140 = vector.load %arg9[%c0_118, %c18_119] : memref<128x32xf32, #tpu.memory_space<vmem>>, vector<128x1xf32>
    tpu.vector_store %arg9[%c0_118, %c18_119], %139 {strides = array<i32>} : memref<128x32xf32, #tpu.memory_space<vmem>>, vector<128x1xf32>,
    %c19 = arith.constant 19 : index
    %c0_120 = arith.constant 0 : index
    %141 = vector.load %arg2[%c19, %c0_120] : memref<32x256xf32, #tpu.memory_space<vmem>>, vector<1x256xf32>
    %c0_121 = arith.constant 0 : index
    %c0_122 = arith.constant 0 : index
    %142 = vector.load %arg8[%c0_121, %c0_122] : memref<128x256xf32, #tpu.memory_space<vmem>>, vector<128x256xf32>
    %143 = vector.broadcast %141 : vector<1x256xf32> to vector<128x256xf32>
    %144 = arith.addf %143, %142 : vector<128x256xf32>
    %cst_123 = arith.constant dense<0x7F800000> : vector<128xf32>
    %145 = vector.multi_reduction <minimumf>, %144, %cst_123 [1] : vector<128x256xf32> to vector<128xf32>
    %146 = vector.shape_cast %145 : vector<128xf32> to vector<128x1xf32>
    %c0_124 = arith.constant 0 : index
    %c19_125 = arith.constant 19 : index
    %147 = vector.load %arg9[%c0_124, %c19_125] : memref<128x32xf32, #tpu.memory_space<vmem>>, vector<128x1xf32>
    tpu.vector_store %arg9[%c0_124, %c19_125], %146 {strides = array<i32>} : memref<128x32xf32, #tpu.memory_space<vmem>>, vector<128x1xf32>,
    %c20 = arith.constant 20 : index
    %c0_126 = arith.constant 0 : index
    %148 = vector.load %arg2[%c20, %c0_126] : memref<32x256xf32, #tpu.memory_space<vmem>>, vector<1x256xf32>
    %c0_127 = arith.constant 0 : index
    %c0_128 = arith.constant 0 : index
    %149 = vector.load %arg8[%c0_127, %c0_128] : memref<128x256xf32, #tpu.memory_space<vmem>>, vector<128x256xf32>
    %150 = vector.broadcast %148 : vector<1x256xf32> to vector<128x256xf32>
    %151 = arith.addf %150, %149 : vector<128x256xf32>
    %cst_129 = arith.constant dense<0x7F800000> : vector<128xf32>
    %152 = vector.multi_reduction <minimumf>, %151, %cst_129 [1] : vector<128x256xf32> to vector<128xf32>
    %153 = vector.shape_cast %152 : vector<128xf32> to vector<128x1xf32>
    %c0_130 = arith.constant 0 : index
    %c20_131 = arith.constant 20 : index
    %154 = vector.load %arg9[%c0_130, %c20_131] : memref<128x32xf32, #tpu.memory_space<vmem>>, vector<128x1xf32>
    tpu.vector_store %arg9[%c0_130, %c20_131], %153 {strides = array<i32>} : memref<128x32xf32, #tpu.memory_space<vmem>>, vector<128x1xf32>,
    %c21 = arith.constant 21 : index
    %c0_132 = arith.constant 0 : index
    %155 = vector.load %arg2[%c21, %c0_132] : memref<32x256xf32, #tpu.memory_space<vmem>>, vector<1x256xf32>
    %c0_133 = arith.constant 0 : index
    %c0_134 = arith.constant 0 : index
    %156 = vector.load %arg8[%c0_133, %c0_134] : memref<128x256xf32, #tpu.memory_space<vmem>>, vector<128x256xf32>
    %157 = vector.broadcast %155 : vector<1x256xf32> to vector<128x256xf32>
    %158 = arith.addf %157, %156 : vector<128x256xf32>
    %cst_135 = arith.constant dense<0x7F800000> : vector<128xf32>
    %159 = vector.multi_reduction <minimumf>, %158, %cst_135 [1] : vector<128x256xf32> to vector<128xf32>
    %160 = vector.shape_cast %159 : vector<128xf32> to vector<128x1xf32>
    %c0_136 = arith.constant 0 : index
    %c21_137 = arith.constant 21 : index
    %161 = vector.load %arg9[%c0_136, %c21_137] : memref<128x32xf32, #tpu.memory_space<vmem>>, vector<128x1xf32>
    tpu.vector_store %arg9[%c0_136, %c21_137], %160 {strides = array<i32>} : memref<128x32xf32, #tpu.memory_space<vmem>>, vector<128x1xf32>,
    %c22 = arith.constant 22 : index
    %c0_138 = arith.constant 0 : index
    %162 = vector.load %arg2[%c22, %c0_138] : memref<32x256xf32, #tpu.memory_space<vmem>>, vector<1x256xf32>
    %c0_139 = arith.constant 0 : index
    %c0_140 = arith.constant 0 : index
    %163 = vector.load %arg8[%c0_139, %c0_140] : memref<128x256xf32, #tpu.memory_space<vmem>>, vector<128x256xf32>
    %164 = vector.broadcast %162 : vector<1x256xf32> to vector<128x256xf32>
    %165 = arith.addf %164, %163 : vector<128x256xf32>
    %cst_141 = arith.constant dense<0x7F800000> : vector<128xf32>
    %166 = vector.multi_reduction <minimumf>, %165, %cst_141 [1] : vector<128x256xf32> to vector<128xf32>
    %167 = vector.shape_cast %166 : vector<128xf32> to vector<128x1xf32>
    %c0_142 = arith.constant 0 : index
    %c22_143 = arith.constant 22 : index
    %168 = vector.load %arg9[%c0_142, %c22_143] : memref<128x32xf32, #tpu.memory_space<vmem>>, vector<128x1xf32>
    tpu.vector_store %arg9[%c0_142, %c22_143], %167 {strides = array<i32>} : memref<128x32xf32, #tpu.memory_space<vmem>>, vector<128x1xf32>,
    %c23 = arith.constant 23 : index
    %c0_144 = arith.constant 0 : index
    %169 = vector.load %arg2[%c23, %c0_144] : memref<32x256xf32, #tpu.memory_space<vmem>>, vector<1x256xf32>
    %c0_145 = arith.constant 0 : index
    %c0_146 = arith.constant 0 : index
    %170 = vector.load %arg8[%c0_145, %c0_146] : memref<128x256xf32, #tpu.memory_space<vmem>>, vector<128x256xf32>
    %171 = vector.broadcast %169 : vector<1x256xf32> to vector<128x256xf32>
    %172 = arith.addf %171, %170 : vector<128x256xf32>
    %cst_147 = arith.constant dense<0x7F800000> : vector<128xf32>
    %173 = vector.multi_reduction <minimumf>, %172, %cst_147 [1] : vector<128x256xf32> to vector<128xf32>
    %174 = vector.shape_cast %173 : vector<128xf32> to vector<128x1xf32>
    %c0_148 = arith.constant 0 : index
    %c23_149 = arith.constant 23 : index
    %175 = vector.load %arg9[%c0_148, %c23_149] : memref<128x32xf32, #tpu.memory_space<vmem>>, vector<128x1xf32>
    tpu.vector_store %arg9[%c0_148, %c23_149], %174 {strides = array<i32>} : memref<128x32xf32, #tpu.memory_space<vmem>>, vector<128x1xf32>,
    %c24 = arith.constant 24 : index
    %c0_150 = arith.constant 0 : index
    %176 = vector.load %arg2[%c24, %c0_150] : memref<32x256xf32, #tpu.memory_space<vmem>>, vector<1x256xf32>
    %c0_151 = arith.constant 0 : index
    %c0_152 = arith.constant 0 : index
    %177 = vector.load %arg8[%c0_151, %c0_152] : memref<128x256xf32, #tpu.memory_space<vmem>>, vector<128x256xf32>
    %178 = vector.broadcast %176 : vector<1x256xf32> to vector<128x256xf32>
    %179 = arith.addf %178, %177 : vector<128x256xf32>
    %cst_153 = arith.constant dense<0x7F800000> : vector<128xf32>
    %180 = vector.multi_reduction <minimumf>, %179, %cst_153 [1] : vector<128x256xf32> to vector<128xf32>
    %181 = vector.shape_cast %180 : vector<128xf32> to vector<128x1xf32>
    %c0_154 = arith.constant 0 : index
    %c24_155 = arith.constant 24 : index
    %182 = vector.load %arg9[%c0_154, %c24_155] : memref<128x32xf32, #tpu.memory_space<vmem>>, vector<128x1xf32>
    tpu.vector_store %arg9[%c0_154, %c24_155], %181 {strides = array<i32>} : memref<128x32xf32, #tpu.memory_space<vmem>>, vector<128x1xf32>,
    %c25 = arith.constant 25 : index
    %c0_156 = arith.constant 0 : index
    %183 = vector.load %arg2[%c25, %c0_156] : memref<32x256xf32, #tpu.memory_space<vmem>>, vector<1x256xf32>
    %c0_157 = arith.constant 0 : index
    %c0_158 = arith.constant 0 : index
    %184 = vector.load %arg8[%c0_157, %c0_158] : memref<128x256xf32, #tpu.memory_space<vmem>>, vector<128x256xf32>
    %185 = vector.broadcast %183 : vector<1x256xf32> to vector<128x256xf32>
    %186 = arith.addf %185, %184 : vector<128x256xf32>
    %cst_159 = arith.constant dense<0x7F800000> : vector<128xf32>
    %187 = vector.multi_reduction <minimumf>, %186, %cst_159 [1] : vector<128x256xf32> to vector<128xf32>
    %188 = vector.shape_cast %187 : vector<128xf32> to vector<128x1xf32>
    %c0_160 = arith.constant 0 : index
    %c25_161 = arith.constant 25 : index
    %189 = vector.load %arg9[%c0_160, %c25_161] : memref<128x32xf32, #tpu.memory_space<vmem>>, vector<128x1xf32>
    tpu.vector_store %arg9[%c0_160, %c25_161], %188 {strides = array<i32>} : memref<128x32xf32, #tpu.memory_space<vmem>>, vector<128x1xf32>,
    %c26 = arith.constant 26 : index
    %c0_162 = arith.constant 0 : index
    %190 = vector.load %arg2[%c26, %c0_162] : memref<32x256xf32, #tpu.memory_space<vmem>>, vector<1x256xf32>
    %c0_163 = arith.constant 0 : index
    %c0_164 = arith.constant 0 : index
    %191 = vector.load %arg8[%c0_163, %c0_164] : memref<128x256xf32, #tpu.memory_space<vmem>>, vector<128x256xf32>
    %192 = vector.broadcast %190 : vector<1x256xf32> to vector<128x256xf32>
    %193 = arith.addf %192, %191 : vector<128x256xf32>
    %cst_165 = arith.constant dense<0x7F800000> : vector<128xf32>
    %194 = vector.multi_reduction <minimumf>, %193, %cst_165 [1] : vector<128x256xf32> to vector<128xf32>
    %195 = vector.shape_cast %194 : vector<128xf32> to vector<128x1xf32>
    %c0_166 = arith.constant 0 : index
    %c26_167 = arith.constant 26 : index
    %196 = vector.load %arg9[%c0_166, %c26_167] : memref<128x32xf32, #tpu.memory_space<vmem>>, vector<128x1xf32>
    tpu.vector_store %arg9[%c0_166, %c26_167], %195 {strides = array<i32>} : memref<128x32xf32, #tpu.memory_space<vmem>>, vector<128x1xf32>,
    %c27 = arith.constant 27 : index
    %c0_168 = arith.constant 0 : index
    %197 = vector.load %arg2[%c27, %c0_168] : memref<32x256xf32, #tpu.memory_space<vmem>>, vector<1x256xf32>
    %c0_169 = arith.constant 0 : index
    %c0_170 = arith.constant 0 : index
    %198 = vector.load %arg8[%c0_169, %c0_170] : memref<128x256xf32, #tpu.memory_space<vmem>>, vector<128x256xf32>
    %199 = vector.broadcast %197 : vector<1x256xf32> to vector<128x256xf32>
    %200 = arith.addf %199, %198 : vector<128x256xf32>
    %cst_171 = arith.constant dense<0x7F800000> : vector<128xf32>
    %201 = vector.multi_reduction <minimumf>, %200, %cst_171 [1] : vector<128x256xf32> to vector<128xf32>
    %202 = vector.shape_cast %201 : vector<128xf32> to vector<128x1xf32>
    %c0_172 = arith.constant 0 : index
    %c27_173 = arith.constant 27 : index
    %203 = vector.load %arg9[%c0_172, %c27_173] : memref<128x32xf32, #tpu.memory_space<vmem>>, vector<128x1xf32>
    tpu.vector_store %arg9[%c0_172, %c27_173], %202 {strides = array<i32>} : memref<128x32xf32, #tpu.memory_space<vmem>>, vector<128x1xf32>,
    %c28 = arith.constant 28 : index
    %c0_174 = arith.constant 0 : index
    %204 = vector.load %arg2[%c28, %c0_174] : memref<32x256xf32, #tpu.memory_space<vmem>>, vector<1x256xf32>
    %c0_175 = arith.constant 0 : index
    %c0_176 = arith.constant 0 : index
    %205 = vector.load %arg8[%c0_175, %c0_176] : memref<128x256xf32, #tpu.memory_space<vmem>>, vector<128x256xf32>
    %206 = vector.broadcast %204 : vector<1x256xf32> to vector<128x256xf32>
    %207 = arith.addf %206, %205 : vector<128x256xf32>
    %cst_177 = arith.constant dense<0x7F800000> : vector<128xf32>
    %208 = vector.multi_reduction <minimumf>, %207, %cst_177 [1] : vector<128x256xf32> to vector<128xf32>
    %209 = vector.shape_cast %208 : vector<128xf32> to vector<128x1xf32>
    %c0_178 = arith.constant 0 : index
    %c28_179 = arith.constant 28 : index
    %210 = vector.load %arg9[%c0_178, %c28_179] : memref<128x32xf32, #tpu.memory_space<vmem>>, vector<128x1xf32>
    tpu.vector_store %arg9[%c0_178, %c28_179], %209 {strides = array<i32>} : memref<128x32xf32, #tpu.memory_space<vmem>>, vector<128x1xf32>,
    %c29 = arith.constant 29 : index
    %c0_180 = arith.constant 0 : index
    %211 = vector.load %arg2[%c29, %c0_180] : memref<32x256xf32, #tpu.memory_space<vmem>>, vector<1x256xf32>
    %c0_181 = arith.constant 0 : index
    %c0_182 = arith.constant 0 : index
    %212 = vector.load %arg8[%c0_181, %c0_182] : memref<128x256xf32, #tpu.memory_space<vmem>>, vector<128x256xf32>
    %213 = vector.broadcast %211 : vector<1x256xf32> to vector<128x256xf32>
    %214 = arith.addf %213, %212 : vector<128x256xf32>
    %cst_183 = arith.constant dense<0x7F800000> : vector<128xf32>
    %215 = vector.multi_reduction <minimumf>, %214, %cst_183 [1] : vector<128x256xf32> to vector<128xf32>
    %216 = vector.shape_cast %215 : vector<128xf32> to vector<128x1xf32>
    %c0_184 = arith.constant 0 : index
    %c29_185 = arith.constant 29 : index
    %217 = vector.load %arg9[%c0_184, %c29_185] : memref<128x32xf32, #tpu.memory_space<vmem>>, vector<128x1xf32>
    tpu.vector_store %arg9[%c0_184, %c29_185], %216 {strides = array<i32>} : memref<128x32xf32, #tpu.memory_space<vmem>>, vector<128x1xf32>,
    %c30 = arith.constant 30 : index
    %c0_186 = arith.constant 0 : index
    %218 = vector.load %arg2[%c30, %c0_186] : memref<32x256xf32, #tpu.memory_space<vmem>>, vector<1x256xf32>
    %c0_187 = arith.constant 0 : index
    %c0_188 = arith.constant 0 : index
    %219 = vector.load %arg8[%c0_187, %c0_188] : memref<128x256xf32, #tpu.memory_space<vmem>>, vector<128x256xf32>
    %220 = vector.broadcast %218 : vector<1x256xf32> to vector<128x256xf32>
    %221 = arith.addf %220, %219 : vector<128x256xf32>
    %cst_189 = arith.constant dense<0x7F800000> : vector<128xf32>
    %222 = vector.multi_reduction <minimumf>, %221, %cst_189 [1] : vector<128x256xf32> to vector<128xf32>
    %223 = vector.shape_cast %222 : vector<128xf32> to vector<128x1xf32>
    %c0_190 = arith.constant 0 : index
    %c30_191 = arith.constant 30 : index
    %224 = vector.load %arg9[%c0_190, %c30_191] : memref<128x32xf32, #tpu.memory_space<vmem>>, vector<128x1xf32>
    tpu.vector_store %arg9[%c0_190, %c30_191], %223 {strides = array<i32>} : memref<128x32xf32, #tpu.memory_space<vmem>>, vector<128x1xf32>,
    %c31 = arith.constant 31 : index
    %c0_192 = arith.constant 0 : index
    %225 = vector.load %arg2[%c31, %c0_192] : memref<32x256xf32, #tpu.memory_space<vmem>>, vector<1x256xf32>
    %c0_193 = arith.constant 0 : index
    %c0_194 = arith.constant 0 : index
    %226 = vector.load %arg8[%c0_193, %c0_194] : memref<128x256xf32, #tpu.memory_space<vmem>>, vector<128x256xf32>
    %227 = vector.broadcast %225 : vector<1x256xf32> to vector<128x256xf32>
    %228 = arith.addf %227, %226 : vector<128x256xf32>
    %cst_195 = arith.constant dense<0x7F800000> : vector<128xf32>
    %229 = vector.multi_reduction <minimumf>, %228, %cst_195 [1] : vector<128x256xf32> to vector<128xf32>
    %230 = vector.shape_cast %229 : vector<128xf32> to vector<128x1xf32>
    %c0_196 = arith.constant 0 : index
    %c31_197 = arith.constant 31 : index
    %231 = vector.load %arg9[%c0_196, %c31_197] : memref<128x32xf32, #tpu.memory_space<vmem>>, vector<128x1xf32>
    tpu.vector_store %arg9[%c0_196, %c31_197], %230 {strides = array<i32>} : memref<128x32xf32, #tpu.memory_space<vmem>>, vector<128x1xf32>,
    %c0_198 = arith.constant 0 : index
    %c0_199 = arith.constant 0 : index
    %232 = vector.load %arg8[%c0_198, %c0_199] : memref<128x256xf32, #tpu.memory_space<vmem>>, vector<128x256xf32>
    %cst_200 = arith.constant dense<0x7F800000> : vector<128xf32>
    %233 = vector.multi_reduction <minimumf>, %232, %cst_200 [1] : vector<128x256xf32> to vector<128xf32>
    %234 = vector.shape_cast %233 : vector<128xf32> to vector<128x1xf32>
    %cst_201 = arith.constant 1.000000e+30 : f32
    %235 = vector.broadcast %cst_201 : f32 to vector<128x1xf32>
    %236 = arith.cmpf olt, %234, %235 : vector<128x1xf32>
    %c0_202 = arith.constant 0 : index
    %c0_203 = arith.constant 0 : index
    %237 = vector.load %arg1[%c0_202, %c0_203] : memref<128x32xf32, #tpu.memory_space<vmem>>, vector<128x32xf32>
    %c0_204 = arith.constant 0 : index
    %c0_205 = arith.constant 0 : index
    %238 = vector.load %arg9[%c0_204, %c0_205] : memref<128x32xf32, #tpu.memory_space<vmem>>, vector<128x32xf32>
    %239 = arith.subf %237, %238 : vector<128x32xf32>
    %cst_206 = arith.constant 0.000000e+00 : f32
    %240 = vector.shape_cast %236 : vector<128x1xi1> to vector<128x1xi1>
    %241 = vector.broadcast %240 : vector<128x1xi1> to vector<128x32xi1>
    %242 = vector.broadcast %cst_206 : f32 to vector<128x32xf32>
    %243 = arith.select %241, %239, %242 : vector<128x32xi1>, vector<128x32xf32>
    %244 = arith.truncf %237 : vector<128x32xf32> to vector<128x32xbf16>
    %c0_207 = arith.constant 0 : index
    %c0_208 = arith.constant 0 : index
    %245 = vector.load %arg4[%c0_207, %c0_208] : memref<32x128xbf16, #tpu.memory_space<vmem>>, vector<32x128xbf16>
    %cst_209 = arith.constant dense<0.000000e+00> : vector<128x128xf32>
    %246 = tpu.matmul %244, %245, %cst_209 {dimension_numbers = #tpu.dot_dimension_numbers<[1], [0], [0], [1], [0, 0, 1, 1], [], []>} : vector<128x32xbf16>, vector<32x128xbf16>, vector<128x128xf32> -> vector<128x128xf32>
    %247 = arith.truncf %243 : vector<128x32xf32> to vector<128x32xbf16>
    %c0_210 = arith.constant 0 : index
    %c0_211 = arith.constant 0 : index
    %248 = vector.load %arg5[%c0_210, %c0_211] : memref<32x128xbf16, #tpu.memory_space<vmem>>, vector<32x128xbf16>
    %cst_212 = arith.constant dense<0.000000e+00> : vector<128x128xf32>
    %249 = tpu.matmul %247, %248, %cst_212 {dimension_numbers = #tpu.dot_dimension_numbers<[1], [0], [0], [1], [0, 0, 1, 1], [], []>} : vector<128x32xbf16>, vector<32x128xbf16>, vector<128x128xf32> -> vector<128x128xf32>
    %250 = arith.addf %246, %249 : vector<128x128xf32>
    %c0_213 = arith.constant 0 : index
    %c0_214 = arith.constant 0 : index
    %251 = vector.load %arg6[%c0_213, %c0_214] : memref<1x128xf32, #tpu.memory_space<vmem>>, vector<1x128xf32>
    %252 = vector.broadcast %251 : vector<1x128xf32> to vector<128x128xf32>
    %253 = arith.addf %250, %252 : vector<128x128xf32>
    %cst_215 = arith.constant 0.000000e+00 : f32
    %254 = vector.broadcast %cst_215 : f32 to vector<128x128xf32>
    %255 = arith.maximumf %253, %254 : vector<128x128xf32>
    %c0_216 = arith.constant 0 : index
    %c0_217 = arith.constant 0 : index
    %256 = vector.load %arg7[%c0_216, %c0_217] : memref<128x128xf32, #tpu.memory_space<vmem>>, vector<128x128xf32>
    tpu.vector_store %arg7[%c0_216, %c0_217], %255 {strides = array<i32>} : memref<128x128xf32, #tpu.memory_space<vmem>>, vector<128x128xf32>,
    return
  }
  func.func @transform_0(%arg0: i32) -> (i32, i32) {
    %c0_i32 = arith.constant 0 : i32
    %c0_i32_0 = arith.constant 0 : i32
    return %arg0, %c0_i32 : i32, i32
  }
  func.func @transform_1(%arg0: i32) -> (i32, i32) {
    %c0_i32 = arith.constant 0 : i32
    %c0_i32_0 = arith.constant 0 : i32
    %c0_i32_1 = arith.constant 0 : i32
    return %c0_i32, %c0_i32_0 : i32, i32
  }
  func.func @transform_2(%arg0: i32) -> (i32, i32) {
    %c0_i32 = arith.constant 0 : i32
    %c0_i32_0 = arith.constant 0 : i32
    return %arg0, %c0_i32 : i32, i32
  }
  func.func @transform_3(%arg0: i32) -> (i32, i32) {
    %c0_i32 = arith.constant 0 : i32
    %c0_i32_0 = arith.constant 0 : i32
    %c0_i32_1 = arith.constant 0 : i32
    return %c0_i32, %c0_i32_0 : i32, i32
  }
  func.func @transform_4(%arg0: i32) -> (i32, i32) {
    %c0_i32 = arith.constant 0 : i32
    %c0_i32_0 = arith.constant 0 : i32
    %c0_i32_1 = arith.constant 0 : i32
    return %c0_i32, %c0_i32_0 : i32, i32
  }
  func.func @transform_5(%arg0: i32) -> (i32, i32) {
    %c0_i32 = arith.constant 0 : i32
    %c0_i32_0 = arith.constant 0 : i32
    %c0_i32_1 = arith.constant 0 : i32
    return %c0_i32, %c0_i32_0 : i32, i32
  }
  func.func @transform_6(%arg0: i32) -> (i32, i32) {
    %c0_i32 = arith.constant 0 : i32
    %c0_i32_0 = arith.constant 0 : i32
    return %arg0, %c0_i32 : i32, i32
  }
}

</mosaic_0001>

<llo_original>
// kernel: tpu_custom_call.1
$region0: #{tpu_custom_call.1}
  #allocation0 [shape = 'u32[]', space=smem, size = 0x4, offset = 0x4, fixed_abs, tag = 'smem constant byte address 0x4 - core index']
  #allocation1 [shape = 'u32[72,128]{1,0:T(1,128)}', space=vmem, size = 0x9000, scoped, tag = 'internal scratch']
  #allocation2 [shape = 'f32[128,256]{1,0:T(8,128)}', space=vmem, size = 0x20000, scoped, tag = 'scratch operand']
  #allocation3 [shape = 'f32[128,32]{1,0:T(8,128)}', space=vmem, size = 0x10000, scoped, tag = 'scratch operand']
  %s0 = inlined_call_operand.vmem [shape: f32[256,32], index: 0, kind: input, shape index: {}]
  %s1 = inlined_call_operand.vmem [shape: f32[32,256], index: 1, kind: input, shape index: {}]
  %s2 = inlined_call_operand.vmem [shape: s8[256,256], index: 2, kind: input, shape index: {}]
  %s3 = inlined_call_operand.vmem [shape: bf16[32,128], index: 3, kind: input, shape index: {}]
  %s4 = inlined_call_operand.vmem [shape: bf16[32,128], index: 4, kind: input, shape index: {}]
  %s5 = inlined_call_operand.vmem [shape: f32[1,128], index: 5, kind: input, shape index: {}]
  %s6 = inlined_call_operand.hbm [shape: f32[256,128], index: 6, kind: output, shape index: {}]
  %s7 = sld [smem:[#allocation0]]
  $region57: #{tpu_custom_call.1} parent=0
    _
  %s9 = ssub.s32 1, %s7
  %s10 = scalar_select 0, %s9, %s7
  $region1: #{tpu_custom_call.1} parent=0
    #allocation4 [shape = 'u8[131072]{0}', space=vmem, size = 0x20000, scoped, tag = 'output window, operand 0']
    #allocation5 [shape = 's32[2]{0}', space=sflag, size = 0x8, scoped, tag = 'scoped memory for tpu_custom_call.1']
    %11 = vsyncpa [#allocation5], 0
    %s12 = scalar_lea.sflag [#allocation5], 1
    %13 = vsyncpa %s12, 0
    loop: start=0, step=1, limit=4
    $region2: #{tpu_custom_call.1} parent=1 // loop_pre_header
      _
    $region3: #{tpu_custom_call.1} parent=1 // loop_header
      %s15 = sphi 0, %s19
      %p16 = scmp.ge.s32.totalorder %s15, 4
      %s25 = sphi 0, %s27
      %s28 = sphi 0, %s25
      %s29 = sphi 0, %s28
      %s45 = sphi 0, %s29
      %s49 = sphi 0, %s49
      %s51 = sphi 0, %s49
      %s52 = sphi 0, %s51
      %s66 = sphi 0, %s52
      %s72 = sphi 0, %s74
      %s75 = sphi 0, %s72
      %s76 = sphi 0, %s75
      %s92 = sphi 0, %s76
      %s96 = sphi 0, %s96
      %s98 = sphi 0, %s96
      %s99 = sphi 0, %s98
      %s113 = sphi 0, %s99
      %s117 = sphi 0, %s117
      %s119 = sphi 0, %s117
      %s120 = sphi 0, %s119
      %s134 = sphi 0, %s120
      %s138 = sphi 0, %s138
      %s140 = sphi 0, %s138
      %s141 = sphi 0, %s140
      %s155 = sphi 0, %s141
      %s161 = sphi 0, %s163
      %s164 = sphi 0, %s161
      %s165 = sphi 0, %s164
      %s181 = sphi 0, %s165
    $region4: #{tpu_custom_call.1} parent=1 // loop_header_branch
      %18 = sbr.rel (%p16) target = $region8
    $region5: #{tpu_custom_call.1} parent=1 // loop_body
      %s20 = ssub.s32 %s15, 1
      %s21 = ssub.s32 %s15, 2
      %s22 = sadd.s32 %s15, 1
      %s23 = ssub.s32 %s15, %s22
      %p24 = scmp.eq.s32.totalorder %s23, 0
      %s26 = sadd.s32 %s25, 1
      %s27 = scalar_select %p24, %s25, %s26
      %p30 = pneg %p24
      %p31 = scmp.eq.s32.totalorder %s15, 1
      %p32 = por %p30, %p31
      %p33 = scmp.ne.s32.totalorder %s25, %s28
      %p34 = scmp.eq.s32.totalorder %s15, 0
      %p35 = por %p33, %p34
      %p36 = scmp.ne.s32.totalorder %s25, %s28
      %p37 = scmp.eq.s32.totalorder %s20, 1
      %p38 = por %p36, %p37
      %p39 = scmp.ne.s32.totalorder %s28, %s29
      %p40 = scmp.eq.s32.totalorder %s20, 0
      %p41 = por %p39, %p40
      %p42 = scmp.ne.s32.totalorder %s28, %s29
      %p43 = scmp.eq.s32.totalorder %s21, 1
      %p44 = por %p42, %p43
      %p46 = scmp.ne.s32.totalorder %s29, %s45
      %p47 = scmp.eq.s32.totalorder %s21, 0
      %p48 = por %p46, %p47
      %s50 = sadd.s32 %s49, 1
      %p53 = scmp.eq.s32.totalorder %s15, 1
      %p54 = scmp.ne.s32.totalorder %s49, %s51
      %p55 = scmp.eq.s32.totalorder %s15, 0
      %p56 = por %p54, %p55
      %p57 = scmp.ne.s32.totalorder %s49, %s51
      %p58 = scmp.eq.s32.totalorder %s20, 1
      %p59 = por %p57, %p58
      %p60 = scmp.ne.s32.totalorder %s51, %s52
      %p61 = scmp.eq.s32.totalorder %s20, 0
      %p62 = por %p60, %p61
      %p63 = scmp.ne.s32.totalorder %s51, %s52
      %p64 = scmp.eq.s32.totalorder %s21, 1
      %p65 = por %p63, %p64
      %p67 = scmp.ne.s32.totalorder %s52, %s66
      %p68 = scmp.eq.s32.totalorder %s21, 0
      %p69 = por %p67, %p68
      %s70 = ssub.s32 %s15, %s22
      %p71 = scmp.eq.s32.totalorder %s70, 0
      %s73 = sadd.s32 %s72, 1
      %s74 = scalar_select %p71, %s72, %s73
      %p77 = pneg %p71
      %p78 = scmp.eq.s32.totalorder %s15, 1
      %p79 = por %p77, %p78
      %p80 = scmp.ne.s32.totalorder %s72, %s75
      %p81 = scmp.eq.s32.totalorder %s15, 0
      %p82 = por %p80, %p81
      %p83 = scmp.ne.s32.totalorder %s72, %s75
      %p84 = scmp.eq.s32.totalorder %s20, 1
      %p85 = por %p83, %p84
      %p86 = scmp.ne.s32.totalorder %s75, %s76
      %p87 = scmp.eq.s32.totalorder %s20, 0
      %p88 = por %p86, %p87
      %p89 = scmp.ne.s32.totalorder %s75, %s76
      %p90 = scmp.eq.s32.totalorder %s21, 1
      %p91 = por %p89, %p90
      %p93 = scmp.ne.s32.totalorder %s76, %s92
      %p94 = scmp.eq.s32.totalorder %s21, 0
      %p95 = por %p93, %p94
      %s97 = sadd.s32 %s96, 1
      %p100 = scmp.eq.s32.totalorder %s15, 1
      %p101 = scmp.ne.s32.totalorder %s96, %s98
      %p102 = scmp.eq.s32.totalorder %s15, 0
      %p103 = por %p101, %p102
      %p104 = scmp.ne.s32.totalorder %s96, %s98
      %p105 = scmp.eq.s32.totalorder %s20, 1
      %p106 = por %p104, %p105
      %p107 = scmp.ne.s32.totalorder %s98, %s99
      %p108 = scmp.eq.s32.totalorder %s20, 0
      %p109 = por %p107, %p108
      %p110 = scmp.ne.s32.totalorder %s98, %s99
      %p111 = scmp.eq.s32.totalorder %s21, 1
      %p112 = por %p110, %p111
      %p114 = scmp.ne.s32.totalorder %s99, %s113
      %p115 = scmp.eq.s32.totalorder %s21, 0
      %p116 = por %p114, %p115
      %s118 = sadd.s32 %s117, 1
      %p121 = scmp.eq.s32.totalorder %s15, 1
      %p122 = scmp.ne.s32.totalorder %s117, %s119
      %p123 = scmp.eq.s32.totalorder %s15, 0
      %p124 = por %p122, %p123
      %p125 = scmp.ne.s32.totalorder %s117, %s119
      %p126 = scmp.eq.s32.totalorder %s20, 1
      %p127 = por %p125, %p126
      %p128 = scmp.ne.s32.totalorder %s119, %s120
      %p129 = scmp.eq.s32.totalorder %s20, 0
      %p130 = por %p128, %p129
      %p131 = scmp.ne.s32.totalorder %s119, %s120
      %p132 = scmp.eq.s32.totalorder %s21, 1
      %p133 = por %p131, %p132
      %p135 = scmp.ne.s32.totalorder %s120, %s134
      %p136 = scmp.eq.s32.totalorder %s21, 0
      %p137 = por %p135, %p136
      %s139 = sadd.s32 %s138, 1
      %p142 = scmp.eq.s32.totalorder %s15, 1
      %p143 = scmp.ne.s32.totalorder %s138, %s140
      %p144 = scmp.eq.s32.totalorder %s15, 0
      %p145 = por %p143, %p144
      %p146 = scmp.ne.s32.totalorder %s138, %s140
      %p147 = scmp.eq.s32.totalorder %s20, 1
      %p148 = por %p146, %p147
      %p149 = scmp.ne.s32.totalorder %s140, %s141
      %p150 = scmp.eq.s32.totalorder %s20, 0
      %p151 = por %p149, %p150
      %p152 = scmp.ne.s32.totalorder %s140, %s141
      %p153 = scmp.eq.s32.totalorder %s21, 1
      %p154 = por %p152, %p153
      %p156 = scmp.ne.s32.totalorder %s141, %s155
      %p157 = scmp.eq.s32.totalorder %s21, 0
      %p158 = por %p156, %p157
      %s159 = ssub.s32 %s15, %s22
      %p160 = scmp.eq.s32.totalorder %s159, 0
      %s162 = sadd.s32 %s161, 1
      %s163 = scalar_select %p160, %s161, %s162
      %p166 = pneg %p160
      %p167 = scmp.eq.s32.totalorder %s15, 1
      %p168 = por %p166, %p167
      %p169 = scmp.ne.s32.totalorder %s161, %s164
      %p170 = scmp.eq.s32.totalorder %s15, 0
      %p171 = por %p169, %p170
      %p172 = scmp.ne.s32.totalorder %s161, %s164
      %p173 = scmp.eq.s32.totalorder %s20, 1
      %p174 = por %p172, %p173
      %p175 = scmp.ne.s32.totalorder %s164, %s165
      %p176 = scmp.eq.s32.totalorder %s20, 0
      %p177 = por %p175, %p176
      %p178 = scmp.ne.s32.totalorder %s164, %s165
      %p179 = scmp.eq.s32.totalorder %s21, 1
      %p180 = por %p178, %p179
      %p182 = scmp.ne.s32.totalorder %s165, %s181
      %p183 = scmp.eq.s32.totalorder %s21, 0
      %p184 = por %p182, %p183
      %p185 = scmp.le.s32.totalorder 1, %s15
      %p186 = scmp.lt.s32.totalorder %s15, 3
      %p187 = pnand %p185, %p186
      %p188 = pneg %p187
      // Predicated region
      $region9: #{tpu_custom_call.1} parent=5 // pred_check
        _
      $region10: #{tpu_custom_call.1} parent=5 // pred_check_branch
        %190 = sbr.rel (%p187) target = $region12
      $region11: #{tpu_custom_call.1} parent=5 // pred_region
        %s191 = ssub.s32 %s15, 1
        // Predicated region
        $region13: #{tpu_custom_call.1} parent=11 // pred_check
          %p192 = pneg %p62
        $region14: #{tpu_custom_call.1} parent=11 // pred_check_branch
          %194 = sbr.rel (%p192) target = $region16
        $region15: #{tpu_custom_call.1} parent=11 // pred_region
          _
        $region16: #{tpu_custom_call.1} parent=11 // pred_fallthru
          _
        // Predicated region
        $region17: #{tpu_custom_call.1} parent=11 // pred_check
          %p195 = pneg %p109
        $region18: #{tpu_custom_call.1} parent=11 // pred_check_branch
          %197 = sbr.rel (%p195) target = $region20
        $region19: #{tpu_custom_call.1} parent=11 // pred_region
          _
        $region20: #{tpu_custom_call.1} parent=11 // pred_fallthru
          _
        // Predicated region
        $region21: #{tpu_custom_call.1} parent=11 // pred_check
          %p198 = pneg %p130
        $region22: #{tpu_custom_call.1} parent=11 // pred_check_branch
          %200 = sbr.rel (%p198) target = $region24
        $region23: #{tpu_custom_call.1} parent=11 // pred_region
          _
        $region24: #{tpu_custom_call.1} parent=11 // pred_fallthru
          _
        // Predicated region
        $region25: #{tpu_custom_call.1} parent=11 // pred_check
          %p201 = pneg %p151
        $region26: #{tpu_custom_call.1} parent=11 // pred_check_branch
          %203 = sbr.rel (%p201) target = $region28
        $region27: #{tpu_custom_call.1} parent=11 // pred_region
          _
        $region28: #{tpu_custom_call.1} parent=11 // pred_fallthru
          _
      $region12: #{tpu_custom_call.1} parent=5 // pred_fallthru
        _
      %p204 = scmp.lt.s32.totalorder %s15, 2
      // Predicated region
      $region29: #{tpu_custom_call.1} parent=5 // pred_check
        %p205 = pneg %p204
      $region30: #{tpu_custom_call.1} parent=5 // pred_check_branch
        %207 = sbr.rel (%p205) target = $region32
      $region31: #{tpu_custom_call.1} parent=5 // pred_region
        // Predicated region
        $region33: #{tpu_custom_call.1} parent=31 // pred_check
          %p208 = pneg %p35
        $region34: #{tpu_custom_call.1} parent=31 // pred_check_branch
          %210 = sbr.rel (%p208) target = $region36
        $region35: #{tpu_custom_call.1} parent=31 // pred_region
          %s211 = smul.u32 16, %s15
          %p212 = scmp.lt.s32.totalorder %s211, 31
          %s213 = scalar_select %p212, %s211, 31
          %s214 = smul.addr %s213, 8
          %s215 = scalar_lea.vmem %s0, %s214
          %s216 = smul.u32 16, %s15
        $region36: #{tpu_custom_call.1} parent=31 // pred_fallthru
          _
        // Predicated region
        $region37: #{tpu_custom_call.1} parent=31 // pred_check
          %p217 = pneg %p82
        $region38: #{tpu_custom_call.1} parent=31 // pred_check_branch
          %219 = sbr.rel (%p217) target = $region40
        $region39: #{tpu_custom_call.1} parent=31 // pred_region
          %s220 = smul.u32 4, %s15
          %p221 = scmp.lt.s32.totalorder %s220, 7
          %s222 = scalar_select %p221, %s220, 7
          %s223 = smul.addr %s222, 2
          %s224 = smul.addr %s223, 8
          %s225 = scalar_lea.vmem %s2, %s224
          %s226 = smul.u32 4, %s15
        $region40: #{tpu_custom_call.1} parent=31 // pred_fallthru
          _
      $region32: #{tpu_custom_call.1} parent=5 // pred_fallthru
        _
      %p227 = scmp.le.s32.totalorder 1, %s15
      %p228 = scmp.lt.s32.totalorder %s15, 3
      %p229 = pnand %p227, %p228
      %p230 = pneg %p229
      // Predicated region
      $region41: #{tpu_custom_call.1} parent=5 // pred_check
        _
      $region42: #{tpu_custom_call.1} parent=5 // pred_check_branch
        %232 = sbr.rel (%p229) target = $region44
      $region43: #{tpu_custom_call.1} parent=5 // pred_region
        %s233 = ssub.s32 %s15, 1
        %s234 = smul.u32 16, %s20
        %p235 = scmp.lt.s32.totalorder %s234, 31
        %s236 = scalar_select %p235, %s234, 31
        %s237 = smul.addr %s236, 8
        %s238 = scalar_lea.vmem %s0, %s237
        %p239 = pneg %p41
        %p240 = pneg %p38
        %p241 = pneg %p62
        %p242 = pneg %p59
        %s243 = smul.u32 4, %s20
        %p244 = scmp.lt.s32.totalorder %s243, 7
        %s245 = scalar_select %p244, %s243, 7
        %s246 = smul.addr %s245, 2
        %s247 = smul.addr %s246, 8
        %s248 = scalar_lea.vmem %s2, %s247
        %p249 = pneg %p88
        %p250 = pneg %p85
        %p251 = pneg %p109
        %p252 = pneg %p106
        %p253 = pneg %p130
        %p254 = pneg %p127
        %p255 = pneg %p151
        %p256 = pneg %p148
        %p257 = pneg %p177
        %p258 = pneg %p174
        %s259 = sand.u32 %s164, 1
        %s260 = scalar_lea.sflag [#allocation5], %s259
        %s261 = sand.u32 %s164, 1
        %s262 = smul.addr %s261, 128
        %s263 = scalar_lea.vmem [#allocation4], %s262
        %s264 = smul.u32 16, %s20
        %p265 = scmp.lt.s32.totalorder %s264, 31
        %s266 = scalar_select %p265, %s264, 31
        %s267 = smul.addr %s266, 8
        %s268 = scalar_lea.vmem %s0, %s267
        %s269 = smul.u32 16, %s20
        %s270 = smul.u32 4, %s20
        %p271 = scmp.lt.s32.totalorder %s270, 7
        %s272 = scalar_select %p271, %s270, 7
        %s273 = smul.addr %s272, 2
        %s274 = smul.addr %s273, 8
        %s275 = scalar_lea.vmem %s2, %s274
        %s276 = smul.u32 4, %s20
        %s277 = smul.u32 16, %s20
        %v279 = vld [vmem:[%s275] sm:$0xff]
        %v280 = vld [vmem:[%s275 + $0x8] sm:$0xff]
        %v281 = vld [vmem:[%s275 + $0x10] sm:$0xff]
        %v282 = vld [vmem:[%s275 + $0x18] sm:$0xff]
        %v283 = vld [vmem:[%s275 + $0x20] sm:$0xff]
        %v284 = vld [vmem:[%s275 + $0x28] sm:$0xff]
        %v285 = vld [vmem:[%s275 + $0x30] sm:$0xff]
        %v286 = vld [vmem:[%s275 + $0x38] sm:$0xff]
        %v287 = vunpack.c.0.s8 %v279
        %v288 = vunpack.c.0.s8 %v280
        %v289 = vunpack.c.1.s8 %v279
        %v290 = vunpack.c.1.s8 %v280
        %v291 = vunpack.c.2.s8 %v279
        %v292 = vunpack.c.2.s8 %v280
        %v293 = vunpack.c.3.s8 %v279
        %v294 = vunpack.c.3.s8 %v280
        %v295 = vunpack.c.0.s8 %v281
        %v296 = vunpack.c.0.s8 %v282
        %v297 = vunpack.c.1.s8 %v281
        %v298 = vunpack.c.1.s8 %v282
        %v299 = vunpack.c.2.s8 %v281
        %v300 = vunpack.c.2.s8 %v282
        %v301 = vunpack.c.3.s8 %v281
        %v302 = vunpack.c.3.s8 %v282
        %v303 = vunpack.c.0.s8 %v283
        %v304 = vunpack.c.0.s8 %v284
        %v305 = vunpack.c.1.s8 %v283
        %v306 = vunpack.c.1.s8 %v284
        %v307 = vunpack.c.2.s8 %v283
        %v308 = vunpack.c.2.s8 %v284
        %v309 = vunpack.c.3.s8 %v283
        %v310 = vunpack.c.3.s8 %v284
        %v311 = vunpack.c.0.s8 %v285
        %v312 = vunpack.c.0.s8 %v286
        %v313 = vunpack.c.1.s8 %v285
        %v314 = vunpack.c.1.s8 %v286
        %v315 = vunpack.c.2.s8 %v285
        %v316 = vunpack.c.2.s8 %v286
        %v317 = vunpack.c.3.s8 %v285
        %v318 = vunpack.c.3.s8 %v286
        %v319 = vcvt.s32.f32 %v287
        %v320 = vcvt.s32.f32 %v288
        %v321 = vcvt.s32.f32 %v289
        %v322 = vcvt.s32.f32 %v290
        %v323 = vcvt.s32.f32 %v291
        %v324 = vcvt.s32.f32 %v292
        %v325 = vcvt.s32.f32 %v293
        %v326 = vcvt.s32.f32 %v294
        %v327 = vcvt.s32.f32 %v295
        %v328 = vcvt.s32.f32 %v296
        %v329 = vcvt.s32.f32 %v297
        %v330 = vcvt.s32.f32 %v298
        %v331 = vcvt.s32.f32 %v299
        %v332 = vcvt.s32.f32 %v300
        %v333 = vcvt.s32.f32 %v301
        %v334 = vcvt.s32.f32 %v302
        %v335 = vcvt.s32.f32 %v303
        %v336 = vcvt.s32.f32 %v304
        %v337 = vcvt.s32.f32 %v305
        %v338 = vcvt.s32.f32 %v306
        %v339 = vcvt.s32.f32 %v307
        %v340 = vcvt.s32.f32 %v308
        %v341 = vcvt.s32.f32 %v309
        %v342 = vcvt.s32.f32 %v310
        %v343 = vcvt.s32.f32 %v311
        %v344 = vcvt.s32.f32 %v312
        %v345 = vcvt.s32.f32 %v313
        %v346 = vcvt.s32.f32 %v314
        %v347 = vcvt.s32.f32 %v315
        %v348 = vcvt.s32.f32 %v316
        %v349 = vcvt.s32.f32 %v317
        %v350 = vcvt.s32.f32 %v318
        %vm351 = vcmp.gt.f32.partialorder %v319, 0.0
        %vm352 = vcmp.gt.f32.partialorder %v320, 0.0
        %vm353 = vcmp.gt.f32.partialorder %v321, 0.0
        %vm354 = vcmp.gt.f32.partialorder %v322, 0.0
        %vm355 = vcmp.gt.f32.partialorder %v323, 0.0
        %vm356 = vcmp.gt.f32.partialorder %v324, 0.0
        %vm357 = vcmp.gt.f32.partialorder %v325, 0.0
        %vm358 = vcmp.gt.f32.partialorder %v326, 0.0
        %vm359 = vcmp.gt.f32.partialorder %v327, 0.0
        %vm360 = vcmp.gt.f32.partialorder %v328, 0.0
        %vm361 = vcmp.gt.f32.partialorder %v329, 0.0
        %vm362 = vcmp.gt.f32.partialorder %v330, 0.0
        %vm363 = vcmp.gt.f32.partialorder %v331, 0.0
        %vm364 = vcmp.gt.f32.partialorder %v332, 0.0
        %vm365 = vcmp.gt.f32.partialorder %v333, 0.0
        %vm366 = vcmp.gt.f32.partialorder %v334, 0.0
        %vm367 = vcmp.gt.f32.partialorder %v335, 0.0
        %vm368 = vcmp.gt.f32.partialorder %v336, 0.0
        %vm369 = vcmp.gt.f32.partialorder %v337, 0.0
        %vm370 = vcmp.gt.f32.partialorder %v338, 0.0
        %vm371 = vcmp.gt.f32.partialorder %v339, 0.0
        %vm372 = vcmp.gt.f32.partialorder %v340, 0.0
        %vm373 = vcmp.gt.f32.partialorder %v341, 0.0
        %vm374 = vcmp.gt.f32.partialorder %v342, 0.0
        %vm375 = vcmp.gt.f32.partialorder %v343, 0.0
        %vm376 = vcmp.gt.f32.partialorder %v344, 0.0
        %vm377 = vcmp.gt.f32.partialorder %v345, 0.0
        %vm378 = vcmp.gt.f32.partialorder %v346, 0.0
        %vm379 = vcmp.gt.f32.partialorder %v347, 0.0
        %vm380 = vcmp.gt.f32.partialorder %v348, 0.0
        %vm381 = vcmp.gt.f32.partialorder %v349, 0.0
        %vm382 = vcmp.gt.f32.partialorder %v350, 0.0
        %v383 = vsel %vm351, 0.0, 1e+30
        %v384 = vsel %vm352, 0.0, 1e+30
        %v385 = vsel %vm353, 0.0, 1e+30
        %v386 = vsel %vm354, 0.0, 1e+30
        %v387 = vsel %vm355, 0.0, 1e+30
        %v388 = vsel %vm356, 0.0, 1e+30
        %v389 = vsel %vm357, 0.0, 1e+30
        %v390 = vsel %vm358, 0.0, 1e+30
        %v391 = vsel %vm359, 0.0, 1e+30
        %v392 = vsel %vm360, 0.0, 1e+30
        %v393 = vsel %vm361, 0.0, 1e+30
        %v394 = vsel %vm362, 0.0, 1e+30
        %v395 = vsel %vm363, 0.0, 1e+30
        %v396 = vsel %vm364, 0.0, 1e+30
        %v397 = vsel %vm365, 0.0, 1e+30
        %v398 = vsel %vm366, 0.0, 1e+30
        %v399 = vsel %vm367, 0.0, 1e+30
        %v400 = vsel %vm368, 0.0, 1e+30
        %v401 = vsel %vm369, 0.0, 1e+30
        %v402 = vsel %vm370, 0.0, 1e+30
        %v403 = vsel %vm371, 0.0, 1e+30
        %v404 = vsel %vm372, 0.0, 1e+30
        %v405 = vsel %vm373, 0.0, 1e+30
        %v406 = vsel %vm374, 0.0, 1e+30
        %v407 = vsel %vm375, 0.0, 1e+30
        %v408 = vsel %vm376, 0.0, 1e+30
        %v409 = vsel %vm377, 0.0, 1e+30
        %v410 = vsel %vm378, 0.0, 1e+30
        %v411 = vsel %vm379, 0.0, 1e+30
        %v412 = vsel %vm380, 0.0, 1e+30
        %v413 = vsel %vm381, 0.0, 1e+30
        %v414 = vsel %vm382, 0.0, 1e+30
        %415 = vst [vmem:[#allocation2] sm:$0xff] %v383
        %416 = vst [vmem:[#allocation2 + $0x8] sm:$0xff] %v384
        %417 = vst [vmem:[#allocation2 + $0x10] sm:$0xff] %v385
        %418 = vst [vmem:[#allocation2 + $0x18] sm:$0xff] %v386
        %419 = vst [vmem:[#allocation2 + $0x20] sm:$0xff] %v387
        %420 = vst [vmem:[#allocation2 + $0x28] sm:$0xff] %v388
        %421 = vst [vmem:[#allocation2 + $0x30] sm:$0xff] %v389
        %422 = vst [vmem:[#allocation2 + $0x38] sm:$0xff] %v390
        %423 = vst [vmem:[#allocation2 + $0x40] sm:$0xff] %v391
        %424 = vst [vmem:[#allocation2 + $0x48] sm:$0xff] %v392
        %425 = vst [vmem:[#allocation2 + $0x50] sm:$0xff] %v393
        %426 = vst [vmem:[#allocation2 + $0x58] sm:$0xff] %v394
        %427 = vst [vmem:[#allocation2 + $0x60] sm:$0xff] %v395
        %428 = vst [vmem:[#allocation2 + $0x68] sm:$0xff] %v396
        %429 = vst [vmem:[#allocation2 + $0x70] sm:$0xff] %v397
        %430 = vst [vmem:[#allocation2 + $0x78] sm:$0xff] %v398
        %431 = vst [vmem:[#allocation2 + $0x80] sm:$0xff] %v399
        %432 = vst [vmem:[#allocation2 + $0x88] sm:$0xff] %v400
        %433 = vst [vmem:[#allocation2 + $0x90] sm:$0xff] %v401
        %434 = vst [vmem:[#allocation2 + $0x98] sm:$0xff] %v402
        %435 = vst [vmem:[#allocation2 + $0xa0] sm:$0xff] %v403
        %436 = vst [vmem:[#allocation2 + $0xa8] sm:$0xff] %v404
        %437 = vst [vmem:[#allocation2 + $0xb0] sm:$0xff] %v405
        %438 = vst [vmem:[#allocation2 + $0xb8] sm:$0xff] %v406
        %439 = vst [vmem:[#allocation2 + $0xc0] sm:$0xff] %v407
        %440 = vst [vmem:[#allocation2 + $0xc8] sm:$0xff] %v408
        %441 = vst [vmem:[#allocation2 + $0xd0] sm:$0xff] %v409
        %442 = vst [vmem:[#allocation2 + $0xd8] sm:$0xff] %v410
        %443 = vst [vmem:[#allocation2 + $0xe0] sm:$0xff] %v411
        %444 = vst [vmem:[#allocation2 + $0xe8] sm:$0xff] %v412
        %445 = vst [vmem:[#allocation2 + $0xf0] sm:$0xff] %v413
        %446 = vst [vmem:[#allocation2 + $0xf8] sm:$0xff] %v414
        %v447 = vld [vmem:[%s1] ss:$8 sm:$0x3]
        %v448 = vld [vmem:[#allocation2] sm:$0xff]
        %v449 = vld [vmem:[#allocation2 + $0x8] sm:$0xff]
        %v450 = vld [vmem:[#allocation2 + $0x10] sm:$0xff]
        %v451 = vld [vmem:[#allocation2 + $0x18] sm:$0xff]
        %v452 = vld [vmem:[#allocation2 + $0x20] sm:$0xff]
        %v453 = vld [vmem:[#allocation2 + $0x28] sm:$0xff]
        %v454 = vld [vmem:[#allocation2 + $0x30] sm:$0xff]
        %v455 = vld [vmem:[#allocation2 + $0x38] sm:$0xff]
        %v456 = vld [vmem:[#allocation2 + $0x40] sm:$0xff]
        %v457 = vld [vmem:[#allocation2 + $0x48] sm:$0xff]
        %v458 = vld [vmem:[#allocation2 + $0x50] sm:$0xff]
        %v459 = vld [vmem:[#allocation2 + $0x58] sm:$0xff]
        %v460 = vld [vmem:[#allocation2 + $0x60] sm:$0xff]
        %v461 = vld [vmem:[#allocation2 + $0x68] sm:$0xff]
        %v462 = vld [vmem:[#allocation2 + $0x70] sm:$0xff]
        %v463 = vld [vmem:[#allocation2 + $0x78] sm:$0xff]
        %v464 = vld [vmem:[#allocation2 + $0x80] sm:$0xff]
        %v465 = vld [vmem:[#allocation2 + $0x88] sm:$0xff]
        %v466 = vld [vmem:[#allocation2 + $0x90] sm:$0xff]
        %v467 = vld [vmem:[#allocation2 + $0x98] sm:$0xff]
        %v468 = vld [vmem:[#allocation2 + $0xa0] sm:$0xff]
        %v469 = vld [vmem:[#allocation2 + $0xa8] sm:$0xff]
        %v470 = vld [vmem:[#allocation2 + $0xb0] sm:$0xff]
        %v471 = vld [vmem:[#allocation2 + $0xb8] sm:$0xff]
        %v472 = vld [vmem:[#allocation2 + $0xc0] sm:$0xff]
        %v473 = vld [vmem:[#allocation2 + $0xc8] sm:$0xff]
        %v474 = vld [vmem:[#allocation2 + $0xd0] sm:$0xff]
        %v475 = vld [vmem:[#allocation2 + $0xd8] sm:$0xff]
        %v476 = vld [vmem:[#allocation2 + $0xe0] sm:$0xff]
        %v477 = vld [vmem:[#allocation2 + $0xe8] sm:$0xff]
        %v478 = vld [vmem:[#allocation2 + $0xf0] sm:$0xff]
        %v479 = vld [vmem:[#allocation2 + $0xf8] sm:$0xff]
        %v481 = vperm.slane %v447, 0
        %v482 = vperm.slane %v447, 1
        %v485 = vadd.f32 %v481, %v448
        %v486 = vadd.f32 %v482, %v449
        %v487 = vadd.f32 %v481, %v450
        %v488 = vadd.f32 %v482, %v451
        %v489 = vadd.f32 %v481, %v452
        %v490 = vadd.f32 %v482, %v453
        %v491 = vadd.f32 %v481, %v454
        %v492 = vadd.f32 %v482, %v455
        %v493 = vadd.f32 %v481, %v456
        %v494 = vadd.f32 %v482, %v457
        %v495 = vadd.f32 %v481, %v458
        %v496 = vadd.f32 %v482, %v459
        %v497 = vadd.f32 %v481, %v460
        %v498 = vadd.f32 %v482, %v461
        %v499 = vadd.f32 %v481, %v462
        %v500 = vadd.f32 %v482, %v463
        %v501 = vadd.f32 %v481, %v464
        %v502 = vadd.f32 %v482, %v465
        %v503 = vadd.f32 %v481, %v466
        %v504 = vadd.f32 %v482, %v467
        %v505 = vadd.f32 %v481, %v468
        %v506 = vadd.f32 %v482, %v469
        %v507 = vadd.f32 %v481, %v470
        %v508 = vadd.f32 %v482, %v471
        %v509 = vadd.f32 %v481, %v472
        %v510 = vadd.f32 %v482, %v473
        %v511 = vadd.f32 %v481, %v474
        %v512 = vadd.f32 %v482, %v475
        %v513 = vadd.f32 %v481, %v476
        %v514 = vadd.f32 %v482, %v477
        %v515 = vadd.f32 %v481, %v478
        %v516 = vadd.f32 %v482, %v479
        %v517 = vmin.f32 %v485, %v486
        %518 = vmin.xlane.f32.xlu0 %v517
        %v519 = vpop.xlane.xlu0 %518
        %v520 = vmin.f32 %v487, %v488
        %521 = vmin.xlane.f32.xlu0 %v520
        %v522 = vpop.xlane.xlu0 %521
        %v523 = vmin.f32 %v489, %v490
        %524 = vmin.xlane.f32.xlu0 %v523
        %v525 = vpop.xlane.xlu0 %524
        %v526 = vmin.f32 %v491, %v492
        %527 = vmin.xlane.f32.xlu0 %v526
        %v528 = vpop.xlane.xlu0 %527
        %v529 = vmin.f32 %v493, %v494
        %530 = vmin.xlane.f32.xlu0 %v529
        %v531 = vpop.xlane.xlu0 %530
        %v532 = vmin.f32 %v495, %v496
        %533 = vmin.xlane.f32.xlu0 %v532
        %v534 = vpop.xlane.xlu0 %533
        %v535 = vmin.f32 %v497, %v498
        %536 = vmin.xlane.f32.xlu0 %v535
        %v537 = vpop.xlane.xlu0 %536
        %v538 = vmin.f32 %v499, %v500
        %539 = vmin.xlane.f32.xlu0 %v538
        %v540 = vpop.xlane.xlu0 %539
        %v541 = vmin.f32 %v501, %v502
        %542 = vmin.xlane.f32.xlu0 %v541
        %v543 = vpop.xlane.xlu0 %542
        %v544 = vmin.f32 %v503, %v504
        %545 = vmin.xlane.f32.xlu0 %v544
        %v546 = vpop.xlane.xlu0 %545
        %v547 = vmin.f32 %v505, %v506
        %548 = vmin.xlane.f32.xlu0 %v547
        %v549 = vpop.xlane.xlu0 %548
        %v550 = vmin.f32 %v507, %v508
        %551 = vmin.xlane.f32.xlu0 %v550
        %v552 = vpop.xlane.xlu0 %551
        %v553 = vmin.f32 %v509, %v510
        %554 = vmin.xlane.f32.xlu0 %v553
        %v555 = vpop.xlane.xlu0 %554
        %v556 = vmin.f32 %v511, %v512
        %557 = vmin.xlane.f32.xlu0 %v556
        %v558 = vpop.xlane.xlu0 %557
        %v559 = vmin.f32 %v513, %v514
        %560 = vmin.xlane.f32.xlu0 %v559
        %v561 = vpop.xlane.xlu0 %560
        %v562 = vmin.f32 %v515, %v516
        %563 = vmin.xlane.f32.xlu0 %v562
        %v564 = vpop.xlane.xlu0 %563
        %vm565 = vcmask 7168
        %566 = vst.msk [vmem:[#allocation3] sm:$0xff] %vm565, %v519
        %567 = vst.msk [vmem:[#allocation3 + $0x8] sm:$0xff] %vm565, %v522
        %568 = vst.msk [vmem:[#allocation3 + $0x10] sm:$0xff] %vm565, %v525
        %569 = vst.msk [vmem:[#allocation3 + $0x18] sm:$0xff] %vm565, %v528
        %570 = vst.msk [vmem:[#allocation3 + $0x20] sm:$0xff] %vm565, %v531
        %571 = vst.msk [vmem:[#allocation3 + $0x28] sm:$0xff] %vm565, %v534
        %572 = vst.msk [vmem:[#allocation3 + $0x30] sm:$0xff] %vm565, %v537
        %573 = vst.msk [vmem:[#allocation3 + $0x38] sm:$0xff] %vm565, %v540
        %574 = vst.msk [vmem:[#allocation3 + $0x40] sm:$0xff] %vm565, %v543
        %575 = vst.msk [vmem:[#allocation3 + $0x48] sm:$0xff] %vm565, %v546
        %576 = vst.msk [vmem:[#allocation3 + $0x50] sm:$0xff] %vm565, %v549
        %577 = vst.msk [vmem:[#allocation3 + $0x58] sm:$0xff] %vm565, %v552
        %578 = vst.msk [vmem:[#allocation3 + $0x60] sm:$0xff] %vm565, %v555
        %579 = vst.msk [vmem:[#allocation3 + $0x68] sm:$0xff] %vm565, %v558
        %580 = vst.msk [vmem:[#allocation3 + $0x70] sm:$0xff] %vm565, %v561
        %581 = vst.msk [vmem:[#allocation3 + $0x78] sm:$0xff] %vm565, %v564
        %s582 = scalar_lea.vmem %s1, 1
        %v583 = vld [vmem:[%s582] ss:$8 sm:$0x3]
        %v584 = vld [vmem:[#allocation2] sm:$0xff]
        %v585 = vld [vmem:[#allocation2 + $0x8] sm:$0xff]
        %v586 = vld [vmem:[#allocation2 + $0x10] sm:$0xff]
        %v587 = vld [vmem:[#allocation2 + $0x18] sm:$0xff]
        %v588 = vld [vmem:[#allocation2 + $0x20] sm:$0xff]
        %v589 = vld [vmem:[#allocation2 + $0x28] sm:$0xff]
        %v590 = vld [vmem:[#allocation2 + $0x30] sm:$0xff]
        %v591 = vld [vmem:[#allocation2 + $0x38] sm:$0xff]
        %v592 = vld [vmem:[#allocation2 + $0x40] sm:$0xff]
        %v593 = vld [vmem:[#allocation2 + $0x48] sm:$0xff]
        %v594 = vld [vmem:[#allocation2 + $0x50] sm:$0xff]
        %v595 = vld [vmem:[#allocation2 + $0x58] sm:$0xff]
        %v596 = vld [vmem:[#allocation2 + $0x60] sm:$0xff]
        %v597 = vld [vmem:[#allocation2 + $0x68] sm:$0xff]
        %v598 = vld [vmem:[#allocation2 + $0x70] sm:$0xff]
        %v599 = vld [vmem:[#allocation2 + $0x78] sm:$0xff]
        %v600 = vld [vmem:[#allocation2 + $0x80] sm:$0xff]
        %v601 = vld [vmem:[#allocation2 + $0x88] sm:$0xff]
        %v602 = vld [vmem:[#allocation2 + $0x90] sm:$0xff]
        %v603 = vld [vmem:[#allocation2 + $0x98] sm:$0xff]
        %v604 = vld [vmem:[#allocation2 + $0xa0] sm:$0xff]
        %v605 = vld [vmem:[#allocation2 + $0xa8] sm:$0xff]
        %v606 = vld [vmem:[#allocation2 + $0xb0] sm:$0xff]
        %v607 = vld [vmem:[#allocation2 + $0xb8] sm:$0xff]
        %v608 = vld [vmem:[#allocation2 + $0xc0] sm:$0xff]
        %v609 = vld [vmem:[#allocation2 + $0xc8] sm:$0xff]
        %v610 = vld [vmem:[#allocation2 + $0xd0] sm:$0xff]
        %v611 = vld [vmem:[#allocation2 + $0xd8] sm:$0xff]
        %v612 = vld [vmem:[#allocation2 + $0xe0] sm:$0xff]
        %v613 = vld [vmem:[#allocation2 + $0xe8] sm:$0xff]
        %v614 = vld [vmem:[#allocation2 + $0xf0] sm:$0xff]
        %v615 = vld [vmem:[#allocation2 + $0xf8] sm:$0xff]
        %v617 = vperm.slane %v583, 0
        %v618 = vperm.slane %v583, 1
        %v621 = vadd.f32 %v617, %v584
        %v622 = vadd.f32 %v618, %v585
        %v623 = vadd.f32 %v617, %v586
        %v624 = vadd.f32 %v618, %v587
        %v625 = vadd.f32 %v617, %v588
        %v626 = vadd.f32 %v618, %v589
        %v627 = vadd.f32 %v617, %v590
        %v628 = vadd.f32 %v618, %v591
        %v629 = vadd.f32 %v617, %v592
        %v630 = vadd.f32 %v618, %v593
        %v631 = vadd.f32 %v617, %v594
        %v632 = vadd.f32 %v618, %v595
        %v633 = vadd.f32 %v617, %v596
        %v634 = vadd.f32 %v618, %v597
        %v635 = vadd.f32 %v617, %v598
        %v636 = vadd.f32 %v618, %v599
        %v637 = vadd.f32 %v617, %v600
        %v638 = vadd.f32 %v618, %v601
        %v639 = vadd.f32 %v617, %v602
        %v640 = vadd.f32 %v618, %v603
        %v641 = vadd.f32 %v617, %v604
        %v642 = vadd.f32 %v618, %v605
        %v643 = vadd.f32 %v617, %v606
        %v644 = vadd.f32 %v618, %v607
        %v645 = vadd.f32 %v617, %v608
        %v646 = vadd.f32 %v618, %v609
        %v647 = vadd.f32 %v617, %v610
        %v648 = vadd.f32 %v618, %v611
        %v649 = vadd.f32 %v617, %v612
        %v650 = vadd.f32 %v618, %v613
        %v651 = vadd.f32 %v617, %v614
        %v652 = vadd.f32 %v618, %v615
        %v653 = vmin.f32 %v621, %v622
        %654 = vmin.xlane.f32.xlu0 %v653
        %v655 = vpop.xlane.xlu0 %654
        %v656 = vmin.f32 %v623, %v624
        %657 = vmin.xlane.f32.xlu0 %v656
        %v658 = vpop.xlane.xlu0 %657
        %v659 = vmin.f32 %v625, %v626
        %660 = vmin.xlane.f32.xlu0 %v659
        %v661 = vpop.xlane.xlu0 %660
        %v662 = vmin.f32 %v627, %v628
        %663 = vmin.xlane.f32.xlu0 %v662
        %v664 = vpop.xlane.xlu0 %663
        %v665 = vmin.f32 %v629, %v630
        %666 = vmin.xlane.f32.xlu0 %v665
        %v667 = vpop.xlane.xlu0 %666
        %v668 = vmin.f32 %v631, %v632
        %669 = vmin.xlane.f32.xlu0 %v668
        %v670 = vpop.xlane.xlu0 %669
        %v671 = vmin.f32 %v633, %v634
        %672 = vmin.xlane.f32.xlu0 %v671
        %v673 = vpop.xlane.xlu0 %672
        %v674 = vmin.f32 %v635, %v636
        %675 = vmin.xlane.f32.xlu0 %v674
        %v676 = vpop.xlane.xlu0 %675
        %v677 = vmin.f32 %v637, %v638
        %678 = vmin.xlane.f32.xlu0 %v677
        %v679 = vpop.xlane.xlu0 %678
        %v680 = vmin.f32 %v639, %v640
        %681 = vmin.xlane.f32.xlu0 %v680
        %v682 = vpop.xlane.xlu0 %681
        %v683 = vmin.f32 %v641, %v642
        %684 = vmin.xlane.f32.xlu0 %v683
        %v685 = vpop.xlane.xlu0 %684
        %v686 = vmin.f32 %v643, %v644
        %687 = vmin.xlane.f32.xlu0 %v686
        %v688 = vpop.xlane.xlu0 %687
        %v689 = vmin.f32 %v645, %v646
        %690 = vmin.xlane.f32.xlu0 %v689
        %v691 = vpop.xlane.xlu0 %690
        %v692 = vmin.f32 %v647, %v648
        %693 = vmin.xlane.f32.xlu0 %v692
        %v694 = vpop.xlane.xlu0 %693
        %v695 = vmin.f32 %v649, %v650
        %696 = vmin.xlane.f32.xlu0 %v695
        %v697 = vpop.xlane.xlu0 %696
        %v698 = vmin.f32 %v651, %v652
        %699 = vmin.xlane.f32.xlu0 %v698
        %v700 = vpop.xlane.xlu0 %699
        %vm701 = vcmask 15368
        %702 = vst.msk [vmem:[#allocation3] sm:$0xff] %vm701, %v655
        %703 = vst.msk [vmem:[#allocation3 + $0x8] sm:$0xff] %vm701, %v658
        %704 = vst.msk [vmem:[#allocation3 + $0x10] sm:$0xff] %vm701, %v661
        %705 = vst.msk [vmem:[#allocation3 + $0x18] sm:$0xff] %vm701, %v664
        %706 = vst.msk [vmem:[#allocation3 + $0x20] sm:$0xff] %vm701, %v667
        %707 = vst.msk [vmem:[#allocation3 + $0x28] sm:$0xff] %vm701, %v670
        %708 = vst.msk [vmem:[#allocation3 + $0x30] sm:$0xff] %vm701, %v673
        %709 = vst.msk [vmem:[#allocation3 + $0x38] sm:$0xff] %vm701, %v676
        %710 = vst.msk [vmem:[#allocation3 + $0x40] sm:$0xff] %vm701, %v679
        %711 = vst.msk [vmem:[#allocation3 + $0x48] sm:$0xff] %vm701, %v682
        %712 = vst.msk [vmem:[#allocation3 + $0x50] sm:$0xff] %vm701, %v685
        %713 = vst.msk [vmem:[#allocation3 + $0x58] sm:$0xff] %vm701, %v688
        %714 = vst.msk [vmem:[#allocation3 + $0x60] sm:$0xff] %vm701, %v691
        %715 = vst.msk [vmem:[#allocation3 + $0x68] sm:$0xff] %vm701, %v694
        %716 = vst.msk [vmem:[#allocation3 + $0x70] sm:$0xff] %vm701, %v697
        %717 = vst.msk [vmem:[#allocation3 + $0x78] sm:$0xff] %vm701, %v700
        %s718 = scalar_lea.vmem %s1, 2
        %v719 = vld [vmem:[%s718] ss:$8 sm:$0x3]
        %v720 = vld [vmem:[#allocation2] sm:$0xff]
        %v721 = vld [vmem:[#allocation2 + $0x8] sm:$0xff]
        %v722 = vld [vmem:[#allocation2 + $0x10] sm:$0xff]
        %v723 = vld [vmem:[#allocation2 + $0x18] sm:$0xff]
        %v724 = vld [vmem:[#allocation2 + $0x20] sm:$0xff]
        %v725 = vld [vmem:[#allocation2 + $0x28] sm:$0xff]
        %v726 = vld [vmem:[#allocation2 + $0x30] sm:$0xff]
        %v727 = vld [vmem:[#allocation2 + $0x38] sm:$0xff]
        %v728 = vld [vmem:[#allocation2 + $0x40] sm:$0xff]
        %v729 = vld [vmem:[#allocation2 + $0x48] sm:$0xff]
        %v730 = vld [vmem:[#allocation2 + $0x50] sm:$0xff]
        %v731 = vld [vmem:[#allocation2 + $0x58] sm:$0xff]
        %v732 = vld [vmem:[#allocation2 + $0x60] sm:$0xff]
        %v733 = vld [vmem:[#allocation2 + $0x68] sm:$0xff]
        %v734 = vld [vmem:[#allocation2 + $0x70] sm:$0xff]
        %v735 = vld [vmem:[#allocation2 + $0x78] sm:$0xff]
        %v736 = vld [vmem:[#allocation2 + $0x80] sm:$0xff]
        %v737 = vld [vmem:[#allocation2 + $0x88] sm:$0xff]
        %v738 = vld [vmem:[#allocation2 + $0x90] sm:$0xff]
        %v739 = vld [vmem:[#allocation2 + $0x98] sm:$0xff]
        %v740 = vld [vmem:[#allocation2 + $0xa0] sm:$0xff]
        %v741 = vld [vmem:[#allocation2 + $0xa8] sm:$0xff]
        %v742 = vld [vmem:[#allocation2 + $0xb0] sm:$0xff]
        %v743 = vld [vmem:[#allocation2 + $0xb8] sm:$0xff]
        %v744 = vld [vmem:[#allocation2 + $0xc0] sm:$0xff]
        %v745 = vld [vmem:[#allocation2 + $0xc8] sm:$0xff]
        %v746 = vld [vmem:[#allocation2 + $0xd0] sm:$0xff]
        %v747 = vld [vmem:[#allocation2 + $0xd8] sm:$0xff]
        %v748 = vld [vmem:[#allocation2 + $0xe0] sm:$0xff]
        %v749 = vld [vmem:[#allocation2 + $0xe8] sm:$0xff]
        %v750 = vld [vmem:[#allocation2 + $0xf0] sm:$0xff]
        %v751 = vld [vmem:[#allocation2 + $0xf8] sm:$0xff]
        %v753 = vperm.slane %v719, 0
        %v754 = vperm.slane %v719, 1
        %v757 = vadd.f32 %v753, %v720
        %v758 = vadd.f32 %v754, %v721
        %v759 = vadd.f32 %v753, %v722
        %v760 = vadd.f32 %v754, %v723
        %v761 = vadd.f32 %v753, %v724
        %v762 = vadd.f32 %v754, %v725
        %v763 = vadd.f32 %v753, %v726
        %v764 = vadd.f32 %v754, %v727
        %v765 = vadd.f32 %v753, %v728
        %v766 = vadd.f32 %v754, %v729
        %v767 = vadd.f32 %v753, %v730
        %v768 = vadd.f32 %v754, %v731
        %v769 = vadd.f32 %v753, %v732
        %v770 = vadd.f32 %v754, %v733
        %v771 = vadd.f32 %v753, %v734
        %v772 = vadd.f32 %v754, %v735
        %v773 = vadd.f32 %v753, %v736
        %v774 = vadd.f32 %v754, %v737
        %v775 = vadd.f32 %v753, %v738
        %v776 = vadd.f32 %v754, %v739
        %v777 = vadd.f32 %v753, %v740
        %v778 = vadd.f32 %v754, %v741
        %v779 = vadd.f32 %v753, %v742
        %v780 = vadd.f32 %v754, %v743
        %v781 = vadd.f32 %v753, %v744
        %v782 = vadd.f32 %v754, %v745
        %v783 = vadd.f32 %v753, %v746
        %v784 = vadd.f32 %v754, %v747
        %v785 = vadd.f32 %v753, %v748
        %v786 = vadd.f32 %v754, %v749
        %v787 = vadd.f32 %v753, %v750
        %v788 = vadd.f32 %v754, %v751
        %v789 = vmin.f32 %v757, %v758
        %790 = vmin.xlane.f32.xlu0 %v789
        %v791 = vpop.xlane.xlu0 %790
        %v792 = vmin.f32 %v759, %v760
        %793 = vmin.xlane.f32.xlu0 %v792
        %v794 = vpop.xlane.xlu0 %793
        %v795 = vmin.f32 %v761, %v762
        %796 = vmin.xlane.f32.xlu0 %v795
        %v797 = vpop.xlane.xlu0 %796
        %v798 = vmin.f32 %v763, %v764
        %799 = vmin.xlane.f32.xlu0 %v798
        %v800 = vpop.xlane.xlu0 %799
        %v801 = vmin.f32 %v765, %v766
        %802 = vmin.xlane.f32.xlu0 %v801
        %v803 = vpop.xlane.xlu0 %802
        %v804 = vmin.f32 %v767, %v768
        %805 = vmin.xlane.f32.xlu0 %v804
        %v806 = vpop.xlane.xlu0 %805
        %v807 = vmin.f32 %v769, %v770
        %808 = vmin.xlane.f32.xlu0 %v807
        %v809 = vpop.xlane.xlu0 %808
        %v810 = vmin.f32 %v771, %v772
        %811 = vmin.xlane.f32.xlu0 %v810
        %v812 = vpop.xlane.xlu0 %811
        %v813 = vmin.f32 %v773, %v774
        %814 = vmin.xlane.f32.xlu0 %v813
        %v815 = vpop.xlane.xlu0 %814
        %v816 = vmin.f32 %v775, %v776
        %817 = vmin.xlane.f32.xlu0 %v816
        %v818 = vpop.xlane.xlu0 %817
        %v819 = vmin.f32 %v777, %v778
        %820 = vmin.xlane.f32.xlu0 %v819
        %v821 = vpop.xlane.xlu0 %820
        %v822 = vmin.f32 %v779, %v780
        %823 = vmin.xlane.f32.xlu0 %v822
        %v824 = vpop.xlane.xlu0 %823
        %v825 = vmin.f32 %v781, %v782
        %826 = vmin.xlane.f32.xlu0 %v825
        %v827 = vpop.xlane.xlu0 %826
        %v828 = vmin.f32 %v783, %v784
        %829 = vmin.xlane.f32.xlu0 %v828
        %v830 = vpop.xlane.xlu0 %829
        %v831 = vmin.f32 %v785, %v786
        %832 = vmin.xlane.f32.xlu0 %v831
        %v833 = vpop.xlane.xlu0 %832
        %v834 = vmin.f32 %v787, %v788
        %835 = vmin.xlane.f32.xlu0 %v834
        %v836 = vpop.xlane.xlu0 %835
        %vm837 = vcmask 23568
        %838 = vst.msk [vmem:[#allocation3] sm:$0xff] %vm837, %v791
        %839 = vst.msk [vmem:[#allocation3 + $0x8] sm:$0xff] %vm837, %v794
        %840 = vst.msk [vmem:[#allocation3 + $0x10] sm:$0xff] %vm837, %v797
        %841 = vst.msk [vmem:[#allocation3 + $0x18] sm:$0xff] %vm837, %v800
        %842 = vst.msk [vmem:[#allocation3 + $0x20] sm:$0xff] %vm837, %v803
        %843 = vst.msk [vmem:[#allocation3 + $0x28] sm:$0xff] %vm837, %v806
        %844 = vst.msk [vmem:[#allocation3 + $0x30] sm:$0xff] %vm837, %v809
        %845 = vst.msk [vmem:[#allocation3 + $0x38] sm:$0xff] %vm837, %v812
        %846 = vst.msk [vmem:[#allocation3 + $0x40] sm:$0xff] %vm837, %v815
        %847 = vst.msk [vmem:[#allocation3 + $0x48] sm:$0xff] %vm837, %v818
        %848 = vst.msk [vmem:[#allocation3 + $0x50] sm:$0xff] %vm837, %v821
        %849 = vst.msk [vmem:[#allocation3 + $0x58] sm:$0xff] %vm837, %v824
        %850 = vst.msk [vmem:[#allocation3 + $0x60] sm:$0xff] %vm837, %v827
        %851 = vst.msk [vmem:[#allocation3 + $0x68] sm:$0xff] %vm837, %v830
        %852 = vst.msk [vmem:[#allocation3 + $0x70] sm:$0xff] %vm837, %v833
        %853 = vst.msk [vmem:[#allocation3 + $0x78] sm:$0xff] %vm837, %v836
        %s854 = scalar_lea.vmem %s1, 3
        %v855 = vld [vmem:[%s854] ss:$8 sm:$0x3]
        %v856 = vld [vmem:[#allocation2] sm:$0xff]
        %v857 = vld [vmem:[#allocation2 + $0x8] sm:$0xff]
        %v858 = vld [vmem:[#allocation2 + $0x10] sm:$0xff]
        %v859 = vld [vmem:[#allocation2 + $0x18] sm:$0xff]
        %v860 = vld [vmem:[#allocation2 + $0x20] sm:$0xff]
        %v861 = vld [vmem:[#allocation2 + $0x28] sm:$0xff]
        %v862 = vld [vmem:[#allocation2 + $0x30] sm:$0xff]
        %v863 = vld [vmem:[#allocation2 + $0x38] sm:$0xff]
        %v864 = vld [vmem:[#allocation2 + $0x40] sm:$0xff]
        %v865 = vld [vmem:[#allocation2 + $0x48] sm:$0xff]
        %v866 = vld [vmem:[#allocation2 + $0x50] sm:$0xff]
        %v867 = vld [vmem:[#allocation2 + $0x58] sm:$0xff]
        %v868 = vld [vmem:[#allocation2 + $0x60] sm:$0xff]
        %v869 = vld [vmem:[#allocation2 + $0x68] sm:$0xff]
        %v870 = vld [vmem:[#allocation2 + $0x70] sm:$0xff]
        %v871 = vld [vmem:[#allocation2 + $0x78] sm:$0xff]
        %v872 = vld [vmem:[#allocation2 + $0x80] sm:$0xff]
        %v873 = vld [vmem:[#allocation2 + $0x88] sm:$0xff]
        %v874 = vld [vmem:[#allocation2 + $0x90] sm:$0xff]
        %v875 = vld [vmem:[#allocation2 + $0x98] sm:$0xff]
        %v876 = vld [vmem:[#allocation2 + $0xa0] sm:$0xff]
        %v877 = vld [vmem:[#allocation2 + $0xa8] sm:$0xff]
        %v878 = vld [vmem:[#allocation2 + $0xb0] sm:$0xff]
        %v879 = vld [vmem:[#allocation2 + $0xb8] sm:$0xff]
        %v880 = vld [vmem:[#allocation2 + $0xc0] sm:$0xff]
        %v881 = vld [vmem:[#allocation2 + $0xc8] sm:$0xff]
        %v882 = vld [vmem:[#allocation2 + $0xd0] sm:$0xff]
        %v883 = vld [vmem:[#allocation2 + $0xd8] sm:$0xff]
        %v884 = vld [vmem:[#allocation2 + $0xe0] sm:$0xff]
        %v885 = vld [vmem:[#allocation2 + $0xe8] sm:$0xff]
        %v886 = vld [vmem:[#allocation2 + $0xf0] sm:$0xff]
        %v887 = vld [vmem:[#allocation2 + $0xf8] sm:$0xff]
        %v889 = vperm.slane %v855, 0
        %v890 = vperm.slane %v855, 1
        %v893 = vadd.f32 %v889, %v856
        %v894 = vadd.f32 %v890, %v857
        %v895 = vadd.f32 %v889, %v858
        %v896 = vadd.f32 %v890, %v859
        %v897 = vadd.f32 %v889, %v860
        %v898 = vadd.f32 %v890, %v861
        %v899 = vadd.f32 %v889, %v862
        %v900 = vadd.f32 %v890, %v863
        %v901 = vadd.f32 %v889, %v864
        %v902 = vadd.f32 %v890, %v865
        %v903 = vadd.f32 %v889, %v866
        %v904 = vadd.f32 %v890, %v867
        %v905 = vadd.f32 %v889, %v868
        %v906 = vadd.f32 %v890, %v869
        %v907 = vadd.f32 %v889, %v870
        %v908 = vadd.f32 %v890, %v871
        %v909 = vadd.f32 %v889, %v872
        %v910 = vadd.f32 %v890, %v873
        %v911 = vadd.f32 %v889, %v874
        %v912 = vadd.f32 %v890, %v875
        %v913 = vadd.f32 %v889, %v876
        %v914 = vadd.f32 %v890, %v877
        %v915 = vadd.f32 %v889, %v878
        %v916 = vadd.f32 %v890, %v879
        %v917 = vadd.f32 %v889, %v880
        %v918 = vadd.f32 %v890, %v881
        %v919 = vadd.f32 %v889, %v882
        %v920 = vadd.f32 %v890, %v883
        %v921 = vadd.f32 %v889, %v884
        %v922 = vadd.f32 %v890, %v885
        %v923 = vadd.f32 %v889, %v886
        %v924 = vadd.f32 %v890, %v887
        %v925 = vmin.f32 %v893, %v894
        %926 = vmin.xlane.f32.xlu0 %v925
        %v927 = vpop.xlane.xlu0 %926
        %v928 = vmin.f32 %v895, %v896
        %929 = vmin.xlane.f32.xlu0 %v928
        %v930 = vpop.xlane.xlu0 %929
        %v931 = vmin.f32 %v897, %v898
        %932 = vmin.xlane.f32.xlu0 %v931
        %v933 = vpop.xlane.xlu0 %932
        %v934 = vmin.f32 %v899, %v900
        %935 = vmin.xlane.f32.xlu0 %v934
        %v936 = vpop.xlane.xlu0 %935
        %v937 = vmin.f32 %v901, %v902
        %938 = vmin.xlane.f32.xlu0 %v937
        %v939 = vpop.xlane.xlu0 %938
        %v940 = vmin.f32 %v903, %v904
        %941 = vmin.xlane.f32.xlu0 %v940
        %v942 = vpop.xlane.xlu0 %941
        %v943 = vmin.f32 %v905, %v906
        %944 = vmin.xlane.f32.xlu0 %v943
        %v945 = vpop.xlane.xlu0 %944
        %v946 = vmin.f32 %v907, %v908
        %947 = vmin.xlane.f32.xlu0 %v946
        %v948 = vpop.xlane.xlu0 %947
        %v949 = vmin.f32 %v909, %v910
        %950 = vmin.xlane.f32.xlu0 %v949
        %v951 = vpop.xlane.xlu0 %950
        %v952 = vmin.f32 %v911, %v912
        %953 = vmin.xlane.f32.xlu0 %v952
        %v954 = vpop.xlane.xlu0 %953
        %v955 = vmin.f32 %v913, %v914
        %956 = vmin.xlane.f32.xlu0 %v955
        %v957 = vpop.xlane.xlu0 %956
        %v958 = vmin.f32 %v915, %v916
        %959 = vmin.xlane.f32.xlu0 %v958
        %v960 = vpop.xlane.xlu0 %959
        %v961 = vmin.f32 %v917, %v918
        %962 = vmin.xlane.f32.xlu0 %v961
        %v963 = vpop.xlane.xlu0 %962
        %v964 = vmin.f32 %v919, %v920
        %965 = vmin.xlane.f32.xlu0 %v964
        %v966 = vpop.xlane.xlu0 %965
        %v967 = vmin.f32 %v921, %v922
        %968 = vmin.xlane.f32.xlu0 %v967
        %v969 = vpop.xlane.xlu0 %968
        %v970 = vmin.f32 %v923, %v924
        %971 = vmin.xlane.f32.xlu0 %v970
        %v972 = vpop.xlane.xlu0 %971
        %vm973 = vcmask 31768
        %974 = vst.msk [vmem:[#allocation3] sm:$0xff] %vm973, %v927
        %975 = vst.msk [vmem:[#allocation3 + $0x8] sm:$0xff] %vm973, %v930
        %976 = vst.msk [vmem:[#allocation3 + $0x10] sm:$0xff] %vm973, %v933
        %977 = vst.msk [vmem:[#allocation3 + $0x18] sm:$0xff] %vm973, %v936
        %978 = vst.msk [vmem:[#allocation3 + $0x20] sm:$0xff] %vm973, %v939
        %979 = vst.msk [vmem:[#allocation3 + $0x28] sm:$0xff] %vm973, %v942
        %980 = vst.msk [vmem:[#allocation3 + $0x30] sm:$0xff] %vm973, %v945
        %981 = vst.msk [vmem:[#allocation3 + $0x38] sm:$0xff] %vm973, %v948
        %982 = vst.msk [vmem:[#allocation3 + $0x40] sm:$0xff] %vm973, %v951
        %983 = vst.msk [vmem:[#allocation3 + $0x48] sm:$0xff] %vm973, %v954
        %984 = vst.msk [vmem:[#allocation3 + $0x50] sm:$0xff] %vm973, %v957
        %985 = vst.msk [vmem:[#allocation3 + $0x58] sm:$0xff] %vm973, %v960
        %986 = vst.msk [vmem:[#allocation3 + $0x60] sm:$0xff] %vm973, %v963
        %987 = vst.msk [vmem:[#allocation3 + $0x68] sm:$0xff] %vm973, %v966
        %988 = vst.msk [vmem:[#allocation3 + $0x70] sm:$0xff] %vm973, %v969
        %989 = vst.msk [vmem:[#allocation3 + $0x78] sm:$0xff] %vm973, %v972
        %s990 = scalar_lea.vmem %s1, 4
        %v991 = vld [vmem:[%s990] ss:$8 sm:$0x3]
        %v992 = vld [vmem:[#allocation2] sm:$0xff]
        %v993 = vld [vmem:[#allocation2 + $0x8] sm:$0xff]
        %v994 = vld [vmem:[#allocation2 + $0x10] sm:$0xff]
        %v995 = vld [vmem:[#allocation2 + $0x18] sm:$0xff]
        %v996 = vld [vmem:[#allocation2 + $0x20] sm:$0xff]
        %v997 = vld [vmem:[#allocation2 + $0x28] sm:$0xff]
        %v998 = vld [vmem:[#allocation2 + $0x30] sm:$0xff]
        %v999 = vld [vmem:[#allocation2 + $0x38] sm:$0xff]
        %v1000 = vld [vmem:[#allocation2 + $0x40] sm:$0xff]
        %v1001 = vld [vmem:[#allocation2 + $0x48] sm:$0xff]
        %v1002 = vld [vmem:[#allocation2 + $0x50] sm:$0xff]
        %v1003 = vld [vmem:[#allocation2 + $0x58] sm:$0xff]
        %v1004 = vld [vmem:[#allocation2 + $0x60] sm:$0xff]
        %v1005 = vld [vmem:[#allocation2 + $0x68] sm:$0xff]
        %v1006 = vld [vmem:[#allocation2 + $0x70] sm:$0xff]
        %v1007 = vld [vmem:[#allocation2 + $0x78] sm:$0xff]
        %v1008 = vld [vmem:[#allocation2 + $0x80] sm:$0xff]
        %v1009 = vld [vmem:[#allocation2 + $0x88] sm:$0xff]
        %v1010 = vld [vmem:[#allocation2 + $0x90] sm:$0xff]
        %v1011 = vld [vmem:[#allocation2 + $0x98] sm:$0xff]
        %v1012 = vld [vmem:[#allocation2 + $0xa0] sm:$0xff]
        %v1013 = vld [vmem:[#allocation2 + $0xa8] sm:$0xff]
        %v1014 = vld [vmem:[#allocation2 + $0xb0] sm:$0xff]
        %v1015 = vld [vmem:[#allocation2 + $0xb8] sm:$0xff]
        %v1016 = vld [vmem:[#allocation2 + $0xc0] sm:$0xff]
        %v1017 = vld [vmem:[#allocation2 + $0xc8] sm:$0xff]
        %v1018 = vld [vmem:[#allocation2 + $0xd0] sm:$0xff]
        %v1019 = vld [vmem:[#allocation2 + $0xd8] sm:$0xff]
        %v1020 = vld [vmem:[#allocation2 + $0xe0] sm:$0xff]
        %v1021 = vld [vmem:[#allocation2 + $0xe8] sm:$0xff]
        %v1022 = vld [vmem:[#allocation2 + $0xf0] sm:$0xff]
        %v1023 = vld [vmem:[#allocation2 + $0xf8] sm:$0xff]
        %v1025 = vperm.slane %v991, 0
        %v1026 = vperm.slane %v991, 1
        %v1029 = vadd.f32 %v1025, %v992
        %v1030 = vadd.f32 %v1026, %v993
        %v1031 = vadd.f32 %v1025, %v994
        %v1032 = vadd.f32 %v1026, %v995
        %v1033 = vadd.f32 %v1025, %v996
        %v1034 = vadd.f32 %v1026, %v997
        %v1035 = vadd.f32 %v1025, %v998
        %v1036 = vadd.f32 %v1026, %v999
        %v1037 = vadd.f32 %v1025, %v1000
        %v1038 = vadd.f32 %v1026, %v1001
        %v1039 = vadd.f32 %v1025, %v1002
        %v1040 = vadd.f32 %v1026, %v1003
        %v1041 = vadd.f32 %v1025, %v1004
        %v1042 = vadd.f32 %v1026, %v1005
        %v1043 = vadd.f32 %v1025, %v1006
        %v1044 = vadd.f32 %v1026, %v1007
        %v1045 = vadd.f32 %v1025, %v1008
        %v1046 = vadd.f32 %v1026, %v1009
        %v1047 = vadd.f32 %v1025, %v1010
        %v1048 = vadd.f32 %v1026, %v1011
        %v1049 = vadd.f32 %v1025, %v1012
        %v1050 = vadd.f32 %v1026, %v1013
        %v1051 = vadd.f32 %v1025, %v1014
        %v1052 = vadd.f32 %v1026, %v1015
        %v1053 = vadd.f32 %v1025, %v1016
        %v1054 = vadd.f32 %v1026, %v1017
        %v1055 = vadd.f32 %v1025, %v1018
        %v1056 = vadd.f32 %v1026, %v1019
        %v1057 = vadd.f32 %v1025, %v1020
        %v1058 = vadd.f32 %v1026, %v1021
        %v1059 = vadd.f32 %v1025, %v1022
        %v1060 = vadd.f32 %v1026, %v1023
        %v1061 = vmin.f32 %v1029, %v1030
        %1062 = vmin.xlane.f32.xlu0 %v1061
        %v1063 = vpop.xlane.xlu0 %1062
        %v1064 = vmin.f32 %v1031, %v1032
        %1065 = vmin.xlane.f32.xlu0 %v1064
        %v1066 = vpop.xlane.xlu0 %1065
        %v1067 = vmin.f32 %v1033, %v1034
        %1068 = vmin.xlane.f32.xlu0 %v1067
        %v1069 = vpop.xlane.xlu0 %1068
        %v1070 = vmin.f32 %v1035, %v1036
        %1071 = vmin.xlane.f32.xlu0 %v1070
        %v1072 = vpop.xlane.xlu0 %1071
        %v1073 = vmin.f32 %v1037, %v1038
        %1074 = vmin.xlane.f32.xlu0 %v1073
        %v1075 = vpop.xlane.xlu0 %1074
        %v1076 = vmin.f32 %v1039, %v1040
        %1077 = vmin.xlane.f32.xlu0 %v1076
        %v1078 = vpop.xlane.xlu0 %1077
        %v1079 = vmin.f32 %v1041, %v1042
        %1080 = vmin.xlane.f32.xlu0 %v1079
        %v1081 = vpop.xlane.xlu0 %1080
        %v1082 = vmin.f32 %v1043, %v1044
        %1083 = vmin.xlane.f32.xlu0 %v1082
        %v1084 = vpop.xlane.xlu0 %1083
        %v1085 = vmin.f32 %v1045, %v1046
        %1086 = vmin.xlane.f32.xlu0 %v1085
        %v1087 = vpop.xlane.xlu0 %1086
        %v1088 = vmin.f32 %v1047, %v1048
        %1089 = vmin.xlane.f32.xlu0 %v1088
        %v1090 = vpop.xlane.xlu0 %1089
        %v1091 = vmin.f32 %v1049, %v1050
        %1092 = vmin.xlane.f32.xlu0 %v1091
        %v1093 = vpop.xlane.xlu0 %1092
        %v1094 = vmin.f32 %v1051, %v1052
        %1095 = vmin.xlane.f32.xlu0 %v1094
        %v1096 = vpop.xlane.xlu0 %1095
        %v1097 = vmin.f32 %v1053, %v1054
        %1098 = vmin.xlane.f32.xlu0 %v1097
        %v1099 = vpop.xlane.xlu0 %1098
        %v1100 = vmin.f32 %v1055, %v1056
        %1101 = vmin.xlane.f32.xlu0 %v1100
        %v1102 = vpop.xlane.xlu0 %1101
        %v1103 = vmin.f32 %v1057, %v1058
        %1104 = vmin.xlane.f32.xlu0 %v1103
        %v1105 = vpop.xlane.xlu0 %1104
        %v1106 = vmin.f32 %v1059, %v1060
        %1107 = vmin.xlane.f32.xlu0 %v1106
        %v1108 = vpop.xlane.xlu0 %1107
        %vm1109 = vcmask 39968
        %1110 = vst.msk [vmem:[#allocation3] sm:$0xff] %vm1109, %v1063
        %1111 = vst.msk [vmem:[#allocation3 + $0x8] sm:$0xff] %vm1109, %v1066
        %1112 = vst.msk [vmem:[#allocation3 + $0x10] sm:$0xff] %vm1109, %v1069
        %1113 = vst.msk [vmem:[#allocation3 + $0x18] sm:$0xff] %vm1109, %v1072
        %1114 = vst.msk [vmem:[#allocation3 + $0x20] sm:$0xff] %vm1109, %v1075
        %1115 = vst.msk [vmem:[#allocation3 + $0x28] sm:$0xff] %vm1109, %v1078
        %1116 = vst.msk [vmem:[#allocation3 + $0x30] sm:$0xff] %vm1109, %v1081
        %1117 = vst.msk [vmem:[#allocation3 + $0x38] sm:$0xff] %vm1109, %v1084
        %1118 = vst.msk [vmem:[#allocation3 + $0x40] sm:$0xff] %vm1109, %v1087
        %1119 = vst.msk [vmem:[#allocation3 + $0x48] sm:$0xff] %vm1109, %v1090
        %1120 = vst.msk [vmem:[#allocation3 + $0x50] sm:$0xff] %vm1109, %v1093
        %1121 = vst.msk [vmem:[#allocation3 + $0x58] sm:$0xff] %vm1109, %v1096
        %1122 = vst.msk [vmem:[#allocation3 + $0x60] sm:$0xff] %vm1109, %v1099
        %1123 = vst.msk [vmem:[#allocation3 + $0x68] sm:$0xff] %vm1109, %v1102
        %1124 = vst.msk [vmem:[#allocation3 + $0x70] sm:$0xff] %vm1109, %v1105
        %1125 = vst.msk [vmem:[#allocation3 + $0x78] sm:$0xff] %vm1109, %v1108
        %s1126 = scalar_lea.vmem %s1, 5
        %v1127 = vld [vmem:[%s1126] ss:$8 sm:$0x3]
        %v1128 = vld [vmem:[#allocation2] sm:$0xff]
        %v1129 = vld [vmem:[#allocation2 + $0x8] sm:$0xff]
        %v1130 = vld [vmem:[#allocation2 + $0x10] sm:$0xff]
        %v1131 = vld [vmem:[#allocation2 + $0x18] sm:$0xff]
        %v1132 = vld [vmem:[#allocation2 + $0x20] sm:$0xff]
        %v1133 = vld [vmem:[#allocation2 + $0x28] sm:$0xff]
        %v1134 = vld [vmem:[#allocation2 + $0x30] sm:$0xff]
        %v1135 = vld [vmem:[#allocation2 + $0x38] sm:$0xff]
        %v1136 = vld [vmem:[#allocation2 + $0x40] sm:$0xff]
        %v1137 = vld [vmem:[#allocation2 + $0x48] sm:$0xff]
        %v1138 = vld [vmem:[#allocation2 + $0x50] sm:$0xff]
        %v1139 = vld [vmem:[#allocation2 + $0x58] sm:$0xff]
        %v1140 = vld [vmem:[#allocation2 + $0x60] sm:$0xff]
        %v1141 = vld [vmem:[#allocation2 + $0x68] sm:$0xff]
        %v1142 = vld [vmem:[#allocation2 + $0x70] sm:$0xff]
        %v1143 = vld [vmem:[#allocation2 + $0x78] sm:$0xff]
        %v1144 = vld [vmem:[#allocation2 + $0x80] sm:$0xff]
        %v1145 = vld [vmem:[#allocation2 + $0x88] sm:$0xff]
        %v1146 = vld [vmem:[#allocation2 + $0x90] sm:$0xff]
        %v1147 = vld [vmem:[#allocation2 + $0x98] sm:$0xff]
        %v1148 = vld [vmem:[#allocation2 + $0xa0] sm:$0xff]
        %v1149 = vld [vmem:[#allocation2 + $0xa8] sm:$0xff]
        %v1150 = vld [vmem:[#allocation2 + $0xb0] sm:$0xff]
        %v1151 = vld [vmem:[#allocation2 + $0xb8] sm:$0xff]
        %v1152 = vld [vmem:[#allocation2 + $0xc0] sm:$0xff]
        %v1153 = vld [vmem:[#allocation2 + $0xc8] sm:$0xff]
        %v1154 = vld [vmem:[#allocation2 + $0xd0] sm:$0xff]
        %v1155 = vld [vmem:[#allocation2 + $0xd8] sm:$0xff]
        %v1156 = vld [vmem:[#allocation2 + $0xe0] sm:$0xff]
        %v1157 = vld [vmem:[#allocation2 + $0xe8] sm:$0xff]
        %v1158 = vld [vmem:[#allocation2 + $0xf0] sm:$0xff]
        %v1159 = vld [vmem:[#allocation2 + $0xf8] sm:$0xff]
        %v1161 = vperm.slane %v1127, 0
        %v1162 = vperm.slane %v1127, 1
        %v1165 = vadd.f32 %v1161, %v1128
        %v1166 = vadd.f32 %v1162, %v1129
        %v1167 = vadd.f32 %v1161, %v1130
        %v1168 = vadd.f32 %v1162, %v1131
        %v1169 = vadd.f32 %v1161, %v1132
        %v1170 = vadd.f32 %v1162, %v1133
        %v1171 = vadd.f32 %v1161, %v1134
        %v1172 = vadd.f32 %v1162, %v1135
        %v1173 = vadd.f32 %v1161, %v1136
        %v1174 = vadd.f32 %v1162, %v1137
        %v1175 = vadd.f32 %v1161, %v1138
        %v1176 = vadd.f32 %v1162, %v1139
        %v1177 = vadd.f32 %v1161, %v1140
        %v1178 = vadd.f32 %v1162, %v1141
        %v1179 = vadd.f32 %v1161, %v1142
        %v1180 = vadd.f32 %v1162, %v1143
        %v1181 = vadd.f32 %v1161, %v1144
        %v1182 = vadd.f32 %v1162, %v1145
        %v1183 = vadd.f32 %v1161, %v1146
        %v1184 = vadd.f32 %v1162, %v1147
        %v1185 = vadd.f32 %v1161, %v1148
        %v1186 = vadd.f32 %v1162, %v1149
        %v1187 = vadd.f32 %v1161, %v1150
        %v1188 = vadd.f32 %v1162, %v1151
        %v1189 = vadd.f32 %v1161, %v1152
        %v1190 = vadd.f32 %v1162, %v1153
        %v1191 = vadd.f32 %v1161, %v1154
        %v1192 = vadd.f32 %v1162, %v1155
        %v1193 = vadd.f32 %v1161, %v1156
        %v1194 = vadd.f32 %v1162, %v1157
        %v1195 = vadd.f32 %v1161, %v1158
        %v1196 = vadd.f32 %v1162, %v1159
        %v1197 = vmin.f32 %v1165, %v1166
        %1198 = vmin.xlane.f32.xlu0 %v1197
        %v1199 = vpop.xlane.xlu0 %1198
        %v1200 = vmin.f32 %v1167, %v1168
        %1201 = vmin.xlane.f32.xlu0 %v1200
        %v1202 = vpop.xlane.xlu0 %1201
        %v1203 = vmin.f32 %v1169, %v1170
        %1204 = vmin.xlane.f32.xlu0 %v1203
        %v1205 = vpop.xlane.xlu0 %1204
        %v1206 = vmin.f32 %v1171, %v1172
        %1207 = vmin.xlane.f32.xlu0 %v1206
        %v1208 = vpop.xlane.xlu0 %1207
        %v1209 = vmin.f32 %v1173, %v1174
        %1210 = vmin.xlane.f32.xlu0 %v1209
        %v1211 = vpop.xlane.xlu0 %1210
        %v1212 = vmin.f32 %v1175, %v1176
        %1213 = vmin.xlane.f32.xlu0 %v1212
        %v1214 = vpop.xlane.xlu0 %1213
        %v1215 = vmin.f32 %v1177, %v1178
        %1216 = vmin.xlane.f32.xlu0 %v1215
        %v1217 = vpop.xlane.xlu0 %1216
        %v1218 = vmin.f32 %v1179, %v1180
        %1219 = vmin.xlane.f32.xlu0 %v1218
        %v1220 = vpop.xlane.xlu0 %1219
        %v1221 = vmin.f32 %v1181, %v1182
        %1222 = vmin.xlane.f32.xlu0 %v1221
        %v1223 = vpop.xlane.xlu0 %1222
        %v1224 = vmin.f32 %v1183, %v1184
        %1225 = vmin.xlane.f32.xlu0 %v1224
        %v1226 = vpop.xlane.xlu0 %1225
        %v1227 = vmin.f32 %v1185, %v1186
        %1228 = vmin.xlane.f32.xlu0 %v1227
        %v1229 = vpop.xlane.xlu0 %1228
        %v1230 = vmin.f32 %v1187, %v1188
        %1231 = vmin.xlane.f32.xlu0 %v1230
        %v1232 = vpop.xlane.xlu0 %1231
        %v1233 = vmin.f32 %v1189, %v1190
        %1234 = vmin.xlane.f32.xlu0 %v1233
        %v1235 = vpop.xlane.xlu0 %1234
        %v1236 = vmin.f32 %v1191, %v1192
        %1237 = vmin.xlane.f32.xlu0 %v1236
        %v1238 = vpop.xlane.xlu0 %1237
        %v1239 = vmin.f32 %v1193, %v1194
        %1240 = vmin.xlane.f32.xlu0 %v1239
        %v1241 = vpop.xlane.xlu0 %1240
        %v1242 = vmin.f32 %v1195, %v1196
        %1243 = vmin.xlane.f32.xlu0 %v1242
        %v1244 = vpop.xlane.xlu0 %1243
        %vm1245 = vcmask 48168
        %1246 = vst.msk [vmem:[#allocation3] sm:$0xff] %vm1245, %v1199
        %1247 = vst.msk [vmem:[#allocation3 + $0x8] sm:$0xff] %vm1245, %v1202
        %1248 = vst.msk [vmem:[#allocation3 + $0x10] sm:$0xff] %vm1245, %v1205
        %1249 = vst.msk [vmem:[#allocation3 + $0x18] sm:$0xff] %vm1245, %v1208
        %1250 = vst.msk [vmem:[#allocation3 + $0x20] sm:$0xff] %vm1245, %v1211
        %1251 = vst.msk [vmem:[#allocation3 + $0x28] sm:$0xff] %vm1245, %v1214
        %1252 = vst.msk [vmem:[#allocation3 + $0x30] sm:$0xff] %vm1245, %v1217
        %1253 = vst.msk [vmem:[#allocation3 + $0x38] sm:$0xff] %vm1245, %v1220
        %1254 = vst.msk [vmem:[#allocation3 + $0x40] sm:$0xff] %vm1245, %v1223
        %1255 = vst.msk [vmem:[#allocation3 + $0x48] sm:$0xff] %vm1245, %v1226
        %1256 = vst.msk [vmem:[#allocation3 + $0x50] sm:$0xff] %vm1245, %v1229
        %1257 = vst.msk [vmem:[#allocation3 + $0x58] sm:$0xff] %vm1245, %v1232
        %1258 = vst.msk [vmem:[#allocation3 + $0x60] sm:$0xff] %vm1245, %v1235
        %1259 = vst.msk [vmem:[#allocation3 + $0x68] sm:$0xff] %vm1245, %v1238
        %1260 = vst.msk [vmem:[#allocation3 + $0x70] sm:$0xff] %vm1245, %v1241
        %1261 = vst.msk [vmem:[#allocation3 + $0x78] sm:$0xff] %vm1245, %v1244
        %s1262 = scalar_lea.vmem %s1, 6
        %v1263 = vld [vmem:[%s1262] ss:$8 sm:$0x3]
        %v1264 = vld [vmem:[#allocation2] sm:$0xff]
        %v1265 = vld [vmem:[#allocation2 + $0x8] sm:$0xff]
        %v1266 = vld [vmem:[#allocation2 + $0x10] sm:$0xff]
        %v1267 = vld [vmem:[#allocation2 + $0x18] sm:$0xff]
        %v1268 = vld [vmem:[#allocation2 + $0x20] sm:$0xff]
        %v1269 = vld [vmem:[#allocation2 + $0x28] sm:$0xff]
        %v1270 = vld [vmem:[#allocation2 + $0x30] sm:$0xff]
        %v1271 = vld [vmem:[#allocation2 + $0x38] sm:$0xff]
        %v1272 = vld [vmem:[#allocation2 + $0x40] sm:$0xff]
        %v1273 = vld [vmem:[#allocation2 + $0x48] sm:$0xff]
        %v1274 = vld [vmem:[#allocation2 + $0x50] sm:$0xff]
        %v1275 = vld [vmem:[#allocation2 + $0x58] sm:$0xff]
        %v1276 = vld [vmem:[#allocation2 + $0x60] sm:$0xff]
        %v1277 = vld [vmem:[#allocation2 + $0x68] sm:$0xff]
        %v1278 = vld [vmem:[#allocation2 + $0x70] sm:$0xff]
        %v1279 = vld [vmem:[#allocation2 + $0x78] sm:$0xff]
        %v1280 = vld [vmem:[#allocation2 + $0x80] sm:$0xff]
        %v1281 = vld [vmem:[#allocation2 + $0x88] sm:$0xff]
        %v1282 = vld [vmem:[#allocation2 + $0x90] sm:$0xff]
        %v1283 = vld [vmem:[#allocation2 + $0x98] sm:$0xff]
        %v1284 = vld [vmem:[#allocation2 + $0xa0] sm:$0xff]
        %v1285 = vld [vmem:[#allocation2 + $0xa8] sm:$0xff]
        %v1286 = vld [vmem:[#allocation2 + $0xb0] sm:$0xff]
        %v1287 = vld [vmem:[#allocation2 + $0xb8] sm:$0xff]
        %v1288 = vld [vmem:[#allocation2 + $0xc0] sm:$0xff]
        %v1289 = vld [vmem:[#allocation2 + $0xc8] sm:$0xff]
        %v1290 = vld [vmem:[#allocation2 + $0xd0] sm:$0xff]
        %v1291 = vld [vmem:[#allocation2 + $0xd8] sm:$0xff]
        %v1292 = vld [vmem:[#allocation2 + $0xe0] sm:$0xff]
        %v1293 = vld [vmem:[#allocation2 + $0xe8] sm:$0xff]
        %v1294 = vld [vmem:[#allocation2 + $0xf0] sm:$0xff]
        %v1295 = vld [vmem:[#allocation2 + $0xf8] sm:$0xff]
        %v1297 = vperm.slane %v1263, 0
        %v1298 = vperm.slane %v1263, 1
        %v1301 = vadd.f32 %v1297, %v1264
        %v1302 = vadd.f32 %v1298, %v1265
        %v1303 = vadd.f32 %v1297, %v1266
        %v1304 = vadd.f32 %v1298, %v1267
        %v1305 = vadd.f32 %v1297, %v1268
        %v1306 = vadd.f32 %v1298, %v1269
        %v1307 = vadd.f32 %v1297, %v1270
        %v1308 = vadd.f32 %v1298, %v1271
        %v1309 = vadd.f32 %v1297, %v1272
        %v1310 = vadd.f32 %v1298, %v1273
        %v1311 = vadd.f32 %v1297, %v1274
        %v1312 = vadd.f32 %v1298, %v1275
        %v1313 = vadd.f32 %v1297, %v1276
        %v1314 = vadd.f32 %v1298, %v1277
        %v1315 = vadd.f32 %v1297, %v1278
        %v1316 = vadd.f32 %v1298, %v1279
        %v1317 = vadd.f32 %v1297, %v1280
        %v1318 = vadd.f32 %v1298, %v1281
        %v1319 = vadd.f32 %v1297, %v1282
        %v1320 = vadd.f32 %v1298, %v1283
        %v1321 = vadd.f32 %v1297, %v1284
        %v1322 = vadd.f32 %v1298, %v1285
        %v1323 = vadd.f32 %v1297, %v1286
        %v1324 = vadd.f32 %v1298, %v1287
        %v1325 = vadd.f32 %v1297, %v1288
        %v1326 = vadd.f32 %v1298, %v1289
        %v1327 = vadd.f32 %v1297, %v1290
        %v1328 = vadd.f32 %v1298, %v1291
        %v1329 = vadd.f32 %v1297, %v1292
        %v1330 = vadd.f32 %v1298, %v1293
        %v1331 = vadd.f32 %v1297, %v1294
        %v1332 = vadd.f32 %v1298, %v1295
        %v1333 = vmin.f32 %v1301, %v1302
        %1334 = vmin.xlane.f32.xlu0 %v1333
        %v1335 = vpop.xlane.xlu0 %1334
        %v1336 = vmin.f32 %v1303, %v1304
        %1337 = vmin.xlane.f32.xlu0 %v1336
        %v1338 = vpop.xlane.xlu0 %1337
        %v1339 = vmin.f32 %v1305, %v1306
        %1340 = vmin.xlane.f32.xlu0 %v1339
        %v1341 = vpop.xlane.xlu0 %1340
        %v1342 = vmin.f32 %v1307, %v1308
        %1343 = vmin.xlane.f32.xlu0 %v1342
        %v1344 = vpop.xlane.xlu0 %1343
        %v1345 = vmin.f32 %v1309, %v1310
        %1346 = vmin.xlane.f32.xlu0 %v1345
        %v1347 = vpop.xlane.xlu0 %1346
        %v1348 = vmin.f32 %v1311, %v1312
        %1349 = vmin.xlane.f32.xlu0 %v1348
        %v1350 = vpop.xlane.xlu0 %1349
        %v1351 = vmin.f32 %v1313, %v1314
        %1352 = vmin.xlane.f32.xlu0 %v1351
        %v1353 = vpop.xlane.xlu0 %1352
        %v1354 = vmin.f32 %v1315, %v1316
        %1355 = vmin.xlane.f32.xlu0 %v1354
        %v1356 = vpop.xlane.xlu0 %1355
        %v1357 = vmin.f32 %v1317, %v1318
        %1358 = vmin.xlane.f32.xlu0 %v1357
        %v1359 = vpop.xlane.xlu0 %1358
        %v1360 = vmin.f32 %v1319, %v1320
        %1361 = vmin.xlane.f32.xlu0 %v1360
        %v1362 = vpop.xlane.xlu0 %1361
        %v1363 = vmin.f32 %v1321, %v1322
        %1364 = vmin.xlane.f32.xlu0 %v1363
        %v1365 = vpop.xlane.xlu0 %1364
        %v1366 = vmin.f32 %v1323, %v1324
        %1367 = vmin.xlane.f32.xlu0 %v1366
        %v1368 = vpop.xlane.xlu0 %1367
        %v1369 = vmin.f32 %v1325, %v1326
        %1370 = vmin.xlane.f32.xlu0 %v1369
        %v1371 = vpop.xlane.xlu0 %1370
        %v1372 = vmin.f32 %v1327, %v1328
        %1373 = vmin.xlane.f32.xlu0 %v1372
        %v1374 = vpop.xlane.xlu0 %1373
        %v1375 = vmin.f32 %v1329, %v1330
        %1376 = vmin.xlane.f32.xlu0 %v1375
        %v1377 = vpop.xlane.xlu0 %1376
        %v1378 = vmin.f32 %v1331, %v1332
        %1379 = vmin.xlane.f32.xlu0 %v1378
        %v1380 = vpop.xlane.xlu0 %1379
        %vm1381 = vcmask 56368
        %1382 = vst.msk [vmem:[#allocation3] sm:$0xff] %vm1381, %v1335
        %1383 = vst.msk [vmem:[#allocation3 + $0x8] sm:$0xff] %vm1381, %v1338
        %1384 = vst.msk [vmem:[#allocation3 + $0x10] sm:$0xff] %vm1381, %v1341
        %1385 = vst.msk [vmem:[#allocation3 + $0x18] sm:$0xff] %vm1381, %v1344
        %1386 = vst.msk [vmem:[#allocation3 + $0x20] sm:$0xff] %vm1381, %v1347
        %1387 = vst.msk [vmem:[#allocation3 + $0x28] sm:$0xff] %vm1381, %v1350
        %1388 = vst.msk [vmem:[#allocation3 + $0x30] sm:$0xff] %vm1381, %v1353
        %1389 = vst.msk [vmem:[#allocation3 + $0x38] sm:$0xff] %vm1381, %v1356
        %1390 = vst.msk [vmem:[#allocation3 + $0x40] sm:$0xff] %vm1381, %v1359
        %1391 = vst.msk [vmem:[#allocation3 + $0x48] sm:$0xff] %vm1381, %v1362
        %1392 = vst.msk [vmem:[#allocation3 + $0x50] sm:$0xff] %vm1381, %v1365
        %1393 = vst.msk [vmem:[#allocation3 + $0x58] sm:$0xff] %vm1381, %v1368
        %1394 = vst.msk [vmem:[#allocation3 + $0x60] sm:$0xff] %vm1381, %v1371
        %1395 = vst.msk [vmem:[#allocation3 + $0x68] sm:$0xff] %vm1381, %v1374
        %1396 = vst.msk [vmem:[#allocation3 + $0x70] sm:$0xff] %vm1381, %v1377
        %1397 = vst.msk [vmem:[#allocation3 + $0x78] sm:$0xff] %vm1381, %v1380
        %s1398 = scalar_lea.vmem %s1, 7
        %v1399 = vld [vmem:[%s1398] ss:$8 sm:$0x3]
        %v1400 = vld [vmem:[#allocation2] sm:$0xff]
        %v1401 = vld [vmem:[#allocation2 + $0x8] sm:$0xff]
        %v1402 = vld [vmem:[#allocation2 + $0x10] sm:$0xff]
        %v1403 = vld [vmem:[#allocation2 + $0x18] sm:$0xff]
        %v1404 = vld [vmem:[#allocation2 + $0x20] sm:$0xff]
        %v1405 = vld [vmem:[#allocation2 + $0x28] sm:$0xff]
        %v1406 = vld [vmem:[#allocation2 + $0x30] sm:$0xff]
        %v1407 = vld [vmem:[#allocation2 + $0x38] sm:$0xff]
        %v1408 = vld [vmem:[#allocation2 + $0x40] sm:$0xff]
        %v1409 = vld [vmem:[#allocation2 + $0x48] sm:$0xff]
        %v1410 = vld [vmem:[#allocation2 + $0x50] sm:$0xff]
        %v1411 = vld [vmem:[#allocation2 + $0x58] sm:$0xff]
        %v1412 = vld [vmem:[#allocation2 + $0x60] sm:$0xff]
        %v1413 = vld [vmem:[#allocation2 + $0x68] sm:$0xff]
        %v1414 = vld [vmem:[#allocation2 + $0x70] sm:$0xff]
        %v1415 = vld [vmem:[#allocation2 + $0x78] sm:$0xff]
        %v1416 = vld [vmem:[#allocation2 + $0x80] sm:$0xff]
        %v1417 = vld [vmem:[#allocation2 + $0x88] sm:$0xff]
        %v1418 = vld [vmem:[#allocation2 + $0x90] sm:$0xff]
        %v1419 = vld [vmem:[#allocation2 + $0x98] sm:$0xff]
        %v1420 = vld [vmem:[#allocation2 + $0xa0] sm:$0xff]
        %v1421 = vld [vmem:[#allocation2 + $0xa8] sm:$0xff]
        %v1422 = vld [vmem:[#allocation2 + $0xb0] sm:$0xff]
        %v1423 = vld [vmem:[#allocation2 + $0xb8] sm:$0xff]
        %v1424 = vld [vmem:[#allocation2 + $0xc0] sm:$0xff]
        %v1425 = vld [vmem:[#allocation2 + $0xc8] sm:$0xff]
        %v1426 = vld [vmem:[#allocation2 + $0xd0] sm:$0xff]
        %v1427 = vld [vmem:[#allocation2 + $0xd8] sm:$0xff]
        %v1428 = vld [vmem:[#allocation2 + $0xe0] sm:$0xff]
        %v1429 = vld [vmem:[#allocation2 + $0xe8] sm:$0xff]
        %v1430 = vld [vmem:[#allocation2 + $0xf0] sm:$0xff]
        %v1431 = vld [vmem:[#allocation2 + $0xf8] sm:$0xff]
        %v1433 = vperm.slane %v1399, 0
        %v1434 = vperm.slane %v1399, 1
        %v1437 = vadd.f32 %v1433, %v1400
        %v1438 = vadd.f32 %v1434, %v1401
        %v1439 = vadd.f32 %v1433, %v1402
        %v1440 = vadd.f32 %v1434, %v1403
        %v1441 = vadd.f32 %v1433, %v1404
        %v1442 = vadd.f32 %v1434, %v1405
        %v1443 = vadd.f32 %v1433, %v1406
        %v1444 = vadd.f32 %v1434, %v1407
        %v1445 = vadd.f32 %v1433, %v1408
        %v1446 = vadd.f32 %v1434, %v1409
        %v1447 = vadd.f32 %v1433, %v1410
        %v1448 = vadd.f32 %v1434, %v1411
        %v1449 = vadd.f32 %v1433, %v1412
        %v1450 = vadd.f32 %v1434, %v1413
        %v1451 = vadd.f32 %v1433, %v1414
        %v1452 = vadd.f32 %v1434, %v1415
        %v1453 = vadd.f32 %v1433, %v1416
        %v1454 = vadd.f32 %v1434, %v1417
        %v1455 = vadd.f32 %v1433, %v1418
        %v1456 = vadd.f32 %v1434, %v1419
        %v1457 = vadd.f32 %v1433, %v1420
        %v1458 = vadd.f32 %v1434, %v1421
        %v1459 = vadd.f32 %v1433, %v1422
        %v1460 = vadd.f32 %v1434, %v1423
        %v1461 = vadd.f32 %v1433, %v1424
        %v1462 = vadd.f32 %v1434, %v1425
        %v1463 = vadd.f32 %v1433, %v1426
        %v1464 = vadd.f32 %v1434, %v1427
        %v1465 = vadd.f32 %v1433, %v1428
        %v1466 = vadd.f32 %v1434, %v1429
        %v1467 = vadd.f32 %v1433, %v1430
        %v1468 = vadd.f32 %v1434, %v1431
        %v1469 = vmin.f32 %v1437, %v1438
        %1470 = vmin.xlane.f32.xlu0 %v1469
        %v1471 = vpop.xlane.xlu0 %1470
        %v1472 = vmin.f32 %v1439, %v1440
        %1473 = vmin.xlane.f32.xlu0 %v1472
        %v1474 = vpop.xlane.xlu0 %1473
        %v1475 = vmin.f32 %v1441, %v1442
        %1476 = vmin.xlane.f32.xlu0 %v1475
        %v1477 = vpop.xlane.xlu0 %1476
        %v1478 = vmin.f32 %v1443, %v1444
        %1479 = vmin.xlane.f32.xlu0 %v1478
        %v1480 = vpop.xlane.xlu0 %1479
        %v1481 = vmin.f32 %v1445, %v1446
        %1482 = vmin.xlane.f32.xlu0 %v1481
        %v1483 = vpop.xlane.xlu0 %1482
        %v1484 = vmin.f32 %v1447, %v1448
        %1485 = vmin.xlane.f32.xlu0 %v1484
        %v1486 = vpop.xlane.xlu0 %1485
        %v1487 = vmin.f32 %v1449, %v1450
        %1488 = vmin.xlane.f32.xlu0 %v1487
        %v1489 = vpop.xlane.xlu0 %1488
        %v1490 = vmin.f32 %v1451, %v1452
        %1491 = vmin.xlane.f32.xlu0 %v1490
        %v1492 = vpop.xlane.xlu0 %1491
        %v1493 = vmin.f32 %v1453, %v1454
        %1494 = vmin.xlane.f32.xlu0 %v1493
        %v1495 = vpop.xlane.xlu0 %1494
        %v1496 = vmin.f32 %v1455, %v1456
        %1497 = vmin.xlane.f32.xlu0 %v1496
        %v1498 = vpop.xlane.xlu0 %1497
        %v1499 = vmin.f32 %v1457, %v1458
        %1500 = vmin.xlane.f32.xlu0 %v1499
        %v1501 = vpop.xlane.xlu0 %1500
        %v1502 = vmin.f32 %v1459, %v1460
        %1503 = vmin.xlane.f32.xlu0 %v1502
        %v1504 = vpop.xlane.xlu0 %1503
        %v1505 = vmin.f32 %v1461, %v1462
        %1506 = vmin.xlane.f32.xlu0 %v1505
        %v1507 = vpop.xlane.xlu0 %1506
        %v1508 = vmin.f32 %v1463, %v1464
        %1509 = vmin.xlane.f32.xlu0 %v1508
        %v1510 = vpop.xlane.xlu0 %1509
        %v1511 = vmin.f32 %v1465, %v1466
        %1512 = vmin.xlane.f32.xlu0 %v1511
        %v1513 = vpop.xlane.xlu0 %1512
        %v1514 = vmin.f32 %v1467, %v1468
        %1515 = vmin.xlane.f32.xlu0 %v1514
        %v1516 = vpop.xlane.xlu0 %1515
        %vm1517 = vcmask 64568
        %1518 = vst.msk [vmem:[#allocation3] sm:$0xff] %vm1517, %v1471
        %1519 = vst.msk [vmem:[#allocation3 + $0x8] sm:$0xff] %vm1517, %v1474
        %1520 = vst.msk [vmem:[#allocation3 + $0x10] sm:$0xff] %vm1517, %v1477
        %1521 = vst.msk [vmem:[#allocation3 + $0x18] sm:$0xff] %vm1517, %v1480
        %1522 = vst.msk [vmem:[#allocation3 + $0x20] sm:$0xff] %vm1517, %v1483
        %1523 = vst.msk [vmem:[#allocation3 + $0x28] sm:$0xff] %vm1517, %v1486
        %1524 = vst.msk [vmem:[#allocation3 + $0x30] sm:$0xff] %vm1517, %v1489
        %1525 = vst.msk [vmem:[#allocation3 + $0x38] sm:$0xff] %vm1517, %v1492
        %1526 = vst.msk [vmem:[#allocation3 + $0x40] sm:$0xff] %vm1517, %v1495
        %1527 = vst.msk [vmem:[#allocation3 + $0x48] sm:$0xff] %vm1517, %v1498
        %1528 = vst.msk [vmem:[#allocation3 + $0x50] sm:$0xff] %vm1517, %v1501
        %1529 = vst.msk [vmem:[#allocation3 + $0x58] sm:$0xff] %vm1517, %v1504
        %1530 = vst.msk [vmem:[#allocation3 + $0x60] sm:$0xff] %vm1517, %v1507
        %1531 = vst.msk [vmem:[#allocation3 + $0x68] sm:$0xff] %vm1517, %v1510
        %1532 = vst.msk [vmem:[#allocation3 + $0x70] sm:$0xff] %vm1517, %v1513
        %1533 = vst.msk [vmem:[#allocation3 + $0x78] sm:$0xff] %vm1517, %v1516
        %s1534 = scalar_lea.vmem %s1, 16
        %v1535 = vld [vmem:[%s1534] ss:$8 sm:$0x3]
        %v1536 = vld [vmem:[#allocation2] sm:$0xff]
        %v1537 = vld [vmem:[#allocation2 + $0x8] sm:$0xff]
        %v1538 = vld [vmem:[#allocation2 + $0x10] sm:$0xff]
        %v1539 = vld [vmem:[#allocation2 + $0x18] sm:$0xff]
        %v1540 = vld [vmem:[#allocation2 + $0x20] sm:$0xff]
        %v1541 = vld [vmem:[#allocation2 + $0x28] sm:$0xff]
        %v1542 = vld [vmem:[#allocation2 + $0x30] sm:$0xff]
        %v1543 = vld [vmem:[#allocation2 + $0x38] sm:$0xff]
        %v1544 = vld [vmem:[#allocation2 + $0x40] sm:$0xff]
        %v1545 = vld [vmem:[#allocation2 + $0x48] sm:$0xff]
        %v1546 = vld [vmem:[#allocation2 + $0x50] sm:$0xff]
        %v1547 = vld [vmem:[#allocation2 + $0x58] sm:$0xff]
        %v1548 = vld [vmem:[#allocation2 + $0x60] sm:$0xff]
        %v1549 = vld [vmem:[#allocation2 + $0x68] sm:$0xff]
        %v1550 = vld [vmem:[#allocation2 + $0x70] sm:$0xff]
        %v1551 = vld [vmem:[#allocation2 + $0x78] sm:$0xff]
        %v1552 = vld [vmem:[#allocation2 + $0x80] sm:$0xff]
        %v1553 = vld [vmem:[#allocation2 + $0x88] sm:$0xff]
        %v1554 = vld [vmem:[#allocation2 + $0x90] sm:$0xff]
        %v1555 = vld [vmem:[#allocation2 + $0x98] sm:$0xff]
        %v1556 = vld [vmem:[#allocation2 + $0xa0] sm:$0xff]
        %v1557 = vld [vmem:[#allocation2 + $0xa8] sm:$0xff]
        %v1558 = vld [vmem:[#allocation2 + $0xb0] sm:$0xff]
        %v1559 = vld [vmem:[#allocation2 + $0xb8] sm:$0xff]
        %v1560 = vld [vmem:[#allocation2 + $0xc0] sm:$0xff]
        %v1561 = vld [vmem:[#allocation2 + $0xc8] sm:$0xff]
        %v1562 = vld [vmem:[#allocation2 + $0xd0] sm:$0xff]
        %v1563 = vld [vmem:[#allocation2 + $0xd8] sm:$0xff]
        %v1564 = vld [vmem:[#allocation2 + $0xe0] sm:$0xff]
        %v1565 = vld [vmem:[#allocation2 + $0xe8] sm:$0xff]
        %v1566 = vld [vmem:[#allocation2 + $0xf0] sm:$0xff]
        %v1567 = vld [vmem:[#allocation2 + $0xf8] sm:$0xff]
        %v1569 = vperm.slane %v1535, 0
        %v1570 = vperm.slane %v1535, 1
        %v1573 = vadd.f32 %v1569, %v1536
        %v1574 = vadd.f32 %v1570, %v1537
        %v1575 = vadd.f32 %v1569, %v1538
        %v1576 = vadd.f32 %v1570, %v1539
        %v1577 = vadd.f32 %v1569, %v1540
        %v1578 = vadd.f32 %v1570, %v1541
        %v1579 = vadd.f32 %v1569, %v1542
        %v1580 = vadd.f32 %v1570, %v1543
        %v1581 = vadd.f32 %v1569, %v1544
        %v1582 = vadd.f32 %v1570, %v1545
        %v1583 = vadd.f32 %v1569, %v1546
        %v1584 = vadd.f32 %v1570, %v1547
        %v1585 = vadd.f32 %v1569, %v1548
        %v1586 = vadd.f32 %v1570, %v1549
        %v1587 = vadd.f32 %v1569, %v1550
        %v1588 = vadd.f32 %v1570, %v1551
        %v1589 = vadd.f32 %v1569, %v1552
        %v1590 = vadd.f32 %v1570, %v1553
        %v1591 = vadd.f32 %v1569, %v1554
        %v1592 = vadd.f32 %v1570, %v1555
        %v1593 = vadd.f32 %v1569, %v1556
        %v1594 = vadd.f32 %v1570, %v1557
        %v1595 = vadd.f32 %v1569, %v1558
        %v1596 = vadd.f32 %v1570, %v1559
        %v1597 = vadd.f32 %v1569, %v1560
        %v1598 = vadd.f32 %v1570, %v1561
        %v1599 = vadd.f32 %v1569, %v1562
        %v1600 = vadd.f32 %v1570, %v1563
        %v1601 = vadd.f32 %v1569, %v1564
        %v1602 = vadd.f32 %v1570, %v1565
        %v1603 = vadd.f32 %v1569, %v1566
        %v1604 = vadd.f32 %v1570, %v1567
        %v1605 = vmin.f32 %v1573, %v1574
        %1606 = vmin.xlane.f32.xlu0 %v1605
        %v1607 = vpop.xlane.xlu0 %1606
        %v1608 = vmin.f32 %v1575, %v1576
        %1609 = vmin.xlane.f32.xlu0 %v1608
        %v1610 = vpop.xlane.xlu0 %1609
        %v1611 = vmin.f32 %v1577, %v1578
        %1612 = vmin.xlane.f32.xlu0 %v1611
        %v1613 = vpop.xlane.xlu0 %1612
        %v1614 = vmin.f32 %v1579, %v1580
        %1615 = vmin.xlane.f32.xlu0 %v1614
        %v1616 = vpop.xlane.xlu0 %1615
        %v1617 = vmin.f32 %v1581, %v1582
        %1618 = vmin.xlane.f32.xlu0 %v1617
        %v1619 = vpop.xlane.xlu0 %1618
        %v1620 = vmin.f32 %v1583, %v1584
        %1621 = vmin.xlane.f32.xlu0 %v1620
        %v1622 = vpop.xlane.xlu0 %1621
        %v1623 = vmin.f32 %v1585, %v1586
        %1624 = vmin.xlane.f32.xlu0 %v1623
        %v1625 = vpop.xlane.xlu0 %1624
        %v1626 = vmin.f32 %v1587, %v1588
        %1627 = vmin.xlane.f32.xlu0 %v1626
        %v1628 = vpop.xlane.xlu0 %1627
        %v1629 = vmin.f32 %v1589, %v1590
        %1630 = vmin.xlane.f32.xlu0 %v1629
        %v1631 = vpop.xlane.xlu0 %1630
        %v1632 = vmin.f32 %v1591, %v1592
        %1633 = vmin.xlane.f32.xlu0 %v1632
        %v1634 = vpop.xlane.xlu0 %1633
        %v1635 = vmin.f32 %v1593, %v1594
        %1636 = vmin.xlane.f32.xlu0 %v1635
        %v1637 = vpop.xlane.xlu0 %1636
        %v1638 = vmin.f32 %v1595, %v1596
        %1639 = vmin.xlane.f32.xlu0 %v1638
        %v1640 = vpop.xlane.xlu0 %1639
        %v1641 = vmin.f32 %v1597, %v1598
        %1642 = vmin.xlane.f32.xlu0 %v1641
        %v1643 = vpop.xlane.xlu0 %1642
        %v1644 = vmin.f32 %v1599, %v1600
        %1645 = vmin.xlane.f32.xlu0 %v1644
        %v1646 = vpop.xlane.xlu0 %1645
        %v1647 = vmin.f32 %v1601, %v1602
        %1648 = vmin.xlane.f32.xlu0 %v1647
        %v1649 = vpop.xlane.xlu0 %1648
        %v1650 = vmin.f32 %v1603, %v1604
        %1651 = vmin.xlane.f32.xlu0 %v1650
        %v1652 = vpop.xlane.xlu0 %1651
        %vm1653 = vcmask 72768
        %1654 = vst.msk [vmem:[#allocation3] sm:$0xff] %vm1653, %v1607
        %1655 = vst.msk [vmem:[#allocation3 + $0x8] sm:$0xff] %vm1653, %v1610
        %1656 = vst.msk [vmem:[#allocation3 + $0x10] sm:$0xff] %vm1653, %v1613
        %1657 = vst.msk [vmem:[#allocation3 + $0x18] sm:$0xff] %vm1653, %v1616
        %1658 = vst.msk [vmem:[#allocation3 + $0x20] sm:$0xff] %vm1653, %v1619
        %1659 = vst.msk [vmem:[#allocation3 + $0x28] sm:$0xff] %vm1653, %v1622
        %1660 = vst.msk [vmem:[#allocation3 + $0x30] sm:$0xff] %vm1653, %v1625
        %1661 = vst.msk [vmem:[#allocation3 + $0x38] sm:$0xff] %vm1653, %v1628
        %1662 = vst.msk [vmem:[#allocation3 + $0x40] sm:$0xff] %vm1653, %v1631
        %1663 = vst.msk [vmem:[#allocation3 + $0x48] sm:$0xff] %vm1653, %v1634
        %1664 = vst.msk [vmem:[#allocation3 + $0x50] sm:$0xff] %vm1653, %v1637
        %1665 = vst.msk [vmem:[#allocation3 + $0x58] sm:$0xff] %vm1653, %v1640
        %1666 = vst.msk [vmem:[#allocation3 + $0x60] sm:$0xff] %vm1653, %v1643
        %1667 = vst.msk [vmem:[#allocation3 + $0x68] sm:$0xff] %vm1653, %v1646
        %1668 = vst.msk [vmem:[#allocation3 + $0x70] sm:$0xff] %vm1653, %v1649
        %1669 = vst.msk [vmem:[#allocation3 + $0x78] sm:$0xff] %vm1653, %v1652
        %s1670 = scalar_lea.vmem %s1, 17
        %v1671 = vld [vmem:[%s1670] ss:$8 sm:$0x3]
        %v1672 = vld [vmem:[#allocation2] sm:$0xff]
        %v1673 = vld [vmem:[#allocation2 + $0x8] sm:$0xff]
        %v1674 = vld [vmem:[#allocation2 + $0x10] sm:$0xff]
        %v1675 = vld [vmem:[#allocation2 + $0x18] sm:$0xff]
        %v1676 = vld [vmem:[#allocation2 + $0x20] sm:$0xff]
        %v1677 = vld [vmem:[#allocation2 + $0x28] sm:$0xff]
        %v1678 = vld [vmem:[#allocation2 + $0x30] sm:$0xff]
        %v1679 = vld [vmem:[#allocation2 + $0x38] sm:$0xff]
        %v1680 = vld [vmem:[#allocation2 + $0x40] sm:$0xff]
        %v1681 = vld [vmem:[#allocation2 + $0x48] sm:$0xff]
        %v1682 = vld [vmem:[#allocation2 + $0x50] sm:$0xff]
        %v1683 = vld [vmem:[#allocation2 + $0x58] sm:$0xff]
        %v1684 = vld [vmem:[#allocation2 + $0x60] sm:$0xff]
        %v1685 = vld [vmem:[#allocation2 + $0x68] sm:$0xff]
        %v1686 = vld [vmem:[#allocation2 + $0x70] sm:$0xff]
        %v1687 = vld [vmem:[#allocation2 + $0x78] sm:$0xff]
        %v1688 = vld [vmem:[#allocation2 + $0x80] sm:$0xff]
        %v1689 = vld [vmem:[#allocation2 + $0x88] sm:$0xff]
        %v1690 = vld [vmem:[#allocation2 + $0x90] sm:$0xff]
        %v1691 = vld [vmem:[#allocation2 + $0x98] sm:$0xff]
        %v1692 = vld [vmem:[#allocation2 + $0xa0] sm:$0xff]
        %v1693 = vld [vmem:[#allocation2 + $0xa8] sm:$0xff]
        %v1694 = vld [vmem:[#allocation2 + $0xb0] sm:$0xff]
        %v1695 = vld [vmem:[#allocation2 + $0xb8] sm:$0xff]
        %v1696 = vld [vmem:[#allocation2 + $0xc0] sm:$0xff]
        %v1697 = vld [vmem:[#allocation2 + $0xc8] sm:$0xff]
        %v1698 = vld [vmem:[#allocation2 + $0xd0] sm:$0xff]
        %v1699 = vld [vmem:[#allocation2 + $0xd8] sm:$0xff]
        %v1700 = vld [vmem:[#allocation2 + $0xe0] sm:$0xff]
        %v1701 = vld [vmem:[#allocation2 + $0xe8] sm:$0xff]
        %v1702 = vld [vmem:[#allocation2 + $0xf0] sm:$0xff]
        %v1703 = vld [vmem:[#allocation2 + $0xf8] sm:$0xff]
        %v1705 = vperm.slane %v1671, 0
        %v1706 = vperm.slane %v1671, 1
        %v1709 = vadd.f32 %v1705, %v1672
        %v1710 = vadd.f32 %v1706, %v1673
        %v1711 = vadd.f32 %v1705, %v1674
        %v1712 = vadd.f32 %v1706, %v1675
        %v1713 = vadd.f32 %v1705, %v1676
        %v1714 = vadd.f32 %v1706, %v1677
        %v1715 = vadd.f32 %v1705, %v1678
        %v1716 = vadd.f32 %v1706, %v1679
        %v1717 = vadd.f32 %v1705, %v1680
        %v1718 = vadd.f32 %v1706, %v1681
        %v1719 = vadd.f32 %v1705, %v1682
        %v1720 = vadd.f32 %v1706, %v1683
        %v1721 = vadd.f32 %v1705, %v1684
        %v1722 = vadd.f32 %v1706, %v1685
        %v1723 = vadd.f32 %v1705, %v1686
        %v1724 = vadd.f32 %v1706, %v1687
        %v1725 = vadd.f32 %v1705, %v1688
        %v1726 = vadd.f32 %v1706, %v1689
        %v1727 = vadd.f32 %v1705, %v1690
        %v1728 = vadd.f32 %v1706, %v1691
        %v1729 = vadd.f32 %v1705, %v1692
        %v1730 = vadd.f32 %v1706, %v1693
        %v1731 = vadd.f32 %v1705, %v1694
        %v1732 = vadd.f32 %v1706, %v1695
        %v1733 = vadd.f32 %v1705, %v1696
        %v1734 = vadd.f32 %v1706, %v1697
        %v1735 = vadd.f32 %v1705, %v1698
        %v1736 = vadd.f32 %v1706, %v1699
        %v1737 = vadd.f32 %v1705, %v1700
        %v1738 = vadd.f32 %v1706, %v1701
        %v1739 = vadd.f32 %v1705, %v1702
        %v1740 = vadd.f32 %v1706, %v1703
        %v1741 = vmin.f32 %v1709, %v1710
        %1742 = vmin.xlane.f32.xlu0 %v1741
        %v1743 = vpop.xlane.xlu0 %1742
        %v1744 = vmin.f32 %v1711, %v1712
        %1745 = vmin.xlane.f32.xlu0 %v1744
        %v1746 = vpop.xlane.xlu0 %1745
        %v1747 = vmin.f32 %v1713, %v1714
        %1748 = vmin.xlane.f32.xlu0 %v1747
        %v1749 = vpop.xlane.xlu0 %1748
        %v1750 = vmin.f32 %v1715, %v1716
        %1751 = vmin.xlane.f32.xlu0 %v1750
        %v1752 = vpop.xlane.xlu0 %1751
        %v1753 = vmin.f32 %v1717, %v1718
        %1754 = vmin.xlane.f32.xlu0 %v1753
        %v1755 = vpop.xlane.xlu0 %1754
        %v1756 = vmin.f32 %v1719, %v1720
        %1757 = vmin.xlane.f32.xlu0 %v1756
        %v1758 = vpop.xlane.xlu0 %1757
        %v1759 = vmin.f32 %v1721, %v1722
        %1760 = vmin.xlane.f32.xlu0 %v1759
        %v1761 = vpop.xlane.xlu0 %1760
        %v1762 = vmin.f32 %v1723, %v1724
        %1763 = vmin.xlane.f32.xlu0 %v1762
        %v1764 = vpop.xlane.xlu0 %1763
        %v1765 = vmin.f32 %v1725, %v1726
        %1766 = vmin.xlane.f32.xlu0 %v1765
        %v1767 = vpop.xlane.xlu0 %1766
        %v1768 = vmin.f32 %v1727, %v1728
        %1769 = vmin.xlane.f32.xlu0 %v1768
        %v1770 = vpop.xlane.xlu0 %1769
        %v1771 = vmin.f32 %v1729, %v1730
        %1772 = vmin.xlane.f32.xlu0 %v1771
        %v1773 = vpop.xlane.xlu0 %1772
        %v1774 = vmin.f32 %v1731, %v1732
        %1775 = vmin.xlane.f32.xlu0 %v1774
        %v1776 = vpop.xlane.xlu0 %1775
        %v1777 = vmin.f32 %v1733, %v1734
        %1778 = vmin.xlane.f32.xlu0 %v1777
        %v1779 = vpop.xlane.xlu0 %1778
        %v1780 = vmin.f32 %v1735, %v1736
        %1781 = vmin.xlane.f32.xlu0 %v1780
        %v1782 = vpop.xlane.xlu0 %1781
        %v1783 = vmin.f32 %v1737, %v1738
        %1784 = vmin.xlane.f32.xlu0 %v1783
        %v1785 = vpop.xlane.xlu0 %1784
        %v1786 = vmin.f32 %v1739, %v1740
        %1787 = vmin.xlane.f32.xlu0 %v1786
        %v1788 = vpop.xlane.xlu0 %1787
        %vm1789 = vcmask 80968
        %1790 = vst.msk [vmem:[#allocation3] sm:$0xff] %vm1789, %v1743
        %1791 = vst.msk [vmem:[#allocation3 + $0x8] sm:$0xff] %vm1789, %v1746
        %1792 = vst.msk [vmem:[#allocation3 + $0x10] sm:$0xff] %vm1789, %v1749
        %1793 = vst.msk [vmem:[#allocation3 + $0x18] sm:$0xff] %vm1789, %v1752
        %1794 = vst.msk [vmem:[#allocation3 + $0x20] sm:$0xff] %vm1789, %v1755
        %1795 = vst.msk [vmem:[#allocation3 + $0x28] sm:$0xff] %vm1789, %v1758
        %1796 = vst.msk [vmem:[#allocation3 + $0x30] sm:$0xff] %vm1789, %v1761
        %1797 = vst.msk [vmem:[#allocation3 + $0x38] sm:$0xff] %vm1789, %v1764
        %1798 = vst.msk [vmem:[#allocation3 + $0x40] sm:$0xff] %vm1789, %v1767
        %1799 = vst.msk [vmem:[#allocation3 + $0x48] sm:$0xff] %vm1789, %v1770
        %1800 = vst.msk [vmem:[#allocation3 + $0x50] sm:$0xff] %vm1789, %v1773
        %1801 = vst.msk [vmem:[#allocation3 + $0x58] sm:$0xff] %vm1789, %v1776
        %1802 = vst.msk [vmem:[#allocation3 + $0x60] sm:$0xff] %vm1789, %v1779
        %1803 = vst.msk [vmem:[#allocation3 + $0x68] sm:$0xff] %vm1789, %v1782
        %1804 = vst.msk [vmem:[#allocation3 + $0x70] sm:$0xff] %vm1789, %v1785
        %1805 = vst.msk [vmem:[#allocation3 + $0x78] sm:$0xff] %vm1789, %v1788
        %s1806 = scalar_lea.vmem %s1, 18
        %v1807 = vld [vmem:[%s1806] ss:$8 sm:$0x3]
        %v1808 = vld [vmem:[#allocation2] sm:$0xff]
        %v1809 = vld [vmem:[#allocation2 + $0x8] sm:$0xff]
        %v1810 = vld [vmem:[#allocation2 + $0x10] sm:$0xff]
        %v1811 = vld [vmem:[#allocation2 + $0x18] sm:$0xff]
        %v1812 = vld [vmem:[#allocation2 + $0x20] sm:$0xff]
        %v1813 = vld [vmem:[#allocation2 + $0x28] sm:$0xff]
        %v1814 = vld [vmem:[#allocation2 + $0x30] sm:$0xff]
        %v1815 = vld [vmem:[#allocation2 + $0x38] sm:$0xff]
        %v1816 = vld [vmem:[#allocation2 + $0x40] sm:$0xff]
        %v1817 = vld [vmem:[#allocation2 + $0x48] sm:$0xff]
        %v1818 = vld [vmem:[#allocation2 + $0x50] sm:$0xff]
        %v1819 = vld [vmem:[#allocation2 + $0x58] sm:$0xff]
        %v1820 = vld [vmem:[#allocation2 + $0x60] sm:$0xff]
        %v1821 = vld [vmem:[#allocation2 + $0x68] sm:$0xff]
        %v1822 = vld [vmem:[#allocation2 + $0x70] sm:$0xff]
        %v1823 = vld [vmem:[#allocation2 + $0x78] sm:$0xff]
        %v1824 = vld [vmem:[#allocation2 + $0x80] sm:$0xff]
        %v1825 = vld [vmem:[#allocation2 + $0x88] sm:$0xff]
        %v1826 = vld [vmem:[#allocation2 + $0x90] sm:$0xff]
        %v1827 = vld [vmem:[#allocation2 + $0x98] sm:$0xff]
        %v1828 = vld [vmem:[#allocation2 + $0xa0] sm:$0xff]
        %v1829 = vld [vmem:[#allocation2 + $0xa8] sm:$0xff]
        %v1830 = vld [vmem:[#allocation2 + $0xb0] sm:$0xff]
        %v1831 = vld [vmem:[#allocation2 + $0xb8] sm:$0xff]
        %v1832 = vld [vmem:[#allocation2 + $0xc0] sm:$0xff]
        %v1833 = vld [vmem:[#allocation2 + $0xc8] sm:$0xff]
        %v1834 = vld [vmem:[#allocation2 + $0xd0] sm:$0xff]
        %v1835 = vld [vmem:[#allocation2 + $0xd8] sm:$0xff]
        %v1836 = vld [vmem:[#allocation2 + $0xe0] sm:$0xff]
        %v1837 = vld [vmem:[#allocation2 + $0xe8] sm:$0xff]
        %v1838 = vld [vmem:[#allocation2 + $0xf0] sm:$0xff]
        %v1839 = vld [vmem:[#allocation2 + $0xf8] sm:$0xff]
        %v1841 = vperm.slane %v1807, 0
        %v1842 = vperm.slane %v1807, 1
        %v1845 = vadd.f32 %v1841, %v1808
        %v1846 = vadd.f32 %v1842, %v1809
        %v1847 = vadd.f32 %v1841, %v1810
        %v1848 = vadd.f32 %v1842, %v1811
        %v1849 = vadd.f32 %v1841, %v1812
        %v1850 = vadd.f32 %v1842, %v1813
        %v1851 = vadd.f32 %v1841, %v1814
        %v1852 = vadd.f32 %v1842, %v1815
        %v1853 = vadd.f32 %v1841, %v1816
        %v1854 = vadd.f32 %v1842, %v1817
        %v1855 = vadd.f32 %v1841, %v1818
        %v1856 = vadd.f32 %v1842, %v1819
        %v1857 = vadd.f32 %v1841, %v1820
        %v1858 = vadd.f32 %v1842, %v1821
        %v1859 = vadd.f32 %v1841, %v1822
        %v1860 = vadd.f32 %v1842, %v1823
        %v1861 = vadd.f32 %v1841, %v1824
        %v1862 = vadd.f32 %v1842, %v1825
        %v1863 = vadd.f32 %v1841, %v1826
        %v1864 = vadd.f32 %v1842, %v1827
        %v1865 = vadd.f32 %v1841, %v1828
        %v1866 = vadd.f32 %v1842, %v1829
        %v1867 = vadd.f32 %v1841, %v1830
        %v1868 = vadd.f32 %v1842, %v1831
        %v1869 = vadd.f32 %v1841, %v1832
        %v1870 = vadd.f32 %v1842, %v1833
        %v1871 = vadd.f32 %v1841, %v1834
        %v1872 = vadd.f32 %v1842, %v1835
        %v1873 = vadd.f32 %v1841, %v1836
        %v1874 = vadd.f32 %v1842, %v1837
        %v1875 = vadd.f32 %v1841, %v1838
        %v1876 = vadd.f32 %v1842, %v1839
        %v1877 = vmin.f32 %v1845, %v1846
        %1878 = vmin.xlane.f32.xlu0 %v1877
        %v1879 = vpop.xlane.xlu0 %1878
        %v1880 = vmin.f32 %v1847, %v1848
        %1881 = vmin.xlane.f32.xlu0 %v1880
        %v1882 = vpop.xlane.xlu0 %1881
        %v1883 = vmin.f32 %v1849, %v1850
        %1884 = vmin.xlane.f32.xlu0 %v1883
        %v1885 = vpop.xlane.xlu0 %1884
        %v1886 = vmin.f32 %v1851, %v1852
        %1887 = vmin.xlane.f32.xlu0 %v1886
        %v1888 = vpop.xlane.xlu0 %1887
        %v1889 = vmin.f32 %v1853, %v1854
        %1890 = vmin.xlane.f32.xlu0 %v1889
        %v1891 = vpop.xlane.xlu0 %1890
        %v1892 = vmin.f32 %v1855, %v1856
        %1893 = vmin.xlane.f32.xlu0 %v1892
        %v1894 = vpop.xlane.xlu0 %1893
        %v1895 = vmin.f32 %v1857, %v1858
        %1896 = vmin.xlane.f32.xlu0 %v1895
        %v1897 = vpop.xlane.xlu0 %1896
        %v1898 = vmin.f32 %v1859, %v1860
        %1899 = vmin.xlane.f32.xlu0 %v1898
        %v1900 = vpop.xlane.xlu0 %1899
        %v1901 = vmin.f32 %v1861, %v1862
        %1902 = vmin.xlane.f32.xlu0 %v1901
        %v1903 = vpop.xlane.xlu0 %1902
        %v1904 = vmin.f32 %v1863, %v1864
        %1905 = vmin.xlane.f32.xlu0 %v1904
        %v1906 = vpop.xlane.xlu0 %1905
        %v1907 = vmin.f32 %v1865, %v1866
        %1908 = vmin.xlane.f32.xlu0 %v1907
        %v1909 = vpop.xlane.xlu0 %1908
        %v1910 = vmin.f32 %v1867, %v1868
        %1911 = vmin.xlane.f32.xlu0 %v1910
        %v1912 = vpop.xlane.xlu0 %1911
        %v1913 = vmin.f32 %v1869, %v1870
        %1914 = vmin.xlane.f32.xlu0 %v1913
        %v1915 = vpop.xlane.xlu0 %1914
        %v1916 = vmin.f32 %v1871, %v1872
        %1917 = vmin.xlane.f32.xlu0 %v1916
        %v1918 = vpop.xlane.xlu0 %1917
        %v1919 = vmin.f32 %v1873, %v1874
        %1920 = vmin.xlane.f32.xlu0 %v1919
        %v1921 = vpop.xlane.xlu0 %1920
        %v1922 = vmin.f32 %v1875, %v1876
        %1923 = vmin.xlane.f32.xlu0 %v1922
        %v1924 = vpop.xlane.xlu0 %1923
        %vm1925 = vcmask 89168
        %1926 = vst.msk [vmem:[#allocation3] sm:$0xff] %vm1925, %v1879
        %1927 = vst.msk [vmem:[#allocation3 + $0x8] sm:$0xff] %vm1925, %v1882
        %1928 = vst.msk [vmem:[#allocation3 + $0x10] sm:$0xff] %vm1925, %v1885
        %1929 = vst.msk [vmem:[#allocation3 + $0x18] sm:$0xff] %vm1925, %v1888
        %1930 = vst.msk [vmem:[#allocation3 + $0x20] sm:$0xff] %vm1925, %v1891
        %1931 = vst.msk [vmem:[#allocation3 + $0x28] sm:$0xff] %vm1925, %v1894
        %1932 = vst.msk [vmem:[#allocation3 + $0x30] sm:$0xff] %vm1925, %v1897
        %1933 = vst.msk [vmem:[#allocation3 + $0x38] sm:$0xff] %vm1925, %v1900
        %1934 = vst.msk [vmem:[#allocation3 + $0x40] sm:$0xff] %vm1925, %v1903
        %1935 = vst.msk [vmem:[#allocation3 + $0x48] sm:$0xff] %vm1925, %v1906
        %1936 = vst.msk [vmem:[#allocation3 + $0x50] sm:$0xff] %vm1925, %v1909
        %1937 = vst.msk [vmem:[#allocation3 + $0x58] sm:$0xff] %vm1925, %v1912
        %1938 = vst.msk [vmem:[#allocation3 + $0x60] sm:$0xff] %vm1925, %v1915
        %1939 = vst.msk [vmem:[#allocation3 + $0x68] sm:$0xff] %vm1925, %v1918
        %1940 = vst.msk [vmem:[#allocation3 + $0x70] sm:$0xff] %vm1925, %v1921
        %1941 = vst.msk [vmem:[#allocation3 + $0x78] sm:$0xff] %vm1925, %v1924
        %s1942 = scalar_lea.vmem %s1, 19
        %v1943 = vld [vmem:[%s1942] ss:$8 sm:$0x3]
        %v1944 = vld [vmem:[#allocation2] sm:$0xff]
        %v1945 = vld [vmem:[#allocation2 + $0x8] sm:$0xff]
        %v1946 = vld [vmem:[#allocation2 + $0x10] sm:$0xff]
        %v1947 = vld [vmem:[#allocation2 + $0x18] sm:$0xff]
        %v1948 = vld [vmem:[#allocation2 + $0x20] sm:$0xff]
        %v1949 = vld [vmem:[#allocation2 + $0x28] sm:$0xff]
        %v1950 = vld [vmem:[#allocation2 + $0x30] sm:$0xff]
        %v1951 = vld [vmem:[#allocation2 + $0x38] sm:$0xff]
        %v1952 = vld [vmem:[#allocation2 + $0x40] sm:$0xff]
        %v1953 = vld [vmem:[#allocation2 + $0x48] sm:$0xff]
        %v1954 = vld [vmem:[#allocation2 + $0x50] sm:$0xff]
        %v1955 = vld [vmem:[#allocation2 + $0x58] sm:$0xff]
        %v1956 = vld [vmem:[#allocation2 + $0x60] sm:$0xff]
        %v1957 = vld [vmem:[#allocation2 + $0x68] sm:$0xff]
        %v1958 = vld [vmem:[#allocation2 + $0x70] sm:$0xff]
        %v1959 = vld [vmem:[#allocation2 + $0x78] sm:$0xff]
        %v1960 = vld [vmem:[#allocation2 + $0x80] sm:$0xff]
        %v1961 = vld [vmem:[#allocation2 + $0x88] sm:$0xff]
        %v1962 = vld [vmem:[#allocation2 + $0x90] sm:$0xff]
        %v1963 = vld [vmem:[#allocation2 + $0x98] sm:$0xff]
        %v1964 = vld [vmem:[#allocation2 + $0xa0] sm:$0xff]
        %v1965 = vld [vmem:[#allocation2 + $0xa8] sm:$0xff]
        %v1966 = vld [vmem:[#allocation2 + $0xb0] sm:$0xff]
        %v1967 = vld [vmem:[#allocation2 + $0xb8] sm:$0xff]
        %v1968 = vld [vmem:[#allocation2 + $0xc0] sm:$0xff]
        %v1969 = vld [vmem:[#allocation2 + $0xc8] sm:$0xff]
        %v1970 = vld [vmem:[#allocation2 + $0xd0] sm:$0xff]
        %v1971 = vld [vmem:[#allocation2 + $0xd8] sm:$0xff]
        %v1972 = vld [vmem:[#allocation2 + $0xe0] sm:$0xff]
        %v1973 = vld [vmem:[#allocation2 + $0xe8] sm:$0xff]
        %v1974 = vld [vmem:[#allocation2 + $0xf0] sm:$0xff]
        %v1975 = vld [vmem:[#allocation2 + $0xf8] sm:$0xff]
        %v1977 = vperm.slane %v1943, 0
        %v1978 = vperm.slane %v1943, 1
        %v1981 = vadd.f32 %v1977, %v1944
        %v1982 = vadd.f32 %v1978, %v1945
        %v1983 = vadd.f32 %v1977, %v1946
        %v1984 = vadd.f32 %v1978, %v1947
        %v1985 = vadd.f32 %v1977, %v1948
        %v1986 = vadd.f32 %v1978, %v1949
        %v1987 = vadd.f32 %v1977, %v1950
        %v1988 = vadd.f32 %v1978, %v1951
        %v1989 = vadd.f32 %v1977, %v1952
        %v1990 = vadd.f32 %v1978, %v1953
        %v1991 = vadd.f32 %v1977, %v1954
        %v1992 = vadd.f32 %v1978, %v1955
        %v1993 = vadd.f32 %v1977, %v1956
        %v1994 = vadd.f32 %v1978, %v1957
        %v1995 = vadd.f32 %v1977, %v1958
        %v1996 = vadd.f32 %v1978, %v1959
        %v1997 = vadd.f32 %v1977, %v1960
        %v1998 = vadd.f32 %v1978, %v1961
        %v1999 = vadd.f32 %v1977, %v1962
        %v2000 = vadd.f32 %v1978, %v1963
        %v2001 = vadd.f32 %v1977, %v1964
        %v2002 = vadd.f32 %v1978, %v1965
        %v2003 = vadd.f32 %v1977, %v1966
        %v2004 = vadd.f32 %v1978, %v1967
        %v2005 = vadd.f32 %v1977, %v1968
        %v2006 = vadd.f32 %v1978, %v1969
        %v2007 = vadd.f32 %v1977, %v1970
        %v2008 = vadd.f32 %v1978, %v1971
        %v2009 = vadd.f32 %v1977, %v1972
        %v2010 = vadd.f32 %v1978, %v1973
        %v2011 = vadd.f32 %v1977, %v1974
        %v2012 = vadd.f32 %v1978, %v1975
        %v2013 = vmin.f32 %v1981, %v1982
        %2014 = vmin.xlane.f32.xlu0 %v2013
        %v2015 = vpop.xlane.xlu0 %2014
        %v2016 = vmin.f32 %v1983, %v1984
        %2017 = vmin.xlane.f32.xlu0 %v2016
        %v2018 = vpop.xlane.xlu0 %2017
        %v2019 = vmin.f32 %v1985, %v1986
        %2020 = vmin.xlane.f32.xlu0 %v2019
        %v2021 = vpop.xlane.xlu0 %2020
        %v2022 = vmin.f32 %v1987, %v1988
        %2023 = vmin.xlane.f32.xlu0 %v2022
        %v2024 = vpop.xlane.xlu0 %2023
        %v2025 = vmin.f32 %v1989, %v1990
        %2026 = vmin.xlane.f32.xlu0 %v2025
        %v2027 = vpop.xlane.xlu0 %2026
        %v2028 = vmin.f32 %v1991, %v1992
        %2029 = vmin.xlane.f32.xlu0 %v2028
        %v2030 = vpop.xlane.xlu0 %2029
        %v2031 = vmin.f32 %v1993, %v1994
        %2032 = vmin.xlane.f32.xlu0 %v2031
        %v2033 = vpop.xlane.xlu0 %2032
        %v2034 = vmin.f32 %v1995, %v1996
        %2035 = vmin.xlane.f32.xlu0 %v2034
        %v2036 = vpop.xlane.xlu0 %2035
        %v2037 = vmin.f32 %v1997, %v1998
        %2038 = vmin.xlane.f32.xlu0 %v2037
        %v2039 = vpop.xlane.xlu0 %2038
        %v2040 = vmin.f32 %v1999, %v2000
        %2041 = vmin.xlane.f32.xlu0 %v2040
        %v2042 = vpop.xlane.xlu0 %2041
        %v2043 = vmin.f32 %v2001, %v2002
        %2044 = vmin.xlane.f32.xlu0 %v2043
        %v2045 = vpop.xlane.xlu0 %2044
        %v2046 = vmin.f32 %v2003, %v2004
        %2047 = vmin.xlane.f32.xlu0 %v2046
        %v2048 = vpop.xlane.xlu0 %2047
        %v2049 = vmin.f32 %v2005, %v2006
        %2050 = vmin.xlane.f32.xlu0 %v2049
        %v2051 = vpop.xlane.xlu0 %2050
        %v2052 = vmin.f32 %v2007, %v2008
        %2053 = vmin.xlane.f32.xlu0 %v2052
        %v2054 = vpop.xlane.xlu0 %2053
        %v2055 = vmin.f32 %v2009, %v2010
        %2056 = vmin.xlane.f32.xlu0 %v2055
        %v2057 = vpop.xlane.xlu0 %2056
        %v2058 = vmin.f32 %v2011, %v2012
        %2059 = vmin.xlane.f32.xlu0 %v2058
        %v2060 = vpop.xlane.xlu0 %2059
        %vm2061 = vcmask 97368
        %2062 = vst.msk [vmem:[#allocation3] sm:$0xff] %vm2061, %v2015
        %2063 = vst.msk [vmem:[#allocation3 + $0x8] sm:$0xff] %vm2061, %v2018
        %2064 = vst.msk [vmem:[#allocation3 + $0x10] sm:$0xff] %vm2061, %v2021
        %2065 = vst.msk [vmem:[#allocation3 + $0x18] sm:$0xff] %vm2061, %v2024
        %2066 = vst.msk [vmem:[#allocation3 + $0x20] sm:$0xff] %vm2061, %v2027
        %2067 = vst.msk [vmem:[#allocation3 + $0x28] sm:$0xff] %vm2061, %v2030
        %2068 = vst.msk [vmem:[#allocation3 + $0x30] sm:$0xff] %vm2061, %v2033
        %2069 = vst.msk [vmem:[#allocation3 + $0x38] sm:$0xff] %vm2061, %v2036
        %2070 = vst.msk [vmem:[#allocation3 + $0x40] sm:$0xff] %vm2061, %v2039
        %2071 = vst.msk [vmem:[#allocation3 + $0x48] sm:$0xff] %vm2061, %v2042
        %2072 = vst.msk [vmem:[#allocation3 + $0x50] sm:$0xff] %vm2061, %v2045
        %2073 = vst.msk [vmem:[#allocation3 + $0x58] sm:$0xff] %vm2061, %v2048
        %2074 = vst.msk [vmem:[#allocation3 + $0x60] sm:$0xff] %vm2061, %v2051
        %2075 = vst.msk [vmem:[#allocation3 + $0x68] sm:$0xff] %vm2061, %v2054
        %2076 = vst.msk [vmem:[#allocation3 + $0x70] sm:$0xff] %vm2061, %v2057
        %2077 = vst.msk [vmem:[#allocation3 + $0x78] sm:$0xff] %vm2061, %v2060
        %s2078 = scalar_lea.vmem %s1, 20
        %v2079 = vld [vmem:[%s2078] ss:$8 sm:$0x3]
        %v2080 = vld [vmem:[#allocation2] sm:$0xff]
        %v2081 = vld [vmem:[#allocation2 + $0x8] sm:$0xff]
        %v2082 = vld [vmem:[#allocation2 + $0x10] sm:$0xff]
        %v2083 = vld [vmem:[#allocation2 + $0x18] sm:$0xff]
        %v2084 = vld [vmem:[#allocation2 + $0x20] sm:$0xff]
        %v2085 = vld [vmem:[#allocation2 + $0x28] sm:$0xff]
        %v2086 = vld [vmem:[#allocation2 + $0x30] sm:$0xff]
        %v2087 = vld [vmem:[#allocation2 + $0x38] sm:$0xff]
        %v2088 = vld [vmem:[#allocation2 + $0x40] sm:$0xff]
        %v2089 = vld [vmem:[#allocation2 + $0x48] sm:$0xff]
        %v2090 = vld [vmem:[#allocation2 + $0x50] sm:$0xff]
        %v2091 = vld [vmem:[#allocation2 + $0x58] sm:$0xff]
        %v2092 = vld [vmem:[#allocation2 + $0x60] sm:$0xff]
        %v2093 = vld [vmem:[#allocation2 + $0x68] sm:$0xff]
        %v2094 = vld [vmem:[#allocation2 + $0x70] sm:$0xff]
        %v2095 = vld [vmem:[#allocation2 + $0x78] sm:$0xff]
        %v2096 = vld [vmem:[#allocation2 + $0x80] sm:$0xff]
        %v2097 = vld [vmem:[#allocation2 + $0x88] sm:$0xff]
        %v2098 = vld [vmem:[#allocation2 + $0x90] sm:$0xff]
        %v2099 = vld [vmem:[#allocation2 + $0x98] sm:$0xff]
        %v2100 = vld [vmem:[#allocation2 + $0xa0] sm:$0xff]
        %v2101 = vld [vmem:[#allocation2 + $0xa8] sm:$0xff]
        %v2102 = vld [vmem:[#allocation2 + $0xb0] sm:$0xff]
        %v2103 = vld [vmem:[#allocation2 + $0xb8] sm:$0xff]
        %v2104 = vld [vmem:[#allocation2 + $0xc0] sm:$0xff]
        %v2105 = vld [vmem:[#allocation2 + $0xc8] sm:$0xff]
        %v2106 = vld [vmem:[#allocation2 + $0xd0] sm:$0xff]
        %v2107 = vld [vmem:[#allocation2 + $0xd8] sm:$0xff]
        %v2108 = vld [vmem:[#allocation2 + $0xe0] sm:$0xff]
        %v2109 = vld [vmem:[#allocation2 + $0xe8] sm:$0xff]
        %v2110 = vld [vmem:[#allocation2 + $0xf0] sm:$0xff]
        %v2111 = vld [vmem:[#allocation2 + $0xf8] sm:$0xff]
        %v2113 = vperm.slane %v2079, 0
        %v2114 = vperm.slane %v2079, 1
        %v2117 = vadd.f32 %v2113, %v2080
        %v2118 = vadd.f32 %v2114, %v2081
        %v2119 = vadd.f32 %v2113, %v2082
        %v2120 = vadd.f32 %v2114, %v2083
        %v2121 = vadd.f32 %v2113, %v2084
        %v2122 = vadd.f32 %v2114, %v2085
        %v2123 = vadd.f32 %v2113, %v2086
        %v2124 = vadd.f32 %v2114, %v2087
        %v2125 = vadd.f32 %v2113, %v2088
        %v2126 = vadd.f32 %v2114, %v2089
        %v2127 = vadd.f32 %v2113, %v2090
        %v2128 = vadd.f32 %v2114, %v2091
        %v2129 = vadd.f32 %v2113, %v2092
        %v2130 = vadd.f32 %v2114, %v2093
        %v2131 = vadd.f32 %v2113, %v2094
        %v2132 = vadd.f32 %v2114, %v2095
        %v2133 = vadd.f32 %v2113, %v2096
        %v2134 = vadd.f32 %v2114, %v2097
        %v2135 = vadd.f32 %v2113, %v2098
        %v2136 = vadd.f32 %v2114, %v2099
        %v2137 = vadd.f32 %v2113, %v2100
        %v2138 = vadd.f32 %v2114, %v2101
        %v2139 = vadd.f32 %v2113, %v2102
        %v2140 = vadd.f32 %v2114, %v2103
        %v2141 = vadd.f32 %v2113, %v2104
        %v2142 = vadd.f32 %v2114, %v2105
        %v2143 = vadd.f32 %v2113, %v2106
        %v2144 = vadd.f32 %v2114, %v2107
        %v2145 = vadd.f32 %v2113, %v2108
        %v2146 = vadd.f32 %v2114, %v2109
        %v2147 = vadd.f32 %v2113, %v2110
        %v2148 = vadd.f32 %v2114, %v2111
        %v2149 = vmin.f32 %v2117, %v2118
        %2150 = vmin.xlane.f32.xlu0 %v2149
        %v2151 = vpop.xlane.xlu0 %2150
        %v2152 = vmin.f32 %v2119, %v2120
        %2153 = vmin.xlane.f32.xlu0 %v2152
        %v2154 = vpop.xlane.xlu0 %2153
        %v2155 = vmin.f32 %v2121, %v2122
        %2156 = vmin.xlane.f32.xlu0 %v2155
        %v2157 = vpop.xlane.xlu0 %2156
        %v2158 = vmin.f32 %v2123, %v2124
        %2159 = vmin.xlane.f32.xlu0 %v2158
        %v2160 = vpop.xlane.xlu0 %2159
        %v2161 = vmin.f32 %v2125, %v2126
        %2162 = vmin.xlane.f32.xlu0 %v2161
        %v2163 = vpop.xlane.xlu0 %2162
        %v2164 = vmin.f32 %v2127, %v2128
        %2165 = vmin.xlane.f32.xlu0 %v2164
        %v2166 = vpop.xlane.xlu0 %2165
        %v2167 = vmin.f32 %v2129, %v2130
        %2168 = vmin.xlane.f32.xlu0 %v2167
        %v2169 = vpop.xlane.xlu0 %2168
        %v2170 = vmin.f32 %v2131, %v2132
        %2171 = vmin.xlane.f32.xlu0 %v2170
        %v2172 = vpop.xlane.xlu0 %2171
        %v2173 = vmin.f32 %v2133, %v2134
        %2174 = vmin.xlane.f32.xlu0 %v2173
        %v2175 = vpop.xlane.xlu0 %2174
        %v2176 = vmin.f32 %v2135, %v2136
        %2177 = vmin.xlane.f32.xlu0 %v2176
        %v2178 = vpop.xlane.xlu0 %2177
        %v2179 = vmin.f32 %v2137, %v2138
        %2180 = vmin.xlane.f32.xlu0 %v2179
        %v2181 = vpop.xlane.xlu0 %2180
        %v2182 = vmin.f32 %v2139, %v2140
        %2183 = vmin.xlane.f32.xlu0 %v2182
        %v2184 = vpop.xlane.xlu0 %2183
        %v2185 = vmin.f32 %v2141, %v2142
        %2186 = vmin.xlane.f32.xlu0 %v2185
        %v2187 = vpop.xlane.xlu0 %2186
        %v2188 = vmin.f32 %v2143, %v2144
        %2189 = vmin.xlane.f32.xlu0 %v2188
        %v2190 = vpop.xlane.xlu0 %2189
        %v2191 = vmin.f32 %v2145, %v2146
        %2192 = vmin.xlane.f32.xlu0 %v2191
        %v2193 = vpop.xlane.xlu0 %2192
        %v2194 = vmin.f32 %v2147, %v2148
        %2195 = vmin.xlane.f32.xlu0 %v2194
        %v2196 = vpop.xlane.xlu0 %2195
        %vm2197 = vcmask 105568
        %2198 = vst.msk [vmem:[#allocation3] sm:$0xff] %vm2197, %v2151
        %2199 = vst.msk [vmem:[#allocation3 + $0x8] sm:$0xff] %vm2197, %v2154
        %2200 = vst.msk [vmem:[#allocation3 + $0x10] sm:$0xff] %vm2197, %v2157
        %2201 = vst.msk [vmem:[#allocation3 + $0x18] sm:$0xff] %vm2197, %v2160
        %2202 = vst.msk [vmem:[#allocation3 + $0x20] sm:$0xff] %vm2197, %v2163
        %2203 = vst.msk [vmem:[#allocation3 + $0x28] sm:$0xff] %vm2197, %v2166
        %2204 = vst.msk [vmem:[#allocation3 + $0x30] sm:$0xff] %vm2197, %v2169
        %2205 = vst.msk [vmem:[#allocation3 + $0x38] sm:$0xff] %vm2197, %v2172
        %2206 = vst.msk [vmem:[#allocation3 + $0x40] sm:$0xff] %vm2197, %v2175
        %2207 = vst.msk [vmem:[#allocation3 + $0x48] sm:$0xff] %vm2197, %v2178
        %2208 = vst.msk [vmem:[#allocation3 + $0x50] sm:$0xff] %vm2197, %v2181
        %2209 = vst.msk [vmem:[#allocation3 + $0x58] sm:$0xff] %vm2197, %v2184
        %2210 = vst.msk [vmem:[#allocation3 + $0x60] sm:$0xff] %vm2197, %v2187
        %2211 = vst.msk [vmem:[#allocation3 + $0x68] sm:$0xff] %vm2197, %v2190
        %2212 = vst.msk [vmem:[#allocation3 + $0x70] sm:$0xff] %vm2197, %v2193
        %2213 = vst.msk [vmem:[#allocation3 + $0x78] sm:$0xff] %vm2197, %v2196
        %s2214 = scalar_lea.vmem %s1, 21
        %v2215 = vld [vmem:[%s2214] ss:$8 sm:$0x3]
        %v2216 = vld [vmem:[#allocation2] sm:$0xff]
        %v2217 = vld [vmem:[#allocation2 + $0x8] sm:$0xff]
        %v2218 = vld [vmem:[#allocation2 + $0x10] sm:$0xff]
        %v2219 = vld [vmem:[#allocation2 + $0x18] sm:$0xff]
        %v2220 = vld [vmem:[#allocation2 + $0x20] sm:$0xff]
        %v2221 = vld [vmem:[#allocation2 + $0x28] sm:$0xff]
        %v2222 = vld [vmem:[#allocation2 + $0x30] sm:$0xff]
        %v2223 = vld [vmem:[#allocation2 + $0x38] sm:$0xff]
        %v2224 = vld [vmem:[#allocation2 + $0x40] sm:$0xff]
        %v2225 = vld [vmem:[#allocation2 + $0x48] sm:$0xff]
        %v2226 = vld [vmem:[#allocation2 + $0x50] sm:$0xff]
        %v2227 = vld [vmem:[#allocation2 + $0x58] sm:$0xff]
        %v2228 = vld [vmem:[#allocation2 + $0x60] sm:$0xff]
        %v2229 = vld [vmem:[#allocation2 + $0x68] sm:$0xff]
        %v2230 = vld [vmem:[#allocation2 + $0x70] sm:$0xff]
        %v2231 = vld [vmem:[#allocation2 + $0x78] sm:$0xff]
        %v2232 = vld [vmem:[#allocation2 + $0x80] sm:$0xff]
        %v2233 = vld [vmem:[#allocation2 + $0x88] sm:$0xff]
        %v2234 = vld [vmem:[#allocation2 + $0x90] sm:$0xff]
        %v2235 = vld [vmem:[#allocation2 + $0x98] sm:$0xff]
        %v2236 = vld [vmem:[#allocation2 + $0xa0] sm:$0xff]
        %v2237 = vld [vmem:[#allocation2 + $0xa8] sm:$0xff]
        %v2238 = vld [vmem:[#allocation2 + $0xb0] sm:$0xff]
        %v2239 = vld [vmem:[#allocation2 + $0xb8] sm:$0xff]
        %v2240 = vld [vmem:[#allocation2 + $0xc0] sm:$0xff]
        %v2241 = vld [vmem:[#allocation2 + $0xc8] sm:$0xff]
        %v2242 = vld [vmem:[#allocation2 + $0xd0] sm:$0xff]
        %v2243 = vld [vmem:[#allocation2 + $0xd8] sm:$0xff]
        %v2244 = vld [vmem:[#allocation2 + $0xe0] sm:$0xff]
        %v2245 = vld [vmem:[#allocation2 + $0xe8] sm:$0xff]
        %v2246 = vld [vmem:[#allocation2 + $0xf0] sm:$0xff]
        %v2247 = vld [vmem:[#allocation2 + $0xf8] sm:$0xff]
        %v2249 = vperm.slane %v2215, 0
        %v2250 = vperm.slane %v2215, 1
        %v2253 = vadd.f32 %v2249, %v2216
        %v2254 = vadd.f32 %v2250, %v2217
        %v2255 = vadd.f32 %v2249, %v2218
        %v2256 = vadd.f32 %v2250, %v2219
        %v2257 = vadd.f32 %v2249, %v2220
        %v2258 = vadd.f32 %v2250, %v2221
        %v2259 = vadd.f32 %v2249, %v2222
        %v2260 = vadd.f32 %v2250, %v2223
        %v2261 = vadd.f32 %v2249, %v2224
        %v2262 = vadd.f32 %v2250, %v2225
        %v2263 = vadd.f32 %v2249, %v2226
        %v2264 = vadd.f32 %v2250, %v2227
        %v2265 = vadd.f32 %v2249, %v2228
        %v2266 = vadd.f32 %v2250, %v2229
        %v2267 = vadd.f32 %v2249, %v2230
        %v2268 = vadd.f32 %v2250, %v2231
        %v2269 = vadd.f32 %v2249, %v2232
        %v2270 = vadd.f32 %v2250, %v2233
        %v2271 = vadd.f32 %v2249, %v2234
        %v2272 = vadd.f32 %v2250, %v2235
        %v2273 = vadd.f32 %v2249, %v2236
        %v2274 = vadd.f32 %v2250, %v2237
        %v2275 = vadd.f32 %v2249, %v2238
        %v2276 = vadd.f32 %v2250, %v2239
        %v2277 = vadd.f32 %v2249, %v2240
        %v2278 = vadd.f32 %v2250, %v2241
        %v2279 = vadd.f32 %v2249, %v2242
        %v2280 = vadd.f32 %v2250, %v2243
        %v2281 = vadd.f32 %v2249, %v2244
        %v2282 = vadd.f32 %v2250, %v2245
        %v2283 = vadd.f32 %v2249, %v2246
        %v2284 = vadd.f32 %v2250, %v2247
        %v2285 = vmin.f32 %v2253, %v2254
        %2286 = vmin.xlane.f32.xlu0 %v2285
        %v2287 = vpop.xlane.xlu0 %2286
        %v2288 = vmin.f32 %v2255, %v2256
        %2289 = vmin.xlane.f32.xlu0 %v2288
        %v2290 = vpop.xlane.xlu0 %2289
        %v2291 = vmin.f32 %v2257, %v2258
        %2292 = vmin.xlane.f32.xlu0 %v2291
        %v2293 = vpop.xlane.xlu0 %2292
        %v2294 = vmin.f32 %v2259, %v2260
        %2295 = vmin.xlane.f32.xlu0 %v2294
        %v2296 = vpop.xlane.xlu0 %2295
        %v2297 = vmin.f32 %v2261, %v2262
        %2298 = vmin.xlane.f32.xlu0 %v2297
        %v2299 = vpop.xlane.xlu0 %2298
        %v2300 = vmin.f32 %v2263, %v2264
        %2301 = vmin.xlane.f32.xlu0 %v2300
        %v2302 = vpop.xlane.xlu0 %2301
        %v2303 = vmin.f32 %v2265, %v2266
        %2304 = vmin.xlane.f32.xlu0 %v2303
        %v2305 = vpop.xlane.xlu0 %2304
        %v2306 = vmin.f32 %v2267, %v2268
        %2307 = vmin.xlane.f32.xlu0 %v2306
        %v2308 = vpop.xlane.xlu0 %2307
        %v2309 = vmin.f32 %v2269, %v2270
        %2310 = vmin.xlane.f32.xlu0 %v2309
        %v2311 = vpop.xlane.xlu0 %2310
        %v2312 = vmin.f32 %v2271, %v2272
        %2313 = vmin.xlane.f32.xlu0 %v2312
        %v2314 = vpop.xlane.xlu0 %2313
        %v2315 = vmin.f32 %v2273, %v2274
        %2316 = vmin.xlane.f32.xlu0 %v2315
        %v2317 = vpop.xlane.xlu0 %2316
        %v2318 = vmin.f32 %v2275, %v2276
        %2319 = vmin.xlane.f32.xlu0 %v2318
        %v2320 = vpop.xlane.xlu0 %2319
        %v2321 = vmin.f32 %v2277, %v2278
        %2322 = vmin.xlane.f32.xlu0 %v2321
        %v2323 = vpop.xlane.xlu0 %2322
        %v2324 = vmin.f32 %v2279, %v2280
        %2325 = vmin.xlane.f32.xlu0 %v2324
        %v2326 = vpop.xlane.xlu0 %2325
        %v2327 = vmin.f32 %v2281, %v2282
        %2328 = vmin.xlane.f32.xlu0 %v2327
        %v2329 = vpop.xlane.xlu0 %2328
        %v2330 = vmin.f32 %v2283, %v2284
        %2331 = vmin.xlane.f32.xlu0 %v2330
        %v2332 = vpop.xlane.xlu0 %2331
        %vm2333 = vcmask 113768
        %2334 = vst.msk [vmem:[#allocation3] sm:$0xff] %vm2333, %v2287
        %2335 = vst.msk [vmem:[#allocation3 + $0x8] sm:$0xff] %vm2333, %v2290
        %2336 = vst.msk [vmem:[#allocation3 + $0x10] sm:$0xff] %vm2333, %v2293
        %2337 = vst.msk [vmem:[#allocation3 + $0x18] sm:$0xff] %vm2333, %v2296
        %2338 = vst.msk [vmem:[#allocation3 + $0x20] sm:$0xff] %vm2333, %v2299
        %2339 = vst.msk [vmem:[#allocation3 + $0x28] sm:$0xff] %vm2333, %v2302
        %2340 = vst.msk [vmem:[#allocation3 + $0x30] sm:$0xff] %vm2333, %v2305
        %2341 = vst.msk [vmem:[#allocation3 + $0x38] sm:$0xff] %vm2333, %v2308
        %2342 = vst.msk [vmem:[#allocation3 + $0x40] sm:$0xff] %vm2333, %v2311
        %2343 = vst.msk [vmem:[#allocation3 + $0x48] sm:$0xff] %vm2333, %v2314
        %2344 = vst.msk [vmem:[#allocation3 + $0x50] sm:$0xff] %vm2333, %v2317
        %2345 = vst.msk [vmem:[#allocation3 + $0x58] sm:$0xff] %vm2333, %v2320
        %2346 = vst.msk [vmem:[#allocation3 + $0x60] sm:$0xff] %vm2333, %v2323
        %2347 = vst.msk [vmem:[#allocation3 + $0x68] sm:$0xff] %vm2333, %v2326
        %2348 = vst.msk [vmem:[#allocation3 + $0x70] sm:$0xff] %vm2333, %v2329
        %2349 = vst.msk [vmem:[#allocation3 + $0x78] sm:$0xff] %vm2333, %v2332
        %s2350 = scalar_lea.vmem %s1, 22
        %v2351 = vld [vmem:[%s2350] ss:$8 sm:$0x3]
        %v2352 = vld [vmem:[#allocation2] sm:$0xff]
        %v2353 = vld [vmem:[#allocation2 + $0x8] sm:$0xff]
        %v2354 = vld [vmem:[#allocation2 + $0x10] sm:$0xff]
        %v2355 = vld [vmem:[#allocation2 + $0x18] sm:$0xff]
        %v2356 = vld [vmem:[#allocation2 + $0x20] sm:$0xff]
        %v2357 = vld [vmem:[#allocation2 + $0x28] sm:$0xff]
        %v2358 = vld [vmem:[#allocation2 + $0x30] sm:$0xff]
        %v2359 = vld [vmem:[#allocation2 + $0x38] sm:$0xff]
        %v2360 = vld [vmem:[#allocation2 + $0x40] sm:$0xff]
        %v2361 = vld [vmem:[#allocation2 + $0x48] sm:$0xff]
        %v2362 = vld [vmem:[#allocation2 + $0x50] sm:$0xff]
        %v2363 = vld [vmem:[#allocation2 + $0x58] sm:$0xff]
        %v2364 = vld [vmem:[#allocation2 + $0x60] sm:$0xff]
        %v2365 = vld [vmem:[#allocation2 + $0x68] sm:$0xff]
        %v2366 = vld [vmem:[#allocation2 + $0x70] sm:$0xff]
        %v2367 = vld [vmem:[#allocation2 + $0x78] sm:$0xff]
        %v2368 = vld [vmem:[#allocation2 + $0x80] sm:$0xff]
        %v2369 = vld [vmem:[#allocation2 + $0x88] sm:$0xff]
        %v2370 = vld [vmem:[#allocation2 + $0x90] sm:$0xff]
        %v2371 = vld [vmem:[#allocation2 + $0x98] sm:$0xff]
        %v2372 = vld [vmem:[#allocation2 + $0xa0] sm:$0xff]
        %v2373 = vld [vmem:[#allocation2 + $0xa8] sm:$0xff]
        %v2374 = vld [vmem:[#allocation2 + $0xb0] sm:$0xff]
        %v2375 = vld [vmem:[#allocation2 + $0xb8] sm:$0xff]
        %v2376 = vld [vmem:[#allocation2 + $0xc0] sm:$0xff]
        %v2377 = vld [vmem:[#allocation2 + $0xc8] sm:$0xff]
        %v2378 = vld [vmem:[#allocation2 + $0xd0] sm:$0xff]
        %v2379 = vld [vmem:[#allocation2 + $0xd8] sm:$0xff]
        %v2380 = vld [vmem:[#allocation2 + $0xe0] sm:$0xff]
        %v2381 = vld [vmem:[#allocation2 + $0xe8] sm:$0xff]
        %v2382 = vld [vmem:[#allocation2 + $0xf0] sm:$0xff]
        %v2383 = vld [vmem:[#allocation2 + $0xf8] sm:$0xff]
        %v2385 = vperm.slane %v2351, 0
        %v2386 = vperm.slane %v2351, 1
        %v2389 = vadd.f32 %v2385, %v2352
        %v2390 = vadd.f32 %v2386, %v2353
        %v2391 = vadd.f32 %v2385, %v2354
        %v2392 = vadd.f32 %v2386, %v2355
        %v2393 = vadd.f32 %v2385, %v2356
        %v2394 = vadd.f32 %v2386, %v2357
        %v2395 = vadd.f32 %v2385, %v2358
        %v2396 = vadd.f32 %v2386, %v2359
        %v2397 = vadd.f32 %v2385, %v2360
        %v2398 = vadd.f32 %v2386, %v2361
        %v2399 = vadd.f32 %v2385, %v2362
        %v2400 = vadd.f32 %v2386, %v2363
        %v2401 = vadd.f32 %v2385, %v2364
        %v2402 = vadd.f32 %v2386, %v2365
        %v2403 = vadd.f32 %v2385, %v2366
        %v2404 = vadd.f32 %v2386, %v2367
        %v2405 = vadd.f32 %v2385, %v2368
        %v2406 = vadd.f32 %v2386, %v2369
        %v2407 = vadd.f32 %v2385, %v2370
        %v2408 = vadd.f32 %v2386, %v2371
        %v2409 = vadd.f32 %v2385, %v2372
        %v2410 = vadd.f32 %v2386, %v2373
        %v2411 = vadd.f32 %v2385, %v2374
        %v2412 = vadd.f32 %v2386, %v2375
        %v2413 = vadd.f32 %v2385, %v2376
        %v2414 = vadd.f32 %v2386, %v2377
        %v2415 = vadd.f32 %v2385, %v2378
        %v2416 = vadd.f32 %v2386, %v2379
        %v2417 = vadd.f32 %v2385, %v2380
        %v2418 = vadd.f32 %v2386, %v2381
        %v2419 = vadd.f32 %v2385, %v2382
        %v2420 = vadd.f32 %v2386, %v2383
        %v2421 = vmin.f32 %v2389, %v2390
        %2422 = vmin.xlane.f32.xlu0 %v2421
        %v2423 = vpop.xlane.xlu0 %2422
        %v2424 = vmin.f32 %v2391, %v2392
        %2425 = vmin.xlane.f32.xlu0 %v2424
        %v2426 = vpop.xlane.xlu0 %2425
        %v2427 = vmin.f32 %v2393, %v2394
        %2428 = vmin.xlane.f32.xlu0 %v2427
        %v2429 = vpop.xlane.xlu0 %2428
        %v2430 = vmin.f32 %v2395, %v2396
        %2431 = vmin.xlane.f32.xlu0 %v2430
        %v2432 = vpop.xlane.xlu0 %2431
        %v2433 = vmin.f32 %v2397, %v2398
        %2434 = vmin.xlane.f32.xlu0 %v2433
        %v2435 = vpop.xlane.xlu0 %2434
        %v2436 = vmin.f32 %v2399, %v2400
        %2437 = vmin.xlane.f32.xlu0 %v2436
        %v2438 = vpop.xlane.xlu0 %2437
        %v2439 = vmin.f32 %v2401, %v2402
        %2440 = vmin.xlane.f32.xlu0 %v2439
        %v2441 = vpop.xlane.xlu0 %2440
        %v2442 = vmin.f32 %v2403, %v2404
        %2443 = vmin.xlane.f32.xlu0 %v2442
        %v2444 = vpop.xlane.xlu0 %2443
        %v2445 = vmin.f32 %v2405, %v2406
        %2446 = vmin.xlane.f32.xlu0 %v2445
        %v2447 = vpop.xlane.xlu0 %2446
        %v2448 = vmin.f32 %v2407, %v2408
        %2449 = vmin.xlane.f32.xlu0 %v2448
        %v2450 = vpop.xlane.xlu0 %2449
        %v2451 = vmin.f32 %v2409, %v2410
        %2452 = vmin.xlane.f32.xlu0 %v2451
        %v2453 = vpop.xlane.xlu0 %2452
        %v2454 = vmin.f32 %v2411, %v2412
        %2455 = vmin.xlane.f32.xlu0 %v2454
        %v2456 = vpop.xlane.xlu0 %2455
        %v2457 = vmin.f32 %v2413, %v2414
        %2458 = vmin.xlane.f32.xlu0 %v2457
        %v2459 = vpop.xlane.xlu0 %2458
        %v2460 = vmin.f32 %v2415, %v2416
        %2461 = vmin.xlane.f32.xlu0 %v2460
        %v2462 = vpop.xlane.xlu0 %2461
        %v2463 = vmin.f32 %v2417, %v2418
        %2464 = vmin.xlane.f32.xlu0 %v2463
        %v2465 = vpop.xlane.xlu0 %2464
        %v2466 = vmin.f32 %v2419, %v2420
        %2467 = vmin.xlane.f32.xlu0 %v2466
        %v2468 = vpop.xlane.xlu0 %2467
        %vm2469 = vcmask 121968
        %2470 = vst.msk [vmem:[#allocation3] sm:$0xff] %vm2469, %v2423
        %2471 = vst.msk [vmem:[#allocation3 + $0x8] sm:$0xff] %vm2469, %v2426
        %2472 = vst.msk [vmem:[#allocation3 + $0x10] sm:$0xff] %vm2469, %v2429
        %2473 = vst.msk [vmem:[#allocation3 + $0x18] sm:$0xff] %vm2469, %v2432
        %2474 = vst.msk [vmem:[#allocation3 + $0x20] sm:$0xff] %vm2469, %v2435
        %2475 = vst.msk [vmem:[#allocation3 + $0x28] sm:$0xff] %vm2469, %v2438
        %2476 = vst.msk [vmem:[#allocation3 + $0x30] sm:$0xff] %vm2469, %v2441
        %2477 = vst.msk [vmem:[#allocation3 + $0x38] sm:$0xff] %vm2469, %v2444
        %2478 = vst.msk [vmem:[#allocation3 + $0x40] sm:$0xff] %vm2469, %v2447
        %2479 = vst.msk [vmem:[#allocation3 + $0x48] sm:$0xff] %vm2469, %v2450
        %2480 = vst.msk [vmem:[#allocation3 + $0x50] sm:$0xff] %vm2469, %v2453
        %2481 = vst.msk [vmem:[#allocation3 + $0x58] sm:$0xff] %vm2469, %v2456
        %2482 = vst.msk [vmem:[#allocation3 + $0x60] sm:$0xff] %vm2469, %v2459
        %2483 = vst.msk [vmem:[#allocation3 + $0x68] sm:$0xff] %vm2469, %v2462
        %2484 = vst.msk [vmem:[#allocation3 + $0x70] sm:$0xff] %vm2469, %v2465
        %2485 = vst.msk [vmem:[#allocation3 + $0x78] sm:$0xff] %vm2469, %v2468
        %s2486 = scalar_lea.vmem %s1, 23
        %v2487 = vld [vmem:[%s2486] ss:$8 sm:$0x3]
        %v2488 = vld [vmem:[#allocation2] sm:$0xff]
        %v2489 = vld [vmem:[#allocation2 + $0x8] sm:$0xff]
        %v2490 = vld [vmem:[#allocation2 + $0x10] sm:$0xff]
        %v2491 = vld [vmem:[#allocation2 + $0x18] sm:$0xff]
        %v2492 = vld [vmem:[#allocation2 + $0x20] sm:$0xff]
        %v2493 = vld [vmem:[#allocation2 + $0x28] sm:$0xff]
        %v2494 = vld [vmem:[#allocation2 + $0x30] sm:$0xff]
        %v2495 = vld [vmem:[#allocation2 + $0x38] sm:$0xff]
        %v2496 = vld [vmem:[#allocation2 + $0x40] sm:$0xff]
        %v2497 = vld [vmem:[#allocation2 + $0x48] sm:$0xff]
        %v2498 = vld [vmem:[#allocation2 + $0x50] sm:$0xff]
        %v2499 = vld [vmem:[#allocation2 + $0x58] sm:$0xff]
        %v2500 = vld [vmem:[#allocation2 + $0x60] sm:$0xff]
        %v2501 = vld [vmem:[#allocation2 + $0x68] sm:$0xff]
        %v2502 = vld [vmem:[#allocation2 + $0x70] sm:$0xff]
        %v2503 = vld [vmem:[#allocation2 + $0x78] sm:$0xff]
        %v2504 = vld [vmem:[#allocation2 + $0x80] sm:$0xff]
        %v2505 = vld [vmem:[#allocation2 + $0x88] sm:$0xff]
        %v2506 = vld [vmem:[#allocation2 + $0x90] sm:$0xff]
        %v2507 = vld [vmem:[#allocation2 + $0x98] sm:$0xff]
        %v2508 = vld [vmem:[#allocation2 + $0xa0] sm:$0xff]
        %v2509 = vld [vmem:[#allocation2 + $0xa8] sm:$0xff]
        %v2510 = vld [vmem:[#allocation2 + $0xb0] sm:$0xff]
        %v2511 = vld [vmem:[#allocation2 + $0xb8] sm:$0xff]
        %v2512 = vld [vmem:[#allocation2 + $0xc0] sm:$0xff]
        %v2513 = vld [vmem:[#allocation2 + $0xc8] sm:$0xff]
        %v2514 = vld [vmem:[#allocation2 + $0xd0] sm:$0xff]
        %v2515 = vld [vmem:[#allocation2 + $0xd8] sm:$0xff]
        %v2516 = vld [vmem:[#allocation2 + $0xe0] sm:$0xff]
        %v2517 = vld [vmem:[#allocation2 + $0xe8] sm:$0xff]
        %v2518 = vld [vmem:[#allocation2 + $0xf0] sm:$0xff]
        %v2519 = vld [vmem:[#allocation2 + $0xf8] sm:$0xff]
        %v2521 = vperm.slane %v2487, 0
        %v2522 = vperm.slane %v2487, 1
        %v2525 = vadd.f32 %v2521, %v2488
        %v2526 = vadd.f32 %v2522, %v2489
        %v2527 = vadd.f32 %v2521, %v2490
        %v2528 = vadd.f32 %v2522, %v2491
        %v2529 = vadd.f32 %v2521, %v2492
        %v2530 = vadd.f32 %v2522, %v2493
        %v2531 = vadd.f32 %v2521, %v2494
        %v2532 = vadd.f32 %v2522, %v2495
        %v2533 = vadd.f32 %v2521, %v2496
        %v2534 = vadd.f32 %v2522, %v2497
        %v2535 = vadd.f32 %v2521, %v2498
        %v2536 = vadd.f32 %v2522, %v2499
        %v2537 = vadd.f32 %v2521, %v2500
        %v2538 = vadd.f32 %v2522, %v2501
        %v2539 = vadd.f32 %v2521, %v2502
        %v2540 = vadd.f32 %v2522, %v2503
        %v2541 = vadd.f32 %v2521, %v2504
        %v2542 = vadd.f32 %v2522, %v2505
        %v2543 = vadd.f32 %v2521, %v2506
        %v2544 = vadd.f32 %v2522, %v2507
        %v2545 = vadd.f32 %v2521, %v2508
        %v2546 = vadd.f32 %v2522, %v2509
        %v2547 = vadd.f32 %v2521, %v2510
        %v2548 = vadd.f32 %v2522, %v2511
        %v2549 = vadd.f32 %v2521, %v2512
        %v2550 = vadd.f32 %v2522, %v2513
        %v2551 = vadd.f32 %v2521, %v2514
        %v2552 = vadd.f32 %v2522, %v2515
        %v2553 = vadd.f32 %v2521, %v2516
        %v2554 = vadd.f32 %v2522, %v2517
        %v2555 = vadd.f32 %v2521, %v2518
        %v2556 = vadd.f32 %v2522, %v2519
        %v2557 = vmin.f32 %v2525, %v2526
        %2558 = vmin.xlane.f32.xlu0 %v2557
        %v2559 = vpop.xlane.xlu0 %2558
        %v2560 = vmin.f32 %v2527, %v2528
        %2561 = vmin.xlane.f32.xlu0 %v2560
        %v2562 = vpop.xlane.xlu0 %2561
        %v2563 = vmin.f32 %v2529, %v2530
        %2564 = vmin.xlane.f32.xlu0 %v2563
        %v2565 = vpop.xlane.xlu0 %2564
        %v2566 = vmin.f32 %v2531, %v2532
        %2567 = vmin.xlane.f32.xlu0 %v2566
        %v2568 = vpop.xlane.xlu0 %2567
        %v2569 = vmin.f32 %v2533, %v2534
        %2570 = vmin.xlane.f32.xlu0 %v2569
        %v2571 = vpop.xlane.xlu0 %2570
        %v2572 = vmin.f32 %v2535, %v2536
        %2573 = vmin.xlane.f32.xlu0 %v2572
        %v2574 = vpop.xlane.xlu0 %2573
        %v2575 = vmin.f32 %v2537, %v2538
        %2576 = vmin.xlane.f32.xlu0 %v2575
        %v2577 = vpop.xlane.xlu0 %2576
        %v2578 = vmin.f32 %v2539, %v2540
        %2579 = vmin.xlane.f32.xlu0 %v2578
        %v2580 = vpop.xlane.xlu0 %2579
        %v2581 = vmin.f32 %v2541, %v2542
        %2582 = vmin.xlane.f32.xlu0 %v2581
        %v2583 = vpop.xlane.xlu0 %2582
        %v2584 = vmin.f32 %v2543, %v2544
        %2585 = vmin.xlane.f32.xlu0 %v2584
        %v2586 = vpop.xlane.xlu0 %2585
        %v2587 = vmin.f32 %v2545, %v2546
        %2588 = vmin.xlane.f32.xlu0 %v2587
        %v2589 = vpop.xlane.xlu0 %2588
        %v2590 = vmin.f32 %v2547, %v2548
        %2591 = vmin.xlane.f32.xlu0 %v2590
        %v2592 = vpop.xlane.xlu0 %2591
        %v2593 = vmin.f32 %v2549, %v2550
        %2594 = vmin.xlane.f32.xlu0 %v2593
        %v2595 = vpop.xlane.xlu0 %2594
        %v2596 = vmin.f32 %v2551, %v2552
        %2597 = vmin.xlane.f32.xlu0 %v2596
        %v2598 = vpop.xlane.xlu0 %2597
        %v2599 = vmin.f32 %v2553, %v2554
        %2600 = vmin.xlane.f32.xlu0 %v2599
        %v2601 = vpop.xlane.xlu0 %2600
        %v2602 = vmin.f32 %v2555, %v2556
        %2603 = vmin.xlane.f32.xlu0 %v2602
        %v2604 = vpop.xlane.xlu0 %2603
        %vm2605 = vcmask 130168
        %2606 = vst.msk [vmem:[#allocation3] sm:$0xff] %vm2605, %v2559
        %2607 = vst.msk [vmem:[#allocation3 + $0x8] sm:$0xff] %vm2605, %v2562
        %2608 = vst.msk [vmem:[#allocation3 + $0x10] sm:$0xff] %vm2605, %v2565
        %2609 = vst.msk [vmem:[#allocation3 + $0x18] sm:$0xff] %vm2605, %v2568
        %2610 = vst.msk [vmem:[#allocation3 + $0x20] sm:$0xff] %vm2605, %v2571
        %2611 = vst.msk [vmem:[#allocation3 + $0x28] sm:$0xff] %vm2605, %v2574
        %2612 = vst.msk [vmem:[#allocation3 + $0x30] sm:$0xff] %vm2605, %v2577
        %2613 = vst.msk [vmem:[#allocation3 + $0x38] sm:$0xff] %vm2605, %v2580
        %2614 = vst.msk [vmem:[#allocation3 + $0x40] sm:$0xff] %vm2605, %v2583
        %2615 = vst.msk [vmem:[#allocation3 + $0x48] sm:$0xff] %vm2605, %v2586
        %2616 = vst.msk [vmem:[#allocation3 + $0x50] sm:$0xff] %vm2605, %v2589
        %2617 = vst.msk [vmem:[#allocation3 + $0x58] sm:$0xff] %vm2605, %v2592
        %2618 = vst.msk [vmem:[#allocation3 + $0x60] sm:$0xff] %vm2605, %v2595
        %2619 = vst.msk [vmem:[#allocation3 + $0x68] sm:$0xff] %vm2605, %v2598
        %2620 = vst.msk [vmem:[#allocation3 + $0x70] sm:$0xff] %vm2605, %v2601
        %2621 = vst.msk [vmem:[#allocation3 + $0x78] sm:$0xff] %vm2605, %v2604
        %s2622 = scalar_lea.vmem %s1, 32
        %v2623 = vld [vmem:[%s2622] ss:$8 sm:$0x3]
        %v2624 = vld [vmem:[#allocation2] sm:$0xff]
        %v2625 = vld [vmem:[#allocation2 + $0x8] sm:$0xff]
        %v2626 = vld [vmem:[#allocation2 + $0x10] sm:$0xff]
        %v2627 = vld [vmem:[#allocation2 + $0x18] sm:$0xff]
        %v2628 = vld [vmem:[#allocation2 + $0x20] sm:$0xff]
        %v2629 = vld [vmem:[#allocation2 + $0x28] sm:$0xff]
        %v2630 = vld [vmem:[#allocation2 + $0x30] sm:$0xff]
        %v2631 = vld [vmem:[#allocation2 + $0x38] sm:$0xff]
        %v2632 = vld [vmem:[#allocation2 + $0x40] sm:$0xff]
        %v2633 = vld [vmem:[#allocation2 + $0x48] sm:$0xff]
        %v2634 = vld [vmem:[#allocation2 + $0x50] sm:$0xff]
        %v2635 = vld [vmem:[#allocation2 + $0x58] sm:$0xff]
        %v2636 = vld [vmem:[#allocation2 + $0x60] sm:$0xff]
        %v2637 = vld [vmem:[#allocation2 + $0x68] sm:$0xff]
        %v2638 = vld [vmem:[#allocation2 + $0x70] sm:$0xff]
        %v2639 = vld [vmem:[#allocation2 + $0x78] sm:$0xff]
        %v2640 = vld [vmem:[#allocation2 + $0x80] sm:$0xff]
        %v2641 = vld [vmem:[#allocation2 + $0x88] sm:$0xff]
        %v2642 = vld [vmem:[#allocation2 + $0x90] sm:$0xff]
        %v2643 = vld [vmem:[#allocation2 + $0x98] sm:$0xff]
        %v2644 = vld [vmem:[#allocation2 + $0xa0] sm:$0xff]
        %v2645 = vld [vmem:[#allocation2 + $0xa8] sm:$0xff]
        %v2646 = vld [vmem:[#allocation2 + $0xb0] sm:$0xff]
        %v2647 = vld [vmem:[#allocation2 + $0xb8] sm:$0xff]
        %v2648 = vld [vmem:[#allocation2 + $0xc0] sm:$0xff]
        %v2649 = vld [vmem:[#allocation2 + $0xc8] sm:$0xff]
        %v2650 = vld [vmem:[#allocation2 + $0xd0] sm:$0xff]
        %v2651 = vld [vmem:[#allocation2 + $0xd8] sm:$0xff]
        %v2652 = vld [vmem:[#allocation2 + $0xe0] sm:$0xff]
        %v2653 = vld [vmem:[#allocation2 + $0xe8] sm:$0xff]
        %v2654 = vld [vmem:[#allocation2 + $0xf0] sm:$0xff]
        %v2655 = vld [vmem:[#allocation2 + $0xf8] sm:$0xff]
        %v2657 = vperm.slane %v2623, 0
        %v2658 = vperm.slane %v2623, 1
        %v2661 = vadd.f32 %v2657, %v2624
        %v2662 = vadd.f32 %v2658, %v2625
        %v2663 = vadd.f32 %v2657, %v2626
        %v2664 = vadd.f32 %v2658, %v2627
        %v2665 = vadd.f32 %v2657, %v2628
        %v2666 = vadd.f32 %v2658, %v2629
        %v2667 = vadd.f32 %v2657, %v2630
        %v2668 = vadd.f32 %v2658, %v2631
        %v2669 = vadd.f32 %v2657, %v2632
        %v2670 = vadd.f32 %v2658, %v2633
        %v2671 = vadd.f32 %v2657, %v2634
        %v2672 = vadd.f32 %v2658, %v2635
        %v2673 = vadd.f32 %v2657, %v2636
        %v2674 = vadd.f32 %v2658, %v2637
        %v2675 = vadd.f32 %v2657, %v2638
        %v2676 = vadd.f32 %v2658, %v2639
        %v2677 = vadd.f32 %v2657, %v2640
        %v2678 = vadd.f32 %v2658, %v2641
        %v2679 = vadd.f32 %v2657, %v2642
        %v2680 = vadd.f32 %v2658, %v2643
        %v2681 = vadd.f32 %v2657, %v2644
        %v2682 = vadd.f32 %v2658, %v2645
        %v2683 = vadd.f32 %v2657, %v2646
        %v2684 = vadd.f32 %v2658, %v2647
        %v2685 = vadd.f32 %v2657, %v2648
        %v2686 = vadd.f32 %v2658, %v2649
        %v2687 = vadd.f32 %v2657, %v2650
        %v2688 = vadd.f32 %v2658, %v2651
        %v2689 = vadd.f32 %v2657, %v2652
        %v2690 = vadd.f32 %v2658, %v2653
        %v2691 = vadd.f32 %v2657, %v2654
        %v2692 = vadd.f32 %v2658, %v2655
        %v2693 = vmin.f32 %v2661, %v2662
        %2694 = vmin.xlane.f32.xlu0 %v2693
        %v2695 = vpop.xlane.xlu0 %2694
        %v2696 = vmin.f32 %v2663, %v2664
        %2697 = vmin.xlane.f32.xlu0 %v2696
        %v2698 = vpop.xlane.xlu0 %2697
        %v2699 = vmin.f32 %v2665, %v2666
        %2700 = vmin.xlane.f32.xlu0 %v2699
        %v2701 = vpop.xlane.xlu0 %2700
        %v2702 = vmin.f32 %v2667, %v2668
        %2703 = vmin.xlane.f32.xlu0 %v2702
        %v2704 = vpop.xlane.xlu0 %2703
        %v2705 = vmin.f32 %v2669, %v2670
        %2706 = vmin.xlane.f32.xlu0 %v2705
        %v2707 = vpop.xlane.xlu0 %2706
        %v2708 = vmin.f32 %v2671, %v2672
        %2709 = vmin.xlane.f32.xlu0 %v2708
        %v2710 = vpop.xlane.xlu0 %2709
        %v2711 = vmin.f32 %v2673, %v2674
        %2712 = vmin.xlane.f32.xlu0 %v2711
        %v2713 = vpop.xlane.xlu0 %2712
        %v2714 = vmin.f32 %v2675, %v2676
        %2715 = vmin.xlane.f32.xlu0 %v2714
        %v2716 = vpop.xlane.xlu0 %2715
        %v2717 = vmin.f32 %v2677, %v2678
        %2718 = vmin.xlane.f32.xlu0 %v2717
        %v2719 = vpop.xlane.xlu0 %2718
        %v2720 = vmin.f32 %v2679, %v2680
        %2721 = vmin.xlane.f32.xlu0 %v2720
        %v2722 = vpop.xlane.xlu0 %2721
        %v2723 = vmin.f32 %v2681, %v2682
        %2724 = vmin.xlane.f32.xlu0 %v2723
        %v2725 = vpop.xlane.xlu0 %2724
        %v2726 = vmin.f32 %v2683, %v2684
        %2727 = vmin.xlane.f32.xlu0 %v2726
        %v2728 = vpop.xlane.xlu0 %2727
        %v2729 = vmin.f32 %v2685, %v2686
        %2730 = vmin.xlane.f32.xlu0 %v2729
        %v2731 = vpop.xlane.xlu0 %2730
        %v2732 = vmin.f32 %v2687, %v2688
        %2733 = vmin.xlane.f32.xlu0 %v2732
        %v2734 = vpop.xlane.xlu0 %2733
        %v2735 = vmin.f32 %v2689, %v2690
        %2736 = vmin.xlane.f32.xlu0 %v2735
        %v2737 = vpop.xlane.xlu0 %2736
        %v2738 = vmin.f32 %v2691, %v2692
        %2739 = vmin.xlane.f32.xlu0 %v2738
        %v2740 = vpop.xlane.xlu0 %2739
        %vm2741 = vcmask 138368
        %2742 = vst.msk [vmem:[#allocation3] sm:$0xff] %vm2741, %v2695
        %2743 = vst.msk [vmem:[#allocation3 + $0x8] sm:$0xff] %vm2741, %v2698
        %2744 = vst.msk [vmem:[#allocation3 + $0x10] sm:$0xff] %vm2741, %v2701
        %2745 = vst.msk [vmem:[#allocation3 + $0x18] sm:$0xff] %vm2741, %v2704
        %2746 = vst.msk [vmem:[#allocation3 + $0x20] sm:$0xff] %vm2741, %v2707
        %2747 = vst.msk [vmem:[#allocation3 + $0x28] sm:$0xff] %vm2741, %v2710
        %2748 = vst.msk [vmem:[#allocation3 + $0x30] sm:$0xff] %vm2741, %v2713
        %2749 = vst.msk [vmem:[#allocation3 + $0x38] sm:$0xff] %vm2741, %v2716
        %2750 = vst.msk [vmem:[#allocation3 + $0x40] sm:$0xff] %vm2741, %v2719
        %2751 = vst.msk [vmem:[#allocation3 + $0x48] sm:$0xff] %vm2741, %v2722
        %2752 = vst.msk [vmem:[#allocation3 + $0x50] sm:$0xff] %vm2741, %v2725
        %2753 = vst.msk [vmem:[#allocation3 + $0x58] sm:$0xff] %vm2741, %v2728
        %2754 = vst.msk [vmem:[#allocation3 + $0x60] sm:$0xff] %vm2741, %v2731
        %2755 = vst.msk [vmem:[#allocation3 + $0x68] sm:$0xff] %vm2741, %v2734
        %2756 = vst.msk [vmem:[#allocation3 + $0x70] sm:$0xff] %vm2741, %v2737
        %2757 = vst.msk [vmem:[#allocation3 + $0x78] sm:$0xff] %vm2741, %v2740
        %s2758 = scalar_lea.vmem %s1, 33
        %v2759 = vld [vmem:[%s2758] ss:$8 sm:$0x3]
        %v2760 = vld [vmem:[#allocation2] sm:$0xff]
        %v2761 = vld [vmem:[#allocation2 + $0x8] sm:$0xff]
        %v2762 = vld [vmem:[#allocation2 + $0x10] sm:$0xff]
        %v2763 = vld [vmem:[#allocation2 + $0x18] sm:$0xff]
        %v2764 = vld [vmem:[#allocation2 + $0x20] sm:$0xff]
        %v2765 = vld [vmem:[#allocation2 + $0x28] sm:$0xff]
        %v2766 = vld [vmem:[#allocation2 + $0x30] sm:$0xff]
        %v2767 = vld [vmem:[#allocation2 + $0x38] sm:$0xff]
        %v2768 = vld [vmem:[#allocation2 + $0x40] sm:$0xff]
        %v2769 = vld [vmem:[#allocation2 + $0x48] sm:$0xff]
        %v2770 = vld [vmem:[#allocation2 + $0x50] sm:$0xff]
        %v2771 = vld [vmem:[#allocation2 + $0x58] sm:$0xff]
        %v2772 = vld [vmem:[#allocation2 + $0x60] sm:$0xff]
        %v2773 = vld [vmem:[#allocation2 + $0x68] sm:$0xff]
        %v2774 = vld [vmem:[#allocation2 + $0x70] sm:$0xff]
        %v2775 = vld [vmem:[#allocation2 + $0x78] sm:$0xff]
        %v2776 = vld [vmem:[#allocation2 + $0x80] sm:$0xff]
        %v2777 = vld [vmem:[#allocation2 + $0x88] sm:$0xff]
        %v2778 = vld [vmem:[#allocation2 + $0x90] sm:$0xff]
        %v2779 = vld [vmem:[#allocation2 + $0x98] sm:$0xff]
        %v2780 = vld [vmem:[#allocation2 + $0xa0] sm:$0xff]
        %v2781 = vld [vmem:[#allocation2 + $0xa8] sm:$0xff]
        %v2782 = vld [vmem:[#allocation2 + $0xb0] sm:$0xff]
        %v2783 = vld [vmem:[#allocation2 + $0xb8] sm:$0xff]
        %v2784 = vld [vmem:[#allocation2 + $0xc0] sm:$0xff]
        %v2785 = vld [vmem:[#allocation2 + $0xc8] sm:$0xff]
        %v2786 = vld [vmem:[#allocation2 + $0xd0] sm:$0xff]
        %v2787 = vld [vmem:[#allocation2 + $0xd8] sm:$0xff]
        %v2788 = vld [vmem:[#allocation2 + $0xe0] sm:$0xff]
        %v2789 = vld [vmem:[#allocation2 + $0xe8] sm:$0xff]
        %v2790 = vld [vmem:[#allocation2 + $0xf0] sm:$0xff]
        %v2791 = vld [vmem:[#allocation2 + $0xf8] sm:$0xff]
        %v2793 = vperm.slane %v2759, 0
        %v2794 = vperm.slane %v2759, 1
        %v2797 = vadd.f32 %v2793, %v2760
        %v2798 = vadd.f32 %v2794, %v2761
        %v2799 = vadd.f32 %v2793, %v2762
        %v2800 = vadd.f32 %v2794, %v2763
        %v2801 = vadd.f32 %v2793, %v2764
        %v2802 = vadd.f32 %v2794, %v2765
        %v2803 = vadd.f32 %v2793, %v2766
        %v2804 = vadd.f32 %v2794, %v2767
        %v2805 = vadd.f32 %v2793, %v2768
        %v2806 = vadd.f32 %v2794, %v2769
        %v2807 = vadd.f32 %v2793, %v2770
        %v2808 = vadd.f32 %v2794, %v2771
        %v2809 = vadd.f32 %v2793, %v2772
        %v2810 = vadd.f32 %v2794, %v2773
        %v2811 = vadd.f32 %v2793, %v2774
        %v2812 = vadd.f32 %v2794, %v2775
        %v2813 = vadd.f32 %v2793, %v2776
        %v2814 = vadd.f32 %v2794, %v2777
        %v2815 = vadd.f32 %v2793, %v2778
        %v2816 = vadd.f32 %v2794, %v2779
        %v2817 = vadd.f32 %v2793, %v2780
        %v2818 = vadd.f32 %v2794, %v2781
        %v2819 = vadd.f32 %v2793, %v2782
        %v2820 = vadd.f32 %v2794, %v2783
        %v2821 = vadd.f32 %v2793, %v2784
        %v2822 = vadd.f32 %v2794, %v2785
        %v2823 = vadd.f32 %v2793, %v2786
        %v2824 = vadd.f32 %v2794, %v2787
        %v2825 = vadd.f32 %v2793, %v2788
        %v2826 = vadd.f32 %v2794, %v2789
        %v2827 = vadd.f32 %v2793, %v2790
        %v2828 = vadd.f32 %v2794, %v2791
        %v2829 = vmin.f32 %v2797, %v2798
        %2830 = vmin.xlane.f32.xlu0 %v2829
        %v2831 = vpop.xlane.xlu0 %2830
        %v2832 = vmin.f32 %v2799, %v2800
        %2833 = vmin.xlane.f32.xlu0 %v2832
        %v2834 = vpop.xlane.xlu0 %2833
        %v2835 = vmin.f32 %v2801, %v2802
        %2836 = vmin.xlane.f32.xlu0 %v2835
        %v2837 = vpop.xlane.xlu0 %2836
        %v2838 = vmin.f32 %v2803, %v2804
        %2839 = vmin.xlane.f32.xlu0 %v2838
        %v2840 = vpop.xlane.xlu0 %2839
        %v2841 = vmin.f32 %v2805, %v2806
        %2842 = vmin.xlane.f32.xlu0 %v2841
        %v2843 = vpop.xlane.xlu0 %2842
        %v2844 = vmin.f32 %v2807, %v2808
        %2845 = vmin.xlane.f32.xlu0 %v2844
        %v2846 = vpop.xlane.xlu0 %2845
        %v2847 = vmin.f32 %v2809, %v2810
        %2848 = vmin.xlane.f32.xlu0 %v2847
        %v2849 = vpop.xlane.xlu0 %2848
        %v2850 = vmin.f32 %v2811, %v2812
        %2851 = vmin.xlane.f32.xlu0 %v2850
        %v2852 = vpop.xlane.xlu0 %2851
        %v2853 = vmin.f32 %v2813, %v2814
        %2854 = vmin.xlane.f32.xlu0 %v2853
        %v2855 = vpop.xlane.xlu0 %2854
        %v2856 = vmin.f32 %v2815, %v2816
        %2857 = vmin.xlane.f32.xlu0 %v2856
        %v2858 = vpop.xlane.xlu0 %2857
        %v2859 = vmin.f32 %v2817, %v2818
        %2860 = vmin.xlane.f32.xlu0 %v2859
        %v2861 = vpop.xlane.xlu0 %2860
        %v2862 = vmin.f32 %v2819, %v2820
        %2863 = vmin.xlane.f32.xlu0 %v2862
        %v2864 = vpop.xlane.xlu0 %2863
        %v2865 = vmin.f32 %v2821, %v2822
        %2866 = vmin.xlane.f32.xlu0 %v2865
        %v2867 = vpop.xlane.xlu0 %2866
        %v2868 = vmin.f32 %v2823, %v2824
        %2869 = vmin.xlane.f32.xlu0 %v2868
        %v2870 = vpop.xlane.xlu0 %2869
        %v2871 = vmin.f32 %v2825, %v2826
        %2872 = vmin.xlane.f32.xlu0 %v2871
        %v2873 = vpop.xlane.xlu0 %2872
        %v2874 = vmin.f32 %v2827, %v2828
        %2875 = vmin.xlane.f32.xlu0 %v2874
        %v2876 = vpop.xlane.xlu0 %2875
        %vm2877 = vcmask 146568
        %2878 = vst.msk [vmem:[#allocation3] sm:$0xff] %vm2877, %v2831
        %2879 = vst.msk [vmem:[#allocation3 + $0x8] sm:$0xff] %vm2877, %v2834
        %2880 = vst.msk [vmem:[#allocation3 + $0x10] sm:$0xff] %vm2877, %v2837
        %2881 = vst.msk [vmem:[#allocation3 + $0x18] sm:$0xff] %vm2877, %v2840
        %2882 = vst.msk [vmem:[#allocation3 + $0x20] sm:$0xff] %vm2877, %v2843
        %2883 = vst.msk [vmem:[#allocation3 + $0x28] sm:$0xff] %vm2877, %v2846
        %2884 = vst.msk [vmem:[#allocation3 + $0x30] sm:$0xff] %vm2877, %v2849
        %2885 = vst.msk [vmem:[#allocation3 + $0x38] sm:$0xff] %vm2877, %v2852
        %2886 = vst.msk [vmem:[#allocation3 + $0x40] sm:$0xff] %vm2877, %v2855
        %2887 = vst.msk [vmem:[#allocation3 + $0x48] sm:$0xff] %vm2877, %v2858
        %2888 = vst.msk [vmem:[#allocation3 + $0x50] sm:$0xff] %vm2877, %v2861
        %2889 = vst.msk [vmem:[#allocation3 + $0x58] sm:$0xff] %vm2877, %v2864
        %2890 = vst.msk [vmem:[#allocation3 + $0x60] sm:$0xff] %vm2877, %v2867
        %2891 = vst.msk [vmem:[#allocation3 + $0x68] sm:$0xff] %vm2877, %v2870
        %2892 = vst.msk [vmem:[#allocation3 + $0x70] sm:$0xff] %vm2877, %v2873
        %2893 = vst.msk [vmem:[#allocation3 + $0x78] sm:$0xff] %vm2877, %v2876
        %s2894 = scalar_lea.vmem %s1, 34
        %v2895 = vld [vmem:[%s2894] ss:$8 sm:$0x3]
        %v2896 = vld [vmem:[#allocation2] sm:$0xff]
        %v2897 = vld [vmem:[#allocation2 + $0x8] sm:$0xff]
        %v2898 = vld [vmem:[#allocation2 + $0x10] sm:$0xff]
        %v2899 = vld [vmem:[#allocation2 + $0x18] sm:$0xff]
        %v2900 = vld [vmem:[#allocation2 + $0x20] sm:$0xff]
        %v2901 = vld [vmem:[#allocation2 + $0x28] sm:$0xff]
        %v2902 = vld [vmem:[#allocation2 + $0x30] sm:$0xff]
        %v2903 = vld [vmem:[#allocation2 + $0x38] sm:$0xff]
        %v2904 = vld [vmem:[#allocation2 + $0x40] sm:$0xff]
        %v2905 = vld [vmem:[#allocation2 + $0x48] sm:$0xff]
        %v2906 = vld [vmem:[#allocation2 + $0x50] sm:$0xff]
        %v2907 = vld [vmem:[#allocation2 + $0x58] sm:$0xff]
        %v2908 = vld [vmem:[#allocation2 + $0x60] sm:$0xff]
        %v2909 = vld [vmem:[#allocation2 + $0x68] sm:$0xff]
        %v2910 = vld [vmem:[#allocation2 + $0x70] sm:$0xff]
        %v2911 = vld [vmem:[#allocation2 + $0x78] sm:$0xff]
        %v2912 = vld [vmem:[#allocation2 + $0x80] sm:$0xff]
        %v2913 = vld [vmem:[#allocation2 + $0x88] sm:$0xff]
        %v2914 = vld [vmem:[#allocation2 + $0x90] sm:$0xff]
        %v2915 = vld [vmem:[#allocation2 + $0x98] sm:$0xff]
        %v2916 = vld [vmem:[#allocation2 + $0xa0] sm:$0xff]
        %v2917 = vld [vmem:[#allocation2 + $0xa8] sm:$0xff]
        %v2918 = vld [vmem:[#allocation2 + $0xb0] sm:$0xff]
        %v2919 = vld [vmem:[#allocation2 + $0xb8] sm:$0xff]
        %v2920 = vld [vmem:[#allocation2 + $0xc0] sm:$0xff]
        %v2921 = vld [vmem:[#allocation2 + $0xc8] sm:$0xff]
        %v2922 = vld [vmem:[#allocation2 + $0xd0] sm:$0xff]
        %v2923 = vld [vmem:[#allocation2 + $0xd8] sm:$0xff]
        %v2924 = vld [vmem:[#allocation2 + $0xe0] sm:$0xff]
        %v2925 = vld [vmem:[#allocation2 + $0xe8] sm:$0xff]
        %v2926 = vld [vmem:[#allocation2 + $0xf0] sm:$0xff]
        %v2927 = vld [vmem:[#allocation2 + $0xf8] sm:$0xff]
        %v2929 = vperm.slane %v2895, 0
        %v2930 = vperm.slane %v2895, 1
        %v2933 = vadd.f32 %v2929, %v2896
        %v2934 = vadd.f32 %v2930, %v2897
        %v2935 = vadd.f32 %v2929, %v2898
        %v2936 = vadd.f32 %v2930, %v2899
        %v2937 = vadd.f32 %v2929, %v2900
        %v2938 = vadd.f32 %v2930, %v2901
        %v2939 = vadd.f32 %v2929, %v2902
        %v2940 = vadd.f32 %v2930, %v2903
        %v2941 = vadd.f32 %v2929, %v2904
        %v2942 = vadd.f32 %v2930, %v2905
        %v2943 = vadd.f32 %v2929, %v2906
        %v2944 = vadd.f32 %v2930, %v2907
        %v2945 = vadd.f32 %v2929, %v2908
        %v2946 = vadd.f32 %v2930, %v2909
        %v2947 = vadd.f32 %v2929, %v2910
        %v2948 = vadd.f32 %v2930, %v2911
        %v2949 = vadd.f32 %v2929, %v2912
        %v2950 = vadd.f32 %v2930, %v2913
        %v2951 = vadd.f32 %v2929, %v2914
        %v2952 = vadd.f32 %v2930, %v2915
        %v2953 = vadd.f32 %v2929, %v2916
        %v2954 = vadd.f32 %v2930, %v2917
        %v2955 = vadd.f32 %v2929, %v2918
        %v2956 = vadd.f32 %v2930, %v2919
        %v2957 = vadd.f32 %v2929, %v2920
        %v2958 = vadd.f32 %v2930, %v2921
        %v2959 = vadd.f32 %v2929, %v2922
        %v2960 = vadd.f32 %v2930, %v2923
        %v2961 = vadd.f32 %v2929, %v2924
        %v2962 = vadd.f32 %v2930, %v2925
        %v2963 = vadd.f32 %v2929, %v2926
        %v2964 = vadd.f32 %v2930, %v2927
        %v2965 = vmin.f32 %v2933, %v2934
        %2966 = vmin.xlane.f32.xlu0 %v2965
        %v2967 = vpop.xlane.xlu0 %2966
        %v2968 = vmin.f32 %v2935, %v2936
        %2969 = vmin.xlane.f32.xlu0 %v2968
        %v2970 = vpop.xlane.xlu0 %2969
        %v2971 = vmin.f32 %v2937, %v2938
        %2972 = vmin.xlane.f32.xlu0 %v2971
        %v2973 = vpop.xlane.xlu0 %2972
        %v2974 = vmin.f32 %v2939, %v2940
        %2975 = vmin.xlane.f32.xlu0 %v2974
        %v2976 = vpop.xlane.xlu0 %2975
        %v2977 = vmin.f32 %v2941, %v2942
        %2978 = vmin.xlane.f32.xlu0 %v2977
        %v2979 = vpop.xlane.xlu0 %2978
        %v2980 = vmin.f32 %v2943, %v2944
        %2981 = vmin.xlane.f32.xlu0 %v2980
        %v2982 = vpop.xlane.xlu0 %2981
        %v2983 = vmin.f32 %v2945, %v2946
        %2984 = vmin.xlane.f32.xlu0 %v2983
        %v2985 = vpop.xlane.xlu0 %2984
        %v2986 = vmin.f32 %v2947, %v2948
        %2987 = vmin.xlane.f32.xlu0 %v2986
        %v2988 = vpop.xlane.xlu0 %2987
        %v2989 = vmin.f32 %v2949, %v2950
        %2990 = vmin.xlane.f32.xlu0 %v2989
        %v2991 = vpop.xlane.xlu0 %2990
        %v2992 = vmin.f32 %v2951, %v2952
        %2993 = vmin.xlane.f32.xlu0 %v2992
        %v2994 = vpop.xlane.xlu0 %2993
        %v2995 = vmin.f32 %v2953, %v2954
        %2996 = vmin.xlane.f32.xlu0 %v2995
        %v2997 = vpop.xlane.xlu0 %2996
        %v2998 = vmin.f32 %v2955, %v2956
        %2999 = vmin.xlane.f32.xlu0 %v2998
        %v3000 = vpop.xlane.xlu0 %2999
        %v3001 = vmin.f32 %v2957, %v2958
        %3002 = vmin.xlane.f32.xlu0 %v3001
        %v3003 = vpop.xlane.xlu0 %3002
        %v3004 = vmin.f32 %v2959, %v2960
        %3005 = vmin.xlane.f32.xlu0 %v3004
        %v3006 = vpop.xlane.xlu0 %3005
        %v3007 = vmin.f32 %v2961, %v2962
        %3008 = vmin.xlane.f32.xlu0 %v3007
        %v3009 = vpop.xlane.xlu0 %3008
        %v3010 = vmin.f32 %v2963, %v2964
        %3011 = vmin.xlane.f32.xlu0 %v3010
        %v3012 = vpop.xlane.xlu0 %3011
        %vm3013 = vcmask 154768
        %3014 = vst.msk [vmem:[#allocation3] sm:$0xff] %vm3013, %v2967
        %3015 = vst.msk [vmem:[#allocation3 + $0x8] sm:$0xff] %vm3013, %v2970
        %3016 = vst.msk [vmem:[#allocation3 + $0x10] sm:$0xff] %vm3013, %v2973
        %3017 = vst.msk [vmem:[#allocation3 + $0x18] sm:$0xff] %vm3013, %v2976
        %3018 = vst.msk [vmem:[#allocation3 + $0x20] sm:$0xff] %vm3013, %v2979
        %3019 = vst.msk [vmem:[#allocation3 + $0x28] sm:$0xff] %vm3013, %v2982
        %3020 = vst.msk [vmem:[#allocation3 + $0x30] sm:$0xff] %vm3013, %v2985
        %3021 = vst.msk [vmem:[#allocation3 + $0x38] sm:$0xff] %vm3013, %v2988
        %3022 = vst.msk [vmem:[#allocation3 + $0x40] sm:$0xff] %vm3013, %v2991
        %3023 = vst.msk [vmem:[#allocation3 + $0x48] sm:$0xff] %vm3013, %v2994
        %3024 = vst.msk [vmem:[#allocation3 + $0x50] sm:$0xff] %vm3013, %v2997
        %3025 = vst.msk [vmem:[#allocation3 + $0x58] sm:$0xff] %vm3013, %v3000
        %3026 = vst.msk [vmem:[#allocation3 + $0x60] sm:$0xff] %vm3013, %v3003
        %3027 = vst.msk [vmem:[#allocation3 + $0x68] sm:$0xff] %vm3013, %v3006
        %3028 = vst.msk [vmem:[#allocation3 + $0x70] sm:$0xff] %vm3013, %v3009
        %3029 = vst.msk [vmem:[#allocation3 + $0x78] sm:$0xff] %vm3013, %v3012
        %s3030 = scalar_lea.vmem %s1, 35
        %v3031 = vld [vmem:[%s3030] ss:$8 sm:$0x3]
        %v3032 = vld [vmem:[#allocation2] sm:$0xff]
        %v3033 = vld [vmem:[#allocation2 + $0x8] sm:$0xff]
        %v3034 = vld [vmem:[#allocation2 + $0x10] sm:$0xff]
        %v3035 = vld [vmem:[#allocation2 + $0x18] sm:$0xff]
        %v3036 = vld [vmem:[#allocation2 + $0x20] sm:$0xff]
        %v3037 = vld [vmem:[#allocation2 + $0x28] sm:$0xff]
        %v3038 = vld [vmem:[#allocation2 + $0x30] sm:$0xff]
        %v3039 = vld [vmem:[#allocation2 + $0x38] sm:$0xff]
        %v3040 = vld [vmem:[#allocation2 + $0x40] sm:$0xff]
        %v3041 = vld [vmem:[#allocation2 + $0x48] sm:$0xff]
        %v3042 = vld [vmem:[#allocation2 + $0x50] sm:$0xff]
        %v3043 = vld [vmem:[#allocation2 + $0x58] sm:$0xff]
        %v3044 = vld [vmem:[#allocation2 + $0x60] sm:$0xff]
        %v3045 = vld [vmem:[#allocation2 + $0x68] sm:$0xff]
        %v3046 = vld [vmem:[#allocation2 + $0x70] sm:$0xff]
        %v3047 = vld [vmem:[#allocation2 + $0x78] sm:$0xff]
        %v3048 = vld [vmem:[#allocation2 + $0x80] sm:$0xff]
        %v3049 = vld [vmem:[#allocation2 + $0x88] sm:$0xff]
        %v3050 = vld [vmem:[#allocation2 + $0x90] sm:$0xff]
        %v3051 = vld [vmem:[#allocation2 + $0x98] sm:$0xff]
        %v3052 = vld [vmem:[#allocation2 + $0xa0] sm:$0xff]
        %v3053 = vld [vmem:[#allocation2 + $0xa8] sm:$0xff]
        %v3054 = vld [vmem:[#allocation2 + $0xb0] sm:$0xff]
        %v3055 = vld [vmem:[#allocation2 + $0xb8] sm:$0xff]
        %v3056 = vld [vmem:[#allocation2 + $0xc0] sm:$0xff]
        %v3057 = vld [vmem:[#allocation2 + $0xc8] sm:$0xff]
        %v3058 = vld [vmem:[#allocation2 + $0xd0] sm:$0xff]
        %v3059 = vld [vmem:[#allocation2 + $0xd8] sm:$0xff]
        %v3060 = vld [vmem:[#allocation2 + $0xe0] sm:$0xff]
        %v3061 = vld [vmem:[#allocation2 + $0xe8] sm:$0xff]
        %v3062 = vld [vmem:[#allocation2 + $0xf0] sm:$0xff]
        %v3063 = vld [vmem:[#allocation2 + $0xf8] sm:$0xff]
        %v3065 = vperm.slane %v3031, 0
        %v3066 = vperm.slane %v3031, 1
        %v3069 = vadd.f32 %v3065, %v3032
        %v3070 = vadd.f32 %v3066, %v3033
        %v3071 = vadd.f32 %v3065, %v3034
        %v3072 = vadd.f32 %v3066, %v3035
        %v3073 = vadd.f32 %v3065, %v3036
        %v3074 = vadd.f32 %v3066, %v3037
        %v3075 = vadd.f32 %v3065, %v3038
        %v3076 = vadd.f32 %v3066, %v3039
        %v3077 = vadd.f32 %v3065, %v3040
        %v3078 = vadd.f32 %v3066, %v3041
        %v3079 = vadd.f32 %v3065, %v3042
        %v3080 = vadd.f32 %v3066, %v3043
        %v3081 = vadd.f32 %v3065, %v3044
        %v3082 = vadd.f32 %v3066, %v3045
        %v3083 = vadd.f32 %v3065, %v3046
        %v3084 = vadd.f32 %v3066, %v3047
        %v3085 = vadd.f32 %v3065, %v3048
        %v3086 = vadd.f32 %v3066, %v3049
        %v3087 = vadd.f32 %v3065, %v3050
        %v3088 = vadd.f32 %v3066, %v3051
        %v3089 = vadd.f32 %v3065, %v3052
        %v3090 = vadd.f32 %v3066, %v3053
        %v3091 = vadd.f32 %v3065, %v3054
        %v3092 = vadd.f32 %v3066, %v3055
        %v3093 = vadd.f32 %v3065, %v3056
        %v3094 = vadd.f32 %v3066, %v3057
        %v3095 = vadd.f32 %v3065, %v3058
        %v3096 = vadd.f32 %v3066, %v3059
        %v3097 = vadd.f32 %v3065, %v3060
        %v3098 = vadd.f32 %v3066, %v3061
        %v3099 = vadd.f32 %v3065, %v3062
        %v3100 = vadd.f32 %v3066, %v3063
        %v3101 = vmin.f32 %v3069, %v3070
        %3102 = vmin.xlane.f32.xlu0 %v3101
        %v3103 = vpop.xlane.xlu0 %3102
        %v3104 = vmin.f32 %v3071, %v3072
        %3105 = vmin.xlane.f32.xlu0 %v3104
        %v3106 = vpop.xlane.xlu0 %3105
        %v3107 = vmin.f32 %v3073, %v3074
        %3108 = vmin.xlane.f32.xlu0 %v3107
        %v3109 = vpop.xlane.xlu0 %3108
        %v3110 = vmin.f32 %v3075, %v3076
        %3111 = vmin.xlane.f32.xlu0 %v3110
        %v3112 = vpop.xlane.xlu0 %3111
        %v3113 = vmin.f32 %v3077, %v3078
        %3114 = vmin.xlane.f32.xlu0 %v3113
        %v3115 = vpop.xlane.xlu0 %3114
        %v3116 = vmin.f32 %v3079, %v3080
        %3117 = vmin.xlane.f32.xlu0 %v3116
        %v3118 = vpop.xlane.xlu0 %3117
        %v3119 = vmin.f32 %v3081, %v3082
        %3120 = vmin.xlane.f32.xlu0 %v3119
        %v3121 = vpop.xlane.xlu0 %3120
        %v3122 = vmin.f32 %v3083, %v3084
        %3123 = vmin.xlane.f32.xlu0 %v3122
        %v3124 = vpop.xlane.xlu0 %3123
        %v3125 = vmin.f32 %v3085, %v3086
        %3126 = vmin.xlane.f32.xlu0 %v3125
        %v3127 = vpop.xlane.xlu0 %3126
        %v3128 = vmin.f32 %v3087, %v3088
        %3129 = vmin.xlane.f32.xlu0 %v3128
        %v3130 = vpop.xlane.xlu0 %3129
        %v3131 = vmin.f32 %v3089, %v3090
        %3132 = vmin.xlane.f32.xlu0 %v3131
        %v3133 = vpop.xlane.xlu0 %3132
        %v3134 = vmin.f32 %v3091, %v3092
        %3135 = vmin.xlane.f32.xlu0 %v3134
        %v3136 = vpop.xlane.xlu0 %3135
        %v3137 = vmin.f32 %v3093, %v3094
        %3138 = vmin.xlane.f32.xlu0 %v3137
        %v3139 = vpop.xlane.xlu0 %3138
        %v3140 = vmin.f32 %v3095, %v3096
        %3141 = vmin.xlane.f32.xlu0 %v3140
        %v3142 = vpop.xlane.xlu0 %3141
        %v3143 = vmin.f32 %v3097, %v3098
        %3144 = vmin.xlane.f32.xlu0 %v3143
        %v3145 = vpop.xlane.xlu0 %3144
        %v3146 = vmin.f32 %v3099, %v3100
        %3147 = vmin.xlane.f32.xlu0 %v3146
        %v3148 = vpop.xlane.xlu0 %3147
        %vm3149 = vcmask 162968
        %3150 = vst.msk [vmem:[#allocation3] sm:$0xff] %vm3149, %v3103
        %3151 = vst.msk [vmem:[#allocation3 + $0x8] sm:$0xff] %vm3149, %v3106
        %3152 = vst.msk [vmem:[#allocation3 + $0x10] sm:$0xff] %vm3149, %v3109
        %3153 = vst.msk [vmem:[#allocation3 + $0x18] sm:$0xff] %vm3149, %v3112
        %3154 = vst.msk [vmem:[#allocation3 + $0x20] sm:$0xff] %vm3149, %v3115
        %3155 = vst.msk [vmem:[#allocation3 + $0x28] sm:$0xff] %vm3149, %v3118
        %3156 = vst.msk [vmem:[#allocation3 + $0x30] sm:$0xff] %vm3149, %v3121
        %3157 = vst.msk [vmem:[#allocation3 + $0x38] sm:$0xff] %vm3149, %v3124
        %3158 = vst.msk [vmem:[#allocation3 + $0x40] sm:$0xff] %vm3149, %v3127
        %3159 = vst.msk [vmem:[#allocation3 + $0x48] sm:$0xff] %vm3149, %v3130
        %3160 = vst.msk [vmem:[#allocation3 + $0x50] sm:$0xff] %vm3149, %v3133
        %3161 = vst.msk [vmem:[#allocation3 + $0x58] sm:$0xff] %vm3149, %v3136
        %3162 = vst.msk [vmem:[#allocation3 + $0x60] sm:$0xff] %vm3149, %v3139
        %3163 = vst.msk [vmem:[#allocation3 + $0x68] sm:$0xff] %vm3149, %v3142
        %3164 = vst.msk [vmem:[#allocation3 + $0x70] sm:$0xff] %vm3149, %v3145
        %3165 = vst.msk [vmem:[#allocation3 + $0x78] sm:$0xff] %vm3149, %v3148
        %s3166 = scalar_lea.vmem %s1, 36
        %v3167 = vld [vmem:[%s3166] ss:$8 sm:$0x3]
        %v3168 = vld [vmem:[#allocation2] sm:$0xff]
        %v3169 = vld [vmem:[#allocation2 + $0x8] sm:$0xff]
        %v3170 = vld [vmem:[#allocation2 + $0x10] sm:$0xff]
        %v3171 = vld [vmem:[#allocation2 + $0x18] sm:$0xff]
        %v3172 = vld [vmem:[#allocation2 + $0x20] sm:$0xff]
        %v3173 = vld [vmem:[#allocation2 + $0x28] sm:$0xff]
        %v3174 = vld [vmem:[#allocation2 + $0x30] sm:$0xff]
        %v3175 = vld [vmem:[#allocation2 + $0x38] sm:$0xff]
        %v3176 = vld [vmem:[#allocation2 + $0x40] sm:$0xff]
        %v3177 = vld [vmem:[#allocation2 + $0x48] sm:$0xff]
        %v3178 = vld [vmem:[#allocation2 + $0x50] sm:$0xff]
        %v3179 = vld [vmem:[#allocation2 + $0x58] sm:$0xff]
        %v3180 = vld [vmem:[#allocation2 + $0x60] sm:$0xff]
        %v3181 = vld [vmem:[#allocation2 + $0x68] sm:$0xff]
        %v3182 = vld [vmem:[#allocation2 + $0x70] sm:$0xff]
        %v3183 = vld [vmem:[#allocation2 + $0x78] sm:$0xff]
        %v3184 = vld [vmem:[#allocation2 + $0x80] sm:$0xff]
        %v3185 = vld [vmem:[#allocation2 + $0x88] sm:$0xff]
        %v3186 = vld [vmem:[#allocation2 + $0x90] sm:$0xff]
        %v3187 = vld [vmem:[#allocation2 + $0x98] sm:$0xff]
        %v3188 = vld [vmem:[#allocation2 + $0xa0] sm:$0xff]
        %v3189 = vld [vmem:[#allocation2 + $0xa8] sm:$0xff]
        %v3190 = vld [vmem:[#allocation2 + $0xb0] sm:$0xff]
        %v3191 = vld [vmem:[#allocation2 + $0xb8] sm:$0xff]
        %v3192 = vld [vmem:[#allocation2 + $0xc0] sm:$0xff]
        %v3193 = vld [vmem:[#allocation2 + $0xc8] sm:$0xff]
        %v3194 = vld [vmem:[#allocation2 + $0xd0] sm:$0xff]
        %v3195 = vld [vmem:[#allocation2 + $0xd8] sm:$0xff]
        %v3196 = vld [vmem:[#allocation2 + $0xe0] sm:$0xff]
        %v3197 = vld [vmem:[#allocation2 + $0xe8] sm:$0xff]
        %v3198 = vld [vmem:[#allocation2 + $0xf0] sm:$0xff]
        %v3199 = vld [vmem:[#allocation2 + $0xf8] sm:$0xff]
        %v3201 = vperm.slane %v3167, 0
        %v3202 = vperm.slane %v3167, 1
        %v3205 = vadd.f32 %v3201, %v3168
        %v3206 = vadd.f32 %v3202, %v3169
        %v3207 = vadd.f32 %v3201, %v3170
        %v3208 = vadd.f32 %v3202, %v3171
        %v3209 = vadd.f32 %v3201, %v3172
        %v3210 = vadd.f32 %v3202, %v3173
        %v3211 = vadd.f32 %v3201, %v3174
        %v3212 = vadd.f32 %v3202, %v3175
        %v3213 = vadd.f32 %v3201, %v3176
        %v3214 = vadd.f32 %v3202, %v3177
        %v3215 = vadd.f32 %v3201, %v3178
        %v3216 = vadd.f32 %v3202, %v3179
        %v3217 = vadd.f32 %v3201, %v3180
        %v3218 = vadd.f32 %v3202, %v3181
        %v3219 = vadd.f32 %v3201, %v3182
        %v3220 = vadd.f32 %v3202, %v3183
        %v3221 = vadd.f32 %v3201, %v3184
        %v3222 = vadd.f32 %v3202, %v3185
        %v3223 = vadd.f32 %v3201, %v3186
        %v3224 = vadd.f32 %v3202, %v3187
        %v3225 = vadd.f32 %v3201, %v3188
        %v3226 = vadd.f32 %v3202, %v3189
        %v3227 = vadd.f32 %v3201, %v3190
        %v3228 = vadd.f32 %v3202, %v3191
        %v3229 = vadd.f32 %v3201, %v3192
        %v3230 = vadd.f32 %v3202, %v3193
        %v3231 = vadd.f32 %v3201, %v3194
        %v3232 = vadd.f32 %v3202, %v3195
        %v3233 = vadd.f32 %v3201, %v3196
        %v3234 = vadd.f32 %v3202, %v3197
        %v3235 = vadd.f32 %v3201, %v3198
        %v3236 = vadd.f32 %v3202, %v3199
        %v3237 = vmin.f32 %v3205, %v3206
        %3238 = vmin.xlane.f32.xlu0 %v3237
        %v3239 = vpop.xlane.xlu0 %3238
        %v3240 = vmin.f32 %v3207, %v3208
        %3241 = vmin.xlane.f32.xlu0 %v3240
        %v3242 = vpop.xlane.xlu0 %3241
        %v3243 = vmin.f32 %v3209, %v3210
        %3244 = vmin.xlane.f32.xlu0 %v3243
        %v3245 = vpop.xlane.xlu0 %3244
        %v3246 = vmin.f32 %v3211, %v3212
        %3247 = vmin.xlane.f32.xlu0 %v3246
        %v3248 = vpop.xlane.xlu0 %3247
        %v3249 = vmin.f32 %v3213, %v3214
        %3250 = vmin.xlane.f32.xlu0 %v3249
        %v3251 = vpop.xlane.xlu0 %3250
        %v3252 = vmin.f32 %v3215, %v3216
        %3253 = vmin.xlane.f32.xlu0 %v3252
        %v3254 = vpop.xlane.xlu0 %3253
        %v3255 = vmin.f32 %v3217, %v3218
        %3256 = vmin.xlane.f32.xlu0 %v3255
        %v3257 = vpop.xlane.xlu0 %3256
        %v3258 = vmin.f32 %v3219, %v3220
        %3259 = vmin.xlane.f32.xlu0 %v3258
        %v3260 = vpop.xlane.xlu0 %3259
        %v3261 = vmin.f32 %v3221, %v3222
        %3262 = vmin.xlane.f32.xlu0 %v3261
        %v3263 = vpop.xlane.xlu0 %3262
        %v3264 = vmin.f32 %v3223, %v3224
        %3265 = vmin.xlane.f32.xlu0 %v3264
        %v3266 = vpop.xlane.xlu0 %3265
        %v3267 = vmin.f32 %v3225, %v3226
        %3268 = vmin.xlane.f32.xlu0 %v3267
        %v3269 = vpop.xlane.xlu0 %3268
        %v3270 = vmin.f32 %v3227, %v3228
        %3271 = vmin.xlane.f32.xlu0 %v3270
        %v3272 = vpop.xlane.xlu0 %3271
        %v3273 = vmin.f32 %v3229, %v3230
        %3274 = vmin.xlane.f32.xlu0 %v3273
        %v3275 = vpop.xlane.xlu0 %3274
        %v3276 = vmin.f32 %v3231, %v3232
        %3277 = vmin.xlane.f32.xlu0 %v3276
        %v3278 = vpop.xlane.xlu0 %3277
        %v3279 = vmin.f32 %v3233, %v3234
        %3280 = vmin.xlane.f32.xlu0 %v3279
        %v3281 = vpop.xlane.xlu0 %3280
        %v3282 = vmin.f32 %v3235, %v3236
        %3283 = vmin.xlane.f32.xlu0 %v3282
        %v3284 = vpop.xlane.xlu0 %3283
        %vm3285 = vcmask 171168
        %3286 = vst.msk [vmem:[#allocation3] sm:$0xff] %vm3285, %v3239
        %3287 = vst.msk [vmem:[#allocation3 + $0x8] sm:$0xff] %vm3285, %v3242
        %3288 = vst.msk [vmem:[#allocation3 + $0x10] sm:$0xff] %vm3285, %v3245
        %3289 = vst.msk [vmem:[#allocation3 + $0x18] sm:$0xff] %vm3285, %v3248
        %3290 = vst.msk [vmem:[#allocation3 + $0x20] sm:$0xff] %vm3285, %v3251
        %3291 = vst.msk [vmem:[#allocation3 + $0x28] sm:$0xff] %vm3285, %v3254
        %3292 = vst.msk [vmem:[#allocation3 + $0x30] sm:$0xff] %vm3285, %v3257
        %3293 = vst.msk [vmem:[#allocation3 + $0x38] sm:$0xff] %vm3285, %v3260
        %3294 = vst.msk [vmem:[#allocation3 + $0x40] sm:$0xff] %vm3285, %v3263
        %3295 = vst.msk [vmem:[#allocation3 + $0x48] sm:$0xff] %vm3285, %v3266
        %3296 = vst.msk [vmem:[#allocation3 + $0x50] sm:$0xff] %vm3285, %v3269
        %3297 = vst.msk [vmem:[#allocation3 + $0x58] sm:$0xff] %vm3285, %v3272
        %3298 = vst.msk [vmem:[#allocation3 + $0x60] sm:$0xff] %vm3285, %v3275
        %3299 = vst.msk [vmem:[#allocation3 + $0x68] sm:$0xff] %vm3285, %v3278
        %3300 = vst.msk [vmem:[#allocation3 + $0x70] sm:$0xff] %vm3285, %v3281
        %3301 = vst.msk [vmem:[#allocation3 + $0x78] sm:$0xff] %vm3285, %v3284
        %s3302 = scalar_lea.vmem %s1, 37
        %v3303 = vld [vmem:[%s3302] ss:$8 sm:$0x3]
        %v3304 = vld [vmem:[#allocation2] sm:$0xff]
        %v3305 = vld [vmem:[#allocation2 + $0x8] sm:$0xff]
        %v3306 = vld [vmem:[#allocation2 + $0x10] sm:$0xff]
        %v3307 = vld [vmem:[#allocation2 + $0x18] sm:$0xff]
        %v3308 = vld [vmem:[#allocation2 + $0x20] sm:$0xff]
        %v3309 = vld [vmem:[#allocation2 + $0x28] sm:$0xff]
        %v3310 = vld [vmem:[#allocation2 + $0x30] sm:$0xff]
        %v3311 = vld [vmem:[#allocation2 + $0x38] sm:$0xff]
        %v3312 = vld [vmem:[#allocation2 + $0x40] sm:$0xff]
        %v3313 = vld [vmem:[#allocation2 + $0x48] sm:$0xff]
        %v3314 = vld [vmem:[#allocation2 + $0x50] sm:$0xff]
        %v3315 = vld [vmem:[#allocation2 + $0x58] sm:$0xff]
        %v3316 = vld [vmem:[#allocation2 + $0x60] sm:$0xff]
        %v3317 = vld [vmem:[#allocation2 + $0x68] sm:$0xff]
        %v3318 = vld [vmem:[#allocation2 + $0x70] sm:$0xff]
        %v3319 = vld [vmem:[#allocation2 + $0x78] sm:$0xff]
        %v3320 = vld [vmem:[#allocation2 + $0x80] sm:$0xff]
        %v3321 = vld [vmem:[#allocation2 + $0x88] sm:$0xff]
        %v3322 = vld [vmem:[#allocation2 + $0x90] sm:$0xff]
        %v3323 = vld [vmem:[#allocation2 + $0x98] sm:$0xff]
        %v3324 = vld [vmem:[#allocation2 + $0xa0] sm:$0xff]
        %v3325 = vld [vmem:[#allocation2 + $0xa8] sm:$0xff]
        %v3326 = vld [vmem:[#allocation2 + $0xb0] sm:$0xff]
        %v3327 = vld [vmem:[#allocation2 + $0xb8] sm:$0xff]
        %v3328 = vld [vmem:[#allocation2 + $0xc0] sm:$0xff]
        %v3329 = vld [vmem:[#allocation2 + $0xc8] sm:$0xff]
        %v3330 = vld [vmem:[#allocation2 + $0xd0] sm:$0xff]
        %v3331 = vld [vmem:[#allocation2 + $0xd8] sm:$0xff]
        %v3332 = vld [vmem:[#allocation2 + $0xe0] sm:$0xff]
        %v3333 = vld [vmem:[#allocation2 + $0xe8] sm:$0xff]
        %v3334 = vld [vmem:[#allocation2 + $0xf0] sm:$0xff]
        %v3335 = vld [vmem:[#allocation2 + $0xf8] sm:$0xff]
        %v3337 = vperm.slane %v3303, 0
        %v3338 = vperm.slane %v3303, 1
        %v3341 = vadd.f32 %v3337, %v3304
        %v3342 = vadd.f32 %v3338, %v3305
        %v3343 = vadd.f32 %v3337, %v3306
        %v3344 = vadd.f32 %v3338, %v3307
        %v3345 = vadd.f32 %v3337, %v3308
        %v3346 = vadd.f32 %v3338, %v3309
        %v3347 = vadd.f32 %v3337, %v3310
        %v3348 = vadd.f32 %v3338, %v3311
        %v3349 = vadd.f32 %v3337, %v3312
        %v3350 = vadd.f32 %v3338, %v3313
        %v3351 = vadd.f32 %v3337, %v3314
        %v3352 = vadd.f32 %v3338, %v3315
        %v3353 = vadd.f32 %v3337, %v3316
        %v3354 = vadd.f32 %v3338, %v3317
        %v3355 = vadd.f32 %v3337, %v3318
        %v3356 = vadd.f32 %v3338, %v3319
        %v3357 = vadd.f32 %v3337, %v3320
        %v3358 = vadd.f32 %v3338, %v3321
        %v3359 = vadd.f32 %v3337, %v3322
        %v3360 = vadd.f32 %v3338, %v3323
        %v3361 = vadd.f32 %v3337, %v3324
        %v3362 = vadd.f32 %v3338, %v3325
        %v3363 = vadd.f32 %v3337, %v3326
        %v3364 = vadd.f32 %v3338, %v3327
        %v3365 = vadd.f32 %v3337, %v3328
        %v3366 = vadd.f32 %v3338, %v3329
        %v3367 = vadd.f32 %v3337, %v3330
        %v3368 = vadd.f32 %v3338, %v3331
        %v3369 = vadd.f32 %v3337, %v3332
        %v3370 = vadd.f32 %v3338, %v3333
        %v3371 = vadd.f32 %v3337, %v3334
        %v3372 = vadd.f32 %v3338, %v3335
        %v3373 = vmin.f32 %v3341, %v3342
        %3374 = vmin.xlane.f32.xlu0 %v3373
        %v3375 = vpop.xlane.xlu0 %3374
        %v3376 = vmin.f32 %v3343, %v3344
        %3377 = vmin.xlane.f32.xlu0 %v3376
        %v3378 = vpop.xlane.xlu0 %3377
        %v3379 = vmin.f32 %v3345, %v3346
        %3380 = vmin.xlane.f32.xlu0 %v3379
        %v3381 = vpop.xlane.xlu0 %3380
        %v3382 = vmin.f32 %v3347, %v3348
        %3383 = vmin.xlane.f32.xlu0 %v3382
        %v3384 = vpop.xlane.xlu0 %3383
        %v3385 = vmin.f32 %v3349, %v3350
        %3386 = vmin.xlane.f32.xlu0 %v3385
        %v3387 = vpop.xlane.xlu0 %3386
        %v3388 = vmin.f32 %v3351, %v3352
        %3389 = vmin.xlane.f32.xlu0 %v3388
        %v3390 = vpop.xlane.xlu0 %3389
        %v3391 = vmin.f32 %v3353, %v3354
        %3392 = vmin.xlane.f32.xlu0 %v3391
        %v3393 = vpop.xlane.xlu0 %3392
        %v3394 = vmin.f32 %v3355, %v3356
        %3395 = vmin.xlane.f32.xlu0 %v3394
        %v3396 = vpop.xlane.xlu0 %3395
        %v3397 = vmin.f32 %v3357, %v3358
        %3398 = vmin.xlane.f32.xlu0 %v3397
        %v3399 = vpop.xlane.xlu0 %3398
        %v3400 = vmin.f32 %v3359, %v3360
        %3401 = vmin.xlane.f32.xlu0 %v3400
        %v3402 = vpop.xlane.xlu0 %3401
        %v3403 = vmin.f32 %v3361, %v3362
        %3404 = vmin.xlane.f32.xlu0 %v3403
        %v3405 = vpop.xlane.xlu0 %3404
        %v3406 = vmin.f32 %v3363, %v3364
        %3407 = vmin.xlane.f32.xlu0 %v3406
        %v3408 = vpop.xlane.xlu0 %3407
        %v3409 = vmin.f32 %v3365, %v3366
        %3410 = vmin.xlane.f32.xlu0 %v3409
        %v3411 = vpop.xlane.xlu0 %3410
        %v3412 = vmin.f32 %v3367, %v3368
        %3413 = vmin.xlane.f32.xlu0 %v3412
        %v3414 = vpop.xlane.xlu0 %3413
        %v3415 = vmin.f32 %v3369, %v3370
        %3416 = vmin.xlane.f32.xlu0 %v3415
        %v3417 = vpop.xlane.xlu0 %3416
        %v3418 = vmin.f32 %v3371, %v3372
        %3419 = vmin.xlane.f32.xlu0 %v3418
        %v3420 = vpop.xlane.xlu0 %3419
        %vm3421 = vcmask 179368
        %3422 = vst.msk [vmem:[#allocation3] sm:$0xff] %vm3421, %v3375
        %3423 = vst.msk [vmem:[#allocation3 + $0x8] sm:$0xff] %vm3421, %v3378
        %3424 = vst.msk [vmem:[#allocation3 + $0x10] sm:$0xff] %vm3421, %v3381
        %3425 = vst.msk [vmem:[#allocation3 + $0x18] sm:$0xff] %vm3421, %v3384
        %3426 = vst.msk [vmem:[#allocation3 + $0x20] sm:$0xff] %vm3421, %v3387
        %3427 = vst.msk [vmem:[#allocation3 + $0x28] sm:$0xff] %vm3421, %v3390
        %3428 = vst.msk [vmem:[#allocation3 + $0x30] sm:$0xff] %vm3421, %v3393
        %3429 = vst.msk [vmem:[#allocation3 + $0x38] sm:$0xff] %vm3421, %v3396
        %3430 = vst.msk [vmem:[#allocation3 + $0x40] sm:$0xff] %vm3421, %v3399
        %3431 = vst.msk [vmem:[#allocation3 + $0x48] sm:$0xff] %vm3421, %v3402
        %3432 = vst.msk [vmem:[#allocation3 + $0x50] sm:$0xff] %vm3421, %v3405
        %3433 = vst.msk [vmem:[#allocation3 + $0x58] sm:$0xff] %vm3421, %v3408
        %3434 = vst.msk [vmem:[#allocation3 + $0x60] sm:$0xff] %vm3421, %v3411
        %3435 = vst.msk [vmem:[#allocation3 + $0x68] sm:$0xff] %vm3421, %v3414
        %3436 = vst.msk [vmem:[#allocation3 + $0x70] sm:$0xff] %vm3421, %v3417
        %3437 = vst.msk [vmem:[#allocation3 + $0x78] sm:$0xff] %vm3421, %v3420
        %s3438 = scalar_lea.vmem %s1, 38
        %v3439 = vld [vmem:[%s3438] ss:$8 sm:$0x3]
        %v3440 = vld [vmem:[#allocation2] sm:$0xff]
        %v3441 = vld [vmem:[#allocation2 + $0x8] sm:$0xff]
        %v3442 = vld [vmem:[#allocation2 + $0x10] sm:$0xff]
        %v3443 = vld [vmem:[#allocation2 + $0x18] sm:$0xff]
        %v3444 = vld [vmem:[#allocation2 + $0x20] sm:$0xff]
        %v3445 = vld [vmem:[#allocation2 + $0x28] sm:$0xff]
        %v3446 = vld [vmem:[#allocation2 + $0x30] sm:$0xff]
        %v3447 = vld [vmem:[#allocation2 + $0x38] sm:$0xff]
        %v3448 = vld [vmem:[#allocation2 + $0x40] sm:$0xff]
        %v3449 = vld [vmem:[#allocation2 + $0x48] sm:$0xff]
        %v3450 = vld [vmem:[#allocation2 + $0x50] sm:$0xff]
        %v3451 = vld [vmem:[#allocation2 + $0x58] sm:$0xff]
        %v3452 = vld [vmem:[#allocation2 + $0x60] sm:$0xff]
        %v3453 = vld [vmem:[#allocation2 + $0x68] sm:$0xff]
        %v3454 = vld [vmem:[#allocation2 + $0x70] sm:$0xff]
        %v3455 = vld [vmem:[#allocation2 + $0x78] sm:$0xff]
        %v3456 = vld [vmem:[#allocation2 + $0x80] sm:$0xff]
        %v3457 = vld [vmem:[#allocation2 + $0x88] sm:$0xff]
        %v3458 = vld [vmem:[#allocation2 + $0x90] sm:$0xff]
        %v3459 = vld [vmem:[#allocation2 + $0x98] sm:$0xff]
        %v3460 = vld [vmem:[#allocation2 + $0xa0] sm:$0xff]
        %v3461 = vld [vmem:[#allocation2 + $0xa8] sm:$0xff]
        %v3462 = vld [vmem:[#allocation2 + $0xb0] sm:$0xff]
        %v3463 = vld [vmem:[#allocation2 + $0xb8] sm:$0xff]
        %v3464 = vld [vmem:[#allocation2 + $0xc0] sm:$0xff]
        %v3465 = vld [vmem:[#allocation2 + $0xc8] sm:$0xff]
        %v3466 = vld [vmem:[#allocation2 + $0xd0] sm:$0xff]
        %v3467 = vld [vmem:[#allocation2 + $0xd8] sm:$0xff]
        %v3468 = vld [vmem:[#allocation2 + $0xe0] sm:$0xff]
        %v3469 = vld [vmem:[#allocation2 + $0xe8] sm:$0xff]
        %v3470 = vld [vmem:[#allocation2 + $0xf0] sm:$0xff]
        %v3471 = vld [vmem:[#allocation2 + $0xf8] sm:$0xff]
        %v3473 = vperm.slane %v3439, 0
        %v3474 = vperm.slane %v3439, 1
        %v3477 = vadd.f32 %v3473, %v3440
        %v3478 = vadd.f32 %v3474, %v3441
        %v3479 = vadd.f32 %v3473, %v3442
        %v3480 = vadd.f32 %v3474, %v3443
        %v3481 = vadd.f32 %v3473, %v3444
        %v3482 = vadd.f32 %v3474, %v3445
        %v3483 = vadd.f32 %v3473, %v3446
        %v3484 = vadd.f32 %v3474, %v3447
        %v3485 = vadd.f32 %v3473, %v3448
        %v3486 = vadd.f32 %v3474, %v3449
        %v3487 = vadd.f32 %v3473, %v3450
        %v3488 = vadd.f32 %v3474, %v3451
        %v3489 = vadd.f32 %v3473, %v3452
        %v3490 = vadd.f32 %v3474, %v3453
        %v3491 = vadd.f32 %v3473, %v3454
        %v3492 = vadd.f32 %v3474, %v3455
        %v3493 = vadd.f32 %v3473, %v3456
        %v3494 = vadd.f32 %v3474, %v3457
        %v3495 = vadd.f32 %v3473, %v3458
        %v3496 = vadd.f32 %v3474, %v3459
        %v3497 = vadd.f32 %v3473, %v3460
        %v3498 = vadd.f32 %v3474, %v3461
        %v3499 = vadd.f32 %v3473, %v3462
        %v3500 = vadd.f32 %v3474, %v3463
        %v3501 = vadd.f32 %v3473, %v3464
        %v3502 = vadd.f32 %v3474, %v3465
        %v3503 = vadd.f32 %v3473, %v3466
        %v3504 = vadd.f32 %v3474, %v3467
        %v3505 = vadd.f32 %v3473, %v3468
        %v3506 = vadd.f32 %v3474, %v3469
        %v3507 = vadd.f32 %v3473, %v3470
        %v3508 = vadd.f32 %v3474, %v3471
        %v3509 = vmin.f32 %v3477, %v3478
        %3510 = vmin.xlane.f32.xlu0 %v3509
        %v3511 = vpop.xlane.xlu0 %3510
        %v3512 = vmin.f32 %v3479, %v3480
        %3513 = vmin.xlane.f32.xlu0 %v3512
        %v3514 = vpop.xlane.xlu0 %3513
        %v3515 = vmin.f32 %v3481, %v3482
        %3516 = vmin.xlane.f32.xlu0 %v3515
        %v3517 = vpop.xlane.xlu0 %3516
        %v3518 = vmin.f32 %v3483, %v3484
        %3519 = vmin.xlane.f32.xlu0 %v3518
        %v3520 = vpop.xlane.xlu0 %3519
        %v3521 = vmin.f32 %v3485, %v3486
        %3522 = vmin.xlane.f32.xlu0 %v3521
        %v3523 = vpop.xlane.xlu0 %3522
        %v3524 = vmin.f32 %v3487, %v3488
        %3525 = vmin.xlane.f32.xlu0 %v3524
        %v3526 = vpop.xlane.xlu0 %3525
        %v3527 = vmin.f32 %v3489, %v3490
        %3528 = vmin.xlane.f32.xlu0 %v3527
        %v3529 = vpop.xlane.xlu0 %3528
        %v3530 = vmin.f32 %v3491, %v3492
        %3531 = vmin.xlane.f32.xlu0 %v3530
        %v3532 = vpop.xlane.xlu0 %3531
        %v3533 = vmin.f32 %v3493, %v3494
        %3534 = vmin.xlane.f32.xlu0 %v3533
        %v3535 = vpop.xlane.xlu0 %3534
        %v3536 = vmin.f32 %v3495, %v3496
        %3537 = vmin.xlane.f32.xlu0 %v3536
        %v3538 = vpop.xlane.xlu0 %3537
        %v3539 = vmin.f32 %v3497, %v3498
        %3540 = vmin.xlane.f32.xlu0 %v3539
        %v3541 = vpop.xlane.xlu0 %3540
        %v3542 = vmin.f32 %v3499, %v3500
        %3543 = vmin.xlane.f32.xlu0 %v3542
        %v3544 = vpop.xlane.xlu0 %3543
        %v3545 = vmin.f32 %v3501, %v3502
        %3546 = vmin.xlane.f32.xlu0 %v3545
        %v3547 = vpop.xlane.xlu0 %3546
        %v3548 = vmin.f32 %v3503, %v3504
        %3549 = vmin.xlane.f32.xlu0 %v3548
        %v3550 = vpop.xlane.xlu0 %3549
        %v3551 = vmin.f32 %v3505, %v3506
        %3552 = vmin.xlane.f32.xlu0 %v3551
        %v3553 = vpop.xlane.xlu0 %3552
        %v3554 = vmin.f32 %v3507, %v3508
        %3555 = vmin.xlane.f32.xlu0 %v3554
        %v3556 = vpop.xlane.xlu0 %3555
        %vm3557 = vcmask 187568
        %3558 = vst.msk [vmem:[#allocation3] sm:$0xff] %vm3557, %v3511
        %3559 = vst.msk [vmem:[#allocation3 + $0x8] sm:$0xff] %vm3557, %v3514
        %3560 = vst.msk [vmem:[#allocation3 + $0x10] sm:$0xff] %vm3557, %v3517
        %3561 = vst.msk [vmem:[#allocation3 + $0x18] sm:$0xff] %vm3557, %v3520
        %3562 = vst.msk [vmem:[#allocation3 + $0x20] sm:$0xff] %vm3557, %v3523
        %3563 = vst.msk [vmem:[#allocation3 + $0x28] sm:$0xff] %vm3557, %v3526
        %3564 = vst.msk [vmem:[#allocation3 + $0x30] sm:$0xff] %vm3557, %v3529
        %3565 = vst.msk [vmem:[#allocation3 + $0x38] sm:$0xff] %vm3557, %v3532
        %3566 = vst.msk [vmem:[#allocation3 + $0x40] sm:$0xff] %vm3557, %v3535
        %3567 = vst.msk [vmem:[#allocation3 + $0x48] sm:$0xff] %vm3557, %v3538
        %3568 = vst.msk [vmem:[#allocation3 + $0x50] sm:$0xff] %vm3557, %v3541
        %3569 = vst.msk [vmem:[#allocation3 + $0x58] sm:$0xff] %vm3557, %v3544
        %3570 = vst.msk [vmem:[#allocation3 + $0x60] sm:$0xff] %vm3557, %v3547
        %3571 = vst.msk [vmem:[#allocation3 + $0x68] sm:$0xff] %vm3557, %v3550
        %3572 = vst.msk [vmem:[#allocation3 + $0x70] sm:$0xff] %vm3557, %v3553
        %3573 = vst.msk [vmem:[#allocation3 + $0x78] sm:$0xff] %vm3557, %v3556
        %s3574 = scalar_lea.vmem %s1, 39
        %v3575 = vld [vmem:[%s3574] ss:$8 sm:$0x3]
        %v3576 = vld [vmem:[#allocation2] sm:$0xff]
        %v3577 = vld [vmem:[#allocation2 + $0x8] sm:$0xff]
        %v3578 = vld [vmem:[#allocation2 + $0x10] sm:$0xff]
        %v3579 = vld [vmem:[#allocation2 + $0x18] sm:$0xff]
        %v3580 = vld [vmem:[#allocation2 + $0x20] sm:$0xff]
        %v3581 = vld [vmem:[#allocation2 + $0x28] sm:$0xff]
        %v3582 = vld [vmem:[#allocation2 + $0x30] sm:$0xff]
        %v3583 = vld [vmem:[#allocation2 + $0x38] sm:$0xff]
        %v3584 = vld [vmem:[#allocation2 + $0x40] sm:$0xff]
        %v3585 = vld [vmem:[#allocation2 + $0x48] sm:$0xff]
        %v3586 = vld [vmem:[#allocation2 + $0x50] sm:$0xff]
        %v3587 = vld [vmem:[#allocation2 + $0x58] sm:$0xff]
        %v3588 = vld [vmem:[#allocation2 + $0x60] sm:$0xff]
        %v3589 = vld [vmem:[#allocation2 + $0x68] sm:$0xff]
        %v3590 = vld [vmem:[#allocation2 + $0x70] sm:$0xff]
        %v3591 = vld [vmem:[#allocation2 + $0x78] sm:$0xff]
        %v3592 = vld [vmem:[#allocation2 + $0x80] sm:$0xff]
        %v3593 = vld [vmem:[#allocation2 + $0x88] sm:$0xff]
        %v3594 = vld [vmem:[#allocation2 + $0x90] sm:$0xff]
        %v3595 = vld [vmem:[#allocation2 + $0x98] sm:$0xff]
        %v3596 = vld [vmem:[#allocation2 + $0xa0] sm:$0xff]
        %v3597 = vld [vmem:[#allocation2 + $0xa8] sm:$0xff]
        %v3598 = vld [vmem:[#allocation2 + $0xb0] sm:$0xff]
        %v3599 = vld [vmem:[#allocation2 + $0xb8] sm:$0xff]
        %v3600 = vld [vmem:[#allocation2 + $0xc0] sm:$0xff]
        %v3601 = vld [vmem:[#allocation2 + $0xc8] sm:$0xff]
        %v3602 = vld [vmem:[#allocation2 + $0xd0] sm:$0xff]
        %v3603 = vld [vmem:[#allocation2 + $0xd8] sm:$0xff]
        %v3604 = vld [vmem:[#allocation2 + $0xe0] sm:$0xff]
        %v3605 = vld [vmem:[#allocation2 + $0xe8] sm:$0xff]
        %v3606 = vld [vmem:[#allocation2 + $0xf0] sm:$0xff]
        %v3607 = vld [vmem:[#allocation2 + $0xf8] sm:$0xff]
        %v3609 = vperm.slane %v3575, 0
        %v3610 = vperm.slane %v3575, 1
        %v3613 = vadd.f32 %v3609, %v3576
        %v3614 = vadd.f32 %v3610, %v3577
        %v3615 = vadd.f32 %v3609, %v3578
        %v3616 = vadd.f32 %v3610, %v3579
        %v3617 = vadd.f32 %v3609, %v3580
        %v3618 = vadd.f32 %v3610, %v3581
        %v3619 = vadd.f32 %v3609, %v3582
        %v3620 = vadd.f32 %v3610, %v3583
        %v3621 = vadd.f32 %v3609, %v3584
        %v3622 = vadd.f32 %v3610, %v3585
        %v3623 = vadd.f32 %v3609, %v3586
        %v3624 = vadd.f32 %v3610, %v3587
        %v3625 = vadd.f32 %v3609, %v3588
        %v3626 = vadd.f32 %v3610, %v3589
        %v3627 = vadd.f32 %v3609, %v3590
        %v3628 = vadd.f32 %v3610, %v3591
        %v3629 = vadd.f32 %v3609, %v3592
        %v3630 = vadd.f32 %v3610, %v3593
        %v3631 = vadd.f32 %v3609, %v3594
        %v3632 = vadd.f32 %v3610, %v3595
        %v3633 = vadd.f32 %v3609, %v3596
        %v3634 = vadd.f32 %v3610, %v3597
        %v3635 = vadd.f32 %v3609, %v3598
        %v3636 = vadd.f32 %v3610, %v3599
        %v3637 = vadd.f32 %v3609, %v3600
        %v3638 = vadd.f32 %v3610, %v3601
        %v3639 = vadd.f32 %v3609, %v3602
        %v3640 = vadd.f32 %v3610, %v3603
        %v3641 = vadd.f32 %v3609, %v3604
        %v3642 = vadd.f32 %v3610, %v3605
        %v3643 = vadd.f32 %v3609, %v3606
        %v3644 = vadd.f32 %v3610, %v3607
        %v3645 = vmin.f32 %v3613, %v3614
        %3646 = vmin.xlane.f32.xlu0 %v3645
        %v3647 = vpop.xlane.xlu0 %3646
        %v3648 = vmin.f32 %v3615, %v3616
        %3649 = vmin.xlane.f32.xlu0 %v3648
        %v3650 = vpop.xlane.xlu0 %3649
        %v3651 = vmin.f32 %v3617, %v3618
        %3652 = vmin.xlane.f32.xlu0 %v3651
        %v3653 = vpop.xlane.xlu0 %3652
        %v3654 = vmin.f32 %v3619, %v3620
        %3655 = vmin.xlane.f32.xlu0 %v3654
        %v3656 = vpop.xlane.xlu0 %3655
        %v3657 = vmin.f32 %v3621, %v3622
        %3658 = vmin.xlane.f32.xlu0 %v3657
        %v3659 = vpop.xlane.xlu0 %3658
        %v3660 = vmin.f32 %v3623, %v3624
        %3661 = vmin.xlane.f32.xlu0 %v3660
        %v3662 = vpop.xlane.xlu0 %3661
        %v3663 = vmin.f32 %v3625, %v3626
        %3664 = vmin.xlane.f32.xlu0 %v3663
        %v3665 = vpop.xlane.xlu0 %3664
        %v3666 = vmin.f32 %v3627, %v3628
        %3667 = vmin.xlane.f32.xlu0 %v3666
        %v3668 = vpop.xlane.xlu0 %3667
        %v3669 = vmin.f32 %v3629, %v3630
        %3670 = vmin.xlane.f32.xlu0 %v3669
        %v3671 = vpop.xlane.xlu0 %3670
        %v3672 = vmin.f32 %v3631, %v3632
        %3673 = vmin.xlane.f32.xlu0 %v3672
        %v3674 = vpop.xlane.xlu0 %3673
        %v3675 = vmin.f32 %v3633, %v3634
        %3676 = vmin.xlane.f32.xlu0 %v3675
        %v3677 = vpop.xlane.xlu0 %3676
        %v3678 = vmin.f32 %v3635, %v3636
        %3679 = vmin.xlane.f32.xlu0 %v3678
        %v3680 = vpop.xlane.xlu0 %3679
        %v3681 = vmin.f32 %v3637, %v3638
        %3682 = vmin.xlane.f32.xlu0 %v3681
        %v3683 = vpop.xlane.xlu0 %3682
        %v3684 = vmin.f32 %v3639, %v3640
        %3685 = vmin.xlane.f32.xlu0 %v3684
        %v3686 = vpop.xlane.xlu0 %3685
        %v3687 = vmin.f32 %v3641, %v3642
        %3688 = vmin.xlane.f32.xlu0 %v3687
        %v3689 = vpop.xlane.xlu0 %3688
        %v3690 = vmin.f32 %v3643, %v3644
        %3691 = vmin.xlane.f32.xlu0 %v3690
        %v3692 = vpop.xlane.xlu0 %3691
        %vm3693 = vcmask 195768
        %3694 = vst.msk [vmem:[#allocation3] sm:$0xff] %vm3693, %v3647
        %3695 = vst.msk [vmem:[#allocation3 + $0x8] sm:$0xff] %vm3693, %v3650
        %3696 = vst.msk [vmem:[#allocation3 + $0x10] sm:$0xff] %vm3693, %v3653
        %3697 = vst.msk [vmem:[#allocation3 + $0x18] sm:$0xff] %vm3693, %v3656
        %3698 = vst.msk [vmem:[#allocation3 + $0x20] sm:$0xff] %vm3693, %v3659
        %3699 = vst.msk [vmem:[#allocation3 + $0x28] sm:$0xff] %vm3693, %v3662
        %3700 = vst.msk [vmem:[#allocation3 + $0x30] sm:$0xff] %vm3693, %v3665
        %3701 = vst.msk [vmem:[#allocation3 + $0x38] sm:$0xff] %vm3693, %v3668
        %3702 = vst.msk [vmem:[#allocation3 + $0x40] sm:$0xff] %vm3693, %v3671
        %3703 = vst.msk [vmem:[#allocation3 + $0x48] sm:$0xff] %vm3693, %v3674
        %3704 = vst.msk [vmem:[#allocation3 + $0x50] sm:$0xff] %vm3693, %v3677
        %3705 = vst.msk [vmem:[#allocation3 + $0x58] sm:$0xff] %vm3693, %v3680
        %3706 = vst.msk [vmem:[#allocation3 + $0x60] sm:$0xff] %vm3693, %v3683
        %3707 = vst.msk [vmem:[#allocation3 + $0x68] sm:$0xff] %vm3693, %v3686
        %3708 = vst.msk [vmem:[#allocation3 + $0x70] sm:$0xff] %vm3693, %v3689
        %3709 = vst.msk [vmem:[#allocation3 + $0x78] sm:$0xff] %vm3693, %v3692
        %s3710 = scalar_lea.vmem %s1, 48
        %v3711 = vld [vmem:[%s3710] ss:$8 sm:$0x3]
        %v3712 = vld [vmem:[#allocation2] sm:$0xff]
        %v3713 = vld [vmem:[#allocation2 + $0x8] sm:$0xff]
        %v3714 = vld [vmem:[#allocation2 + $0x10] sm:$0xff]
        %v3715 = vld [vmem:[#allocation2 + $0x18] sm:$0xff]
        %v3716 = vld [vmem:[#allocation2 + $0x20] sm:$0xff]
        %v3717 = vld [vmem:[#allocation2 + $0x28] sm:$0xff]
        %v3718 = vld [vmem:[#allocation2 + $0x30] sm:$0xff]
        %v3719 = vld [vmem:[#allocation2 + $0x38] sm:$0xff]
        %v3720 = vld [vmem:[#allocation2 + $0x40] sm:$0xff]
        %v3721 = vld [vmem:[#allocation2 + $0x48] sm:$0xff]
        %v3722 = vld [vmem:[#allocation2 + $0x50] sm:$0xff]
        %v3723 = vld [vmem:[#allocation2 + $0x58] sm:$0xff]
        %v3724 = vld [vmem:[#allocation2 + $0x60] sm:$0xff]
        %v3725 = vld [vmem:[#allocation2 + $0x68] sm:$0xff]
        %v3726 = vld [vmem:[#allocation2 + $0x70] sm:$0xff]
        %v3727 = vld [vmem:[#allocation2 + $0x78] sm:$0xff]
        %v3728 = vld [vmem:[#allocation2 + $0x80] sm:$0xff]
        %v3729 = vld [vmem:[#allocation2 + $0x88] sm:$0xff]
        %v3730 = vld [vmem:[#allocation2 + $0x90] sm:$0xff]
        %v3731 = vld [vmem:[#allocation2 + $0x98] sm:$0xff]
        %v3732 = vld [vmem:[#allocation2 + $0xa0] sm:$0xff]
        %v3733 = vld [vmem:[#allocation2 + $0xa8] sm:$0xff]
        %v3734 = vld [vmem:[#allocation2 + $0xb0] sm:$0xff]
        %v3735 = vld [vmem:[#allocation2 + $0xb8] sm:$0xff]
        %v3736 = vld [vmem:[#allocation2 + $0xc0] sm:$0xff]
        %v3737 = vld [vmem:[#allocation2 + $0xc8] sm:$0xff]
        %v3738 = vld [vmem:[#allocation2 + $0xd0] sm:$0xff]
        %v3739 = vld [vmem:[#allocation2 + $0xd8] sm:$0xff]
        %v3740 = vld [vmem:[#allocation2 + $0xe0] sm:$0xff]
        %v3741 = vld [vmem:[#allocation2 + $0xe8] sm:$0xff]
        %v3742 = vld [vmem:[#allocation2 + $0xf0] sm:$0xff]
        %v3743 = vld [vmem:[#allocation2 + $0xf8] sm:$0xff]
        %v3745 = vperm.slane %v3711, 0
        %v3746 = vperm.slane %v3711, 1
        %v3749 = vadd.f32 %v3745, %v3712
        %v3750 = vadd.f32 %v3746, %v3713
        %v3751 = vadd.f32 %v3745, %v3714
        %v3752 = vadd.f32 %v3746, %v3715
        %v3753 = vadd.f32 %v3745, %v3716
        %v3754 = vadd.f32 %v3746, %v3717
        %v3755 = vadd.f32 %v3745, %v3718
        %v3756 = vadd.f32 %v3746, %v3719
        %v3757 = vadd.f32 %v3745, %v3720
        %v3758 = vadd.f32 %v3746, %v3721
        %v3759 = vadd.f32 %v3745, %v3722
        %v3760 = vadd.f32 %v3746, %v3723
        %v3761 = vadd.f32 %v3745, %v3724
        %v3762 = vadd.f32 %v3746, %v3725
        %v3763 = vadd.f32 %v3745, %v3726
        %v3764 = vadd.f32 %v3746, %v3727
        %v3765 = vadd.f32 %v3745, %v3728
        %v3766 = vadd.f32 %v3746, %v3729
        %v3767 = vadd.f32 %v3745, %v3730
        %v3768 = vadd.f32 %v3746, %v3731
        %v3769 = vadd.f32 %v3745, %v3732
        %v3770 = vadd.f32 %v3746, %v3733
        %v3771 = vadd.f32 %v3745, %v3734
        %v3772 = vadd.f32 %v3746, %v3735
        %v3773 = vadd.f32 %v3745, %v3736
        %v3774 = vadd.f32 %v3746, %v3737
        %v3775 = vadd.f32 %v3745, %v3738
        %v3776 = vadd.f32 %v3746, %v3739
        %v3777 = vadd.f32 %v3745, %v3740
        %v3778 = vadd.f32 %v3746, %v3741
        %v3779 = vadd.f32 %v3745, %v3742
        %v3780 = vadd.f32 %v3746, %v3743
        %v3781 = vmin.f32 %v3749, %v3750
        %3782 = vmin.xlane.f32.xlu0 %v3781
        %v3783 = vpop.xlane.xlu0 %3782
        %v3784 = vmin.f32 %v3751, %v3752
        %3785 = vmin.xlane.f32.xlu0 %v3784
        %v3786 = vpop.xlane.xlu0 %3785
        %v3787 = vmin.f32 %v3753, %v3754
        %3788 = vmin.xlane.f32.xlu0 %v3787
        %v3789 = vpop.xlane.xlu0 %3788
        %v3790 = vmin.f32 %v3755, %v3756
        %3791 = vmin.xlane.f32.xlu0 %v3790
        %v3792 = vpop.xlane.xlu0 %3791
        %v3793 = vmin.f32 %v3757, %v3758
        %3794 = vmin.xlane.f32.xlu0 %v3793
        %v3795 = vpop.xlane.xlu0 %3794
        %v3796 = vmin.f32 %v3759, %v3760
        %3797 = vmin.xlane.f32.xlu0 %v3796
        %v3798 = vpop.xlane.xlu0 %3797
        %v3799 = vmin.f32 %v3761, %v3762
        %3800 = vmin.xlane.f32.xlu0 %v3799
        %v3801 = vpop.xlane.xlu0 %3800
        %v3802 = vmin.f32 %v3763, %v3764
        %3803 = vmin.xlane.f32.xlu0 %v3802
        %v3804 = vpop.xlane.xlu0 %3803
        %v3805 = vmin.f32 %v3765, %v3766
        %3806 = vmin.xlane.f32.xlu0 %v3805
        %v3807 = vpop.xlane.xlu0 %3806
        %v3808 = vmin.f32 %v3767, %v3768
        %3809 = vmin.xlane.f32.xlu0 %v3808
        %v3810 = vpop.xlane.xlu0 %3809
        %v3811 = vmin.f32 %v3769, %v3770
        %3812 = vmin.xlane.f32.xlu0 %v3811
        %v3813 = vpop.xlane.xlu0 %3812
        %v3814 = vmin.f32 %v3771, %v3772
        %3815 = vmin.xlane.f32.xlu0 %v3814
        %v3816 = vpop.xlane.xlu0 %3815
        %v3817 = vmin.f32 %v3773, %v3774
        %3818 = vmin.xlane.f32.xlu0 %v3817
        %v3819 = vpop.xlane.xlu0 %3818
        %v3820 = vmin.f32 %v3775, %v3776
        %3821 = vmin.xlane.f32.xlu0 %v3820
        %v3822 = vpop.xlane.xlu0 %3821
        %v3823 = vmin.f32 %v3777, %v3778
        %3824 = vmin.xlane.f32.xlu0 %v3823
        %v3825 = vpop.xlane.xlu0 %3824
        %v3826 = vmin.f32 %v3779, %v3780
        %3827 = vmin.xlane.f32.xlu0 %v3826
        %v3828 = vpop.xlane.xlu0 %3827
        %vm3829 = vcmask 203968
        %3830 = vst.msk [vmem:[#allocation3] sm:$0xff] %vm3829, %v3783
        %3831 = vst.msk [vmem:[#allocation3 + $0x8] sm:$0xff] %vm3829, %v3786
        %3832 = vst.msk [vmem:[#allocation3 + $0x10] sm:$0xff] %vm3829, %v3789
        %3833 = vst.msk [vmem:[#allocation3 + $0x18] sm:$0xff] %vm3829, %v3792
        %3834 = vst.msk [vmem:[#allocation3 + $0x20] sm:$0xff] %vm3829, %v3795
        %3835 = vst.msk [vmem:[#allocation3 + $0x28] sm:$0xff] %vm3829, %v3798
        %3836 = vst.msk [vmem:[#allocation3 + $0x30] sm:$0xff] %vm3829, %v3801
        %3837 = vst.msk [vmem:[#allocation3 + $0x38] sm:$0xff] %vm3829, %v3804
        %3838 = vst.msk [vmem:[#allocation3 + $0x40] sm:$0xff] %vm3829, %v3807
        %3839 = vst.msk [vmem:[#allocation3 + $0x48] sm:$0xff] %vm3829, %v3810
        %3840 = vst.msk [vmem:[#allocation3 + $0x50] sm:$0xff] %vm3829, %v3813
        %3841 = vst.msk [vmem:[#allocation3 + $0x58] sm:$0xff] %vm3829, %v3816
        %3842 = vst.msk [vmem:[#allocation3 + $0x60] sm:$0xff] %vm3829, %v3819
        %3843 = vst.msk [vmem:[#allocation3 + $0x68] sm:$0xff] %vm3829, %v3822
        %3844 = vst.msk [vmem:[#allocation3 + $0x70] sm:$0xff] %vm3829, %v3825
        %3845 = vst.msk [vmem:[#allocation3 + $0x78] sm:$0xff] %vm3829, %v3828
        %s3846 = scalar_lea.vmem %s1, 49
        %v3847 = vld [vmem:[%s3846] ss:$8 sm:$0x3]
        %v3848 = vld [vmem:[#allocation2] sm:$0xff]
        %v3849 = vld [vmem:[#allocation2 + $0x8] sm:$0xff]
        %v3850 = vld [vmem:[#allocation2 + $0x10] sm:$0xff]
        %v3851 = vld [vmem:[#allocation2 + $0x18] sm:$0xff]
        %v3852 = vld [vmem:[#allocation2 + $0x20] sm:$0xff]
        %v3853 = vld [vmem:[#allocation2 + $0x28] sm:$0xff]
        %v3854 = vld [vmem:[#allocation2 + $0x30] sm:$0xff]
        %v3855 = vld [vmem:[#allocation2 + $0x38] sm:$0xff]
        %v3856 = vld [vmem:[#allocation2 + $0x40] sm:$0xff]
        %v3857 = vld [vmem:[#allocation2 + $0x48] sm:$0xff]
        %v3858 = vld [vmem:[#allocation2 + $0x50] sm:$0xff]
        %v3859 = vld [vmem:[#allocation2 + $0x58] sm:$0xff]
        %v3860 = vld [vmem:[#allocation2 + $0x60] sm:$0xff]
        %v3861 = vld [vmem:[#allocation2 + $0x68] sm:$0xff]
        %v3862 = vld [vmem:[#allocation2 + $0x70] sm:$0xff]
        %v3863 = vld [vmem:[#allocation2 + $0x78] sm:$0xff]
        %v3864 = vld [vmem:[#allocation2 + $0x80] sm:$0xff]
        %v3865 = vld [vmem:[#allocation2 + $0x88] sm:$0xff]
        %v3866 = vld [vmem:[#allocation2 + $0x90] sm:$0xff]
        %v3867 = vld [vmem:[#allocation2 + $0x98] sm:$0xff]
        %v3868 = vld [vmem:[#allocation2 + $0xa0] sm:$0xff]
        %v3869 = vld [vmem:[#allocation2 + $0xa8] sm:$0xff]
        %v3870 = vld [vmem:[#allocation2 + $0xb0] sm:$0xff]
        %v3871 = vld [vmem:[#allocation2 + $0xb8] sm:$0xff]
        %v3872 = vld [vmem:[#allocation2 + $0xc0] sm:$0xff]
        %v3873 = vld [vmem:[#allocation2 + $0xc8] sm:$0xff]
        %v3874 = vld [vmem:[#allocation2 + $0xd0] sm:$0xff]
        %v3875 = vld [vmem:[#allocation2 + $0xd8] sm:$0xff]
        %v3876 = vld [vmem:[#allocation2 + $0xe0] sm:$0xff]
        %v3877 = vld [vmem:[#allocation2 + $0xe8] sm:$0xff]
        %v3878 = vld [vmem:[#allocation2 + $0xf0] sm:$0xff]
        %v3879 = vld [vmem:[#allocation2 + $0xf8] sm:$0xff]
        %v3881 = vperm.slane %v3847, 0
        %v3882 = vperm.slane %v3847, 1
        %v3885 = vadd.f32 %v3881, %v3848
        %v3886 = vadd.f32 %v3882, %v3849
        %v3887 = vadd.f32 %v3881, %v3850
        %v3888 = vadd.f32 %v3882, %v3851
        %v3889 = vadd.f32 %v3881, %v3852
        %v3890 = vadd.f32 %v3882, %v3853
        %v3891 = vadd.f32 %v3881, %v3854
        %v3892 = vadd.f32 %v3882, %v3855
        %v3893 = vadd.f32 %v3881, %v3856
        %v3894 = vadd.f32 %v3882, %v3857
        %v3895 = vadd.f32 %v3881, %v3858
        %v3896 = vadd.f32 %v3882, %v3859
        %v3897 = vadd.f32 %v3881, %v3860
        %v3898 = vadd.f32 %v3882, %v3861
        %v3899 = vadd.f32 %v3881, %v3862
        %v3900 = vadd.f32 %v3882, %v3863
        %v3901 = vadd.f32 %v3881, %v3864
        %v3902 = vadd.f32 %v3882, %v3865
        %v3903 = vadd.f32 %v3881, %v3866
        %v3904 = vadd.f32 %v3882, %v3867
        %v3905 = vadd.f32 %v3881, %v3868
        %v3906 = vadd.f32 %v3882, %v3869
        %v3907 = vadd.f32 %v3881, %v3870
        %v3908 = vadd.f32 %v3882, %v3871
        %v3909 = vadd.f32 %v3881, %v3872
        %v3910 = vadd.f32 %v3882, %v3873
        %v3911 = vadd.f32 %v3881, %v3874
        %v3912 = vadd.f32 %v3882, %v3875
        %v3913 = vadd.f32 %v3881, %v3876
        %v3914 = vadd.f32 %v3882, %v3877
        %v3915 = vadd.f32 %v3881, %v3878
        %v3916 = vadd.f32 %v3882, %v3879
        %v3917 = vmin.f32 %v3885, %v3886
        %3918 = vmin.xlane.f32.xlu0 %v3917
        %v3919 = vpop.xlane.xlu0 %3918
        %v3920 = vmin.f32 %v3887, %v3888
        %3921 = vmin.xlane.f32.xlu0 %v3920
        %v3922 = vpop.xlane.xlu0 %3921
        %v3923 = vmin.f32 %v3889, %v3890
        %3924 = vmin.xlane.f32.xlu0 %v3923
        %v3925 = vpop.xlane.xlu0 %3924
        %v3926 = vmin.f32 %v3891, %v3892
        %3927 = vmin.xlane.f32.xlu0 %v3926
        %v3928 = vpop.xlane.xlu0 %3927
        %v3929 = vmin.f32 %v3893, %v3894
        %3930 = vmin.xlane.f32.xlu0 %v3929
        %v3931 = vpop.xlane.xlu0 %3930
        %v3932 = vmin.f32 %v3895, %v3896
        %3933 = vmin.xlane.f32.xlu0 %v3932
        %v3934 = vpop.xlane.xlu0 %3933
        %v3935 = vmin.f32 %v3897, %v3898
        %3936 = vmin.xlane.f32.xlu0 %v3935
        %v3937 = vpop.xlane.xlu0 %3936
        %v3938 = vmin.f32 %v3899, %v3900
        %3939 = vmin.xlane.f32.xlu0 %v3938
        %v3940 = vpop.xlane.xlu0 %3939
        %v3941 = vmin.f32 %v3901, %v3902
        %3942 = vmin.xlane.f32.xlu0 %v3941
        %v3943 = vpop.xlane.xlu0 %3942
        %v3944 = vmin.f32 %v3903, %v3904
        %3945 = vmin.xlane.f32.xlu0 %v3944
        %v3946 = vpop.xlane.xlu0 %3945
        %v3947 = vmin.f32 %v3905, %v3906
        %3948 = vmin.xlane.f32.xlu0 %v3947
        %v3949 = vpop.xlane.xlu0 %3948
        %v3950 = vmin.f32 %v3907, %v3908
        %3951 = vmin.xlane.f32.xlu0 %v3950
        %v3952 = vpop.xlane.xlu0 %3951
        %v3953 = vmin.f32 %v3909, %v3910
        %3954 = vmin.xlane.f32.xlu0 %v3953
        %v3955 = vpop.xlane.xlu0 %3954
        %v3956 = vmin.f32 %v3911, %v3912
        %3957 = vmin.xlane.f32.xlu0 %v3956
        %v3958 = vpop.xlane.xlu0 %3957
        %v3959 = vmin.f32 %v3913, %v3914
        %3960 = vmin.xlane.f32.xlu0 %v3959
        %v3961 = vpop.xlane.xlu0 %3960
        %v3962 = vmin.f32 %v3915, %v3916
        %3963 = vmin.xlane.f32.xlu0 %v3962
        %v3964 = vpop.xlane.xlu0 %3963
        %vm3965 = vcmask 212168
        %3966 = vst.msk [vmem:[#allocation3] sm:$0xff] %vm3965, %v3919
        %3967 = vst.msk [vmem:[#allocation3 + $0x8] sm:$0xff] %vm3965, %v3922
        %3968 = vst.msk [vmem:[#allocation3 + $0x10] sm:$0xff] %vm3965, %v3925
        %3969 = vst.msk [vmem:[#allocation3 + $0x18] sm:$0xff] %vm3965, %v3928
        %3970 = vst.msk [vmem:[#allocation3 + $0x20] sm:$0xff] %vm3965, %v3931
        %3971 = vst.msk [vmem:[#allocation3 + $0x28] sm:$0xff] %vm3965, %v3934
        %3972 = vst.msk [vmem:[#allocation3 + $0x30] sm:$0xff] %vm3965, %v3937
        %3973 = vst.msk [vmem:[#allocation3 + $0x38] sm:$0xff] %vm3965, %v3940
        %3974 = vst.msk [vmem:[#allocation3 + $0x40] sm:$0xff] %vm3965, %v3943
        %3975 = vst.msk [vmem:[#allocation3 + $0x48] sm:$0xff] %vm3965, %v3946
        %3976 = vst.msk [vmem:[#allocation3 + $0x50] sm:$0xff] %vm3965, %v3949
        %3977 = vst.msk [vmem:[#allocation3 + $0x58] sm:$0xff] %vm3965, %v3952
        %3978 = vst.msk [vmem:[#allocation3 + $0x60] sm:$0xff] %vm3965, %v3955
        %3979 = vst.msk [vmem:[#allocation3 + $0x68] sm:$0xff] %vm3965, %v3958
        %3980 = vst.msk [vmem:[#allocation3 + $0x70] sm:$0xff] %vm3965, %v3961
        %3981 = vst.msk [vmem:[#allocation3 + $0x78] sm:$0xff] %vm3965, %v3964
        %s3982 = scalar_lea.vmem %s1, 50
        %v3983 = vld [vmem:[%s3982] ss:$8 sm:$0x3]
        %v3984 = vld [vmem:[#allocation2] sm:$0xff]
        %v3985 = vld [vmem:[#allocation2 + $0x8] sm:$0xff]
        %v3986 = vld [vmem:[#allocation2 + $0x10] sm:$0xff]
        %v3987 = vld [vmem:[#allocation2 + $0x18] sm:$0xff]
        %v3988 = vld [vmem:[#allocation2 + $0x20] sm:$0xff]
        %v3989 = vld [vmem:[#allocation2 + $0x28] sm:$0xff]
        %v3990 = vld [vmem:[#allocation2 + $0x30] sm:$0xff]
        %v3991 = vld [vmem:[#allocation2 + $0x38] sm:$0xff]
        %v3992 = vld [vmem:[#allocation2 + $0x40] sm:$0xff]
        %v3993 = vld [vmem:[#allocation2 + $0x48] sm:$0xff]
        %v3994 = vld [vmem:[#allocation2 + $0x50] sm:$0xff]
        %v3995 = vld [vmem:[#allocation2 + $0x58] sm:$0xff]
        %v3996 = vld [vmem:[#allocation2 + $0x60] sm:$0xff]
        %v3997 = vld [vmem:[#allocation2 + $0x68] sm:$0xff]
        %v3998 = vld [vmem:[#allocation2 + $0x70] sm:$0xff]
        %v3999 = vld [vmem:[#allocation2 + $0x78] sm:$0xff]
        %v4000 = vld [vmem:[#allocation2 + $0x80] sm:$0xff]
        %v4001 = vld [vmem:[#allocation2 + $0x88] sm:$0xff]
        %v4002 = vld [vmem:[#allocation2 + $0x90] sm:$0xff]
        %v4003 = vld [vmem:[#allocation2 + $0x98] sm:$0xff]
        %v4004 = vld [vmem:[#allocation2 + $0xa0] sm:$0xff]
        %v4005 = vld [vmem:[#allocation2 + $0xa8] sm:$0xff]
        %v4006 = vld [vmem:[#allocation2 + $0xb0] sm:$0xff]
        %v4007 = vld [vmem:[#allocation2 + $0xb8] sm:$0xff]
        %v4008 = vld [vmem:[#allocation2 + $0xc0] sm:$0xff]
        %v4009 = vld [vmem:[#allocation2 + $0xc8] sm:$0xff]
        %v4010 = vld [vmem:[#allocation2 + $0xd0] sm:$0xff]
        %v4011 = vld [vmem:[#allocation2 + $0xd8] sm:$0xff]
        %v4012 = vld [vmem:[#allocation2 + $0xe0] sm:$0xff]
        %v4013 = vld [vmem:[#allocation2 + $0xe8] sm:$0xff]
        %v4014 = vld [vmem:[#allocation2 + $0xf0] sm:$0xff]
        %v4015 = vld [vmem:[#allocation2 + $0xf8] sm:$0xff]
        %v4017 = vperm.slane %v3983, 0
        %v4018 = vperm.slane %v3983, 1
        %v4021 = vadd.f32 %v4017, %v3984
        %v4022 = vadd.f32 %v4018, %v3985
        %v4023 = vadd.f32 %v4017, %v3986
        %v4024 = vadd.f32 %v4018, %v3987
        %v4025 = vadd.f32 %v4017, %v3988
        %v4026 = vadd.f32 %v4018, %v3989
        %v4027 = vadd.f32 %v4017, %v3990
        %v4028 = vadd.f32 %v4018, %v3991
        %v4029 = vadd.f32 %v4017, %v3992
        %v4030 = vadd.f32 %v4018, %v3993
        %v4031 = vadd.f32 %v4017, %v3994
        %v4032 = vadd.f32 %v4018, %v3995
        %v4033 = vadd.f32 %v4017, %v3996
        %v4034 = vadd.f32 %v4018, %v3997
        %v4035 = vadd.f32 %v4017, %v3998
        %v4036 = vadd.f32 %v4018, %v3999
        %v4037 = vadd.f32 %v4017, %v4000
        %v4038 = vadd.f32 %v4018, %v4001
        %v4039 = vadd.f32 %v4017, %v4002
        %v4040 = vadd.f32 %v4018, %v4003
        %v4041 = vadd.f32 %v4017, %v4004
        %v4042 = vadd.f32 %v4018, %v4005
        %v4043 = vadd.f32 %v4017, %v4006
        %v4044 = vadd.f32 %v4018, %v4007
        %v4045 = vadd.f32 %v4017, %v4008
        %v4046 = vadd.f32 %v4018, %v4009
        %v4047 = vadd.f32 %v4017, %v4010
        %v4048 = vadd.f32 %v4018, %v4011
        %v4049 = vadd.f32 %v4017, %v4012
        %v4050 = vadd.f32 %v4018, %v4013
        %v4051 = vadd.f32 %v4017, %v4014
        %v4052 = vadd.f32 %v4018, %v4015
        %v4053 = vmin.f32 %v4021, %v4022
        %4054 = vmin.xlane.f32.xlu0 %v4053
        %v4055 = vpop.xlane.xlu0 %4054
        %v4056 = vmin.f32 %v4023, %v4024
        %4057 = vmin.xlane.f32.xlu0 %v4056
        %v4058 = vpop.xlane.xlu0 %4057
        %v4059 = vmin.f32 %v4025, %v4026
        %4060 = vmin.xlane.f32.xlu0 %v4059
        %v4061 = vpop.xlane.xlu0 %4060
        %v4062 = vmin.f32 %v4027, %v4028
        %4063 = vmin.xlane.f32.xlu0 %v4062
        %v4064 = vpop.xlane.xlu0 %4063
        %v4065 = vmin.f32 %v4029, %v4030
        %4066 = vmin.xlane.f32.xlu0 %v4065
        %v4067 = vpop.xlane.xlu0 %4066
        %v4068 = vmin.f32 %v4031, %v4032
        %4069 = vmin.xlane.f32.xlu0 %v4068
        %v4070 = vpop.xlane.xlu0 %4069
        %v4071 = vmin.f32 %v4033, %v4034
        %4072 = vmin.xlane.f32.xlu0 %v4071
        %v4073 = vpop.xlane.xlu0 %4072
        %v4074 = vmin.f32 %v4035, %v4036
        %4075 = vmin.xlane.f32.xlu0 %v4074
        %v4076 = vpop.xlane.xlu0 %4075
        %v4077 = vmin.f32 %v4037, %v4038
        %4078 = vmin.xlane.f32.xlu0 %v4077
        %v4079 = vpop.xlane.xlu0 %4078
        %v4080 = vmin.f32 %v4039, %v4040
        %4081 = vmin.xlane.f32.xlu0 %v4080
        %v4082 = vpop.xlane.xlu0 %4081
        %v4083 = vmin.f32 %v4041, %v4042
        %4084 = vmin.xlane.f32.xlu0 %v4083
        %v4085 = vpop.xlane.xlu0 %4084
        %v4086 = vmin.f32 %v4043, %v4044
        %4087 = vmin.xlane.f32.xlu0 %v4086
        %v4088 = vpop.xlane.xlu0 %4087
        %v4089 = vmin.f32 %v4045, %v4046
        %4090 = vmin.xlane.f32.xlu0 %v4089
        %v4091 = vpop.xlane.xlu0 %4090
        %v4092 = vmin.f32 %v4047, %v4048
        %4093 = vmin.xlane.f32.xlu0 %v4092
        %v4094 = vpop.xlane.xlu0 %4093
        %v4095 = vmin.f32 %v4049, %v4050
        %4096 = vmin.xlane.f32.xlu0 %v4095
        %v4097 = vpop.xlane.xlu0 %4096
        %v4098 = vmin.f32 %v4051, %v4052
        %4099 = vmin.xlane.f32.xlu0 %v4098
        %v4100 = vpop.xlane.xlu0 %4099
        %vm4101 = vcmask 220368
        %4102 = vst.msk [vmem:[#allocation3] sm:$0xff] %vm4101, %v4055
        %4103 = vst.msk [vmem:[#allocation3 + $0x8] sm:$0xff] %vm4101, %v4058
        %4104 = vst.msk [vmem:[#allocation3 + $0x10] sm:$0xff] %vm4101, %v4061
        %4105 = vst.msk [vmem:[#allocation3 + $0x18] sm:$0xff] %vm4101, %v4064
        %4106 = vst.msk [vmem:[#allocation3 + $0x20] sm:$0xff] %vm4101, %v4067
        %4107 = vst.msk [vmem:[#allocation3 + $0x28] sm:$0xff] %vm4101, %v4070
        %4108 = vst.msk [vmem:[#allocation3 + $0x30] sm:$0xff] %vm4101, %v4073
        %4109 = vst.msk [vmem:[#allocation3 + $0x38] sm:$0xff] %vm4101, %v4076
        %4110 = vst.msk [vmem:[#allocation3 + $0x40] sm:$0xff] %vm4101, %v4079
        %4111 = vst.msk [vmem:[#allocation3 + $0x48] sm:$0xff] %vm4101, %v4082
        %4112 = vst.msk [vmem:[#allocation3 + $0x50] sm:$0xff] %vm4101, %v4085
        %4113 = vst.msk [vmem:[#allocation3 + $0x58] sm:$0xff] %vm4101, %v4088
        %4114 = vst.msk [vmem:[#allocation3 + $0x60] sm:$0xff] %vm4101, %v4091
        %4115 = vst.msk [vmem:[#allocation3 + $0x68] sm:$0xff] %vm4101, %v4094
        %4116 = vst.msk [vmem:[#allocation3 + $0x70] sm:$0xff] %vm4101, %v4097
        %4117 = vst.msk [vmem:[#allocation3 + $0x78] sm:$0xff] %vm4101, %v4100
        %s4118 = scalar_lea.vmem %s1, 51
        %v4119 = vld [vmem:[%s4118] ss:$8 sm:$0x3]
        %v4120 = vld [vmem:[#allocation2] sm:$0xff]
        %v4121 = vld [vmem:[#allocation2 + $0x8] sm:$0xff]
        %v4122 = vld [vmem:[#allocation2 + $0x10] sm:$0xff]
        %v4123 = vld [vmem:[#allocation2 + $0x18] sm:$0xff]
        %v4124 = vld [vmem:[#allocation2 + $0x20] sm:$0xff]
        %v4125 = vld [vmem:[#allocation2 + $0x28] sm:$0xff]
        %v4126 = vld [vmem:[#allocation2 + $0x30] sm:$0xff]
        %v4127 = vld [vmem:[#allocation2 + $0x38] sm:$0xff]
        %v4128 = vld [vmem:[#allocation2 + $0x40] sm:$0xff]
        %v4129 = vld [vmem:[#allocation2 + $0x48] sm:$0xff]
        %v4130 = vld [vmem:[#allocation2 + $0x50] sm:$0xff]
        %v4131 = vld [vmem:[#allocation2 + $0x58] sm:$0xff]
        %v4132 = vld [vmem:[#allocation2 + $0x60] sm:$0xff]
        %v4133 = vld [vmem:[#allocation2 + $0x68] sm:$0xff]
        %v4134 = vld [vmem:[#allocation2 + $0x70] sm:$0xff]
        %v4135 = vld [vmem:[#allocation2 + $0x78] sm:$0xff]
        %v4136 = vld [vmem:[#allocation2 + $0x80] sm:$0xff]
        %v4137 = vld [vmem:[#allocation2 + $0x88] sm:$0xff]
        %v4138 = vld [vmem:[#allocation2 + $0x90] sm:$0xff]
        %v4139 = vld [vmem:[#allocation2 + $0x98] sm:$0xff]
        %v4140 = vld [vmem:[#allocation2 + $0xa0] sm:$0xff]
        %v4141 = vld [vmem:[#allocation2 + $0xa8] sm:$0xff]
        %v4142 = vld [vmem:[#allocation2 + $0xb0] sm:$0xff]
        %v4143 = vld [vmem:[#allocation2 + $0xb8] sm:$0xff]
        %v4144 = vld [vmem:[#allocation2 + $0xc0] sm:$0xff]
        %v4145 = vld [vmem:[#allocation2 + $0xc8] sm:$0xff]
        %v4146 = vld [vmem:[#allocation2 + $0xd0] sm:$0xff]
        %v4147 = vld [vmem:[#allocation2 + $0xd8] sm:$0xff]
        %v4148 = vld [vmem:[#allocation2 + $0xe0] sm:$0xff]
        %v4149 = vld [vmem:[#allocation2 + $0xe8] sm:$0xff]
        %v4150 = vld [vmem:[#allocation2 + $0xf0] sm:$0xff]
        %v4151 = vld [vmem:[#allocation2 + $0xf8] sm:$0xff]
        %v4153 = vperm.slane %v4119, 0
        %v4154 = vperm.slane %v4119, 1
        %v4157 = vadd.f32 %v4153, %v4120
        %v4158 = vadd.f32 %v4154, %v4121
        %v4159 = vadd.f32 %v4153, %v4122
        %v4160 = vadd.f32 %v4154, %v4123
        %v4161 = vadd.f32 %v4153, %v4124
        %v4162 = vadd.f32 %v4154, %v4125
        %v4163 = vadd.f32 %v4153, %v4126
        %v4164 = vadd.f32 %v4154, %v4127
        %v4165 = vadd.f32 %v4153, %v4128
        %v4166 = vadd.f32 %v4154, %v4129
        %v4167 = vadd.f32 %v4153, %v4130
        %v4168 = vadd.f32 %v4154, %v4131
        %v4169 = vadd.f32 %v4153, %v4132
        %v4170 = vadd.f32 %v4154, %v4133
        %v4171 = vadd.f32 %v4153, %v4134
        %v4172 = vadd.f32 %v4154, %v4135
        %v4173 = vadd.f32 %v4153, %v4136
        %v4174 = vadd.f32 %v4154, %v4137
        %v4175 = vadd.f32 %v4153, %v4138
        %v4176 = vadd.f32 %v4154, %v4139
        %v4177 = vadd.f32 %v4153, %v4140
        %v4178 = vadd.f32 %v4154, %v4141
        %v4179 = vadd.f32 %v4153, %v4142
        %v4180 = vadd.f32 %v4154, %v4143
        %v4181 = vadd.f32 %v4153, %v4144
        %v4182 = vadd.f32 %v4154, %v4145
        %v4183 = vadd.f32 %v4153, %v4146
        %v4184 = vadd.f32 %v4154, %v4147
        %v4185 = vadd.f32 %v4153, %v4148
        %v4186 = vadd.f32 %v4154, %v4149
        %v4187 = vadd.f32 %v4153, %v4150
        %v4188 = vadd.f32 %v4154, %v4151
        %v4189 = vmin.f32 %v4157, %v4158
        %4190 = vmin.xlane.f32.xlu0 %v4189
        %v4191 = vpop.xlane.xlu0 %4190
        %v4192 = vmin.f32 %v4159, %v4160
        %4193 = vmin.xlane.f32.xlu0 %v4192
        %v4194 = vpop.xlane.xlu0 %4193
        %v4195 = vmin.f32 %v4161, %v4162
        %4196 = vmin.xlane.f32.xlu0 %v4195
        %v4197 = vpop.xlane.xlu0 %4196
        %v4198 = vmin.f32 %v4163, %v4164
        %4199 = vmin.xlane.f32.xlu0 %v4198
        %v4200 = vpop.xlane.xlu0 %4199
        %v4201 = vmin.f32 %v4165, %v4166
        %4202 = vmin.xlane.f32.xlu0 %v4201
        %v4203 = vpop.xlane.xlu0 %4202
        %v4204 = vmin.f32 %v4167, %v4168
        %4205 = vmin.xlane.f32.xlu0 %v4204
        %v4206 = vpop.xlane.xlu0 %4205
        %v4207 = vmin.f32 %v4169, %v4170
        %4208 = vmin.xlane.f32.xlu0 %v4207
        %v4209 = vpop.xlane.xlu0 %4208
        %v4210 = vmin.f32 %v4171, %v4172
        %4211 = vmin.xlane.f32.xlu0 %v4210
        %v4212 = vpop.xlane.xlu0 %4211
        %v4213 = vmin.f32 %v4173, %v4174
        %4214 = vmin.xlane.f32.xlu0 %v4213
        %v4215 = vpop.xlane.xlu0 %4214
        %v4216 = vmin.f32 %v4175, %v4176
        %4217 = vmin.xlane.f32.xlu0 %v4216
        %v4218 = vpop.xlane.xlu0 %4217
        %v4219 = vmin.f32 %v4177, %v4178
        %4220 = vmin.xlane.f32.xlu0 %v4219
        %v4221 = vpop.xlane.xlu0 %4220
        %v4222 = vmin.f32 %v4179, %v4180
        %4223 = vmin.xlane.f32.xlu0 %v4222
        %v4224 = vpop.xlane.xlu0 %4223
        %v4225 = vmin.f32 %v4181, %v4182
        %4226 = vmin.xlane.f32.xlu0 %v4225
        %v4227 = vpop.xlane.xlu0 %4226
        %v4228 = vmin.f32 %v4183, %v4184
        %4229 = vmin.xlane.f32.xlu0 %v4228
        %v4230 = vpop.xlane.xlu0 %4229
        %v4231 = vmin.f32 %v4185, %v4186
        %4232 = vmin.xlane.f32.xlu0 %v4231
        %v4233 = vpop.xlane.xlu0 %4232
        %v4234 = vmin.f32 %v4187, %v4188
        %4235 = vmin.xlane.f32.xlu0 %v4234
        %v4236 = vpop.xlane.xlu0 %4235
        %vm4237 = vcmask 228568
        %4238 = vst.msk [vmem:[#allocation3] sm:$0xff] %vm4237, %v4191
        %4239 = vst.msk [vmem:[#allocation3 + $0x8] sm:$0xff] %vm4237, %v4194
        %4240 = vst.msk [vmem:[#allocation3 + $0x10] sm:$0xff] %vm4237, %v4197
        %4241 = vst.msk [vmem:[#allocation3 + $0x18] sm:$0xff] %vm4237, %v4200
        %4242 = vst.msk [vmem:[#allocation3 + $0x20] sm:$0xff] %vm4237, %v4203
        %4243 = vst.msk [vmem:[#allocation3 + $0x28] sm:$0xff] %vm4237, %v4206
        %4244 = vst.msk [vmem:[#allocation3 + $0x30] sm:$0xff] %vm4237, %v4209
        %4245 = vst.msk [vmem:[#allocation3 + $0x38] sm:$0xff] %vm4237, %v4212
        %4246 = vst.msk [vmem:[#allocation3 + $0x40] sm:$0xff] %vm4237, %v4215
        %4247 = vst.msk [vmem:[#allocation3 + $0x48] sm:$0xff] %vm4237, %v4218
        %4248 = vst.msk [vmem:[#allocation3 + $0x50] sm:$0xff] %vm4237, %v4221
        %4249 = vst.msk [vmem:[#allocation3 + $0x58] sm:$0xff] %vm4237, %v4224
        %4250 = vst.msk [vmem:[#allocation3 + $0x60] sm:$0xff] %vm4237, %v4227
        %4251 = vst.msk [vmem:[#allocation3 + $0x68] sm:$0xff] %vm4237, %v4230
        %4252 = vst.msk [vmem:[#allocation3 + $0x70] sm:$0xff] %vm4237, %v4233
        %4253 = vst.msk [vmem:[#allocation3 + $0x78] sm:$0xff] %vm4237, %v4236
        %s4254 = scalar_lea.vmem %s1, 52
        %v4255 = vld [vmem:[%s4254] ss:$8 sm:$0x3]
        %v4256 = vld [vmem:[#allocation2] sm:$0xff]
        %v4257 = vld [vmem:[#allocation2 + $0x8] sm:$0xff]
        %v4258 = vld [vmem:[#allocation2 + $0x10] sm:$0xff]
        %v4259 = vld [vmem:[#allocation2 + $0x18] sm:$0xff]
        %v4260 = vld [vmem:[#allocation2 + $0x20] sm:$0xff]
        %v4261 = vld [vmem:[#allocation2 + $0x28] sm:$0xff]
        %v4262 = vld [vmem:[#allocation2 + $0x30] sm:$0xff]
        %v4263 = vld [vmem:[#allocation2 + $0x38] sm:$0xff]
        %v4264 = vld [vmem:[#allocation2 + $0x40] sm:$0xff]
        %v4265 = vld [vmem:[#allocation2 + $0x48] sm:$0xff]
        %v4266 = vld [vmem:[#allocation2 + $0x50] sm:$0xff]
        %v4267 = vld [vmem:[#allocation2 + $0x58] sm:$0xff]
        %v4268 = vld [vmem:[#allocation2 + $0x60] sm:$0xff]
        %v4269 = vld [vmem:[#allocation2 + $0x68] sm:$0xff]
        %v4270 = vld [vmem:[#allocation2 + $0x70] sm:$0xff]
        %v4271 = vld [vmem:[#allocation2 + $0x78] sm:$0xff]
        %v4272 = vld [vmem:[#allocation2 + $0x80] sm:$0xff]
        %v4273 = vld [vmem:[#allocation2 + $0x88] sm:$0xff]
        %v4274 = vld [vmem:[#allocation2 + $0x90] sm:$0xff]
        %v4275 = vld [vmem:[#allocation2 + $0x98] sm:$0xff]
        %v4276 = vld [vmem:[#allocation2 + $0xa0] sm:$0xff]
        %v4277 = vld [vmem:[#allocation2 + $0xa8] sm:$0xff]
        %v4278 = vld [vmem:[#allocation2 + $0xb0] sm:$0xff]
        %v4279 = vld [vmem:[#allocation2 + $0xb8] sm:$0xff]
        %v4280 = vld [vmem:[#allocation2 + $0xc0] sm:$0xff]
        %v4281 = vld [vmem:[#allocation2 + $0xc8] sm:$0xff]
        %v4282 = vld [vmem:[#allocation2 + $0xd0] sm:$0xff]
        %v4283 = vld [vmem:[#allocation2 + $0xd8] sm:$0xff]
        %v4284 = vld [vmem:[#allocation2 + $0xe0] sm:$0xff]
        %v4285 = vld [vmem:[#allocation2 + $0xe8] sm:$0xff]
        %v4286 = vld [vmem:[#allocation2 + $0xf0] sm:$0xff]
        %v4287 = vld [vmem:[#allocation2 + $0xf8] sm:$0xff]
        %v4289 = vperm.slane %v4255, 0
        %v4290 = vperm.slane %v4255, 1
        %v4293 = vadd.f32 %v4289, %v4256
        %v4294 = vadd.f32 %v4290, %v4257
        %v4295 = vadd.f32 %v4289, %v4258
        %v4296 = vadd.f32 %v4290, %v4259
        %v4297 = vadd.f32 %v4289, %v4260
        %v4298 = vadd.f32 %v4290, %v4261
        %v4299 = vadd.f32 %v4289, %v4262
        %v4300 = vadd.f32 %v4290, %v4263
        %v4301 = vadd.f32 %v4289, %v4264
        %v4302 = vadd.f32 %v4290, %v4265
        %v4303 = vadd.f32 %v4289, %v4266
        %v4304 = vadd.f32 %v4290, %v4267
        %v4305 = vadd.f32 %v4289, %v4268
        %v4306 = vadd.f32 %v4290, %v4269
        %v4307 = vadd.f32 %v4289, %v4270
        %v4308 = vadd.f32 %v4290, %v4271
        %v4309 = vadd.f32 %v4289, %v4272
        %v4310 = vadd.f32 %v4290, %v4273
        %v4311 = vadd.f32 %v4289, %v4274
        %v4312 = vadd.f32 %v4290, %v4275
        %v4313 = vadd.f32 %v4289, %v4276
        %v4314 = vadd.f32 %v4290, %v4277
        %v4315 = vadd.f32 %v4289, %v4278
        %v4316 = vadd.f32 %v4290, %v4279
        %v4317 = vadd.f32 %v4289, %v4280
        %v4318 = vadd.f32 %v4290, %v4281
        %v4319 = vadd.f32 %v4289, %v4282
        %v4320 = vadd.f32 %v4290, %v4283
        %v4321 = vadd.f32 %v4289, %v4284
        %v4322 = vadd.f32 %v4290, %v4285
        %v4323 = vadd.f32 %v4289, %v4286
        %v4324 = vadd.f32 %v4290, %v4287
        %v4325 = vmin.f32 %v4293, %v4294
        %4326 = vmin.xlane.f32.xlu0 %v4325
        %v4327 = vpop.xlane.xlu0 %4326
        %v4328 = vmin.f32 %v4295, %v4296
        %4329 = vmin.xlane.f32.xlu0 %v4328
        %v4330 = vpop.xlane.xlu0 %4329
        %v4331 = vmin.f32 %v4297, %v4298
        %4332 = vmin.xlane.f32.xlu0 %v4331
        %v4333 = vpop.xlane.xlu0 %4332
        %v4334 = vmin.f32 %v4299, %v4300
        %4335 = vmin.xlane.f32.xlu0 %v4334
        %v4336 = vpop.xlane.xlu0 %4335
        %v4337 = vmin.f32 %v4301, %v4302
        %4338 = vmin.xlane.f32.xlu0 %v4337
        %v4339 = vpop.xlane.xlu0 %4338
        %v4340 = vmin.f32 %v4303, %v4304
        %4341 = vmin.xlane.f32.xlu0 %v4340
        %v4342 = vpop.xlane.xlu0 %4341
        %v4343 = vmin.f32 %v4305, %v4306
        %4344 = vmin.xlane.f32.xlu0 %v4343
        %v4345 = vpop.xlane.xlu0 %4344
        %v4346 = vmin.f32 %v4307, %v4308
        %4347 = vmin.xlane.f32.xlu0 %v4346
        %v4348 = vpop.xlane.xlu0 %4347
        %v4349 = vmin.f32 %v4309, %v4310
        %4350 = vmin.xlane.f32.xlu0 %v4349
        %v4351 = vpop.xlane.xlu0 %4350
        %v4352 = vmin.f32 %v4311, %v4312
        %4353 = vmin.xlane.f32.xlu0 %v4352
        %v4354 = vpop.xlane.xlu0 %4353
        %v4355 = vmin.f32 %v4313, %v4314
        %4356 = vmin.xlane.f32.xlu0 %v4355
        %v4357 = vpop.xlane.xlu0 %4356
        %v4358 = vmin.f32 %v4315, %v4316
        %4359 = vmin.xlane.f32.xlu0 %v4358
        %v4360 = vpop.xlane.xlu0 %4359
        %v4361 = vmin.f32 %v4317, %v4318
        %4362 = vmin.xlane.f32.xlu0 %v4361
        %v4363 = vpop.xlane.xlu0 %4362
        %v4364 = vmin.f32 %v4319, %v4320
        %4365 = vmin.xlane.f32.xlu0 %v4364
        %v4366 = vpop.xlane.xlu0 %4365
        %v4367 = vmin.f32 %v4321, %v4322
        %4368 = vmin.xlane.f32.xlu0 %v4367
        %v4369 = vpop.xlane.xlu0 %4368
        %v4370 = vmin.f32 %v4323, %v4324
        %4371 = vmin.xlane.f32.xlu0 %v4370
        %v4372 = vpop.xlane.xlu0 %4371
        %vm4373 = vcmask 236768
        %4374 = vst.msk [vmem:[#allocation3] sm:$0xff] %vm4373, %v4327
        %4375 = vst.msk [vmem:[#allocation3 + $0x8] sm:$0xff] %vm4373, %v4330
        %4376 = vst.msk [vmem:[#allocation3 + $0x10] sm:$0xff] %vm4373, %v4333
        %4377 = vst.msk [vmem:[#allocation3 + $0x18] sm:$0xff] %vm4373, %v4336
        %4378 = vst.msk [vmem:[#allocation3 + $0x20] sm:$0xff] %vm4373, %v4339
        %4379 = vst.msk [vmem:[#allocation3 + $0x28] sm:$0xff] %vm4373, %v4342
        %4380 = vst.msk [vmem:[#allocation3 + $0x30] sm:$0xff] %vm4373, %v4345
        %4381 = vst.msk [vmem:[#allocation3 + $0x38] sm:$0xff] %vm4373, %v4348
        %4382 = vst.msk [vmem:[#allocation3 + $0x40] sm:$0xff] %vm4373, %v4351
        %4383 = vst.msk [vmem:[#allocation3 + $0x48] sm:$0xff] %vm4373, %v4354
        %4384 = vst.msk [vmem:[#allocation3 + $0x50] sm:$0xff] %vm4373, %v4357
        %4385 = vst.msk [vmem:[#allocation3 + $0x58] sm:$0xff] %vm4373, %v4360
        %4386 = vst.msk [vmem:[#allocation3 + $0x60] sm:$0xff] %vm4373, %v4363
        %4387 = vst.msk [vmem:[#allocation3 + $0x68] sm:$0xff] %vm4373, %v4366
        %4388 = vst.msk [vmem:[#allocation3 + $0x70] sm:$0xff] %vm4373, %v4369
        %4389 = vst.msk [vmem:[#allocation3 + $0x78] sm:$0xff] %vm4373, %v4372
        %s4390 = scalar_lea.vmem %s1, 53
        %v4391 = vld [vmem:[%s4390] ss:$8 sm:$0x3]
        %v4392 = vld [vmem:[#allocation2] sm:$0xff]
        %v4393 = vld [vmem:[#allocation2 + $0x8] sm:$0xff]
        %v4394 = vld [vmem:[#allocation2 + $0x10] sm:$0xff]
        %v4395 = vld [vmem:[#allocation2 + $0x18] sm:$0xff]
        %v4396 = vld [vmem:[#allocation2 + $0x20] sm:$0xff]
        %v4397 = vld [vmem:[#allocation2 + $0x28] sm:$0xff]
        %v4398 = vld [vmem:[#allocation2 + $0x30] sm:$0xff]
        %v4399 = vld [vmem:[#allocation2 + $0x38] sm:$0xff]
        %v4400 = vld [vmem:[#allocation2 + $0x40] sm:$0xff]
        %v4401 = vld [vmem:[#allocation2 + $0x48] sm:$0xff]
        %v4402 = vld [vmem:[#allocation2 + $0x50] sm:$0xff]
        %v4403 = vld [vmem:[#allocation2 + $0x58] sm:$0xff]
        %v4404 = vld [vmem:[#allocation2 + $0x60] sm:$0xff]
        %v4405 = vld [vmem:[#allocation2 + $0x68] sm:$0xff]
        %v4406 = vld [vmem:[#allocation2 + $0x70] sm:$0xff]
        %v4407 = vld [vmem:[#allocation2 + $0x78] sm:$0xff]
        %v4408 = vld [vmem:[#allocation2 + $0x80] sm:$0xff]
        %v4409 = vld [vmem:[#allocation2 + $0x88] sm:$0xff]
        %v4410 = vld [vmem:[#allocation2 + $0x90] sm:$0xff]
        %v4411 = vld [vmem:[#allocation2 + $0x98] sm:$0xff]
        %v4412 = vld [vmem:[#allocation2 + $0xa0] sm:$0xff]
        %v4413 = vld [vmem:[#allocation2 + $0xa8] sm:$0xff]
        %v4414 = vld [vmem:[#allocation2 + $0xb0] sm:$0xff]
        %v4415 = vld [vmem:[#allocation2 + $0xb8] sm:$0xff]
        %v4416 = vld [vmem:[#allocation2 + $0xc0] sm:$0xff]
        %v4417 = vld [vmem:[#allocation2 + $0xc8] sm:$0xff]
        %v4418 = vld [vmem:[#allocation2 + $0xd0] sm:$0xff]
        %v4419 = vld [vmem:[#allocation2 + $0xd8] sm:$0xff]
        %v4420 = vld [vmem:[#allocation2 + $0xe0] sm:$0xff]
        %v4421 = vld [vmem:[#allocation2 + $0xe8] sm:$0xff]
        %v4422 = vld [vmem:[#allocation2 + $0xf0] sm:$0xff]
        %v4423 = vld [vmem:[#allocation2 + $0xf8] sm:$0xff]
        %v4425 = vperm.slane %v4391, 0
        %v4426 = vperm.slane %v4391, 1
        %v4429 = vadd.f32 %v4425, %v4392
        %v4430 = vadd.f32 %v4426, %v4393
        %v4431 = vadd.f32 %v4425, %v4394
        %v4432 = vadd.f32 %v4426, %v4395
        %v4433 = vadd.f32 %v4425, %v4396
        %v4434 = vadd.f32 %v4426, %v4397
        %v4435 = vadd.f32 %v4425, %v4398
        %v4436 = vadd.f32 %v4426, %v4399
        %v4437 = vadd.f32 %v4425, %v4400
        %v4438 = vadd.f32 %v4426, %v4401
        %v4439 = vadd.f32 %v4425, %v4402
        %v4440 = vadd.f32 %v4426, %v4403
        %v4441 = vadd.f32 %v4425, %v4404
        %v4442 = vadd.f32 %v4426, %v4405
        %v4443 = vadd.f32 %v4425, %v4406
        %v4444 = vadd.f32 %v4426, %v4407
        %v4445 = vadd.f32 %v4425, %v4408
        %v4446 = vadd.f32 %v4426, %v4409
        %v4447 = vadd.f32 %v4425, %v4410
        %v4448 = vadd.f32 %v4426, %v4411
        %v4449 = vadd.f32 %v4425, %v4412
        %v4450 = vadd.f32 %v4426, %v4413
        %v4451 = vadd.f32 %v4425, %v4414
        %v4452 = vadd.f32 %v4426, %v4415
        %v4453 = vadd.f32 %v4425, %v4416
        %v4454 = vadd.f32 %v4426, %v4417
        %v4455 = vadd.f32 %v4425, %v4418
        %v4456 = vadd.f32 %v4426, %v4419
        %v4457 = vadd.f32 %v4425, %v4420
        %v4458 = vadd.f32 %v4426, %v4421
        %v4459 = vadd.f32 %v4425, %v4422
        %v4460 = vadd.f32 %v4426, %v4423
        %v4461 = vmin.f32 %v4429, %v4430
        %4462 = vmin.xlane.f32.xlu0 %v4461
        %v4463 = vpop.xlane.xlu0 %4462
        %v4464 = vmin.f32 %v4431, %v4432
        %4465 = vmin.xlane.f32.xlu0 %v4464
        %v4466 = vpop.xlane.xlu0 %4465
        %v4467 = vmin.f32 %v4433, %v4434
        %4468 = vmin.xlane.f32.xlu0 %v4467
        %v4469 = vpop.xlane.xlu0 %4468
        %v4470 = vmin.f32 %v4435, %v4436
        %4471 = vmin.xlane.f32.xlu0 %v4470
        %v4472 = vpop.xlane.xlu0 %4471
        %v4473 = vmin.f32 %v4437, %v4438
        %4474 = vmin.xlane.f32.xlu0 %v4473
        %v4475 = vpop.xlane.xlu0 %4474
        %v4476 = vmin.f32 %v4439, %v4440
        %4477 = vmin.xlane.f32.xlu0 %v4476
        %v4478 = vpop.xlane.xlu0 %4477
        %v4479 = vmin.f32 %v4441, %v4442
        %4480 = vmin.xlane.f32.xlu0 %v4479
        %v4481 = vpop.xlane.xlu0 %4480
        %v4482 = vmin.f32 %v4443, %v4444
        %4483 = vmin.xlane.f32.xlu0 %v4482
        %v4484 = vpop.xlane.xlu0 %4483
        %v4485 = vmin.f32 %v4445, %v4446
        %4486 = vmin.xlane.f32.xlu0 %v4485
        %v4487 = vpop.xlane.xlu0 %4486
        %v4488 = vmin.f32 %v4447, %v4448
        %4489 = vmin.xlane.f32.xlu0 %v4488
        %v4490 = vpop.xlane.xlu0 %4489
        %v4491 = vmin.f32 %v4449, %v4450
        %4492 = vmin.xlane.f32.xlu0 %v4491
        %v4493 = vpop.xlane.xlu0 %4492
        %v4494 = vmin.f32 %v4451, %v4452
        %4495 = vmin.xlane.f32.xlu0 %v4494
        %v4496 = vpop.xlane.xlu0 %4495
        %v4497 = vmin.f32 %v4453, %v4454
        %4498 = vmin.xlane.f32.xlu0 %v4497
        %v4499 = vpop.xlane.xlu0 %4498
        %v4500 = vmin.f32 %v4455, %v4456
        %4501 = vmin.xlane.f32.xlu0 %v4500
        %v4502 = vpop.xlane.xlu0 %4501
        %v4503 = vmin.f32 %v4457, %v4458
        %4504 = vmin.xlane.f32.xlu0 %v4503
        %v4505 = vpop.xlane.xlu0 %4504
        %v4506 = vmin.f32 %v4459, %v4460
        %4507 = vmin.xlane.f32.xlu0 %v4506
        %v4508 = vpop.xlane.xlu0 %4507
        %vm4509 = vcmask 244968
        %4510 = vst.msk [vmem:[#allocation3] sm:$0xff] %vm4509, %v4463
        %4511 = vst.msk [vmem:[#allocation3 + $0x8] sm:$0xff] %vm4509, %v4466
        %4512 = vst.msk [vmem:[#allocation3 + $0x10] sm:$0xff] %vm4509, %v4469
        %4513 = vst.msk [vmem:[#allocation3 + $0x18] sm:$0xff] %vm4509, %v4472
        %4514 = vst.msk [vmem:[#allocation3 + $0x20] sm:$0xff] %vm4509, %v4475
        %4515 = vst.msk [vmem:[#allocation3 + $0x28] sm:$0xff] %vm4509, %v4478
        %4516 = vst.msk [vmem:[#allocation3 + $0x30] sm:$0xff] %vm4509, %v4481
        %4517 = vst.msk [vmem:[#allocation3 + $0x38] sm:$0xff] %vm4509, %v4484
        %4518 = vst.msk [vmem:[#allocation3 + $0x40] sm:$0xff] %vm4509, %v4487
        %4519 = vst.msk [vmem:[#allocation3 + $0x48] sm:$0xff] %vm4509, %v4490
        %4520 = vst.msk [vmem:[#allocation3 + $0x50] sm:$0xff] %vm4509, %v4493
        %4521 = vst.msk [vmem:[#allocation3 + $0x58] sm:$0xff] %vm4509, %v4496
        %4522 = vst.msk [vmem:[#allocation3 + $0x60] sm:$0xff] %vm4509, %v4499
        %4523 = vst.msk [vmem:[#allocation3 + $0x68] sm:$0xff] %vm4509, %v4502
        %4524 = vst.msk [vmem:[#allocation3 + $0x70] sm:$0xff] %vm4509, %v4505
        %4525 = vst.msk [vmem:[#allocation3 + $0x78] sm:$0xff] %vm4509, %v4508
        %s4526 = scalar_lea.vmem %s1, 54
        %v4527 = vld [vmem:[%s4526] ss:$8 sm:$0x3]
        %v4528 = vld [vmem:[#allocation2] sm:$0xff]
        %v4529 = vld [vmem:[#allocation2 + $0x8] sm:$0xff]
        %v4530 = vld [vmem:[#allocation2 + $0x10] sm:$0xff]
        %v4531 = vld [vmem:[#allocation2 + $0x18] sm:$0xff]
        %v4532 = vld [vmem:[#allocation2 + $0x20] sm:$0xff]
        %v4533 = vld [vmem:[#allocation2 + $0x28] sm:$0xff]
        %v4534 = vld [vmem:[#allocation2 + $0x30] sm:$0xff]
        %v4535 = vld [vmem:[#allocation2 + $0x38] sm:$0xff]
        %v4536 = vld [vmem:[#allocation2 + $0x40] sm:$0xff]
        %v4537 = vld [vmem:[#allocation2 + $0x48] sm:$0xff]
        %v4538 = vld [vmem:[#allocation2 + $0x50] sm:$0xff]
        %v4539 = vld [vmem:[#allocation2 + $0x58] sm:$0xff]
        %v4540 = vld [vmem:[#allocation2 + $0x60] sm:$0xff]
        %v4541 = vld [vmem:[#allocation2 + $0x68] sm:$0xff]
        %v4542 = vld [vmem:[#allocation2 + $0x70] sm:$0xff]
        %v4543 = vld [vmem:[#allocation2 + $0x78] sm:$0xff]
        %v4544 = vld [vmem:[#allocation2 + $0x80] sm:$0xff]
        %v4545 = vld [vmem:[#allocation2 + $0x88] sm:$0xff]
        %v4546 = vld [vmem:[#allocation2 + $0x90] sm:$0xff]
        %v4547 = vld [vmem:[#allocation2 + $0x98] sm:$0xff]
        %v4548 = vld [vmem:[#allocation2 + $0xa0] sm:$0xff]
        %v4549 = vld [vmem:[#allocation2 + $0xa8] sm:$0xff]
        %v4550 = vld [vmem:[#allocation2 + $0xb0] sm:$0xff]
        %v4551 = vld [vmem:[#allocation2 + $0xb8] sm:$0xff]
        %v4552 = vld [vmem:[#allocation2 + $0xc0] sm:$0xff]
        %v4553 = vld [vmem:[#allocation2 + $0xc8] sm:$0xff]
        %v4554 = vld [vmem:[#allocation2 + $0xd0] sm:$0xff]
        %v4555 = vld [vmem:[#allocation2 + $0xd8] sm:$0xff]
        %v4556 = vld [vmem:[#allocation2 + $0xe0] sm:$0xff]
        %v4557 = vld [vmem:[#allocation2 + $0xe8] sm:$0xff]
        %v4558 = vld [vmem:[#allocation2 + $0xf0] sm:$0xff]
        %v4559 = vld [vmem:[#allocation2 + $0xf8] sm:$0xff]
        %v4561 = vperm.slane %v4527, 0
        %v4562 = vperm.slane %v4527, 1
        %v4565 = vadd.f32 %v4561, %v4528
        %v4566 = vadd.f32 %v4562, %v4529
        %v4567 = vadd.f32 %v4561, %v4530
        %v4568 = vadd.f32 %v4562, %v4531
        %v4569 = vadd.f32 %v4561, %v4532
        %v4570 = vadd.f32 %v4562, %v4533
        %v4571 = vadd.f32 %v4561, %v4534
        %v4572 = vadd.f32 %v4562, %v4535
        %v4573 = vadd.f32 %v4561, %v4536
        %v4574 = vadd.f32 %v4562, %v4537
        %v4575 = vadd.f32 %v4561, %v4538
        %v4576 = vadd.f32 %v4562, %v4539
        %v4577 = vadd.f32 %v4561, %v4540
        %v4578 = vadd.f32 %v4562, %v4541
        %v4579 = vadd.f32 %v4561, %v4542
        %v4580 = vadd.f32 %v4562, %v4543
        %v4581 = vadd.f32 %v4561, %v4544
        %v4582 = vadd.f32 %v4562, %v4545
        %v4583 = vadd.f32 %v4561, %v4546
        %v4584 = vadd.f32 %v4562, %v4547
        %v4585 = vadd.f32 %v4561, %v4548
        %v4586 = vadd.f32 %v4562, %v4549
        %v4587 = vadd.f32 %v4561, %v4550
        %v4588 = vadd.f32 %v4562, %v4551
        %v4589 = vadd.f32 %v4561, %v4552
        %v4590 = vadd.f32 %v4562, %v4553
        %v4591 = vadd.f32 %v4561, %v4554
        %v4592 = vadd.f32 %v4562, %v4555
        %v4593 = vadd.f32 %v4561, %v4556
        %v4594 = vadd.f32 %v4562, %v4557
        %v4595 = vadd.f32 %v4561, %v4558
        %v4596 = vadd.f32 %v4562, %v4559
        %v4597 = vmin.f32 %v4565, %v4566
        %4598 = vmin.xlane.f32.xlu0 %v4597
        %v4599 = vpop.xlane.xlu0 %4598
        %v4600 = vmin.f32 %v4567, %v4568
        %4601 = vmin.xlane.f32.xlu0 %v4600
        %v4602 = vpop.xlane.xlu0 %4601
        %v4603 = vmin.f32 %v4569, %v4570
        %4604 = vmin.xlane.f32.xlu0 %v4603
        %v4605 = vpop.xlane.xlu0 %4604
        %v4606 = vmin.f32 %v4571, %v4572
        %4607 = vmin.xlane.f32.xlu0 %v4606
        %v4608 = vpop.xlane.xlu0 %4607
        %v4609 = vmin.f32 %v4573, %v4574
        %4610 = vmin.xlane.f32.xlu0 %v4609
        %v4611 = vpop.xlane.xlu0 %4610
        %v4612 = vmin.f32 %v4575, %v4576
        %4613 = vmin.xlane.f32.xlu0 %v4612
        %v4614 = vpop.xlane.xlu0 %4613
        %v4615 = vmin.f32 %v4577, %v4578
        %4616 = vmin.xlane.f32.xlu0 %v4615
        %v4617 = vpop.xlane.xlu0 %4616
        %v4618 = vmin.f32 %v4579, %v4580
        %4619 = vmin.xlane.f32.xlu0 %v4618
        %v4620 = vpop.xlane.xlu0 %4619
        %v4621 = vmin.f32 %v4581, %v4582
        %4622 = vmin.xlane.f32.xlu0 %v4621
        %v4623 = vpop.xlane.xlu0 %4622
        %v4624 = vmin.f32 %v4583, %v4584
        %4625 = vmin.xlane.f32.xlu0 %v4624
        %v4626 = vpop.xlane.xlu0 %4625
        %v4627 = vmin.f32 %v4585, %v4586
        %4628 = vmin.xlane.f32.xlu0 %v4627
        %v4629 = vpop.xlane.xlu0 %4628
        %v4630 = vmin.f32 %v4587, %v4588
        %4631 = vmin.xlane.f32.xlu0 %v4630
        %v4632 = vpop.xlane.xlu0 %4631
        %v4633 = vmin.f32 %v4589, %v4590
        %4634 = vmin.xlane.f32.xlu0 %v4633
        %v4635 = vpop.xlane.xlu0 %4634
        %v4636 = vmin.f32 %v4591, %v4592
        %4637 = vmin.xlane.f32.xlu0 %v4636
        %v4638 = vpop.xlane.xlu0 %4637
        %v4639 = vmin.f32 %v4593, %v4594
        %4640 = vmin.xlane.f32.xlu0 %v4639
        %v4641 = vpop.xlane.xlu0 %4640
        %v4642 = vmin.f32 %v4595, %v4596
        %4643 = vmin.xlane.f32.xlu0 %v4642
        %v4644 = vpop.xlane.xlu0 %4643
        %vm4645 = vcmask 253168
        %4646 = vst.msk [vmem:[#allocation3] sm:$0xff] %vm4645, %v4599
        %4647 = vst.msk [vmem:[#allocation3 + $0x8] sm:$0xff] %vm4645, %v4602
        %4648 = vst.msk [vmem:[#allocation3 + $0x10] sm:$0xff] %vm4645, %v4605
        %4649 = vst.msk [vmem:[#allocation3 + $0x18] sm:$0xff] %vm4645, %v4608
        %4650 = vst.msk [vmem:[#allocation3 + $0x20] sm:$0xff] %vm4645, %v4611
        %4651 = vst.msk [vmem:[#allocation3 + $0x28] sm:$0xff] %vm4645, %v4614
        %4652 = vst.msk [vmem:[#allocation3 + $0x30] sm:$0xff] %vm4645, %v4617
        %4653 = vst.msk [vmem:[#allocation3 + $0x38] sm:$0xff] %vm4645, %v4620
        %4654 = vst.msk [vmem:[#allocation3 + $0x40] sm:$0xff] %vm4645, %v4623
        %4655 = vst.msk [vmem:[#allocation3 + $0x48] sm:$0xff] %vm4645, %v4626
        %4656 = vst.msk [vmem:[#allocation3 + $0x50] sm:$0xff] %vm4645, %v4629
        %4657 = vst.msk [vmem:[#allocation3 + $0x58] sm:$0xff] %vm4645, %v4632
        %4658 = vst.msk [vmem:[#allocation3 + $0x60] sm:$0xff] %vm4645, %v4635
        %4659 = vst.msk [vmem:[#allocation3 + $0x68] sm:$0xff] %vm4645, %v4638
        %4660 = vst.msk [vmem:[#allocation3 + $0x70] sm:$0xff] %vm4645, %v4641
        %4661 = vst.msk [vmem:[#allocation3 + $0x78] sm:$0xff] %vm4645, %v4644
        %s4662 = scalar_lea.vmem %s1, 55
        %v4663 = vld [vmem:[%s4662] ss:$8 sm:$0x3]
        %v4664 = vld [vmem:[#allocation2] sm:$0xff]
        %v4665 = vld [vmem:[#allocation2 + $0x8] sm:$0xff]
        %v4666 = vld [vmem:[#allocation2 + $0x10] sm:$0xff]
        %v4667 = vld [vmem:[#allocation2 + $0x18] sm:$0xff]
        %v4668 = vld [vmem:[#allocation2 + $0x20] sm:$0xff]
        %v4669 = vld [vmem:[#allocation2 + $0x28] sm:$0xff]
        %v4670 = vld [vmem:[#allocation2 + $0x30] sm:$0xff]
        %v4671 = vld [vmem:[#allocation2 + $0x38] sm:$0xff]
        %v4672 = vld [vmem:[#allocation2 + $0x40] sm:$0xff]
        %v4673 = vld [vmem:[#allocation2 + $0x48] sm:$0xff]
        %v4674 = vld [vmem:[#allocation2 + $0x50] sm:$0xff]
        %v4675 = vld [vmem:[#allocation2 + $0x58] sm:$0xff]
        %v4676 = vld [vmem:[#allocation2 + $0x60] sm:$0xff]
        %v4677 = vld [vmem:[#allocation2 + $0x68] sm:$0xff]
        %v4678 = vld [vmem:[#allocation2 + $0x70] sm:$0xff]
        %v4679 = vld [vmem:[#allocation2 + $0x78] sm:$0xff]
        %v4680 = vld [vmem:[#allocation2 + $0x80] sm:$0xff]
        %v4681 = vld [vmem:[#allocation2 + $0x88] sm:$0xff]
        %v4682 = vld [vmem:[#allocation2 + $0x90] sm:$0xff]
        %v4683 = vld [vmem:[#allocation2 + $0x98] sm:$0xff]
        %v4684 = vld [vmem:[#allocation2 + $0xa0] sm:$0xff]
        %v4685 = vld [vmem:[#allocation2 + $0xa8] sm:$0xff]
        %v4686 = vld [vmem:[#allocation2 + $0xb0] sm:$0xff]
        %v4687 = vld [vmem:[#allocation2 + $0xb8] sm:$0xff]
        %v4688 = vld [vmem:[#allocation2 + $0xc0] sm:$0xff]
        %v4689 = vld [vmem:[#allocation2 + $0xc8] sm:$0xff]
        %v4690 = vld [vmem:[#allocation2 + $0xd0] sm:$0xff]
        %v4691 = vld [vmem:[#allocation2 + $0xd8] sm:$0xff]
        %v4692 = vld [vmem:[#allocation2 + $0xe0] sm:$0xff]
        %v4693 = vld [vmem:[#allocation2 + $0xe8] sm:$0xff]
        %v4694 = vld [vmem:[#allocation2 + $0xf0] sm:$0xff]
        %v4695 = vld [vmem:[#allocation2 + $0xf8] sm:$0xff]
        %v4697 = vperm.slane %v4663, 0
        %v4698 = vperm.slane %v4663, 1
        %v4701 = vadd.f32 %v4697, %v4664
        %v4702 = vadd.f32 %v4698, %v4665
        %v4703 = vadd.f32 %v4697, %v4666
        %v4704 = vadd.f32 %v4698, %v4667
        %v4705 = vadd.f32 %v4697, %v4668
        %v4706 = vadd.f32 %v4698, %v4669
        %v4707 = vadd.f32 %v4697, %v4670
        %v4708 = vadd.f32 %v4698, %v4671
        %v4709 = vadd.f32 %v4697, %v4672
        %v4710 = vadd.f32 %v4698, %v4673
        %v4711 = vadd.f32 %v4697, %v4674
        %v4712 = vadd.f32 %v4698, %v4675
        %v4713 = vadd.f32 %v4697, %v4676
        %v4714 = vadd.f32 %v4698, %v4677
        %v4715 = vadd.f32 %v4697, %v4678
        %v4716 = vadd.f32 %v4698, %v4679
        %v4717 = vadd.f32 %v4697, %v4680
        %v4718 = vadd.f32 %v4698, %v4681
        %v4719 = vadd.f32 %v4697, %v4682
        %v4720 = vadd.f32 %v4698, %v4683
        %v4721 = vadd.f32 %v4697, %v4684
        %v4722 = vadd.f32 %v4698, %v4685
        %v4723 = vadd.f32 %v4697, %v4686
        %v4724 = vadd.f32 %v4698, %v4687
        %v4725 = vadd.f32 %v4697, %v4688
        %v4726 = vadd.f32 %v4698, %v4689
        %v4727 = vadd.f32 %v4697, %v4690
        %v4728 = vadd.f32 %v4698, %v4691
        %v4729 = vadd.f32 %v4697, %v4692
        %v4730 = vadd.f32 %v4698, %v4693
        %v4731 = vadd.f32 %v4697, %v4694
        %v4732 = vadd.f32 %v4698, %v4695
        %v4733 = vmin.f32 %v4701, %v4702
        %4734 = vmin.xlane.f32.xlu0 %v4733
        %v4735 = vpop.xlane.xlu0 %4734
        %v4736 = vmin.f32 %v4703, %v4704
        %4737 = vmin.xlane.f32.xlu0 %v4736
        %v4738 = vpop.xlane.xlu0 %4737
        %v4739 = vmin.f32 %v4705, %v4706
        %4740 = vmin.xlane.f32.xlu0 %v4739
        %v4741 = vpop.xlane.xlu0 %4740
        %v4742 = vmin.f32 %v4707, %v4708
        %4743 = vmin.xlane.f32.xlu0 %v4742
        %v4744 = vpop.xlane.xlu0 %4743
        %v4745 = vmin.f32 %v4709, %v4710
        %4746 = vmin.xlane.f32.xlu0 %v4745
        %v4747 = vpop.xlane.xlu0 %4746
        %v4748 = vmin.f32 %v4711, %v4712
        %4749 = vmin.xlane.f32.xlu0 %v4748
        %v4750 = vpop.xlane.xlu0 %4749
        %v4751 = vmin.f32 %v4713, %v4714
        %4752 = vmin.xlane.f32.xlu0 %v4751
        %v4753 = vpop.xlane.xlu0 %4752
        %v4754 = vmin.f32 %v4715, %v4716
        %4755 = vmin.xlane.f32.xlu0 %v4754
        %v4756 = vpop.xlane.xlu0 %4755
        %v4757 = vmin.f32 %v4717, %v4718
        %4758 = vmin.xlane.f32.xlu0 %v4757
        %v4759 = vpop.xlane.xlu0 %4758
        %v4760 = vmin.f32 %v4719, %v4720
        %4761 = vmin.xlane.f32.xlu0 %v4760
        %v4762 = vpop.xlane.xlu0 %4761
        %v4763 = vmin.f32 %v4721, %v4722
        %4764 = vmin.xlane.f32.xlu0 %v4763
        %v4765 = vpop.xlane.xlu0 %4764
        %v4766 = vmin.f32 %v4723, %v4724
        %4767 = vmin.xlane.f32.xlu0 %v4766
        %v4768 = vpop.xlane.xlu0 %4767
        %v4769 = vmin.f32 %v4725, %v4726
        %4770 = vmin.xlane.f32.xlu0 %v4769
        %v4771 = vpop.xlane.xlu0 %4770
        %v4772 = vmin.f32 %v4727, %v4728
        %4773 = vmin.xlane.f32.xlu0 %v4772
        %v4774 = vpop.xlane.xlu0 %4773
        %v4775 = vmin.f32 %v4729, %v4730
        %4776 = vmin.xlane.f32.xlu0 %v4775
        %v4777 = vpop.xlane.xlu0 %4776
        %v4778 = vmin.f32 %v4731, %v4732
        %4779 = vmin.xlane.f32.xlu0 %v4778
        %v4780 = vpop.xlane.xlu0 %4779
        %vm4781 = vcmask 261368
        %4782 = vst.msk [vmem:[#allocation3] sm:$0xff] %vm4781, %v4735
        %4783 = vst.msk [vmem:[#allocation3 + $0x8] sm:$0xff] %vm4781, %v4738
        %4784 = vst.msk [vmem:[#allocation3 + $0x10] sm:$0xff] %vm4781, %v4741
        %4785 = vst.msk [vmem:[#allocation3 + $0x18] sm:$0xff] %vm4781, %v4744
        %4786 = vst.msk [vmem:[#allocation3 + $0x20] sm:$0xff] %vm4781, %v4747
        %4787 = vst.msk [vmem:[#allocation3 + $0x28] sm:$0xff] %vm4781, %v4750
        %4788 = vst.msk [vmem:[#allocation3 + $0x30] sm:$0xff] %vm4781, %v4753
        %4789 = vst.msk [vmem:[#allocation3 + $0x38] sm:$0xff] %vm4781, %v4756
        %4790 = vst.msk [vmem:[#allocation3 + $0x40] sm:$0xff] %vm4781, %v4759
        %4791 = vst.msk [vmem:[#allocation3 + $0x48] sm:$0xff] %vm4781, %v4762
        %4792 = vst.msk [vmem:[#allocation3 + $0x50] sm:$0xff] %vm4781, %v4765
        %4793 = vst.msk [vmem:[#allocation3 + $0x58] sm:$0xff] %vm4781, %v4768
        %4794 = vst.msk [vmem:[#allocation3 + $0x60] sm:$0xff] %vm4781, %v4771
        %4795 = vst.msk [vmem:[#allocation3 + $0x68] sm:$0xff] %vm4781, %v4774
        %4796 = vst.msk [vmem:[#allocation3 + $0x70] sm:$0xff] %vm4781, %v4777
        %4797 = vst.msk [vmem:[#allocation3 + $0x78] sm:$0xff] %vm4781, %v4780
        %v4798 = vld [vmem:[#allocation2] sm:$0xff]
        %v4799 = vld [vmem:[#allocation2 + $0x8] sm:$0xff]
        %v4800 = vld [vmem:[#allocation2 + $0x10] sm:$0xff]
        %v4801 = vld [vmem:[#allocation2 + $0x18] sm:$0xff]
        %v4802 = vld [vmem:[#allocation2 + $0x20] sm:$0xff]
        %v4803 = vld [vmem:[#allocation2 + $0x28] sm:$0xff]
        %v4804 = vld [vmem:[#allocation2 + $0x30] sm:$0xff]
        %v4805 = vld [vmem:[#allocation2 + $0x38] sm:$0xff]
        %v4806 = vld [vmem:[#allocation2 + $0x40] sm:$0xff]
        %v4807 = vld [vmem:[#allocation2 + $0x48] sm:$0xff]
        %v4808 = vld [vmem:[#allocation2 + $0x50] sm:$0xff]
        %v4809 = vld [vmem:[#allocation2 + $0x58] sm:$0xff]
        %v4810 = vld [vmem:[#allocation2 + $0x60] sm:$0xff]
        %v4811 = vld [vmem:[#allocation2 + $0x68] sm:$0xff]
        %v4812 = vld [vmem:[#allocation2 + $0x70] sm:$0xff]
        %v4813 = vld [vmem:[#allocation2 + $0x78] sm:$0xff]
        %v4814 = vld [vmem:[#allocation2 + $0x80] sm:$0xff]
        %v4815 = vld [vmem:[#allocation2 + $0x88] sm:$0xff]
        %v4816 = vld [vmem:[#allocation2 + $0x90] sm:$0xff]
        %v4817 = vld [vmem:[#allocation2 + $0x98] sm:$0xff]
        %v4818 = vld [vmem:[#allocation2 + $0xa0] sm:$0xff]
        %v4819 = vld [vmem:[#allocation2 + $0xa8] sm:$0xff]
        %v4820 = vld [vmem:[#allocation2 + $0xb0] sm:$0xff]
        %v4821 = vld [vmem:[#allocation2 + $0xb8] sm:$0xff]
        %v4822 = vld [vmem:[#allocation2 + $0xc0] sm:$0xff]
        %v4823 = vld [vmem:[#allocation2 + $0xc8] sm:$0xff]
        %v4824 = vld [vmem:[#allocation2 + $0xd0] sm:$0xff]
        %v4825 = vld [vmem:[#allocation2 + $0xd8] sm:$0xff]
        %v4826 = vld [vmem:[#allocation2 + $0xe0] sm:$0xff]
        %v4827 = vld [vmem:[#allocation2 + $0xe8] sm:$0xff]
        %v4828 = vld [vmem:[#allocation2 + $0xf0] sm:$0xff]
        %v4829 = vld [vmem:[#allocation2 + $0xf8] sm:$0xff]
        %v4830 = vmin.f32 %v4798, %v4799
        %4831 = vmin.xlane.f32.xlu0 %v4830
        %v4832 = vpop.xlane.xlu0 %4831
        %v4833 = vmin.f32 %v4800, %v4801
        %4834 = vmin.xlane.f32.xlu0 %v4833
        %v4835 = vpop.xlane.xlu0 %4834
        %v4836 = vmin.f32 %v4802, %v4803
        %4837 = vmin.xlane.f32.xlu0 %v4836
        %v4838 = vpop.xlane.xlu0 %4837
        %v4839 = vmin.f32 %v4804, %v4805
        %4840 = vmin.xlane.f32.xlu0 %v4839
        %v4841 = vpop.xlane.xlu0 %4840
        %v4842 = vmin.f32 %v4806, %v4807
        %4843 = vmin.xlane.f32.xlu0 %v4842
        %v4844 = vpop.xlane.xlu0 %4843
        %v4845 = vmin.f32 %v4808, %v4809
        %4846 = vmin.xlane.f32.xlu0 %v4845
        %v4847 = vpop.xlane.xlu0 %4846
        %v4848 = vmin.f32 %v4810, %v4811
        %4849 = vmin.xlane.f32.xlu0 %v4848
        %v4850 = vpop.xlane.xlu0 %4849
        %v4851 = vmin.f32 %v4812, %v4813
        %4852 = vmin.xlane.f32.xlu0 %v4851
        %v4853 = vpop.xlane.xlu0 %4852
        %v4854 = vmin.f32 %v4814, %v4815
        %4855 = vmin.xlane.f32.xlu0 %v4854
        %v4856 = vpop.xlane.xlu0 %4855
        %v4857 = vmin.f32 %v4816, %v4817
        %4858 = vmin.xlane.f32.xlu0 %v4857
        %v4859 = vpop.xlane.xlu0 %4858
        %v4860 = vmin.f32 %v4818, %v4819
        %4861 = vmin.xlane.f32.xlu0 %v4860
        %v4862 = vpop.xlane.xlu0 %4861
        %v4863 = vmin.f32 %v4820, %v4821
        %4864 = vmin.xlane.f32.xlu0 %v4863
        %v4865 = vpop.xlane.xlu0 %4864
        %v4866 = vmin.f32 %v4822, %v4823
        %4867 = vmin.xlane.f32.xlu0 %v4866
        %v4868 = vpop.xlane.xlu0 %4867
        %v4869 = vmin.f32 %v4824, %v4825
        %4870 = vmin.xlane.f32.xlu0 %v4869
        %v4871 = vpop.xlane.xlu0 %4870
        %v4872 = vmin.f32 %v4826, %v4827
        %4873 = vmin.xlane.f32.xlu0 %v4872
        %v4874 = vpop.xlane.xlu0 %4873
        %v4875 = vmin.f32 %v4828, %v4829
        %4876 = vmin.xlane.f32.xlu0 %v4875
        %v4877 = vpop.xlane.xlu0 %4876
        %vm4878 = vcmp.lt.f32.partialorder %v4832, 1e+30
        %vm4879 = vcmp.lt.f32.partialorder %v4835, 1e+30
        %vm4880 = vcmp.lt.f32.partialorder %v4838, 1e+30
        %vm4881 = vcmp.lt.f32.partialorder %v4841, 1e+30
        %vm4882 = vcmp.lt.f32.partialorder %v4844, 1e+30
        %vm4883 = vcmp.lt.f32.partialorder %v4847, 1e+30
        %vm4884 = vcmp.lt.f32.partialorder %v4850, 1e+30
        %vm4885 = vcmp.lt.f32.partialorder %v4853, 1e+30
        %vm4886 = vcmp.lt.f32.partialorder %v4856, 1e+30
        %vm4887 = vcmp.lt.f32.partialorder %v4859, 1e+30
        %vm4888 = vcmp.lt.f32.partialorder %v4862, 1e+30
        %vm4889 = vcmp.lt.f32.partialorder %v4865, 1e+30
        %vm4890 = vcmp.lt.f32.partialorder %v4868, 1e+30
        %vm4891 = vcmp.lt.f32.partialorder %v4871, 1e+30
        %vm4892 = vcmp.lt.f32.partialorder %v4874, 1e+30
        %vm4893 = vcmp.lt.f32.partialorder %v4877, 1e+30
        %v4894 = vld [vmem:[%s268] sm:$0xff]
        %v4895 = vld [vmem:[%s268 + $0x8] sm:$0xff]
        %v4896 = vld [vmem:[%s268 + $0x10] sm:$0xff]
        %v4897 = vld [vmem:[%s268 + $0x18] sm:$0xff]
        %v4898 = vld [vmem:[%s268 + $0x20] sm:$0xff]
        %v4899 = vld [vmem:[%s268 + $0x28] sm:$0xff]
        %v4900 = vld [vmem:[%s268 + $0x30] sm:$0xff]
        %v4901 = vld [vmem:[%s268 + $0x38] sm:$0xff]
        %v4902 = vld [vmem:[%s268 + $0x40] sm:$0xff]
        %v4903 = vld [vmem:[%s268 + $0x48] sm:$0xff]
        %v4904 = vld [vmem:[%s268 + $0x50] sm:$0xff]
        %v4905 = vld [vmem:[%s268 + $0x58] sm:$0xff]
        %v4906 = vld [vmem:[%s268 + $0x60] sm:$0xff]
        %v4907 = vld [vmem:[%s268 + $0x68] sm:$0xff]
        %v4908 = vld [vmem:[%s268 + $0x70] sm:$0xff]
        %v4909 = vld [vmem:[%s268 + $0x78] sm:$0xff]
        %v4910 = vld [vmem:[#allocation3] sm:$0xff]
        %v4911 = vld [vmem:[#allocation3 + $0x8] sm:$0xff]
        %v4912 = vld [vmem:[#allocation3 + $0x10] sm:$0xff]
        %v4913 = vld [vmem:[#allocation3 + $0x18] sm:$0xff]
        %v4914 = vld [vmem:[#allocation3 + $0x20] sm:$0xff]
        %v4915 = vld [vmem:[#allocation3 + $0x28] sm:$0xff]
        %v4916 = vld [vmem:[#allocation3 + $0x30] sm:$0xff]
        %v4917 = vld [vmem:[#allocation3 + $0x38] sm:$0xff]
        %v4918 = vld [vmem:[#allocation3 + $0x40] sm:$0xff]
        %v4919 = vld [vmem:[#allocation3 + $0x48] sm:$0xff]
        %v4920 = vld [vmem:[#allocation3 + $0x50] sm:$0xff]
        %v4921 = vld [vmem:[#allocation3 + $0x58] sm:$0xff]
        %v4922 = vld [vmem:[#allocation3 + $0x60] sm:$0xff]
        %v4923 = vld [vmem:[#allocation3 + $0x68] sm:$0xff]
        %v4924 = vld [vmem:[#allocation3 + $0x70] sm:$0xff]
        %v4925 = vld [vmem:[#allocation3 + $0x78] sm:$0xff]
        %v4926 = vsub.f32 %v4894, %v4910
        %v4927 = vsub.f32 %v4895, %v4911
        %v4928 = vsub.f32 %v4896, %v4912
        %v4929 = vsub.f32 %v4897, %v4913
        %v4930 = vsub.f32 %v4898, %v4914
        %v4931 = vsub.f32 %v4899, %v4915
        %v4932 = vsub.f32 %v4900, %v4916
        %v4933 = vsub.f32 %v4901, %v4917
        %v4934 = vsub.f32 %v4902, %v4918
        %v4935 = vsub.f32 %v4903, %v4919
        %v4936 = vsub.f32 %v4904, %v4920
        %v4937 = vsub.f32 %v4905, %v4921
        %v4938 = vsub.f32 %v4906, %v4922
        %v4939 = vsub.f32 %v4907, %v4923
        %v4940 = vsub.f32 %v4908, %v4924
        %v4941 = vsub.f32 %v4909, %v4925
        %v4942 = vsel %vm4878, 1, 0
        %v4943 = vsel %vm4879, 1, 0
        %v4944 = vsel %vm4880, 1, 0
        %v4945 = vsel %vm4881, 1, 0
        %v4946 = vsel %vm4882, 1, 0
        %v4947 = vsel %vm4883, 1, 0
        %v4948 = vsel %vm4884, 1, 0
        %v4949 = vsel %vm4885, 1, 0
        %v4950 = vsel %vm4886, 1, 0
        %v4951 = vsel %vm4887, 1, 0
        %v4952 = vsel %vm4888, 1, 0
        %v4953 = vsel %vm4889, 1, 0
        %v4954 = vsel %vm4890, 1, 0
        %v4955 = vsel %vm4891, 1, 0
        %v4956 = vsel %vm4892, 1, 0
        %v4957 = vsel %vm4893, 1, 0
        %vm4958 = vcmp.eq.s32.totalorder %v4942, 1
        %vm4959 = vcmp.eq.s32.totalorder %v4943, 1
        %vm4960 = vcmp.eq.s32.totalorder %v4944, 1
        %vm4961 = vcmp.eq.s32.totalorder %v4945, 1
        %vm4962 = vcmp.eq.s32.totalorder %v4946, 1
        %vm4963 = vcmp.eq.s32.totalorder %v4947, 1
        %vm4964 = vcmp.eq.s32.totalorder %v4948, 1
        %vm4965 = vcmp.eq.s32.totalorder %v4949, 1
        %vm4966 = vcmp.eq.s32.totalorder %v4950, 1
        %vm4967 = vcmp.eq.s32.totalorder %v4951, 1
        %vm4968 = vcmp.eq.s32.totalorder %v4952, 1
        %vm4969 = vcmp.eq.s32.totalorder %v4953, 1
        %vm4970 = vcmp.eq.s32.totalorder %v4954, 1
        %vm4971 = vcmp.eq.s32.totalorder %v4955, 1
        %vm4972 = vcmp.eq.s32.totalorder %v4956, 1
        %vm4973 = vcmp.eq.s32.totalorder %v4957, 1
        %v4974 = vsel %vm4958, %v4926, 0.0
        %v4975 = vsel %vm4959, %v4927, 0.0
        %v4976 = vsel %vm4960, %v4928, 0.0
        %v4977 = vsel %vm4961, %v4929, 0.0
        %v4978 = vsel %vm4962, %v4930, 0.0
        %v4979 = vsel %vm4963, %v4931, 0.0
        %v4980 = vsel %vm4964, %v4932, 0.0
        %v4981 = vsel %vm4965, %v4933, 0.0
        %v4982 = vsel %vm4966, %v4934, 0.0
        %v4983 = vsel %vm4967, %v4935, 0.0
        %v4984 = vsel %vm4968, %v4936, 0.0
        %v4985 = vsel %vm4969, %v4937, 0.0
        %v4986 = vsel %vm4970, %v4938, 0.0
        %v4987 = vsel %vm4971, %v4939, 0.0
        %v4988 = vsel %vm4972, %v4940, 0.0
        %v4989 = vsel %vm4973, %v4941, 0.0
        %v4990 = vpack.c.bf16 %v4895, %v4894
        %v4991 = vpack.c.bf16 %v4897, %v4896
        %v4992 = vpack.c.bf16 %v4899, %v4898
        %v4993 = vpack.c.bf16 %v4901, %v4900
        %v4994 = vpack.c.bf16 %v4903, %v4902
        %v4995 = vpack.c.bf16 %v4905, %v4904
        %v4996 = vpack.c.bf16 %v4907, %v4906
        %v4997 = vpack.c.bf16 %v4909, %v4908
        %v4998 = vld [vmem:[%s3] sm:$0xf]
        %v4999 = vld [vmem:[%s3 + $0x4] sm:$0xf]
        %v5000 = vld [vmem:[%s3 + $0x8] sm:$0xf]
        %v5001 = vld [vmem:[%s3 + $0xc] sm:$0xf]
        %v5002 = vpack.c.bf16 %v4975, %v4974
        %v5003 = vpack.c.bf16 %v4977, %v4976
        %v5004 = vpack.c.bf16 %v4979, %v4978
        %v5005 = vpack.c.bf16 %v4981, %v4980
        %v5006 = vpack.c.bf16 %v4983, %v4982
        %v5007 = vpack.c.bf16 %v4985, %v4984
        %v5008 = vpack.c.bf16 %v4987, %v4986
        %v5009 = vpack.c.bf16 %v4989, %v4988
        %v5010 = vld [vmem:[%s4] sm:$0xf]
        %v5011 = vld [vmem:[%s4 + $0x4] sm:$0xf]
        %v5012 = vld [vmem:[%s4 + $0x8] sm:$0xf]
        %v5013 = vld [vmem:[%s4 + $0xc] sm:$0xf]
        %v5018 = vunpack.c.l.b16 %v5010
        %v5019 = vunpack.c.l.b16 %v5011
        %v5020 = vunpack.c.l.b16 %v5012
        %v5021 = vunpack.c.l.b16 %v5013
        %v5022 = vpack.c.b16 %v5019, %v5018
        %v5023 = vpack.c.b16 %v5021, %v5020
        %vm5026 = vcmask 261120
        %v5028 = vsel %vm5026, %v5002, 0
        %v5031 = vsel %vm5026, %v5003, 0
        %v5034 = vsel %vm5026, %v5004, 0
        %v5037 = vsel %vm5026, %v5005, 0
        %v5040 = vsel %vm5026, %v5006, 0
        %v5043 = vsel %vm5026, %v5007, 0
        %v5046 = vsel %vm5026, %v5008, 0
        %v5049 = vsel %vm5026, %v5009, 0
        %5051 = vmatpush.bf16.msra.mxu0 0
        %5052 = vmatpush.bf16.msra.mxu0 0
        %5053 = vmatpush.bf16.msra.mxu0 0
        %5054 = vmatpush.bf16.msra.mxu0 0
        %5055 = vmatpush.bf16.msra.mxu0 0
        %5056 = vmatpush.bf16.msra.mxu0 0
        %5057 = vmatpush.bf16.msra.mxu0 %v5023
        %5058 = vmatpush.bf16.msra.mxu0 %v5022
        %5059 = vmatmul.bf16.gmra.mxu0 %v5028
        %v5060 = vpop.f32.mrf.mxu0
        %v5061 = vadd.f32 0.0, %v5060
        %v5062 = vpop.f32.mrf.mxu0
        %v5063 = vadd.f32 0.0, %v5062
        %5064 = vmatmul.bf16.gmra.mxu0 %v5031
        %v5065 = vpop.f32.mrf.mxu0
        %v5066 = vadd.f32 0.0, %v5065
        %v5067 = vpop.f32.mrf.mxu0
        %v5068 = vadd.f32 0.0, %v5067
        %5069 = vmatmul.bf16.gmra.mxu0 %v5034
        %v5070 = vpop.f32.mrf.mxu0
        %v5071 = vadd.f32 0.0, %v5070
        %v5072 = vpop.f32.mrf.mxu0
        %v5073 = vadd.f32 0.0, %v5072
        %5074 = vmatmul.bf16.gmra.mxu0 %v5037
        %v5075 = vpop.f32.mrf.mxu0
        %v5076 = vadd.f32 0.0, %v5075
        %v5077 = vpop.f32.mrf.mxu0
        %v5078 = vadd.f32 0.0, %v5077
        %5079 = vmatmul.bf16.gmra.mxu0 %v5040
        %v5080 = vpop.f32.mrf.mxu0
        %v5081 = vadd.f32 0.0, %v5080
        %v5082 = vpop.f32.mrf.mxu0
        %v5083 = vadd.f32 0.0, %v5082
        %5084 = vmatmul.bf16.gmra.mxu0 %v5043
        %v5085 = vpop.f32.mrf.mxu0
        %v5086 = vadd.f32 0.0, %v5085
        %v5087 = vpop.f32.mrf.mxu0
        %v5088 = vadd.f32 0.0, %v5087
        %5089 = vmatmul.bf16.gmra.mxu0 %v5046
        %v5090 = vpop.f32.mrf.mxu0
        %v5091 = vadd.f32 0.0, %v5090
        %v5092 = vpop.f32.mrf.mxu0
        %v5093 = vadd.f32 0.0, %v5092
        %5094 = vmatmul.bf16.gmra.mxu0 %v5049
        %v5095 = vpop.f32.mrf.mxu0
        %v5096 = vadd.f32 0.0, %v5095
        %v5097 = vpop.f32.mrf.mxu0
        %v5098 = vadd.f32 0.0, %v5097
        %5099 = vdwg.mxu0
        %v5104 = vunpack.c.l.b16 %v4998
        %v5105 = vunpack.c.l.b16 %v4999
        %v5106 = vunpack.c.l.b16 %v5000
        %v5107 = vunpack.c.l.b16 %v5001
        %v5108 = vpack.c.b16 %v5105, %v5104
        %v5109 = vpack.c.b16 %v5107, %v5106
        %v5113 = vsel %vm5026, %v4990, 0
        %v5116 = vsel %vm5026, %v4991, 0
        %v5119 = vsel %vm5026, %v4992, 0
        %v5122 = vsel %vm5026, %v4993, 0
        %v5125 = vsel %vm5026, %v4994, 0
        %v5128 = vsel %vm5026, %v4995, 0
        %v5131 = vsel %vm5026, %v4996, 0
        %v5134 = vsel %vm5026, %v4997, 0
        %5136 = vmatpush.bf16.msra.mxu0 0
        %5137 = vmatpush.bf16.msra.mxu0 0
        %5138 = vmatpush.bf16.msra.mxu0 0
        %5139 = vmatpush.bf16.msra.mxu0 0
        %5140 = vmatpush.bf16.msra.mxu0 0
        %5141 = vmatpush.bf16.msra.mxu0 0
        %5142 = vmatpush.bf16.msra.mxu0 %v5109
        %5143 = vmatpush.bf16.msra.mxu0 %v5108
        %5144 = vmatmul.bf16.gmra.mxu0 %v5113
        %v5145 = vpop.f32.mrf.mxu0
        %v5146 = vadd.f32 %v5061, %v5145
        %v5147 = vpop.f32.mrf.mxu0
        %v5148 = vadd.f32 %v5063, %v5147
        %5149 = vmatmul.bf16.gmra.mxu0 %v5116
        %v5150 = vpop.f32.mrf.mxu0
        %v5151 = vadd.f32 %v5066, %v5150
        %v5152 = vpop.f32.mrf.mxu0
        %v5153 = vadd.f32 %v5068, %v5152
        %5154 = vmatmul.bf16.gmra.mxu0 %v5119
        %v5155 = vpop.f32.mrf.mxu0
        %v5156 = vadd.f32 %v5071, %v5155
        %v5157 = vpop.f32.mrf.mxu0
        %v5158 = vadd.f32 %v5073, %v5157
        %5159 = vmatmul.bf16.gmra.mxu0 %v5122
        %v5160 = vpop.f32.mrf.mxu0
        %v5161 = vadd.f32 %v5076, %v5160
        %v5162 = vpop.f32.mrf.mxu0
        %v5163 = vadd.f32 %v5078, %v5162
        %5164 = vmatmul.bf16.gmra.mxu0 %v5125
        %v5165 = vpop.f32.mrf.mxu0
        %v5166 = vadd.f32 %v5081, %v5165
        %v5167 = vpop.f32.mrf.mxu0
        %v5168 = vadd.f32 %v5083, %v5167
        %5169 = vmatmul.bf16.gmra.mxu0 %v5128
        %v5170 = vpop.f32.mrf.mxu0
        %v5171 = vadd.f32 %v5086, %v5170
        %v5172 = vpop.f32.mrf.mxu0
        %v5173 = vadd.f32 %v5088, %v5172
        %5174 = vmatmul.bf16.gmra.mxu0 %v5131
        %v5175 = vpop.f32.mrf.mxu0
        %v5176 = vadd.f32 %v5091, %v5175
        %v5177 = vpop.f32.mrf.mxu0
        %v5178 = vadd.f32 %v5093, %v5177
        %5179 = vmatmul.bf16.gmra.mxu0 %v5134
        %v5180 = vpop.f32.mrf.mxu0
        %v5181 = vadd.f32 %v5096, %v5180
        %v5182 = vpop.f32.mrf.mxu0
        %v5183 = vadd.f32 %v5098, %v5182
        %5184 = vdwg.mxu0
        %v5185 = vld [vmem:[%s5] sm:$0x1]
        %v5187 = vperm.slane %v5185, 0
        %v5189 = vadd.f32 %v5146, %v5187
        %v5190 = vadd.f32 %v5148, %v5187
        %v5191 = vadd.f32 %v5151, %v5187
        %v5192 = vadd.f32 %v5153, %v5187
        %v5193 = vadd.f32 %v5156, %v5187
        %v5194 = vadd.f32 %v5158, %v5187
        %v5195 = vadd.f32 %v5161, %v5187
        %v5196 = vadd.f32 %v5163, %v5187
        %v5197 = vadd.f32 %v5166, %v5187
        %v5198 = vadd.f32 %v5168, %v5187
        %v5199 = vadd.f32 %v5171, %v5187
        %v5200 = vadd.f32 %v5173, %v5187
        %v5201 = vadd.f32 %v5176, %v5187
        %v5202 = vadd.f32 %v5178, %v5187
        %v5203 = vadd.f32 %v5181, %v5187
        %v5204 = vadd.f32 %v5183, %v5187
        %v5205 = vmax.f32 %v5189, 0.0
        %v5206 = vmax.f32 %v5190, 0.0
        %v5207 = vmax.f32 %v5191, 0.0
        %v5208 = vmax.f32 %v5192, 0.0
        %v5209 = vmax.f32 %v5193, 0.0
        %v5210 = vmax.f32 %v5194, 0.0
        %v5211 = vmax.f32 %v5195, 0.0
        %v5212 = vmax.f32 %v5196, 0.0
        %v5213 = vmax.f32 %v5197, 0.0
        %v5214 = vmax.f32 %v5198, 0.0
        %v5215 = vmax.f32 %v5199, 0.0
        %v5216 = vmax.f32 %v5200, 0.0
        %v5217 = vmax.f32 %v5201, 0.0
        %v5218 = vmax.f32 %v5202, 0.0
        %v5219 = vmax.f32 %v5203, 0.0
        %v5220 = vmax.f32 %v5204, 0.0
        %5221 = vst [vmem:[%s263] sm:$0xff] %v5205
        %5222 = vst [vmem:[%s263 + $0x8] sm:$0xff] %v5206
        %5223 = vst [vmem:[%s263 + $0x10] sm:$0xff] %v5207
        %5224 = vst [vmem:[%s263 + $0x18] sm:$0xff] %v5208
        %5225 = vst [vmem:[%s263 + $0x20] sm:$0xff] %v5209
        %5226 = vst [vmem:[%s263 + $0x28] sm:$0xff] %v5210
        %5227 = vst [vmem:[%s263 + $0x30] sm:$0xff] %v5211
        %5228 = vst [vmem:[%s263 + $0x38] sm:$0xff] %v5212
        %5229 = vst [vmem:[%s263 + $0x40] sm:$0xff] %v5213
        %5230 = vst [vmem:[%s263 + $0x48] sm:$0xff] %v5214
        %5231 = vst [vmem:[%s263 + $0x50] sm:$0xff] %v5215
        %5232 = vst [vmem:[%s263 + $0x58] sm:$0xff] %v5216
        %5233 = vst [vmem:[%s263 + $0x60] sm:$0xff] %v5217
        %5234 = vst [vmem:[%s263 + $0x68] sm:$0xff] %v5218
        %5235 = vst [vmem:[%s263 + $0x70] sm:$0xff] %v5219
        %5236 = vst [vmem:[%s263 + $0x78] sm:$0xff] %v5220
        %s5237 = sand.u32 %s164, 1
        %s5238 = scalar_lea.sflag [#allocation5], %s5237
        %s5239 = sand.u32 %s164, 1
        %s5240 = smul.addr %s5239, 128
        %s5241 = scalar_lea.vmem [#allocation4], %s5240
        // Predicated region
        $region45: #{tpu_custom_call.1} parent=43 // pred_check
          %p5242 = pneg %p174
        $region46: #{tpu_custom_call.1} parent=43 // pred_check_branch
          %5244 = sbr.rel (%p5242) target = $region48
        $region47: #{tpu_custom_call.1} parent=43 // pred_region
          %s5245 = smul.u32 16, %s20
          %5247 = vsyncadd %s5238, 0
          %s5248 = smul.addr %s5245, 8
          %s5249 = scalar_lea.hbm %s6, %s5248
          %s5250 = sshll.u32 %s5241, 4
          %s5251 = int_to_ptr.vmem [resolvable:$true] %s5250
          %s5252 = sshll.u32 %s5249, 4
          %s5253 = int_to_ptr.hbm [resolvable:$true] %s5252
          %5258 = dma.vmem_to_hbm [thread:$0]  %s5251, 2048, %s5253, %s5238, 128, 128, 8
        $region48: #{tpu_custom_call.1} parent=43 // pred_fallthru
          _
      $region44: #{tpu_custom_call.1} parent=5 // pred_fallthru
        _
      %p5259 = scmp.le.s32.totalorder 2, %s15
      // Predicated region
      $region49: #{tpu_custom_call.1} parent=5 // pred_check
        %p5260 = pneg %p5259
      $region50: #{tpu_custom_call.1} parent=5 // pred_check_branch
        %5262 = sbr.rel (%p5260) target = $region52
      $region51: #{tpu_custom_call.1} parent=5 // pred_region
        %s5263 = ssub.s32 %s15, 2
        // Predicated region
        $region53: #{tpu_custom_call.1} parent=51 // pred_check
          %p5264 = pneg %p180
        $region54: #{tpu_custom_call.1} parent=51 // pred_check_branch
          %5266 = sbr.rel (%p5264) target = $region56
        $region55: #{tpu_custom_call.1} parent=51 // pred_region
          %s5267 = sand.u32 %s165, 1
          %s5268 = scalar_lea.sflag [#allocation5], %s5267
          %s5269 = sand.u32 %s165, 1
          %s5270 = smul.addr %s5269, 128
          %s5271 = scalar_lea.vmem [#allocation4], %s5270
          %5273 = dma.done %s5268, 2048
        $region56: #{tpu_custom_call.1} parent=51 // pred_fallthru
          _
      $region52: #{tpu_custom_call.1} parent=5 // pred_fallthru
        _
    $region6: #{tpu_custom_call.1} parent=1 // loop_footer
      %s19 = sadd.s32 1, %s15
    $region7: #{tpu_custom_call.1} parent=1 // loop_footer_branch
      %14 = sbr.rel target = $region3
    $region8: #{tpu_custom_call.1} parent=1 // loop_exit
      _
    %5274 = vsyncpa [#allocation5], 1
    %s5275 = scalar_lea.sflag [#allocation5], 1
    %5276 = vsyncpa %s5275, 1

</llo_original>
